<compile_context>
chip_gen: v7x
topology: tpu7x:2x2x1
jax: 0.10.0
libtpu: 0.0.40
codegen_flags: <defaults>
</compile_context>

<pallas_src>
import functools
import math

import jax
import jax.numpy as jnp
from jax.experimental import pallas as pl
from jax.experimental.pallas import tpu as pltpu


# ConvTranspose2d(k=4, s=2, p=1) sub-pixel taps: output row 2t + a is
# sum over (di, kh) of input[t + di] * W[..., kh, :].
_CT_TAPS = (((-1, 3), (0, 1)),   # a == 0 : (di, kh)
            ((0, 2), (1, 0)))    # a == 1

# Conv2d(k=4, s=2, p=1): kernel row kh reads input row 2*i - 1 + kh, which is
# input-parity grid p at row i + di.
_S2_ROWMAP = ((1, -1), (0, 0), (1, 0), (0, 1))   # kh -> (parity p, offset di)


# ============================================================================
# Fused kernel (one batch tile per grid step)
# ============================================================================
def _vqvae_kernel(p0_ref, edge_ref,
                  w0, b0, w1, b1, w2, b2,
                  wr1a, br1a, wr1b, br1b, wr2a, br2a, wr2b, br2b,
                  emb_ref, emb_sq_ref,
                  wd0, bd0, wdr1a, bdr1a, wdr1b, bdr1b, wdr2a, bdr2a, wdr2b,
                  bdr2b, wt0, bt0, wt1, bt1,
                  ze_ref, zq_ref, y_ref, *, S, Bt, dim):
    M = S * S
    BM = Bt * M
    P = S + 1                                     # row padding for tap slices

    # ---- hoisted per-image boundary masks (bf16 0/1, shape (BM, 1)) --------
    em = edge_ref[...]
    r_m = {-1: em[:, 0:1], 0: None, 1: em[:, 1:2]}
    c_m = {-1: em[:, 2:3], 0: None, 1: em[:, 3:4]}
    mask9 = {}
    for di in (-1, 0, 1):
        for dj in (-1, 0, 1):
            a, b = r_m[di], c_m[dj]
            mask9[(di, dj)] = a if b is None else (b if a is None else a * b)

    def padded(h):                                # (BM, C) -> (BM + 2P, C)
        z = jnp.zeros((P, h.shape[-1]), h.dtype)
        return jnp.concatenate([z, h, z], axis=0)

    def tap(hp, di, dj, lo=None, hi=None):
        """Shifted (di, dj) view of a padded, batch-stacked image (masked)."""
        s = P + di * S + dj
        t = hp[s:s + BM, :] if lo is None else hp[s:s + BM, lo:hi]
        m = mask9[(di, dj)]
        return t if m is None else t * m

    def cat9(h_bf16):                             # (BM, C) -> (BM, 9*C)
        hp = padded(h_bf16)
        return jnp.concatenate(
            [tap(hp, di, dj) for di in (-1, 0, 1) for dj in (-1, 0, 1)],
            axis=-1)

    def mm(a_bf16, w_ref, b_ref):                 # bf16 MXU, f32 accumulation
        return (jnp.dot(a_bf16, w_ref[...],
                        preferred_element_type=jnp.float32) + b_ref[...])

    def conv3x3(h_f32, w_ref, b_ref):
        return mm(cat9(h_f32.astype(jnp.bfloat16)), w_ref, b_ref)

    def resblock(x_f32, wa, ba, wb, bb):
        t = jnp.maximum(x_f32.astype(jnp.bfloat16), 0)        # ReLU
        t = mm(cat9(t), wa, ba)                               # Conv 3x3
        t = jnp.maximum(t, 0.0).astype(jnp.bfloat16)          # ReLU
        return x_f32 + mm(t, wb, bb)                          # Conv 1x1 + skip

    # ============================ encoder ============================
    # Conv(cin, dim, 4, 2, 1) + ReLU as one GEMM on pre-gathered patches whose
    # rows are grouped by output parity (stride-2 reads become stride-1 below).
    h0 = jnp.maximum(mm(p0_ref[0], w0, b0), 0.0).astype(jnp.bfloat16)

    # Conv(dim, dim, 4, 2, 1) + ReLU: single matmul on a 16-tap concat (K=16*dim).
    pads4 = [padded(h0[g * BM:(g + 1) * BM, :]) for g in range(4)]
    cols = []
    for kh in range(4):
        pr, di = _S2_ROWMAP[kh]
        for kw in range(4):
            pc, dj = _S2_ROWMAP[kw]
            cols.append(tap(pads4[pr * 2 + pc], di, dj))
    h1 = jnp.maximum(mm(jnp.concatenate(cols, axis=-1), w1, b1), 0.0)

    # Conv(dim, dim, 3, 1, 1) + two residual blocks.
    h2 = conv3x3(h1, w2, b2)
    h2 = resblock(h2, wr1a, br1a, wr1b, br1b)
    ze = resblock(h2, wr2a, br2a, wr2b, br2b)                 # (BM, dim) f32

    # ======================= vector quantization ======================
    emb = emb_ref[...]
    dist = emb_sq_ref[...] - 2.0 * jax.lax.dot_general(
        ze.astype(jnp.bfloat16), emb.astype(jnp.bfloat16),
        (((1,), (1,)), ((), ())), preferred_element_type=jnp.float32)
    K = dist.shape[-1]
    iota_k = jax.lax.broadcasted_iota(jnp.int32, dist.shape, 1)
    dmin = jnp.min(dist, axis=1, keepdims=True)
    nn = jnp.min(jnp.where(dist == dmin, iota_k, K), axis=1, keepdims=True)
    onehot = (iota_k == nn).astype(jnp.float32)
    zq = jnp.dot(onehot, emb, preferred_element_type=jnp.float32)

    ze_ref[...] = ze.reshape(Bt, M, dim)
    zq_ref[...] = zq.reshape(Bt, M, dim)

    # ============================ decoder ============================
    # Forward value of ze + stop_gradient(zq - ze) is exactly zq.
    d0 = conv3x3(zq, wd0, bd0)
    d0 = resblock(d0, wdr1a, bdr1a, wdr1b, bdr1b)
    d0 = resblock(d0, wdr2a, bdr2a, wdr2b, bdr2b)

    # ConvTranspose(dim, dim, 4, 2, 1) + ReLU: all 4 output parities from ONE
    # matmul against the zero-padded sub-pixel weight (K=9*dim, N=4*dim).
    u = jnp.maximum(mm(cat9(d0.astype(jnp.bfloat16)), wt0, bt0), 0.0)
    u = u.astype(jnp.bfloat16)                                # (BM, 4*dim)

    # ConvTranspose(dim, cin, 4, 2, 1) evaluated directly on the parity grids
    # of `u` (columns g*dim:(g+1)*dim hold parity g = a'*2 + b'); one matmul
    # per input parity (a, b) emits the 4 output sub-parities (a2, b2) at once.
    up = padded(u)
    memo = {}

    def ct_tap(a_, b_, dq, dr):
        key = (a_, b_, dq, dr)
        if key not in memo:
            g = a_ * 2 + b_
            memo[key] = tap(up, dq, dr, lo=g * dim, hi=(g + 1) * dim)
        return memo[key]

    blocks = []
    for a in (0, 1):
        for b in (0, 1):
            taps = []
            for dI in (-1, 0, 1):
                a_, dq = (a + dI) % 2, (a + dI) // 2
                for dJ in (-1, 0, 1):
                    b_, dr = (b + dJ) % 2, (b + dJ) // 2
                    taps.append(ct_tap(a_, b_, dq, dr))
            blocks.append(mm(jnp.concatenate(taps, axis=-1), wt1, bt1))
    y = jnp.concatenate(blocks, axis=-1)                      # (BM, 16*cin)
    y_ref[...] = y.reshape(Bt, M, y.shape[-1])                # one wide store


# ============================================================================
# Weight packing (XLA, once per call)
# ============================================================================
def _pack_conv_taps(w):
    """Conv2d (O, C, kh, kw) -> (kh*kw*C, O); row block t = kh*KW + kw."""
    o, c, kh, kw = w.shape
    return jnp.transpose(w, (2, 3, 1, 0)).reshape(kh * kw * c, o).astype(jnp.bfloat16)


def _pack_conv_gemm(w):
    """Conv2d (O, C, k, k) -> (C*k*k, O) for the pre-gathered-patch GEMM."""
    return w.reshape(w.shape[0], -1).T.astype(jnp.bfloat16)


def _pack_conv1x1(w):
    return w.reshape(w.shape[0], w.shape[1]).T.astype(jnp.bfloat16)


def _pack_convt_subpixel(w):
    """ConvTranspose2d (I, O, 4, 4) -> zero-padded sub-pixel weight (9*I, 4*O).

    Row block t = (di+1)*3 + (dj+1) matches the kernel's 9-tap concat; column
    block g = a*2 + b is the output parity; block (t, g) holds W[:, :, kh, kw]
    iff (di, kh) in _CT_TAPS[a] and (dj, kw) in _CT_TAPS[b], else zeros.
    """
    i, o = w.shape[0], w.shape[1]
    out = jnp.zeros((9 * i, 4 * o), jnp.float32)
    for a in range(2):
        for b in range(2):
            g = a * 2 + b
            for di, kh in _CT_TAPS[a]:
                for dj, kw in _CT_TAPS[b]:
                    t = (di + 1) * 3 + (dj + 1)
                    out = out.at[t * i:(t + 1) * i, g * o:(g + 1) * o].set(
                        w[:, :, kh, kw])
    return out.astype(jnp.bfloat16)


def _bias(b):
    return b.reshape(1, -1).astype(jnp.float32)


def _bias4(b):
    return jnp.tile(b.reshape(1, -1), (1, 4)).astype(jnp.float32)


# ============================================================================
# XLA-side layout prep
# ============================================================================
def _first_conv_patches(x, S):
    """im2col for Conv(k=4, s=2, p=1) at output resolution 2S, rows grouped by
    output-pixel parity: (N, 4, S*S, C*16)."""
    # TODO(synk): first-layer patch gather stays in XLA; an in-kernel version
    # would need a two-level parity decomposition of the raw input.
    n, h, _, c = x.shape
    xp = jnp.pad(x, ((0, 0), (1, 1), (1, 1), (0, 0)))
    ho = h // 2
    cols = [xp[:, kh:kh + 2 * ho - 1:2, kw:kw + 2 * ho - 1:2, :]
            for kh in range(4) for kw in range(4)]
    p = jnp.stack(cols, axis=-1).reshape(n, ho, ho, c * 16)   # feat = c*16+kh*4+kw
    p = p.reshape(n, S, 2, S, 2, c * 16)                      # (n, i, a, j, b, F)
    p = jnp.transpose(p, (0, 2, 4, 1, 3, 5))                  # (n, a, b, i, j, F)
    return p.reshape(n, 4, S * S, c * 16)


def _edge_masks(S, Bt):
    """(Bt*S*S, 4) bf16 0/1: [row_ok(-1), row_ok(+1), col_ok(-1), col_ok(+1)]."""
    ii = jnp.tile(jnp.repeat(jnp.arange(S), S), Bt)
    jj = jnp.tile(jnp.arange(S), Bt * S)
    return jnp.stack([ii >= 1, ii <= S - 2, jj >= 1, jj <= S - 2],
                     axis=1).astype(jnp.bfloat16)


# ============================================================================
# Parameters (PyTorch-style init and layouts)
# ============================================================================
def _conv_params(key, o, i, k):
    kw_, kb = jax.random.split(key)
    bound = 1.0 / (i * k * k) ** 0.5
    return {"w": jax.random.uniform(kw_, (o, i, k, k), jnp.float32, -bound, bound),
            "b": jax.random.uniform(kb, (o,), jnp.float32, -bound, bound)}


def _convt_params(key, i, o, k):
    kw_, kb = jax.random.split(key)
    bound = 1.0 / (i * k * k) ** 0.5
    return {"w": jax.random.uniform(kw_, (i, o, k, k), jnp.float32, -bound, bound),
            "b": jax.random.uniform(kb, (o,), jnp.float32, -bound, bound)}


def init_params(key, input_dim, dim, n_embedding):
    ks = jax.random.split(key, 16)
    return {
        "enc0": _conv_params(ks[0], dim, input_dim, 4),
        "enc1": _conv_params(ks[1], dim, dim, 4),
        "enc2": _conv_params(ks[2], dim, dim, 3),
        "enc_r1_c1": _conv_params(ks[3], dim, dim, 3),
        "enc_r1_c2": _conv_params(ks[4], dim, dim, 1),
        "enc_r2_c1": _conv_params(ks[5], dim, dim, 3),
        "enc_r2_c2": _conv_params(ks[6], dim, dim, 1),
        "emb": jax.random.uniform(ks[7], (n_embedding, dim), jnp.float32,
                                  -1.0 / n_embedding, 1.0 / n_embedding),
        "dec0": _conv_params(ks[8], dim, dim, 3),
        "dec_r1_c1": _conv_params(ks[9], dim, dim, 3),
        "dec_r1_c2": _conv_params(ks[10], dim, dim, 1),
        "dec_r2_c1": _conv_params(ks[11], dim, dim, 3),
        "dec_r2_c2": _conv_params(ks[12], dim, dim, 1),
        "dect0": _convt_params(ks[13], dim, dim, 4),
        "dect1": _convt_params(ks[14], dim, input_dim, 4),
    }


# ============================================================================
# Full forward pass (matches VQVAE.forward)
# ============================================================================
def vqvae_forward(params, x_nchw):
    x = jnp.transpose(x_nchw, (0, 2, 3, 1)).astype(jnp.float32)   # NCHW -> NHWC
    N, H, W, cin = x.shape
    dim = params["enc0"]["w"].shape[0]
    assert H == W and H % 4 == 0, "spatial size must be a multiple of 4"
    S = H // 4
    M = S * S

    # Batch tile: fill the MXU M dimension (target >= 128 rows per grid step),
    # reduced to a divisor of N.
    Bt = min(N, max(1, -(-128 // M))) if M < 128 else 1
    while N % Bt:
        Bt -= 1
    NT = N // Bt
    BM = Bt * M
    F0 = cin * 16

    # ---- packed operands: bf16 MXU weights, f32 biases / codebook ----
    p = params
    ws = [
        _pack_conv_gemm(p["enc0"]["w"]), _bias(p["enc0"]["b"]),
        _pack_conv_taps(p["enc1"]["w"]), _bias(p["enc1"]["b"]),
        _pack_conv_taps(p["enc2"]["w"]), _bias(p["enc2"]["b"]),
        _pack_conv_taps(p["enc_r1_c1"]["w"]), _bias(p["enc_r1_c1"]["b"]),
        _pack_conv1x1(p["enc_r1_c2"]["w"]), _bias(p["enc_r1_c2"]["b"]),
        _pack_conv_taps(p["enc_r2_c1"]["w"]), _bias(p["enc_r2_c1"]["b"]),
        _pack_conv1x1(p["enc_r2_c2"]["w"]), _bias(p["enc_r2_c2"]["b"]),
        p["emb"].astype(jnp.float32),
        jnp.sum(p["emb"].astype(jnp.float32) ** 2, axis=1).reshape(1, -1),
        _pack_conv_taps(p["dec0"]["w"]), _bias(p["dec0"]["b"]),
        _pack_conv_taps(p["dec_r1_c1"]["w"]), _bias(p["dec_r1_c1"]["b"]),
        _pack_conv1x1(p["dec_r1_c2"]["w"]), _bias(p["dec_r1_c2"]["b"]),
        _pack_conv_taps(p["dec_r2_c1"]["w"]), _bias(p["dec_r2_c1"]["b"]),
        _pack_conv1x1(p["dec_r2_c2"]["w"]), _bias(p["dec_r2_c2"]["b"]),
        _pack_convt_subpixel(p["dect0"]["w"]), _bias4(p["dect0"]["b"]),
        _pack_convt_subpixel(p["dect1"]["w"]), _bias4(p["dect1"]["b"]),
    ]

    # First-conv patches, parity-major within each batch tile, + edge masks.
    p0 = _first_conv_patches(x, S)                                # (N, 4, M, F0)
    p0 = (p0.reshape(NT, Bt, 4, M, F0).transpose(0, 2, 1, 3, 4)
            .reshape(NT, 4 * BM, F0).astype(jnp.bfloat16))
    edge = _edge_masks(S, Bt)

    out_shape = (jax.ShapeDtypeStruct((N, M, dim), jnp.float32),
                 jax.ShapeDtypeStruct((N, M, dim), jnp.float32),
                 jax.ShapeDtypeStruct((N, M, 16 * cin), jnp.float32))

    rep2 = lambda a: pl.BlockSpec(a.shape, lambda n: (0, 0))
    in_specs = ([pl.BlockSpec((1, 4 * BM, F0), lambda n: (n, 0, 0)), rep2(edge)]
                + [rep2(a) for a in ws])
    out_specs = (pl.BlockSpec((Bt, M, dim), lambda n: (n, 0, 0)),
                 pl.BlockSpec((Bt, M, dim), lambda n: (n, 0, 0)),
                 pl.BlockSpec((Bt, M, 16 * cin), lambda n: (n, 0, 0)))

    Kc = p["emb"].shape[0]
    per_img = (2 * 4 * M * F0 * dim + 2 * M * 16 * dim * dim
               + 6 * 2 * M * 9 * dim * dim + 4 * 2 * M * dim * dim
               + 4 * M * dim * Kc
               + 2 * M * 9 * dim * 4 * dim + 4 * 2 * M * 9 * dim * 4 * cin)
    nbytes = sum(int(a.size) * a.dtype.itemsize for a in [p0, edge] + ws)
    nbytes += sum(math.prod(o.shape) * 4 for o in out_shape)

    call = pl.pallas_call(
        functools.partial(_vqvae_kernel, S=S, Bt=Bt, dim=dim),
        grid=(NT,),
        in_specs=in_specs,
        out_specs=out_specs,
        out_shape=out_shape,
        compiler_params=pltpu.CompilerParams(
            dimension_semantics=("parallel",)),
        cost_estimate=pl.CostEstimate(flops=int(N * per_img),
                                      transcendentals=0,
                                      bytes_accessed=int(nbytes)),
    )
    ze, zq, y = call(p0, edge, *ws)

    # Decoder output columns: (((a*2+b)*2 + a2)*2 + b2)*cin + c -> 4x4 interleave.
    y = y.reshape(N, S, S, 2, 2, 2, 2, cin)
    y = jnp.transpose(y, (0, 1, 3, 5, 2, 4, 6, 7))       # (n, q, a, a2, r, b, b2, c)
    x_hat = y.reshape(N, 4 * S, 4 * S, cin)

    to_nchw = lambda t: jnp.transpose(t, (0, 3, 1, 2))
    return (to_nchw(x_hat),
            to_nchw(ze.reshape(N, S, S, dim)),
            to_nchw(zq.reshape(N, S, S, dim)))


# ============================================================================
# Pure-JAX f32 reference (for the numerical self-check)
# ============================================================================
def _ref_conv(x, w, b, stride, pad):
    y = jax.lax.conv_general_dilated(
        x, jnp.transpose(w, (2, 3, 1, 0)), (stride, stride),
        [(pad, pad), (pad, pad)], dimension_numbers=("NHWC", "HWIO", "NHWC"))
    return y + b.reshape(1, 1, 1, -1)


def _ref_convt(x, w, b):
    wf = jnp.transpose(w[:, :, ::-1, ::-1], (2, 3, 0, 1))
    y = jax.lax.conv_general_dilated(
        x, wf, (1, 1), [(2, 2), (2, 2)], lhs_dilation=(2, 2),
        dimension_numbers=("NHWC", "HWIO", "NHWC"))
    return y + b.reshape(1, 1, 1, -1)


def _ref_resblock(x, p1, p2):
    t = jax.nn.relu(x)
    t = _ref_conv(t, p1["w"], p1["b"], 1, 1)
    t = jax.nn.relu(t)
    t = _ref_conv(t, p2["w"], p2["b"], 1, 0)
    return x + t


def _ref_encoder(params, x_nhwc):
    h = jax.nn.relu(_ref_conv(x_nhwc, params["enc0"]["w"], params["enc0"]["b"], 2, 1))
    h = jax.nn.relu(_ref_conv(h, params["enc1"]["w"], params["enc1"]["b"], 2, 1))
    h = _ref_conv(h, params["enc2"]["w"], params["enc2"]["b"], 1, 1)
    h = _ref_resblock(h, params["enc_r1_c1"], params["enc_r1_c2"])
    h = _ref_resblock(h, params["enc_r2_c1"], params["enc_r2_c2"])
    return h


def _ref_decoder(params, zq_nhwc):
    h = _ref_conv(zq_nhwc, params["dec0"]["w"], params["dec0"]["b"], 1, 1)
    h = _ref_resblock(h, params["dec_r1_c1"], params["dec_r1_c2"])
    h = _ref_resblock(h, params["dec_r2_c1"], params["dec_r2_c2"])
    h = jax.nn.relu(_ref_convt(h, params["dect0"]["w"], params["dect0"]["b"]))
    return _ref_convt(h, params["dect1"]["w"], params["dect1"]["b"])


# ============================================================================
if __name__ == "__main__":
    key = jax.random.PRNGKey(0)
    k_params, k_x = jax.random.split(key)

    input_dim, dim, n_embedding = 3, 32, 16
    params = init_params(k_params, input_dim, dim, n_embedding)
    x = jax.random.normal(k_x, (2, input_dim, 16, 16), jnp.float32)

    fwd = jax.jit(functools.partial(vqvae_forward, params))
    x_hat, ze, zq = fwd(x)
    jax.block_until_ready((x_hat, ze, zq))

    assert x_hat.shape == (2, input_dim, 16, 16)
    assert ze.shape == (2, dim, 4, 4)
    assert zq.shape == (2, dim, 4, 4)
    assert bool(jnp.all(jnp.isfinite(x_hat)))
    assert bool(jnp.all(jnp.isfinite(ze)))
    assert bool(jnp.all(jnp.isfinite(zq)))

    # ---- numerical self-check vs. a pure-JAX f32 reference (bf16 tolerance) ----
    x_nhwc = jnp.transpose(x, (0, 2, 3, 1))
    ze_ref = _ref_encoder(params, x_nhwc)
    err_ze = float(jnp.max(jnp.abs(jnp.transpose(ze, (0, 2, 3, 1)) - ze_ref)))
    assert err_ze < 1e-1, f"encoder mismatch: {err_ze}"

    # every zq row must be (numerically) a codebook entry
    zq_rows = jnp.transpose(zq, (0, 2, 3, 1)).reshape(-1, dim)
    d_row = jnp.min(jnp.max(jnp.abs(zq_rows[:, None, :] - params["emb"][None, :, :]),
                            axis=-1), axis=-1)
    assert float(jnp.max(d_row)) < 1e-3, "zq rows are not codebook entries"

    # decoder checked against the reference applied to the kernel's own zq
    xh_ref = _ref_decoder(params, jnp.transpose(zq, (0, 2, 3, 1)))
    err_x = float(jnp.max(jnp.abs(jnp.transpose(x_hat, (0, 2, 3, 1)) - xh_ref)))
    assert err_x < 5e-2, f"decoder mismatch: {err_x}"

    print("KERNEL_OK")
</pallas_src>

<mosaic_0001>
module attributes {stable_mosaic.version = 11 : i64} {
  func.func @_vqvae_kernel(%arg0: i32, %arg1: memref<1x128x48xbf16, #tpu.memory_space<vmem>>, %arg2: memref<32x4xbf16, #tpu.memory_space<vmem>>, %arg3: memref<48x32xbf16, #tpu.memory_space<vmem>>, %arg4: memref<1x32xf32, #tpu.memory_space<vmem>>, %arg5: memref<512x32xbf16, #tpu.memory_space<vmem>>, %arg6: memref<1x32xf32, #tpu.memory_space<vmem>>, %arg7: memref<288x32xbf16, #tpu.memory_space<vmem>>, %arg8: memref<1x32xf32, #tpu.memory_space<vmem>>, %arg9: memref<288x32xbf16, #tpu.memory_space<vmem>>, %arg10: memref<1x32xf32, #tpu.memory_space<vmem>>, %arg11: memref<32x32xbf16, #tpu.memory_space<vmem>>, %arg12: memref<1x32xf32, #tpu.memory_space<vmem>>, %arg13: memref<288x32xbf16, #tpu.memory_space<vmem>>, %arg14: memref<1x32xf32, #tpu.memory_space<vmem>>, %arg15: memref<32x32xbf16, #tpu.memory_space<vmem>>, %arg16: memref<1x32xf32, #tpu.memory_space<vmem>>, %arg17: memref<16x32xf32, #tpu.memory_space<vmem>>, %arg18: memref<1x16xf32, #tpu.memory_space<vmem>>, %arg19: memref<288x32xbf16, #tpu.memory_space<vmem>>, %arg20: memref<1x32xf32, #tpu.memory_space<vmem>>, %arg21: memref<288x32xbf16, #tpu.memory_space<vmem>>, %arg22: memref<1x32xf32, #tpu.memory_space<vmem>>, %arg23: memref<32x32xbf16, #tpu.memory_space<vmem>>, %arg24: memref<1x32xf32, #tpu.memory_space<vmem>>, %arg25: memref<288x32xbf16, #tpu.memory_space<vmem>>, %arg26: memref<1x32xf32, #tpu.memory_space<vmem>>, %arg27: memref<32x32xbf16, #tpu.memory_space<vmem>>, %arg28: memref<1x32xf32, #tpu.memory_space<vmem>>, %arg29: memref<288x128xbf16, #tpu.memory_space<vmem>>, %arg30: memref<1x128xf32, #tpu.memory_space<vmem>>, %arg31: memref<288x12xbf16, #tpu.memory_space<vmem>>, %arg32: memref<1x12xf32, #tpu.memory_space<vmem>>, %arg33: memref<2x16x32xf32, #tpu.memory_space<vmem>>, %arg34: memref<2x16x32xf32, #tpu.memory_space<vmem>>, %arg35: memref<2x16x48xf32, #tpu.memory_space<vmem>>) attributes {dimension_semantics = [#tpu.dimension_semantics<parallel>], iteration_bounds = array<i64: 1>, scalar_prefetch = 0 : i64, scratch_operands = 0 : i64, tpu.core_type = #tpu.core_type<tc>, window_params = [{transform_indices = @transform_0, window_bounds = array<i64: 1, 128, 48>}, {pipeline_mode = #tpu.pipeline_mode<synchronous>, transform_indices = @transform_1, window_bounds = array<i64: 32, 4>}, {pipeline_mode = #tpu.pipeline_mode<synchronous>, transform_indices = @transform_2, window_bounds = array<i64: 48, 32>}, {pipeline_mode = #tpu.pipeline_mode<synchronous>, transform_indices = @transform_3, window_bounds = array<i64: 1, 32>}, {pipeline_mode = #tpu.pipeline_mode<synchronous>, transform_indices = @transform_4, window_bounds = array<i64: 512, 32>}, {pipeline_mode = #tpu.pipeline_mode<synchronous>, transform_indices = @transform_5, window_bounds = array<i64: 1, 32>}, {pipeline_mode = #tpu.pipeline_mode<synchronous>, transform_indices = @transform_6, window_bounds = array<i64: 288, 32>}, {pipeline_mode = #tpu.pipeline_mode<synchronous>, transform_indices = @transform_7, window_bounds = array<i64: 1, 32>}, {pipeline_mode = #tpu.pipeline_mode<synchronous>, transform_indices = @transform_8, window_bounds = array<i64: 288, 32>}, {pipeline_mode = #tpu.pipeline_mode<synchronous>, transform_indices = @transform_9, window_bounds = array<i64: 1, 32>}, {pipeline_mode = #tpu.pipeline_mode<synchronous>, transform_indices = @transform_10, window_bounds = array<i64: 32, 32>}, {pipeline_mode = #tpu.pipeline_mode<synchronous>, transform_indices = @transform_11, window_bounds = array<i64: 1, 32>}, {pipeline_mode = #tpu.pipeline_mode<synchronous>, transform_indices = @transform_12, window_bounds = array<i64: 288, 32>}, {pipeline_mode = #tpu.pipeline_mode<synchronous>, transform_indices = @transform_13, window_bounds = array<i64: 1, 32>}, {pipeline_mode = #tpu.pipeline_mode<synchronous>, transform_indices = @transform_14, window_bounds = array<i64: 32, 32>}, {pipeline_mode = #tpu.pipeline_mode<synchronous>, transform_indices = @transform_15, window_bounds = array<i64: 1, 32>}, {pipeline_mode = #tpu.pipeline_mode<synchronous>, transform_indices = @transform_16, window_bounds = array<i64: 16, 32>}, {pipeline_mode = #tpu.pipeline_mode<synchronous>, transform_indices = @transform_17, window_bounds = array<i64: 1, 16>}, {pipeline_mode = #tpu.pipeline_mode<synchronous>, transform_indices = @transform_18, window_bounds = array<i64: 288, 32>}, {pipeline_mode = #tpu.pipeline_mode<synchronous>, transform_indices = @transform_19, window_bounds = array<i64: 1, 32>}, {pipeline_mode = #tpu.pipeline_mode<synchronous>, transform_indices = @transform_20, window_bounds = array<i64: 288, 32>}, {pipeline_mode = #tpu.pipeline_mode<synchronous>, transform_indices = @transform_21, window_bounds = array<i64: 1, 32>}, {pipeline_mode = #tpu.pipeline_mode<synchronous>, transform_indices = @transform_22, window_bounds = array<i64: 32, 32>}, {pipeline_mode = #tpu.pipeline_mode<synchronous>, transform_indices = @transform_23, window_bounds = array<i64: 1, 32>}, {pipeline_mode = #tpu.pipeline_mode<synchronous>, transform_indices = @transform_24, window_bounds = array<i64: 288, 32>}, {pipeline_mode = #tpu.pipeline_mode<synchronous>, transform_indices = @transform_25, window_bounds = array<i64: 1, 32>}, {pipeline_mode = #tpu.pipeline_mode<synchronous>, transform_indices = @transform_26, window_bounds = array<i64: 32, 32>}, {pipeline_mode = #tpu.pipeline_mode<synchronous>, transform_indices = @transform_27, window_bounds = array<i64: 1, 32>}, {pipeline_mode = #tpu.pipeline_mode<synchronous>, transform_indices = @transform_28, window_bounds = array<i64: 288, 128>}, {pipeline_mode = #tpu.pipeline_mode<synchronous>, transform_indices = @transform_29, window_bounds = array<i64: 1, 128>}, {pipeline_mode = #tpu.pipeline_mode<synchronous>, transform_indices = @transform_30, window_bounds = array<i64: 288, 12>}, {pipeline_mode = #tpu.pipeline_mode<synchronous>, transform_indices = @transform_31, window_bounds = array<i64: 1, 12>}, {transform_indices = @transform_32, window_bounds = array<i64: 2, 16, 32>}, {transform_indices = @transform_33, window_bounds = array<i64: 2, 16, 32>}, {transform_indices = @transform_34, window_bounds = array<i64: 2, 16, 48>}]} {
    %c0 = arith.constant 0 : index
    %c0_0 = arith.constant 0 : index
    %0 = vector.load %arg2[%c0, %c0_0] : memref<32x4xbf16, #tpu.memory_space<vmem>>, vector<32x4xbf16>
    %1 = vector.extract_strided_slice %0 {offsets = [0, 0], sizes = [32, 1], strides = [1, 1]} : vector<32x4xbf16> to vector<32x1xbf16>
    %2 = vector.extract_strided_slice %0 {offsets = [0, 1], sizes = [32, 1], strides = [1, 1]} : vector<32x4xbf16> to vector<32x1xbf16>
    %3 = vector.extract_strided_slice %0 {offsets = [0, 2], sizes = [32, 1], strides = [1, 1]} : vector<32x4xbf16> to vector<32x1xbf16>
    %4 = vector.extract_strided_slice %0 {offsets = [0, 3], sizes = [32, 1], strides = [1, 1]} : vector<32x4xbf16> to vector<32x1xbf16>
    %5 = arith.mulf %1, %3 : vector<32x1xbf16>
    %6 = arith.mulf %1, %4 : vector<32x1xbf16>
    %7 = arith.mulf %2, %3 : vector<32x1xbf16>
    %8 = arith.mulf %2, %4 : vector<32x1xbf16>
    %c0_1 = arith.constant 0 : index
    %c0_2 = arith.constant 0 : index
    %c0_3 = arith.constant 0 : index
    %9 = vector.load %arg1[%c0_1, %c0_2, %c0_3] : memref<1x128x48xbf16, #tpu.memory_space<vmem>>, vector<1x128x48xbf16>
    %10 = vector.shape_cast %9 : vector<1x128x48xbf16> to vector<128x48xbf16>
    %c0_4 = arith.constant 0 : index
    %c0_5 = arith.constant 0 : index
    %11 = vector.load %arg3[%c0_4, %c0_5] : memref<48x32xbf16, #tpu.memory_space<vmem>>, vector<48x32xbf16>
    %cst = arith.constant dense<0.000000e+00> : vector<128x32xf32>
    %12 = tpu.matmul %10, %11, %cst {dimension_numbers = #tpu.dot_dimension_numbers<[1], [0], [0], [1], [0, 0, 1, 1], [], []>} : vector<128x48xbf16>, vector<48x32xbf16>, vector<128x32xf32> -> vector<128x32xf32>
    %c0_6 = arith.constant 0 : index
    %c0_7 = arith.constant 0 : index
    %13 = vector.load %arg4[%c0_6, %c0_7] : memref<1x32xf32, #tpu.memory_space<vmem>>, vector<1x32xf32>
    %14 = vector.broadcast %13 : vector<1x32xf32> to vector<128x32xf32>
    %15 = arith.addf %12, %14 : vector<128x32xf32>
    %cst_8 = arith.constant 0.000000e+00 : f32
    %16 = vector.broadcast %cst_8 : f32 to vector<128x32xf32>
    %17 = arith.maximumf %15, %16 : vector<128x32xf32>
    %18 = arith.truncf %17 : vector<128x32xf32> to vector<128x32xbf16>
    %19 = vector.extract_strided_slice %18 {offsets = [0, 0], sizes = [32, 32], strides = [1, 1]} : vector<128x32xbf16> to vector<32x32xbf16>
    %cst_9 = arith.constant 0.000000e+00 : bf16
    %20 = vector.broadcast %cst_9 : bf16 to vector<5x32xbf16>
    %21 = tpu.concatenate %20, %19, %20 in 0 : vector<5x32xbf16>, vector<32x32xbf16>, vector<5x32xbf16> -> vector<42x32xbf16>
    %22 = vector.extract_strided_slice %18 {offsets = [32, 0], sizes = [32, 32], strides = [1, 1]} : vector<128x32xbf16> to vector<32x32xbf16>
    %cst_10 = arith.constant 0.000000e+00 : bf16
    %23 = vector.broadcast %cst_10 : bf16 to vector<5x32xbf16>
    %24 = tpu.concatenate %23, %22, %23 in 0 : vector<5x32xbf16>, vector<32x32xbf16>, vector<5x32xbf16> -> vector<42x32xbf16>
    %25 = vector.extract_strided_slice %18 {offsets = [64, 0], sizes = [32, 32], strides = [1, 1]} : vector<128x32xbf16> to vector<32x32xbf16>
    %cst_11 = arith.constant 0.000000e+00 : bf16
    %26 = vector.broadcast %cst_11 : bf16 to vector<5x32xbf16>
    %27 = tpu.concatenate %26, %25, %26 in 0 : vector<5x32xbf16>, vector<32x32xbf16>, vector<5x32xbf16> -> vector<42x32xbf16>
    %28 = vector.extract_strided_slice %18 {offsets = [96, 0], sizes = [32, 32], strides = [1, 1]} : vector<128x32xbf16> to vector<32x32xbf16>
    %cst_12 = arith.constant 0.000000e+00 : bf16
    %29 = vector.broadcast %cst_12 : bf16 to vector<5x32xbf16>
    %30 = tpu.concatenate %29, %28, %29 in 0 : vector<5x32xbf16>, vector<32x32xbf16>, vector<5x32xbf16> -> vector<42x32xbf16>
    %31 = vector.extract_strided_slice %30 {offsets = [0, 0], sizes = [32, 32], strides = [1, 1]} : vector<42x32xbf16> to vector<32x32xbf16>
    %32 = vector.broadcast %5 : vector<32x1xbf16> to vector<32x32xbf16>
    %33 = arith.mulf %31, %32 : vector<32x32xbf16>
    %34 = vector.extract_strided_slice %27 {offsets = [1, 0], sizes = [32, 32], strides = [1, 1]} : vector<42x32xbf16> to vector<32x32xbf16>
    %35 = vector.broadcast %1 : vector<32x1xbf16> to vector<32x32xbf16>
    %36 = arith.mulf %34, %35 : vector<32x32xbf16>
    %37 = vector.extract_strided_slice %30 {offsets = [1, 0], sizes = [32, 32], strides = [1, 1]} : vector<42x32xbf16> to vector<32x32xbf16>
    %38 = vector.broadcast %1 : vector<32x1xbf16> to vector<32x32xbf16>
    %39 = arith.mulf %37, %38 : vector<32x32xbf16>
    %40 = vector.extract_strided_slice %27 {offsets = [2, 0], sizes = [32, 32], strides = [1, 1]} : vector<42x32xbf16> to vector<32x32xbf16>
    %41 = vector.broadcast %6 : vector<32x1xbf16> to vector<32x32xbf16>
    %42 = arith.mulf %40, %41 : vector<32x32xbf16>
    %43 = vector.extract_strided_slice %24 {offsets = [4, 0], sizes = [32, 32], strides = [1, 1]} : vector<42x32xbf16> to vector<32x32xbf16>
    %44 = vector.broadcast %3 : vector<32x1xbf16> to vector<32x32xbf16>
    %45 = arith.mulf %43, %44 : vector<32x32xbf16>
    %46 = vector.extract_strided_slice %21 {offsets = [5, 0], sizes = [32, 32], strides = [1, 1]} : vector<42x32xbf16> to vector<32x32xbf16>
    %47 = vector.extract_strided_slice %24 {offsets = [5, 0], sizes = [32, 32], strides = [1, 1]} : vector<42x32xbf16> to vector<32x32xbf16>
    %48 = vector.extract_strided_slice %21 {offsets = [6, 0], sizes = [32, 32], strides = [1, 1]} : vector<42x32xbf16> to vector<32x32xbf16>
    %49 = vector.broadcast %4 : vector<32x1xbf16> to vector<32x32xbf16>
    %50 = arith.mulf %48, %49 : vector<32x32xbf16>
    %51 = vector.extract_strided_slice %30 {offsets = [4, 0], sizes = [32, 32], strides = [1, 1]} : vector<42x32xbf16> to vector<32x32xbf16>
    %52 = vector.broadcast %3 : vector<32x1xbf16> to vector<32x32xbf16>
    %53 = arith.mulf %51, %52 : vector<32x32xbf16>
    %54 = vector.extract_strided_slice %27 {offsets = [5, 0], sizes = [32, 32], strides = [1, 1]} : vector<42x32xbf16> to vector<32x32xbf16>
    %55 = vector.extract_strided_slice %30 {offsets = [5, 0], sizes = [32, 32], strides = [1, 1]} : vector<42x32xbf16> to vector<32x32xbf16>
    %56 = vector.extract_strided_slice %27 {offsets = [6, 0], sizes = [32, 32], strides = [1, 1]} : vector<42x32xbf16> to vector<32x32xbf16>
    %57 = vector.broadcast %4 : vector<32x1xbf16> to vector<32x32xbf16>
    %58 = arith.mulf %56, %57 : vector<32x32xbf16>
    %59 = vector.extract_strided_slice %24 {offsets = [8, 0], sizes = [32, 32], strides = [1, 1]} : vector<42x32xbf16> to vector<32x32xbf16>
    %60 = vector.broadcast %7 : vector<32x1xbf16> to vector<32x32xbf16>
    %61 = arith.mulf %59, %60 : vector<32x32xbf16>
    %62 = vector.extract_strided_slice %21 {offsets = [9, 0], sizes = [32, 32], strides = [1, 1]} : vector<42x32xbf16> to vector<32x32xbf16>
    %63 = vector.broadcast %2 : vector<32x1xbf16> to vector<32x32xbf16>
    %64 = arith.mulf %62, %63 : vector<32x32xbf16>
    %65 = vector.extract_strided_slice %24 {offsets = [9, 0], sizes = [32, 32], strides = [1, 1]} : vector<42x32xbf16> to vector<32x32xbf16>
    %66 = vector.broadcast %2 : vector<32x1xbf16> to vector<32x32xbf16>
    %67 = arith.mulf %65, %66 : vector<32x32xbf16>
    %68 = vector.extract_strided_slice %21 {offsets = [10, 0], sizes = [32, 32], strides = [1, 1]} : vector<42x32xbf16> to vector<32x32xbf16>
    %69 = vector.broadcast %8 : vector<32x1xbf16> to vector<32x32xbf16>
    %70 = arith.mulf %68, %69 : vector<32x32xbf16>
    %71 = tpu.concatenate %33, %36, %39, %42, %45, %46, %47, %50, %53, %54, %55, %58, %61, %64, %67, %70 in 1 : vector<32x32xbf16>, vector<32x32xbf16>, vector<32x32xbf16>, vector<32x32xbf16>, vector<32x32xbf16>, vector<32x32xbf16>, vector<32x32xbf16>, vector<32x32xbf16>, vector<32x32xbf16>, vector<32x32xbf16>, vector<32x32xbf16>, vector<32x32xbf16>, vector<32x32xbf16>, vector<32x32xbf16>, vector<32x32xbf16>, vector<32x32xbf16> -> vector<32x512xbf16>
    %c0_13 = arith.constant 0 : index
    %c0_14 = arith.constant 0 : index
    %72 = vector.load %arg5[%c0_13, %c0_14] : memref<512x32xbf16, #tpu.memory_space<vmem>>, vector<512x32xbf16>
    %cst_15 = arith.constant dense<0.000000e+00> : vector<32x32xf32>
    %73 = tpu.matmul %71, %72, %cst_15 {dimension_numbers = #tpu.dot_dimension_numbers<[1], [0], [0], [1], [0, 0, 1, 1], [], []>} : vector<32x512xbf16>, vector<512x32xbf16>, vector<32x32xf32> -> vector<32x32xf32>
    %c0_16 = arith.constant 0 : index
    %c0_17 = arith.constant 0 : index
    %74 = vector.load %arg6[%c0_16, %c0_17] : memref<1x32xf32, #tpu.memory_space<vmem>>, vector<1x32xf32>
    %75 = vector.broadcast %74 : vector<1x32xf32> to vector<32x32xf32>
    %76 = arith.addf %73, %75 : vector<32x32xf32>
    %cst_18 = arith.constant 0.000000e+00 : f32
    %77 = vector.broadcast %cst_18 : f32 to vector<32x32xf32>
    %78 = arith.maximumf %76, %77 : vector<32x32xf32>
    %79 = arith.truncf %78 : vector<32x32xf32> to vector<32x32xbf16>
    %cst_19 = arith.constant 0.000000e+00 : bf16
    %80 = vector.broadcast %cst_19 : bf16 to vector<5x32xbf16>
    %81 = tpu.concatenate %80, %79, %80 in 0 : vector<5x32xbf16>, vector<32x32xbf16>, vector<5x32xbf16> -> vector<42x32xbf16>
    %82 = vector.extract_strided_slice %81 {offsets = [0, 0], sizes = [32, 32], strides = [1, 1]} : vector<42x32xbf16> to vector<32x32xbf16>
    %83 = vector.broadcast %5 : vector<32x1xbf16> to vector<32x32xbf16>
    %84 = arith.mulf %82, %83 : vector<32x32xbf16>
    %85 = vector.extract_strided_slice %81 {offsets = [1, 0], sizes = [32, 32], strides = [1, 1]} : vector<42x32xbf16> to vector<32x32xbf16>
    %86 = vector.broadcast %1 : vector<32x1xbf16> to vector<32x32xbf16>
    %87 = arith.mulf %85, %86 : vector<32x32xbf16>
    %88 = vector.extract_strided_slice %81 {offsets = [2, 0], sizes = [32, 32], strides = [1, 1]} : vector<42x32xbf16> to vector<32x32xbf16>
    %89 = vector.broadcast %6 : vector<32x1xbf16> to vector<32x32xbf16>
    %90 = arith.mulf %88, %89 : vector<32x32xbf16>
    %91 = vector.extract_strided_slice %81 {offsets = [4, 0], sizes = [32, 32], strides = [1, 1]} : vector<42x32xbf16> to vector<32x32xbf16>
    %92 = vector.broadcast %3 : vector<32x1xbf16> to vector<32x32xbf16>
    %93 = arith.mulf %91, %92 : vector<32x32xbf16>
    %94 = vector.extract_strided_slice %81 {offsets = [5, 0], sizes = [32, 32], strides = [1, 1]} : vector<42x32xbf16> to vector<32x32xbf16>
    %95 = vector.extract_strided_slice %81 {offsets = [6, 0], sizes = [32, 32], strides = [1, 1]} : vector<42x32xbf16> to vector<32x32xbf16>
    %96 = vector.broadcast %4 : vector<32x1xbf16> to vector<32x32xbf16>
    %97 = arith.mulf %95, %96 : vector<32x32xbf16>
    %98 = vector.extract_strided_slice %81 {offsets = [8, 0], sizes = [32, 32], strides = [1, 1]} : vector<42x32xbf16> to vector<32x32xbf16>
    %99 = vector.broadcast %7 : vector<32x1xbf16> to vector<32x32xbf16>
    %100 = arith.mulf %98, %99 : vector<32x32xbf16>
    %101 = vector.extract_strided_slice %81 {offsets = [9, 0], sizes = [32, 32], strides = [1, 1]} : vector<42x32xbf16> to vector<32x32xbf16>
    %102 = vector.broadcast %2 : vector<32x1xbf16> to vector<32x32xbf16>
    %103 = arith.mulf %101, %102 : vector<32x32xbf16>
    %104 = vector.extract_strided_slice %81 {offsets = [10, 0], sizes = [32, 32], strides = [1, 1]} : vector<42x32xbf16> to vector<32x32xbf16>
    %105 = vector.broadcast %8 : vector<32x1xbf16> to vector<32x32xbf16>
    %106 = arith.mulf %104, %105 : vector<32x32xbf16>
    %107 = tpu.concatenate %84, %87, %90, %93, %94, %97, %100, %103, %106 in 1 : vector<32x32xbf16>, vector<32x32xbf16>, vector<32x32xbf16>, vector<32x32xbf16>, vector<32x32xbf16>, vector<32x32xbf16>, vector<32x32xbf16>, vector<32x32xbf16>, vector<32x32xbf16> -> vector<32x288xbf16>
    %c0_20 = arith.constant 0 : index
    %c0_21 = arith.constant 0 : index
    %108 = vector.load %arg7[%c0_20, %c0_21] : memref<288x32xbf16, #tpu.memory_space<vmem>>, vector<288x32xbf16>
    %cst_22 = arith.constant dense<0.000000e+00> : vector<32x32xf32>
    %109 = tpu.matmul %107, %108, %cst_22 {dimension_numbers = #tpu.dot_dimension_numbers<[1], [0], [0], [1], [0, 0, 1, 1], [], []>} : vector<32x288xbf16>, vector<288x32xbf16>, vector<32x32xf32> -> vector<32x32xf32>
    %c0_23 = arith.constant 0 : index
    %c0_24 = arith.constant 0 : index
    %110 = vector.load %arg8[%c0_23, %c0_24] : memref<1x32xf32, #tpu.memory_space<vmem>>, vector<1x32xf32>
    %111 = vector.broadcast %110 : vector<1x32xf32> to vector<32x32xf32>
    %112 = arith.addf %109, %111 : vector<32x32xf32>
    %113 = arith.truncf %112 : vector<32x32xf32> to vector<32x32xbf16>
    %cst_25 = arith.constant 0.000000e+00 : bf16
    %114 = vector.broadcast %cst_25 : bf16 to vector<32x32xbf16>
    %115 = arith.maximumf %113, %114 : vector<32x32xbf16>
    %cst_26 = arith.constant 0.000000e+00 : bf16
    %116 = vector.broadcast %cst_26 : bf16 to vector<5x32xbf16>
    %117 = tpu.concatenate %116, %115, %116 in 0 : vector<5x32xbf16>, vector<32x32xbf16>, vector<5x32xbf16> -> vector<42x32xbf16>
    %118 = vector.extract_strided_slice %117 {offsets = [0, 0], sizes = [32, 32], strides = [1, 1]} : vector<42x32xbf16> to vector<32x32xbf16>
    %119 = vector.broadcast %5 : vector<32x1xbf16> to vector<32x32xbf16>
    %120 = arith.mulf %118, %119 : vector<32x32xbf16>
    %121 = vector.extract_strided_slice %117 {offsets = [1, 0], sizes = [32, 32], strides = [1, 1]} : vector<42x32xbf16> to vector<32x32xbf16>
    %122 = vector.broadcast %1 : vector<32x1xbf16> to vector<32x32xbf16>
    %123 = arith.mulf %121, %122 : vector<32x32xbf16>
    %124 = vector.extract_strided_slice %117 {offsets = [2, 0], sizes = [32, 32], strides = [1, 1]} : vector<42x32xbf16> to vector<32x32xbf16>
    %125 = vector.broadcast %6 : vector<32x1xbf16> to vector<32x32xbf16>
    %126 = arith.mulf %124, %125 : vector<32x32xbf16>
    %127 = vector.extract_strided_slice %117 {offsets = [4, 0], sizes = [32, 32], strides = [1, 1]} : vector<42x32xbf16> to vector<32x32xbf16>
    %128 = vector.broadcast %3 : vector<32x1xbf16> to vector<32x32xbf16>
    %129 = arith.mulf %127, %128 : vector<32x32xbf16>
    %130 = vector.extract_strided_slice %117 {offsets = [5, 0], sizes = [32, 32], strides = [1, 1]} : vector<42x32xbf16> to vector<32x32xbf16>
    %131 = vector.extract_strided_slice %117 {offsets = [6, 0], sizes = [32, 32], strides = [1, 1]} : vector<42x32xbf16> to vector<32x32xbf16>
    %132 = vector.broadcast %4 : vector<32x1xbf16> to vector<32x32xbf16>
    %133 = arith.mulf %131, %132 : vector<32x32xbf16>
    %134 = vector.extract_strided_slice %117 {offsets = [8, 0], sizes = [32, 32], strides = [1, 1]} : vector<42x32xbf16> to vector<32x32xbf16>
    %135 = vector.broadcast %7 : vector<32x1xbf16> to vector<32x32xbf16>
    %136 = arith.mulf %134, %135 : vector<32x32xbf16>
    %137 = vector.extract_strided_slice %117 {offsets = [9, 0], sizes = [32, 32], strides = [1, 1]} : vector<42x32xbf16> to vector<32x32xbf16>
    %138 = vector.broadcast %2 : vector<32x1xbf16> to vector<32x32xbf16>
    %139 = arith.mulf %137, %138 : vector<32x32xbf16>
    %140 = vector.extract_strided_slice %117 {offsets = [10, 0], sizes = [32, 32], strides = [1, 1]} : vector<42x32xbf16> to vector<32x32xbf16>
    %141 = vector.broadcast %8 : vector<32x1xbf16> to vector<32x32xbf16>
    %142 = arith.mulf %140, %141 : vector<32x32xbf16>
    %143 = tpu.concatenate %120, %123, %126, %129, %130, %133, %136, %139, %142 in 1 : vector<32x32xbf16>, vector<32x32xbf16>, vector<32x32xbf16>, vector<32x32xbf16>, vector<32x32xbf16>, vector<32x32xbf16>, vector<32x32xbf16>, vector<32x32xbf16>, vector<32x32xbf16> -> vector<32x288xbf16>
    %c0_27 = arith.constant 0 : index
    %c0_28 = arith.constant 0 : index
    %144 = vector.load %arg9[%c0_27, %c0_28] : memref<288x32xbf16, #tpu.memory_space<vmem>>, vector<288x32xbf16>
    %cst_29 = arith.constant dense<0.000000e+00> : vector<32x32xf32>
    %145 = tpu.matmul %143, %144, %cst_29 {dimension_numbers = #tpu.dot_dimension_numbers<[1], [0], [0], [1], [0, 0, 1, 1], [], []>} : vector<32x288xbf16>, vector<288x32xbf16>, vector<32x32xf32> -> vector<32x32xf32>
    %c0_30 = arith.constant 0 : index
    %c0_31 = arith.constant 0 : index
    %146 = vector.load %arg10[%c0_30, %c0_31] : memref<1x32xf32, #tpu.memory_space<vmem>>, vector<1x32xf32>
    %147 = vector.broadcast %146 : vector<1x32xf32> to vector<32x32xf32>
    %148 = arith.addf %145, %147 : vector<32x32xf32>
    %cst_32 = arith.constant 0.000000e+00 : f32
    %149 = vector.broadcast %cst_32 : f32 to vector<32x32xf32>
    %150 = arith.maximumf %148, %149 : vector<32x32xf32>
    %151 = arith.truncf %150 : vector<32x32xf32> to vector<32x32xbf16>
    %c0_33 = arith.constant 0 : index
    %c0_34 = arith.constant 0 : index
    %152 = vector.load %arg11[%c0_33, %c0_34] : memref<32x32xbf16, #tpu.memory_space<vmem>>, vector<32x32xbf16>
    %cst_35 = arith.constant dense<0.000000e+00> : vector<32x32xf32>
    %153 = tpu.matmul %151, %152, %cst_35 {dimension_numbers = #tpu.dot_dimension_numbers<[1], [0], [0], [1], [0, 0, 1, 1], [], []>} : vector<32x32xbf16>, vector<32x32xbf16>, vector<32x32xf32> -> vector<32x32xf32>
    %c0_36 = arith.constant 0 : index
    %c0_37 = arith.constant 0 : index
    %154 = vector.load %arg12[%c0_36, %c0_37] : memref<1x32xf32, #tpu.memory_space<vmem>>, vector<1x32xf32>
    %155 = vector.broadcast %154 : vector<1x32xf32> to vector<32x32xf32>
    %156 = arith.addf %153, %155 : vector<32x32xf32>
    %157 = arith.addf %112, %156 : vector<32x32xf32>
    %158 = arith.truncf %157 : vector<32x32xf32> to vector<32x32xbf16>
    %cst_38 = arith.constant 0.000000e+00 : bf16
    %159 = vector.broadcast %cst_38 : bf16 to vector<32x32xbf16>
    %160 = arith.maximumf %158, %159 : vector<32x32xbf16>
    %cst_39 = arith.constant 0.000000e+00 : bf16
    %161 = vector.broadcast %cst_39 : bf16 to vector<5x32xbf16>
    %162 = tpu.concatenate %161, %160, %161 in 0 : vector<5x32xbf16>, vector<32x32xbf16>, vector<5x32xbf16> -> vector<42x32xbf16>
    %163 = vector.extract_strided_slice %162 {offsets = [0, 0], sizes = [32, 32], strides = [1, 1]} : vector<42x32xbf16> to vector<32x32xbf16>
    %164 = vector.broadcast %5 : vector<32x1xbf16> to vector<32x32xbf16>
    %165 = arith.mulf %163, %164 : vector<32x32xbf16>
    %166 = vector.extract_strided_slice %162 {offsets = [1, 0], sizes = [32, 32], strides = [1, 1]} : vector<42x32xbf16> to vector<32x32xbf16>
    %167 = vector.broadcast %1 : vector<32x1xbf16> to vector<32x32xbf16>
    %168 = arith.mulf %166, %167 : vector<32x32xbf16>
    %169 = vector.extract_strided_slice %162 {offsets = [2, 0], sizes = [32, 32], strides = [1, 1]} : vector<42x32xbf16> to vector<32x32xbf16>
    %170 = vector.broadcast %6 : vector<32x1xbf16> to vector<32x32xbf16>
    %171 = arith.mulf %169, %170 : vector<32x32xbf16>
    %172 = vector.extract_strided_slice %162 {offsets = [4, 0], sizes = [32, 32], strides = [1, 1]} : vector<42x32xbf16> to vector<32x32xbf16>
    %173 = vector.broadcast %3 : vector<32x1xbf16> to vector<32x32xbf16>
    %174 = arith.mulf %172, %173 : vector<32x32xbf16>
    %175 = vector.extract_strided_slice %162 {offsets = [5, 0], sizes = [32, 32], strides = [1, 1]} : vector<42x32xbf16> to vector<32x32xbf16>
    %176 = vector.extract_strided_slice %162 {offsets = [6, 0], sizes = [32, 32], strides = [1, 1]} : vector<42x32xbf16> to vector<32x32xbf16>
    %177 = vector.broadcast %4 : vector<32x1xbf16> to vector<32x32xbf16>
    %178 = arith.mulf %176, %177 : vector<32x32xbf16>
    %179 = vector.extract_strided_slice %162 {offsets = [8, 0], sizes = [32, 32], strides = [1, 1]} : vector<42x32xbf16> to vector<32x32xbf16>
    %180 = vector.broadcast %7 : vector<32x1xbf16> to vector<32x32xbf16>
    %181 = arith.mulf %179, %180 : vector<32x32xbf16>
    %182 = vector.extract_strided_slice %162 {offsets = [9, 0], sizes = [32, 32], strides = [1, 1]} : vector<42x32xbf16> to vector<32x32xbf16>
    %183 = vector.broadcast %2 : vector<32x1xbf16> to vector<32x32xbf16>
    %184 = arith.mulf %182, %183 : vector<32x32xbf16>
    %185 = vector.extract_strided_slice %162 {offsets = [10, 0], sizes = [32, 32], strides = [1, 1]} : vector<42x32xbf16> to vector<32x32xbf16>
    %186 = vector.broadcast %8 : vector<32x1xbf16> to vector<32x32xbf16>
    %187 = arith.mulf %185, %186 : vector<32x32xbf16>
    %188 = tpu.concatenate %165, %168, %171, %174, %175, %178, %181, %184, %187 in 1 : vector<32x32xbf16>, vector<32x32xbf16>, vector<32x32xbf16>, vector<32x32xbf16>, vector<32x32xbf16>, vector<32x32xbf16>, vector<32x32xbf16>, vector<32x32xbf16>, vector<32x32xbf16> -> vector<32x288xbf16>
    %c0_40 = arith.constant 0 : index
    %c0_41 = arith.constant 0 : index
    %189 = vector.load %arg13[%c0_40, %c0_41] : memref<288x32xbf16, #tpu.memory_space<vmem>>, vector<288x32xbf16>
    %cst_42 = arith.constant dense<0.000000e+00> : vector<32x32xf32>
    %190 = tpu.matmul %188, %189, %cst_42 {dimension_numbers = #tpu.dot_dimension_numbers<[1], [0], [0], [1], [0, 0, 1, 1], [], []>} : vector<32x288xbf16>, vector<288x32xbf16>, vector<32x32xf32> -> vector<32x32xf32>
    %c0_43 = arith.constant 0 : index
    %c0_44 = arith.constant 0 : index
    %191 = vector.load %arg14[%c0_43, %c0_44] : memref<1x32xf32, #tpu.memory_space<vmem>>, vector<1x32xf32>
    %192 = vector.broadcast %191 : vector<1x32xf32> to vector<32x32xf32>
    %193 = arith.addf %190, %192 : vector<32x32xf32>
    %cst_45 = arith.constant 0.000000e+00 : f32
    %194 = vector.broadcast %cst_45 : f32 to vector<32x32xf32>
    %195 = arith.maximumf %193, %194 : vector<32x32xf32>
    %196 = arith.truncf %195 : vector<32x32xf32> to vector<32x32xbf16>
    %c0_46 = arith.constant 0 : index
    %c0_47 = arith.constant 0 : index
    %197 = vector.load %arg15[%c0_46, %c0_47] : memref<32x32xbf16, #tpu.memory_space<vmem>>, vector<32x32xbf16>
    %cst_48 = arith.constant dense<0.000000e+00> : vector<32x32xf32>
    %198 = tpu.matmul %196, %197, %cst_48 {dimension_numbers = #tpu.dot_dimension_numbers<[1], [0], [0], [1], [0, 0, 1, 1], [], []>} : vector<32x32xbf16>, vector<32x32xbf16>, vector<32x32xf32> -> vector<32x32xf32>
    %c0_49 = arith.constant 0 : index
    %c0_50 = arith.constant 0 : index
    %199 = vector.load %arg16[%c0_49, %c0_50] : memref<1x32xf32, #tpu.memory_space<vmem>>, vector<1x32xf32>
    %200 = vector.broadcast %199 : vector<1x32xf32> to vector<32x32xf32>
    %201 = arith.addf %198, %200 : vector<32x32xf32>
    %202 = arith.addf %157, %201 : vector<32x32xf32>
    %c0_51 = arith.constant 0 : index
    %c0_52 = arith.constant 0 : index
    %203 = vector.load %arg17[%c0_51, %c0_52] : memref<16x32xf32, #tpu.memory_space<vmem>>, vector<16x32xf32>
    %c0_53 = arith.constant 0 : index
    %c0_54 = arith.constant 0 : index
    %204 = vector.load %arg18[%c0_53, %c0_54] : memref<1x16xf32, #tpu.memory_space<vmem>>, vector<1x16xf32>
    %205 = arith.truncf %202 : vector<32x32xf32> to vector<32x32xbf16>
    %206 = arith.truncf %203 : vector<16x32xf32> to vector<16x32xbf16>
    %cst_55 = arith.constant dense<0.000000e+00> : vector<32x16xf32>
    %207 = tpu.matmul %205, %206, %cst_55 {dimension_numbers = #tpu.dot_dimension_numbers<[1], [1], [0], [0], [0, 0, 1, 0], [], []>} : vector<32x32xbf16>, vector<16x32xbf16>, vector<32x16xf32> -> vector<32x16xf32>
    %cst_56 = arith.constant 2.000000e+00 : f32
    %208 = vector.broadcast %cst_56 : f32 to vector<32x16xf32>
    %209 = arith.mulf %208, %207 : vector<32x16xf32>
    %210 = vector.broadcast %204 : vector<1x16xf32> to vector<32x16xf32>
    %211 = arith.subf %210, %209 : vector<32x16xf32>
    %212 = tpu.iota {dimensions = array<i32: 1>} : vector<32x16xi32>
    %cst_57 = arith.constant dense<0x7F800000> : vector<32xf32>
    %213 = vector.multi_reduction <minimumf>, %211, %cst_57 [1] : vector<32x16xf32> to vector<32xf32>
    %214 = vector.shape_cast %213 : vector<32xf32> to vector<32x1xf32>
    %215 = vector.broadcast %214 : vector<32x1xf32> to vector<32x16xf32>
    %216 = arith.cmpf oeq, %211, %215 : vector<32x16xf32>
    %c16_i32 = arith.constant 16 : i32
    %217 = vector.broadcast %c16_i32 : i32 to vector<32x16xi32>
    %218 = arith.select %216, %212, %217 : vector<32x16xi1>, vector<32x16xi32>
    %cst_58 = arith.constant dense<2147483647> : vector<32xi32>
    %219 = vector.multi_reduction <minsi>, %218, %cst_58 [1] : vector<32x16xi32> to vector<32xi32>
    %220 = vector.shape_cast %219 : vector<32xi32> to vector<32x1xi32>
    %221 = vector.broadcast %220 : vector<32x1xi32> to vector<32x16xi32>
    %222 = arith.cmpi eq, %212, %221 : vector<32x16xi32>
    %223 = arith.extui %222 : vector<32x16xi1> to vector<32x16xi32>
    %224 = arith.sitofp %223 : vector<32x16xi32> to vector<32x16xf32>
    %cst_59 = arith.constant dense<0.000000e+00> : vector<32x32xf32>
    %225 = tpu.matmul %224, %203, %cst_59 {dimension_numbers = #tpu.dot_dimension_numbers<[1], [0], [0], [1], [0, 0, 1, 1], [], []>} : vector<32x16xf32>, vector<16x32xf32>, vector<32x32xf32> -> vector<32x32xf32>
    %226 = vector.shape_cast %202 : vector<32x32xf32> to vector<2x16x32xf32>
    %c0_60 = arith.constant 0 : index
    %c0_61 = arith.constant 0 : index
    %c0_62 = arith.constant 0 : index
    %227 = vector.load %arg33[%c0_60, %c0_61, %c0_62] : memref<2x16x32xf32, #tpu.memory_space<vmem>>, vector<2x16x32xf32>
    tpu.vector_store %arg33[%c0_60, %c0_61, %c0_62], %226 {strides = array<i32>} : memref<2x16x32xf32, #tpu.memory_space<vmem>>, vector<2x16x32xf32>,
    %228 = vector.shape_cast %225 : vector<32x32xf32> to vector<2x16x32xf32>
    %c0_63 = arith.constant 0 : index
    %c0_64 = arith.constant 0 : index
    %c0_65 = arith.constant 0 : index
    %229 = vector.load %arg34[%c0_63, %c0_64, %c0_65] : memref<2x16x32xf32, #tpu.memory_space<vmem>>, vector<2x16x32xf32>
    tpu.vector_store %arg34[%c0_63, %c0_64, %c0_65], %228 {strides = array<i32>} : memref<2x16x32xf32, #tpu.memory_space<vmem>>, vector<2x16x32xf32>,
    %230 = arith.truncf %225 : vector<32x32xf32> to vector<32x32xbf16>
    %cst_66 = arith.constant 0.000000e+00 : bf16
    %231 = vector.broadcast %cst_66 : bf16 to vector<5x32xbf16>
    %232 = tpu.concatenate %231, %230, %231 in 0 : vector<5x32xbf16>, vector<32x32xbf16>, vector<5x32xbf16> -> vector<42x32xbf16>
    %233 = vector.extract_strided_slice %232 {offsets = [0, 0], sizes = [32, 32], strides = [1, 1]} : vector<42x32xbf16> to vector<32x32xbf16>
    %234 = vector.broadcast %5 : vector<32x1xbf16> to vector<32x32xbf16>
    %235 = arith.mulf %233, %234 : vector<32x32xbf16>
    %236 = vector.extract_strided_slice %232 {offsets = [1, 0], sizes = [32, 32], strides = [1, 1]} : vector<42x32xbf16> to vector<32x32xbf16>
    %237 = vector.broadcast %1 : vector<32x1xbf16> to vector<32x32xbf16>
    %238 = arith.mulf %236, %237 : vector<32x32xbf16>
    %239 = vector.extract_strided_slice %232 {offsets = [2, 0], sizes = [32, 32], strides = [1, 1]} : vector<42x32xbf16> to vector<32x32xbf16>
    %240 = vector.broadcast %6 : vector<32x1xbf16> to vector<32x32xbf16>
    %241 = arith.mulf %239, %240 : vector<32x32xbf16>
    %242 = vector.extract_strided_slice %232 {offsets = [4, 0], sizes = [32, 32], strides = [1, 1]} : vector<42x32xbf16> to vector<32x32xbf16>
    %243 = vector.broadcast %3 : vector<32x1xbf16> to vector<32x32xbf16>
    %244 = arith.mulf %242, %243 : vector<32x32xbf16>
    %245 = vector.extract_strided_slice %232 {offsets = [5, 0], sizes = [32, 32], strides = [1, 1]} : vector<42x32xbf16> to vector<32x32xbf16>
    %246 = vector.extract_strided_slice %232 {offsets = [6, 0], sizes = [32, 32], strides = [1, 1]} : vector<42x32xbf16> to vector<32x32xbf16>
    %247 = vector.broadcast %4 : vector<32x1xbf16> to vector<32x32xbf16>
    %248 = arith.mulf %246, %247 : vector<32x32xbf16>
    %249 = vector.extract_strided_slice %232 {offsets = [8, 0], sizes = [32, 32], strides = [1, 1]} : vector<42x32xbf16> to vector<32x32xbf16>
    %250 = vector.broadcast %7 : vector<32x1xbf16> to vector<32x32xbf16>
    %251 = arith.mulf %249, %250 : vector<32x32xbf16>
    %252 = vector.extract_strided_slice %232 {offsets = [9, 0], sizes = [32, 32], strides = [1, 1]} : vector<42x32xbf16> to vector<32x32xbf16>
    %253 = vector.broadcast %2 : vector<32x1xbf16> to vector<32x32xbf16>
    %254 = arith.mulf %252, %253 : vector<32x32xbf16>
    %255 = vector.extract_strided_slice %232 {offsets = [10, 0], sizes = [32, 32], strides = [1, 1]} : vector<42x32xbf16> to vector<32x32xbf16>
    %256 = vector.broadcast %8 : vector<32x1xbf16> to vector<32x32xbf16>
    %257 = arith.mulf %255, %256 : vector<32x32xbf16>
    %258 = tpu.concatenate %235, %238, %241, %244, %245, %248, %251, %254, %257 in 1 : vector<32x32xbf16>, vector<32x32xbf16>, vector<32x32xbf16>, vector<32x32xbf16>, vector<32x32xbf16>, vector<32x32xbf16>, vector<32x32xbf16>, vector<32x32xbf16>, vector<32x32xbf16> -> vector<32x288xbf16>
    %c0_67 = arith.constant 0 : index
    %c0_68 = arith.constant 0 : index
    %259 = vector.load %arg19[%c0_67, %c0_68] : memref<288x32xbf16, #tpu.memory_space<vmem>>, vector<288x32xbf16>
    %cst_69 = arith.constant dense<0.000000e+00> : vector<32x32xf32>
    %260 = tpu.matmul %258, %259, %cst_69 {dimension_numbers = #tpu.dot_dimension_numbers<[1], [0], [0], [1], [0, 0, 1, 1], [], []>} : vector<32x288xbf16>, vector<288x32xbf16>, vector<32x32xf32> -> vector<32x32xf32>
    %c0_70 = arith.constant 0 : index
    %c0_71 = arith.constant 0 : index
    %261 = vector.load %arg20[%c0_70, %c0_71] : memref<1x32xf32, #tpu.memory_space<vmem>>, vector<1x32xf32>
    %262 = vector.broadcast %261 : vector<1x32xf32> to vector<32x32xf32>
    %263 = arith.addf %260, %262 : vector<32x32xf32>
    %264 = arith.truncf %263 : vector<32x32xf32> to vector<32x32xbf16>
    %cst_72 = arith.constant 0.000000e+00 : bf16
    %265 = vector.broadcast %cst_72 : bf16 to vector<32x32xbf16>
    %266 = arith.maximumf %264, %265 : vector<32x32xbf16>
    %cst_73 = arith.constant 0.000000e+00 : bf16
    %267 = vector.broadcast %cst_73 : bf16 to vector<5x32xbf16>
    %268 = tpu.concatenate %267, %266, %267 in 0 : vector<5x32xbf16>, vector<32x32xbf16>, vector<5x32xbf16> -> vector<42x32xbf16>
    %269 = vector.extract_strided_slice %268 {offsets = [0, 0], sizes = [32, 32], strides = [1, 1]} : vector<42x32xbf16> to vector<32x32xbf16>
    %270 = vector.broadcast %5 : vector<32x1xbf16> to vector<32x32xbf16>
    %271 = arith.mulf %269, %270 : vector<32x32xbf16>
    %272 = vector.extract_strided_slice %268 {offsets = [1, 0], sizes = [32, 32], strides = [1, 1]} : vector<42x32xbf16> to vector<32x32xbf16>
    %273 = vector.broadcast %1 : vector<32x1xbf16> to vector<32x32xbf16>
    %274 = arith.mulf %272, %273 : vector<32x32xbf16>
    %275 = vector.extract_strided_slice %268 {offsets = [2, 0], sizes = [32, 32], strides = [1, 1]} : vector<42x32xbf16> to vector<32x32xbf16>
    %276 = vector.broadcast %6 : vector<32x1xbf16> to vector<32x32xbf16>
    %277 = arith.mulf %275, %276 : vector<32x32xbf16>
    %278 = vector.extract_strided_slice %268 {offsets = [4, 0], sizes = [32, 32], strides = [1, 1]} : vector<42x32xbf16> to vector<32x32xbf16>
    %279 = vector.broadcast %3 : vector<32x1xbf16> to vector<32x32xbf16>
    %280 = arith.mulf %278, %279 : vector<32x32xbf16>
    %281 = vector.extract_strided_slice %268 {offsets = [5, 0], sizes = [32, 32], strides = [1, 1]} : vector<42x32xbf16> to vector<32x32xbf16>
    %282 = vector.extract_strided_slice %268 {offsets = [6, 0], sizes = [32, 32], strides = [1, 1]} : vector<42x32xbf16> to vector<32x32xbf16>
    %283 = vector.broadcast %4 : vector<32x1xbf16> to vector<32x32xbf16>
    %284 = arith.mulf %282, %283 : vector<32x32xbf16>
    %285 = vector.extract_strided_slice %268 {offsets = [8, 0], sizes = [32, 32], strides = [1, 1]} : vector<42x32xbf16> to vector<32x32xbf16>
    %286 = vector.broadcast %7 : vector<32x1xbf16> to vector<32x32xbf16>
    %287 = arith.mulf %285, %286 : vector<32x32xbf16>
    %288 = vector.extract_strided_slice %268 {offsets = [9, 0], sizes = [32, 32], strides = [1, 1]} : vector<42x32xbf16> to vector<32x32xbf16>
    %289 = vector.broadcast %2 : vector<32x1xbf16> to vector<32x32xbf16>
    %290 = arith.mulf %288, %289 : vector<32x32xbf16>
    %291 = vector.extract_strided_slice %268 {offsets = [10, 0], sizes = [32, 32], strides = [1, 1]} : vector<42x32xbf16> to vector<32x32xbf16>
    %292 = vector.broadcast %8 : vector<32x1xbf16> to vector<32x32xbf16>
    %293 = arith.mulf %291, %292 : vector<32x32xbf16>
    %294 = tpu.concatenate %271, %274, %277, %280, %281, %284, %287, %290, %293 in 1 : vector<32x32xbf16>, vector<32x32xbf16>, vector<32x32xbf16>, vector<32x32xbf16>, vector<32x32xbf16>, vector<32x32xbf16>, vector<32x32xbf16>, vector<32x32xbf16>, vector<32x32xbf16> -> vector<32x288xbf16>
    %c0_74 = arith.constant 0 : index
    %c0_75 = arith.constant 0 : index
    %295 = vector.load %arg21[%c0_74, %c0_75] : memref<288x32xbf16, #tpu.memory_space<vmem>>, vector<288x32xbf16>
    %cst_76 = arith.constant dense<0.000000e+00> : vector<32x32xf32>
    %296 = tpu.matmul %294, %295, %cst_76 {dimension_numbers = #tpu.dot_dimension_numbers<[1], [0], [0], [1], [0, 0, 1, 1], [], []>} : vector<32x288xbf16>, vector<288x32xbf16>, vector<32x32xf32> -> vector<32x32xf32>
    %c0_77 = arith.constant 0 : index
    %c0_78 = arith.constant 0 : index
    %297 = vector.load %arg22[%c0_77, %c0_78] : memref<1x32xf32, #tpu.memory_space<vmem>>, vector<1x32xf32>
    %298 = vector.broadcast %297 : vector<1x32xf32> to vector<32x32xf32>
    %299 = arith.addf %296, %298 : vector<32x32xf32>
    %cst_79 = arith.constant 0.000000e+00 : f32
    %300 = vector.broadcast %cst_79 : f32 to vector<32x32xf32>
    %301 = arith.maximumf %299, %300 : vector<32x32xf32>
    %302 = arith.truncf %301 : vector<32x32xf32> to vector<32x32xbf16>
    %c0_80 = arith.constant 0 : index
    %c0_81 = arith.constant 0 : index
    %303 = vector.load %arg23[%c0_80, %c0_81] : memref<32x32xbf16, #tpu.memory_space<vmem>>, vector<32x32xbf16>
    %cst_82 = arith.constant dense<0.000000e+00> : vector<32x32xf32>
    %304 = tpu.matmul %302, %303, %cst_82 {dimension_numbers = #tpu.dot_dimension_numbers<[1], [0], [0], [1], [0, 0, 1, 1], [], []>} : vector<32x32xbf16>, vector<32x32xbf16>, vector<32x32xf32> -> vector<32x32xf32>
    %c0_83 = arith.constant 0 : index
    %c0_84 = arith.constant 0 : index
    %305 = vector.load %arg24[%c0_83, %c0_84] : memref<1x32xf32, #tpu.memory_space<vmem>>, vector<1x32xf32>
    %306 = vector.broadcast %305 : vector<1x32xf32> to vector<32x32xf32>
    %307 = arith.addf %304, %306 : vector<32x32xf32>
    %308 = arith.addf %263, %307 : vector<32x32xf32>
    %309 = arith.truncf %308 : vector<32x32xf32> to vector<32x32xbf16>
    %cst_85 = arith.constant 0.000000e+00 : bf16
    %310 = vector.broadcast %cst_85 : bf16 to vector<32x32xbf16>
    %311 = arith.maximumf %309, %310 : vector<32x32xbf16>
    %cst_86 = arith.constant 0.000000e+00 : bf16
    %312 = vector.broadcast %cst_86 : bf16 to vector<5x32xbf16>
    %313 = tpu.concatenate %312, %311, %312 in 0 : vector<5x32xbf16>, vector<32x32xbf16>, vector<5x32xbf16> -> vector<42x32xbf16>
    %314 = vector.extract_strided_slice %313 {offsets = [0, 0], sizes = [32, 32], strides = [1, 1]} : vector<42x32xbf16> to vector<32x32xbf16>
    %315 = vector.broadcast %5 : vector<32x1xbf16> to vector<32x32xbf16>
    %316 = arith.mulf %314, %315 : vector<32x32xbf16>
    %317 = vector.extract_strided_slice %313 {offsets = [1, 0], sizes = [32, 32], strides = [1, 1]} : vector<42x32xbf16> to vector<32x32xbf16>
    %318 = vector.broadcast %1 : vector<32x1xbf16> to vector<32x32xbf16>
    %319 = arith.mulf %317, %318 : vector<32x32xbf16>
    %320 = vector.extract_strided_slice %313 {offsets = [2, 0], sizes = [32, 32], strides = [1, 1]} : vector<42x32xbf16> to vector<32x32xbf16>
    %321 = vector.broadcast %6 : vector<32x1xbf16> to vector<32x32xbf16>
    %322 = arith.mulf %320, %321 : vector<32x32xbf16>
    %323 = vector.extract_strided_slice %313 {offsets = [4, 0], sizes = [32, 32], strides = [1, 1]} : vector<42x32xbf16> to vector<32x32xbf16>
    %324 = vector.broadcast %3 : vector<32x1xbf16> to vector<32x32xbf16>
    %325 = arith.mulf %323, %324 : vector<32x32xbf16>
    %326 = vector.extract_strided_slice %313 {offsets = [5, 0], sizes = [32, 32], strides = [1, 1]} : vector<42x32xbf16> to vector<32x32xbf16>
    %327 = vector.extract_strided_slice %313 {offsets = [6, 0], sizes = [32, 32], strides = [1, 1]} : vector<42x32xbf16> to vector<32x32xbf16>
    %328 = vector.broadcast %4 : vector<32x1xbf16> to vector<32x32xbf16>
    %329 = arith.mulf %327, %328 : vector<32x32xbf16>
    %330 = vector.extract_strided_slice %313 {offsets = [8, 0], sizes = [32, 32], strides = [1, 1]} : vector<42x32xbf16> to vector<32x32xbf16>
    %331 = vector.broadcast %7 : vector<32x1xbf16> to vector<32x32xbf16>
    %332 = arith.mulf %330, %331 : vector<32x32xbf16>
    %333 = vector.extract_strided_slice %313 {offsets = [9, 0], sizes = [32, 32], strides = [1, 1]} : vector<42x32xbf16> to vector<32x32xbf16>
    %334 = vector.broadcast %2 : vector<32x1xbf16> to vector<32x32xbf16>
    %335 = arith.mulf %333, %334 : vector<32x32xbf16>
    %336 = vector.extract_strided_slice %313 {offsets = [10, 0], sizes = [32, 32], strides = [1, 1]} : vector<42x32xbf16> to vector<32x32xbf16>
    %337 = vector.broadcast %8 : vector<32x1xbf16> to vector<32x32xbf16>
    %338 = arith.mulf %336, %337 : vector<32x32xbf16>
    %339 = tpu.concatenate %316, %319, %322, %325, %326, %329, %332, %335, %338 in 1 : vector<32x32xbf16>, vector<32x32xbf16>, vector<32x32xbf16>, vector<32x32xbf16>, vector<32x32xbf16>, vector<32x32xbf16>, vector<32x32xbf16>, vector<32x32xbf16>, vector<32x32xbf16> -> vector<32x288xbf16>
    %c0_87 = arith.constant 0 : index
    %c0_88 = arith.constant 0 : index
    %340 = vector.load %arg25[%c0_87, %c0_88] : memref<288x32xbf16, #tpu.memory_space<vmem>>, vector<288x32xbf16>
    %cst_89 = arith.constant dense<0.000000e+00> : vector<32x32xf32>
    %341 = tpu.matmul %339, %340, %cst_89 {dimension_numbers = #tpu.dot_dimension_numbers<[1], [0], [0], [1], [0, 0, 1, 1], [], []>} : vector<32x288xbf16>, vector<288x32xbf16>, vector<32x32xf32> -> vector<32x32xf32>
    %c0_90 = arith.constant 0 : index
    %c0_91 = arith.constant 0 : index
    %342 = vector.load %arg26[%c0_90, %c0_91] : memref<1x32xf32, #tpu.memory_space<vmem>>, vector<1x32xf32>
    %343 = vector.broadcast %342 : vector<1x32xf32> to vector<32x32xf32>
    %344 = arith.addf %341, %343 : vector<32x32xf32>
    %cst_92 = arith.constant 0.000000e+00 : f32
    %345 = vector.broadcast %cst_92 : f32 to vector<32x32xf32>
    %346 = arith.maximumf %344, %345 : vector<32x32xf32>
    %347 = arith.truncf %346 : vector<32x32xf32> to vector<32x32xbf16>
    %c0_93 = arith.constant 0 : index
    %c0_94 = arith.constant 0 : index
    %348 = vector.load %arg27[%c0_93, %c0_94] : memref<32x32xbf16, #tpu.memory_space<vmem>>, vector<32x32xbf16>
    %cst_95 = arith.constant dense<0.000000e+00> : vector<32x32xf32>
    %349 = tpu.matmul %347, %348, %cst_95 {dimension_numbers = #tpu.dot_dimension_numbers<[1], [0], [0], [1], [0, 0, 1, 1], [], []>} : vector<32x32xbf16>, vector<32x32xbf16>, vector<32x32xf32> -> vector<32x32xf32>
    %c0_96 = arith.constant 0 : index
    %c0_97 = arith.constant 0 : index
    %350 = vector.load %arg28[%c0_96, %c0_97] : memref<1x32xf32, #tpu.memory_space<vmem>>, vector<1x32xf32>
    %351 = vector.broadcast %350 : vector<1x32xf32> to vector<32x32xf32>
    %352 = arith.addf %349, %351 : vector<32x32xf32>
    %353 = arith.addf %308, %352 : vector<32x32xf32>
    %354 = arith.truncf %353 : vector<32x32xf32> to vector<32x32xbf16>
    %cst_98 = arith.constant 0.000000e+00 : bf16
    %355 = vector.broadcast %cst_98 : bf16 to vector<5x32xbf16>
    %356 = tpu.concatenate %355, %354, %355 in 0 : vector<5x32xbf16>, vector<32x32xbf16>, vector<5x32xbf16> -> vector<42x32xbf16>
    %357 = vector.extract_strided_slice %356 {offsets = [0, 0], sizes = [32, 32], strides = [1, 1]} : vector<42x32xbf16> to vector<32x32xbf16>
    %358 = vector.broadcast %5 : vector<32x1xbf16> to vector<32x32xbf16>
    %359 = arith.mulf %357, %358 : vector<32x32xbf16>
    %360 = vector.extract_strided_slice %356 {offsets = [1, 0], sizes = [32, 32], strides = [1, 1]} : vector<42x32xbf16> to vector<32x32xbf16>
    %361 = vector.broadcast %1 : vector<32x1xbf16> to vector<32x32xbf16>
    %362 = arith.mulf %360, %361 : vector<32x32xbf16>
    %363 = vector.extract_strided_slice %356 {offsets = [2, 0], sizes = [32, 32], strides = [1, 1]} : vector<42x32xbf16> to vector<32x32xbf16>
    %364 = vector.broadcast %6 : vector<32x1xbf16> to vector<32x32xbf16>
    %365 = arith.mulf %363, %364 : vector<32x32xbf16>
    %366 = vector.extract_strided_slice %356 {offsets = [4, 0], sizes = [32, 32], strides = [1, 1]} : vector<42x32xbf16> to vector<32x32xbf16>
    %367 = vector.broadcast %3 : vector<32x1xbf16> to vector<32x32xbf16>
    %368 = arith.mulf %366, %367 : vector<32x32xbf16>
    %369 = vector.extract_strided_slice %356 {offsets = [5, 0], sizes = [32, 32], strides = [1, 1]} : vector<42x32xbf16> to vector<32x32xbf16>
    %370 = vector.extract_strided_slice %356 {offsets = [6, 0], sizes = [32, 32], strides = [1, 1]} : vector<42x32xbf16> to vector<32x32xbf16>
    %371 = vector.broadcast %4 : vector<32x1xbf16> to vector<32x32xbf16>
    %372 = arith.mulf %370, %371 : vector<32x32xbf16>
    %373 = vector.extract_strided_slice %356 {offsets = [8, 0], sizes = [32, 32], strides = [1, 1]} : vector<42x32xbf16> to vector<32x32xbf16>
    %374 = vector.broadcast %7 : vector<32x1xbf16> to vector<32x32xbf16>
    %375 = arith.mulf %373, %374 : vector<32x32xbf16>
    %376 = vector.extract_strided_slice %356 {offsets = [9, 0], sizes = [32, 32], strides = [1, 1]} : vector<42x32xbf16> to vector<32x32xbf16>
    %377 = vector.broadcast %2 : vector<32x1xbf16> to vector<32x32xbf16>
    %378 = arith.mulf %376, %377 : vector<32x32xbf16>
    %379 = vector.extract_strided_slice %356 {offsets = [10, 0], sizes = [32, 32], strides = [1, 1]} : vector<42x32xbf16> to vector<32x32xbf16>
    %380 = vector.broadcast %8 : vector<32x1xbf16> to vector<32x32xbf16>
    %381 = arith.mulf %379, %380 : vector<32x32xbf16>
    %382 = tpu.concatenate %359, %362, %365, %368, %369, %372, %375, %378, %381 in 1 : vector<32x32xbf16>, vector<32x32xbf16>, vector<32x32xbf16>, vector<32x32xbf16>, vector<32x32xbf16>, vector<32x32xbf16>, vector<32x32xbf16>, vector<32x32xbf16>, vector<32x32xbf16> -> vector<32x288xbf16>
    %c0_99 = arith.constant 0 : index
    %c0_100 = arith.constant 0 : index
    %383 = vector.load %arg29[%c0_99, %c0_100] : memref<288x128xbf16, #tpu.memory_space<vmem>>, vector<288x128xbf16>
    %cst_101 = arith.constant dense<0.000000e+00> : vector<32x128xf32>
    %384 = tpu.matmul %382, %383, %cst_101 {dimension_numbers = #tpu.dot_dimension_numbers<[1], [0], [0], [1], [0, 0, 1, 1], [], []>} : vector<32x288xbf16>, vector<288x128xbf16>, vector<32x128xf32> -> vector<32x128xf32>
    %c0_102 = arith.constant 0 : index
    %c0_103 = arith.constant 0 : index
    %385 = vector.load %arg30[%c0_102, %c0_103] : memref<1x128xf32, #tpu.memory_space<vmem>>, vector<1x128xf32>
    %386 = vector.broadcast %385 : vector<1x128xf32> to vector<32x128xf32>
    %387 = arith.addf %384, %386 : vector<32x128xf32>
    %cst_104 = arith.constant 0.000000e+00 : f32
    %388 = vector.broadcast %cst_104 : f32 to vector<32x128xf32>
    %389 = arith.maximumf %387, %388 : vector<32x128xf32>
    %390 = arith.truncf %389 : vector<32x128xf32> to vector<32x128xbf16>
    %cst_105 = arith.constant 0.000000e+00 : bf16
    %391 = vector.broadcast %cst_105 : bf16 to vector<5x128xbf16>
    %392 = tpu.concatenate %391, %390, %391 in 0 : vector<5x128xbf16>, vector<32x128xbf16>, vector<5x128xbf16> -> vector<42x128xbf16>
    %393 = vector.extract_strided_slice %392 {offsets = [0, 96], sizes = [32, 32], strides = [1, 1]} : vector<42x128xbf16> to vector<32x32xbf16>
    %394 = vector.broadcast %5 : vector<32x1xbf16> to vector<32x32xbf16>
    %395 = arith.mulf %393, %394 : vector<32x32xbf16>
    %396 = vector.extract_strided_slice %392 {offsets = [1, 64], sizes = [32, 32], strides = [1, 1]} : vector<42x128xbf16> to vector<32x32xbf16>
    %397 = vector.broadcast %1 : vector<32x1xbf16> to vector<32x32xbf16>
    %398 = arith.mulf %396, %397 : vector<32x32xbf16>
    %399 = vector.extract_strided_slice %392 {offsets = [1, 96], sizes = [32, 32], strides = [1, 1]} : vector<42x128xbf16> to vector<32x32xbf16>
    %400 = vector.broadcast %1 : vector<32x1xbf16> to vector<32x32xbf16>
    %401 = arith.mulf %399, %400 : vector<32x32xbf16>
    %402 = vector.extract_strided_slice %392 {offsets = [4, 32], sizes = [32, 32], strides = [1, 1]} : vector<42x128xbf16> to vector<32x32xbf16>
    %403 = vector.broadcast %3 : vector<32x1xbf16> to vector<32x32xbf16>
    %404 = arith.mulf %402, %403 : vector<32x32xbf16>
    %405 = vector.extract_strided_slice %392 {offsets = [5, 0], sizes = [32, 32], strides = [1, 1]} : vector<42x128xbf16> to vector<32x32xbf16>
    %406 = vector.extract_strided_slice %392 {offsets = [5, 32], sizes = [32, 32], strides = [1, 1]} : vector<42x128xbf16> to vector<32x32xbf16>
    %407 = vector.extract_strided_slice %392 {offsets = [4, 96], sizes = [32, 32], strides = [1, 1]} : vector<42x128xbf16> to vector<32x32xbf16>
    %408 = vector.broadcast %3 : vector<32x1xbf16> to vector<32x32xbf16>
    %409 = arith.mulf %407, %408 : vector<32x32xbf16>
    %410 = vector.extract_strided_slice %392 {offsets = [5, 64], sizes = [32, 32], strides = [1, 1]} : vector<42x128xbf16> to vector<32x32xbf16>
    %411 = vector.extract_strided_slice %392 {offsets = [5, 96], sizes = [32, 32], strides = [1, 1]} : vector<42x128xbf16> to vector<32x32xbf16>
    %412 = tpu.concatenate %395, %398, %401, %404, %405, %406, %409, %410, %411 in 1 : vector<32x32xbf16>, vector<32x32xbf16>, vector<32x32xbf16>, vector<32x32xbf16>, vector<32x32xbf16>, vector<32x32xbf16>, vector<32x32xbf16>, vector<32x32xbf16>, vector<32x32xbf16> -> vector<32x288xbf16>
    %c0_106 = arith.constant 0 : index
    %c0_107 = arith.constant 0 : index
    %413 = vector.load %arg31[%c0_106, %c0_107] : memref<288x12xbf16, #tpu.memory_space<vmem>>, vector<288x12xbf16>
    %cst_108 = arith.constant dense<0.000000e+00> : vector<32x12xf32>
    %414 = tpu.matmul %412, %413, %cst_108 {dimension_numbers = #tpu.dot_dimension_numbers<[1], [0], [0], [1], [0, 0, 1, 1], [], []>} : vector<32x288xbf16>, vector<288x12xbf16>, vector<32x12xf32> -> vector<32x12xf32>
    %c0_109 = arith.constant 0 : index
    %c0_110 = arith.constant 0 : index
    %415 = vector.load %arg32[%c0_109, %c0_110] : memref<1x12xf32, #tpu.memory_space<vmem>>, vector<1x12xf32>
    %416 = vector.broadcast %415 : vector<1x12xf32> to vector<32x12xf32>
    %417 = arith.addf %414, %416 : vector<32x12xf32>
    %418 = vector.extract_strided_slice %392 {offsets = [2, 64], sizes = [32, 32], strides = [1, 1]} : vector<42x128xbf16> to vector<32x32xbf16>
    %419 = vector.broadcast %6 : vector<32x1xbf16> to vector<32x32xbf16>
    %420 = arith.mulf %418, %419 : vector<32x32xbf16>
    %421 = vector.extract_strided_slice %392 {offsets = [6, 0], sizes = [32, 32], strides = [1, 1]} : vector<42x128xbf16> to vector<32x32xbf16>
    %422 = vector.broadcast %4 : vector<32x1xbf16> to vector<32x32xbf16>
    %423 = arith.mulf %421, %422 : vector<32x32xbf16>
    %424 = vector.extract_strided_slice %392 {offsets = [6, 64], sizes = [32, 32], strides = [1, 1]} : vector<42x128xbf16> to vector<32x32xbf16>
    %425 = vector.broadcast %4 : vector<32x1xbf16> to vector<32x32xbf16>
    %426 = arith.mulf %424, %425 : vector<32x32xbf16>
    %427 = tpu.concatenate %398, %401, %420, %405, %406, %423, %410, %411, %426 in 1 : vector<32x32xbf16>, vector<32x32xbf16>, vector<32x32xbf16>, vector<32x32xbf16>, vector<32x32xbf16>, vector<32x32xbf16>, vector<32x32xbf16>, vector<32x32xbf16>, vector<32x32xbf16> -> vector<32x288xbf16>
    %c0_111 = arith.constant 0 : index
    %c0_112 = arith.constant 0 : index
    %428 = vector.load %arg31[%c0_111, %c0_112] : memref<288x12xbf16, #tpu.memory_space<vmem>>, vector<288x12xbf16>
    %cst_113 = arith.constant dense<0.000000e+00> : vector<32x12xf32>
    %429 = tpu.matmul %427, %428, %cst_113 {dimension_numbers = #tpu.dot_dimension_numbers<[1], [0], [0], [1], [0, 0, 1, 1], [], []>} : vector<32x288xbf16>, vector<288x12xbf16>, vector<32x12xf32> -> vector<32x12xf32>
    %c0_114 = arith.constant 0 : index
    %c0_115 = arith.constant 0 : index
    %430 = vector.load %arg32[%c0_114, %c0_115] : memref<1x12xf32, #tpu.memory_space<vmem>>, vector<1x12xf32>
    %431 = vector.broadcast %430 : vector<1x12xf32> to vector<32x12xf32>
    %432 = arith.addf %429, %431 : vector<32x12xf32>
    %433 = vector.extract_strided_slice %392 {offsets = [8, 32], sizes = [32, 32], strides = [1, 1]} : vector<42x128xbf16> to vector<32x32xbf16>
    %434 = vector.broadcast %7 : vector<32x1xbf16> to vector<32x32xbf16>
    %435 = arith.mulf %433, %434 : vector<32x32xbf16>
    %436 = vector.extract_strided_slice %392 {offsets = [9, 0], sizes = [32, 32], strides = [1, 1]} : vector<42x128xbf16> to vector<32x32xbf16>
    %437 = vector.broadcast %2 : vector<32x1xbf16> to vector<32x32xbf16>
    %438 = arith.mulf %436, %437 : vector<32x32xbf16>
    %439 = vector.extract_strided_slice %392 {offsets = [9, 32], sizes = [32, 32], strides = [1, 1]} : vector<42x128xbf16> to vector<32x32xbf16>
    %440 = vector.broadcast %2 : vector<32x1xbf16> to vector<32x32xbf16>
    %441 = arith.mulf %439, %440 : vector<32x32xbf16>
    %442 = tpu.concatenate %404, %405, %406, %409, %410, %411, %435, %438, %441 in 1 : vector<32x32xbf16>, vector<32x32xbf16>, vector<32x32xbf16>, vector<32x32xbf16>, vector<32x32xbf16>, vector<32x32xbf16>, vector<32x32xbf16>, vector<32x32xbf16>, vector<32x32xbf16> -> vector<32x288xbf16>
    %c0_116 = arith.constant 0 : index
    %c0_117 = arith.constant 0 : index
    %443 = vector.load %arg31[%c0_116, %c0_117] : memref<288x12xbf16, #tpu.memory_space<vmem>>, vector<288x12xbf16>
    %cst_118 = arith.constant dense<0.000000e+00> : vector<32x12xf32>
    %444 = tpu.matmul %442, %443, %cst_118 {dimension_numbers = #tpu.dot_dimension_numbers<[1], [0], [0], [1], [0, 0, 1, 1], [], []>} : vector<32x288xbf16>, vector<288x12xbf16>, vector<32x12xf32> -> vector<32x12xf32>
    %c0_119 = arith.constant 0 : index
    %c0_120 = arith.constant 0 : index
    %445 = vector.load %arg32[%c0_119, %c0_120] : memref<1x12xf32, #tpu.memory_space<vmem>>, vector<1x12xf32>
    %446 = vector.broadcast %445 : vector<1x12xf32> to vector<32x12xf32>
    %447 = arith.addf %444, %446 : vector<32x12xf32>
    %448 = vector.extract_strided_slice %392 {offsets = [10, 0], sizes = [32, 32], strides = [1, 1]} : vector<42x128xbf16> to vector<32x32xbf16>
    %449 = vector.broadcast %8 : vector<32x1xbf16> to vector<32x32xbf16>
    %450 = arith.mulf %448, %449 : vector<32x32xbf16>
    %451 = tpu.concatenate %405, %406, %423, %410, %411, %426, %438, %441, %450 in 1 : vector<32x32xbf16>, vector<32x32xbf16>, vector<32x32xbf16>, vector<32x32xbf16>, vector<32x32xbf16>, vector<32x32xbf16>, vector<32x32xbf16>, vector<32x32xbf16>, vector<32x32xbf16> -> vector<32x288xbf16>
    %c0_121 = arith.constant 0 : index
    %c0_122 = arith.constant 0 : index
    %452 = vector.load %arg31[%c0_121, %c0_122] : memref<288x12xbf16, #tpu.memory_space<vmem>>, vector<288x12xbf16>
    %cst_123 = arith.constant dense<0.000000e+00> : vector<32x12xf32>
    %453 = tpu.matmul %451, %452, %cst_123 {dimension_numbers = #tpu.dot_dimension_numbers<[1], [0], [0], [1], [0, 0, 1, 1], [], []>} : vector<32x288xbf16>, vector<288x12xbf16>, vector<32x12xf32> -> vector<32x12xf32>
    %c0_124 = arith.constant 0 : index
    %c0_125 = arith.constant 0 : index
    %454 = vector.load %arg32[%c0_124, %c0_125] : memref<1x12xf32, #tpu.memory_space<vmem>>, vector<1x12xf32>
    %455 = vector.broadcast %454 : vector<1x12xf32> to vector<32x12xf32>
    %456 = arith.addf %453, %455 : vector<32x12xf32>
    %457 = tpu.concatenate %417, %432, %447, %456 in 1 : vector<32x12xf32>, vector<32x12xf32>, vector<32x12xf32>, vector<32x12xf32> -> vector<32x48xf32>
    %458 = vector.shape_cast %457 : vector<32x48xf32> to vector<2x16x48xf32>
    %c0_126 = arith.constant 0 : index
    %c0_127 = arith.constant 0 : index
    %c0_128 = arith.constant 0 : index
    %459 = vector.load %arg35[%c0_126, %c0_127, %c0_128] : memref<2x16x48xf32, #tpu.memory_space<vmem>>, vector<2x16x48xf32>
    tpu.vector_store %arg35[%c0_126, %c0_127, %c0_128], %458 {strides = array<i32>} : memref<2x16x48xf32, #tpu.memory_space<vmem>>, vector<2x16x48xf32>,
    return
  }
  func.func @transform_0(%arg0: i32) -> (i32, i32, i32) {
    %c0_i32 = arith.constant 0 : i32
    %c0_i32_0 = arith.constant 0 : i32
    %c0_i32_1 = arith.constant 0 : i32
    return %arg0, %c0_i32, %c0_i32_0 : i32, i32, i32
  }
  func.func @transform_1(%arg0: i32) -> (i32, i32) {
    %c0_i32 = arith.constant 0 : i32
    %c0_i32_0 = arith.constant 0 : i32
    %c0_i32_1 = arith.constant 0 : i32
    return %c0_i32, %c0_i32_0 : i32, i32
  }
  func.func @transform_2(%arg0: i32) -> (i32, i32) {
    %c0_i32 = arith.constant 0 : i32
    %c0_i32_0 = arith.constant 0 : i32
    %c0_i32_1 = arith.constant 0 : i32
    return %c0_i32, %c0_i32_0 : i32, i32
  }
  func.func @transform_3(%arg0: i32) -> (i32, i32) {
    %c0_i32 = arith.constant 0 : i32
    %c0_i32_0 = arith.constant 0 : i32
    %c0_i32_1 = arith.constant 0 : i32
    return %c0_i32, %c0_i32_0 : i32, i32
  }
  func.func @transform_4(%arg0: i32) -> (i32, i32) {
    %c0_i32 = arith.constant 0 : i32
    %c0_i32_0 = arith.constant 0 : i32
    %c0_i32_1 = arith.constant 0 : i32
    return %c0_i32, %c0_i32_0 : i32, i32
  }
  func.func @transform_5(%arg0: i32) -> (i32, i32) {
    %c0_i32 = arith.constant 0 : i32
    %c0_i32_0 = arith.constant 0 : i32
    %c0_i32_1 = arith.constant 0 : i32
    return %c0_i32, %c0_i32_0 : i32, i32
  }
  func.func @transform_6(%arg0: i32) -> (i32, i32) {
    %c0_i32 = arith.constant 0 : i32
    %c0_i32_0 = arith.constant 0 : i32
    %c0_i32_1 = arith.constant 0 : i32
    return %c0_i32, %c0_i32_0 : i32, i32
  }
  func.func @transform_7(%arg0: i32) -> (i32, i32) {
    %c0_i32 = arith.constant 0 : i32
    %c0_i32_0 = arith.constant 0 : i32
    %c0_i32_1 = arith.constant 0 : i32
    return %c0_i32, %c0_i32_0 : i32, i32
  }
  func.func @transform_8(%arg0: i32) -> (i32, i32) {
    %c0_i32 = arith.constant 0 : i32
    %c0_i32_0 = arith.constant 0 : i32
    %c0_i32_1 = arith.constant 0 : i32
    return %c0_i32, %c0_i32_0 : i32, i32
  }
  func.func @transform_9(%arg0: i32) -> (i32, i32) {
    %c0_i32 = arith.constant 0 : i32
    %c0_i32_0 = arith.constant 0 : i32
    %c0_i32_1 = arith.constant 0 : i32
    return %c0_i32, %c0_i32_0 : i32, i32
  }
  func.func @transform_10(%arg0: i32) -> (i32, i32) {
    %c0_i32 = arith.constant 0 : i32
    %c0_i32_0 = arith.constant 0 : i32
    %c0_i32_1 = arith.constant 0 : i32
    return %c0_i32, %c0_i32_0 : i32, i32
  }
  func.func @transform_11(%arg0: i32) -> (i32, i32) {
    %c0_i32 = arith.constant 0 : i32
    %c0_i32_0 = arith.constant 0 : i32
    %c0_i32_1 = arith.constant 0 : i32
    return %c0_i32, %c0_i32_0 : i32, i32
  }
  func.func @transform_12(%arg0: i32) -> (i32, i32) {
    %c0_i32 = arith.constant 0 : i32
    %c0_i32_0 = arith.constant 0 : i32
    %c0_i32_1 = arith.constant 0 : i32
    return %c0_i32, %c0_i32_0 : i32, i32
  }
  func.func @transform_13(%arg0: i32) -> (i32, i32) {
    %c0_i32 = arith.constant 0 : i32
    %c0_i32_0 = arith.constant 0 : i32
    %c0_i32_1 = arith.constant 0 : i32
    return %c0_i32, %c0_i32_0 : i32, i32
  }
  func.func @transform_14(%arg0: i32) -> (i32, i32) {
    %c0_i32 = arith.constant 0 : i32
    %c0_i32_0 = arith.constant 0 : i32
    %c0_i32_1 = arith.constant 0 : i32
    return %c0_i32, %c0_i32_0 : i32, i32
  }
  func.func @transform_15(%arg0: i32) -> (i32, i32) {
    %c0_i32 = arith.constant 0 : i32
    %c0_i32_0 = arith.constant 0 : i32
    %c0_i32_1 = arith.constant 0 : i32
    return %c0_i32, %c0_i32_0 : i32, i32
  }
  func.func @transform_16(%arg0: i32) -> (i32, i32) {
    %c0_i32 = arith.constant 0 : i32
    %c0_i32_0 = arith.constant 0 : i32
    %c0_i32_1 = arith.constant 0 : i32
    return %c0_i32, %c0_i32_0 : i32, i32
  }
  func.func @transform_17(%arg0: i32) -> (i32, i32) {
    %c0_i32 = arith.constant 0 : i32
    %c0_i32_0 = arith.constant 0 : i32
    %c0_i32_1 = arith.constant 0 : i32
    return %c0_i32, %c0_i32_0 : i32, i32
  }
  func.func @transform_18(%arg0: i32) -> (i32, i32) {
    %c0_i32 = arith.constant 0 : i32
    %c0_i32_0 = arith.constant 0 : i32
    %c0_i32_1 = arith.constant 0 : i32
    return %c0_i32, %c0_i32_0 : i32, i32
  }
  func.func @transform_19(%arg0: i32) -> (i32, i32) {
    %c0_i32 = arith.constant 0 : i32
    %c0_i32_0 = arith.constant 0 : i32
    %c0_i32_1 = arith.constant 0 : i32
    return %c0_i32, %c0_i32_0 : i32, i32
  }
  func.func @transform_20(%arg0: i32) -> (i32, i32) {
    %c0_i32 = arith.constant 0 : i32
    %c0_i32_0 = arith.constant 0 : i32
    %c0_i32_1 = arith.constant 0 : i32
    return %c0_i32, %c0_i32_0 : i32, i32
  }
  func.func @transform_21(%arg0: i32) -> (i32, i32) {
    %c0_i32 = arith.constant 0 : i32
    %c0_i32_0 = arith.constant 0 : i32
    %c0_i32_1 = arith.constant 0 : i32
    return %c0_i32, %c0_i32_0 : i32, i32
  }
  func.func @transform_22(%arg0: i32) -> (i32, i32) {
    %c0_i32 = arith.constant 0 : i32
    %c0_i32_0 = arith.constant 0 : i32
    %c0_i32_1 = arith.constant 0 : i32
    return %c0_i32, %c0_i32_0 : i32, i32
  }
  func.func @transform_23(%arg0: i32) -> (i32, i32) {
    %c0_i32 = arith.constant 0 : i32
    %c0_i32_0 = arith.constant 0 : i32
    %c0_i32_1 = arith.constant 0 : i32
    return %c0_i32, %c0_i32_0 : i32, i32
  }
  func.func @transform_24(%arg0: i32) -> (i32, i32) {
    %c0_i32 = arith.constant 0 : i32
    %c0_i32_0 = arith.constant 0 : i32
    %c0_i32_1 = arith.constant 0 : i32
    return %c0_i32, %c0_i32_0 : i32, i32
  }
  func.func @transform_25(%arg0: i32) -> (i32, i32) {
    %c0_i32 = arith.constant 0 : i32
    %c0_i32_0 = arith.constant 0 : i32
    %c0_i32_1 = arith.constant 0 : i32
    return %c0_i32, %c0_i32_0 : i32, i32
  }
  func.func @transform_26(%arg0: i32) -> (i32, i32) {
    %c0_i32 = arith.constant 0 : i32
    %c0_i32_0 = arith.constant 0 : i32
    %c0_i32_1 = arith.constant 0 : i32
    return %c0_i32, %c0_i32_0 : i32, i32
  }
  func.func @transform_27(%arg0: i32) -> (i32, i32) {
    %c0_i32 = arith.constant 0 : i32
    %c0_i32_0 = arith.constant 0 : i32
    %c0_i32_1 = arith.constant 0 : i32
    return %c0_i32, %c0_i32_0 : i32, i32
  }
  func.func @transform_28(%arg0: i32) -> (i32, i32) {
    %c0_i32 = arith.constant 0 : i32
    %c0_i32_0 = arith.constant 0 : i32
    %c0_i32_1 = arith.constant 0 : i32
    return %c0_i32, %c0_i32_0 : i32, i32
  }
  func.func @transform_29(%arg0: i32) -> (i32, i32) {
    %c0_i32 = arith.constant 0 : i32
    %c0_i32_0 = arith.constant 0 : i32
    %c0_i32_1 = arith.constant 0 : i32
    return %c0_i32, %c0_i32_0 : i32, i32
  }
  func.func @transform_30(%arg0: i32) -> (i32, i32) {
    %c0_i32 = arith.constant 0 : i32
    %c0_i32_0 = arith.constant 0 : i32
    %c0_i32_1 = arith.constant 0 : i32
    return %c0_i32, %c0_i32_0 : i32, i32
  }
  func.func @transform_31(%arg0: i32) -> (i32, i32) {
    %c0_i32 = arith.constant 0 : i32
    %c0_i32_0 = arith.constant 0 : i32
    %c0_i32_1 = arith.constant 0 : i32
    return %c0_i32, %c0_i32_0 : i32, i32
  }
  func.func @transform_32(%arg0: i32) -> (i32, i32, i32) {
    %c0_i32 = arith.constant 0 : i32
    %c0_i32_0 = arith.constant 0 : i32
    %c0_i32_1 = arith.constant 0 : i32
    return %arg0, %c0_i32, %c0_i32_0 : i32, i32, i32
  }
  func.func @transform_33(%arg0: i32) -> (i32, i32, i32) {
    %c0_i32 = arith.constant 0 : i32
    %c0_i32_0 = arith.constant 0 : i32
    %c0_i32_1 = arith.constant 0 : i32
    return %arg0, %c0_i32, %c0_i32_0 : i32, i32, i32
  }
  func.func @transform_34(%arg0: i32) -> (i32, i32, i32) {
    %c0_i32 = arith.constant 0 : i32
    %c0_i32_0 = arith.constant 0 : i32
    %c0_i32_1 = arith.constant 0 : i32
    return %arg0, %c0_i32, %c0_i32_0 : i32, i32, i32
  }
}

</mosaic_0001>

<llo_original>
// kernel: vqvae_forward.1
$region0: #{vqvae_forward.1}
  #allocation0 [shape = 'u32[]', space=smem, size = 0x4, offset = 0x4, fixed_abs, tag = 'smem constant byte address 0x4 - core index']
  #allocation1 [shape = 'u32[144,128]{1,0:T(1,128)}', space=vmem, size = 0x12000, scoped, tag = 'internal scratch']
  %s0 = inlined_call_operand.smem [shape: u32[35], index: -1, kind: input, shape index: {}]
  %s1 = sld [smem:[%s0]]
  %s2 = scalar_lea.smem %s0, 1
  %s3 = sld [smem:[%s2]]
  %s4 = scalar_lea.smem %s0, 2
  %s5 = sld [smem:[%s4]]
  %s6 = scalar_lea.smem %s0, 3
  %s7 = sld [smem:[%s6]]
  %s8 = scalar_lea.smem %s0, 4
  %s9 = sld [smem:[%s8]]
  %s10 = scalar_lea.smem %s0, 5
  %s11 = sld [smem:[%s10]]
  %s12 = scalar_lea.smem %s0, 6
  %s13 = sld [smem:[%s12]]
  %s14 = scalar_lea.smem %s0, 7
  %s15 = sld [smem:[%s14]]
  %s16 = scalar_lea.smem %s0, 8
  %s17 = sld [smem:[%s16]]
  %s18 = scalar_lea.smem %s0, 9
  %s19 = sld [smem:[%s18]]
  %s20 = scalar_lea.smem %s0, 10
  %s21 = sld [smem:[%s20]]
  %s22 = scalar_lea.smem %s0, 11
  %s23 = sld [smem:[%s22]]
  %s24 = scalar_lea.smem %s0, 12
  %s25 = sld [smem:[%s24]]
  %s26 = scalar_lea.smem %s0, 13
  %s27 = sld [smem:[%s26]]
  %s28 = scalar_lea.smem %s0, 14
  %s29 = sld [smem:[%s28]]
  %s30 = scalar_lea.smem %s0, 15
  %s31 = sld [smem:[%s30]]
  %s32 = scalar_lea.smem %s0, 16
  %s33 = sld [smem:[%s32]]
  %s34 = scalar_lea.smem %s0, 17
  %s35 = sld [smem:[%s34]]
  %s36 = scalar_lea.smem %s0, 18
  %s37 = sld [smem:[%s36]]
  %s38 = scalar_lea.smem %s0, 19
  %s39 = sld [smem:[%s38]]
  %s40 = scalar_lea.smem %s0, 20
  %s41 = sld [smem:[%s40]]
  %s42 = scalar_lea.smem %s0, 21
  %s43 = sld [smem:[%s42]]
  %s44 = scalar_lea.smem %s0, 22
  %s45 = sld [smem:[%s44]]
  %s46 = scalar_lea.smem %s0, 23
  %s47 = sld [smem:[%s46]]
  %s48 = scalar_lea.smem %s0, 24
  %s49 = sld [smem:[%s48]]
  %s50 = scalar_lea.smem %s0, 25
  %s51 = sld [smem:[%s50]]
  %s52 = scalar_lea.smem %s0, 26
  %s53 = sld [smem:[%s52]]
  %s54 = scalar_lea.smem %s0, 27
  %s55 = sld [smem:[%s54]]
  %s56 = scalar_lea.smem %s0, 28
  %s57 = sld [smem:[%s56]]
  %s58 = scalar_lea.smem %s0, 29
  %s59 = sld [smem:[%s58]]
  %s60 = scalar_lea.smem %s0, 30
  %s61 = sld [smem:[%s60]]
  %s62 = scalar_lea.smem %s0, 31
  %s63 = sld [smem:[%s62]]
  %s64 = scalar_lea.smem %s0, 32
  %s65 = sld [smem:[%s64]]
  %s66 = scalar_lea.smem %s0, 33
  %s67 = sld [smem:[%s66]]
  %s68 = scalar_lea.smem %s0, 34
  %s69 = sld [smem:[%s68]]
  %70 = xla_tuple %s65, %s67, %s69
  %s71 = sld [smem:[#allocation0]]
  $region154: #{vqvae_forward.1} parent=0
    _
  %s73 = ssub.s32 1, %s71
  %s74 = scalar_select 0, %s73, %s71
  $region1: #{vqvae_forward.1} parent=0
    #allocation2 [shape = 'u8[16384]{0}', space=vmem, size = 0x4000, scoped, tag = 'output window, operand 0, single buffered']
    #allocation3 [shape = 's32[1]{0}', space=sflag, size = 0x4, scoped, tag = 'scoped memory for vqvae_forward.1']
    #allocation4 [shape = 'u8[16384]{0}', space=vmem, size = 0x4000, scoped, tag = 'output window, operand 1, single buffered']
    #allocation5 [shape = 's32[1]{0}', space=sflag, size = 0x4, scoped, tag = 'scoped memory for vqvae_forward.1']
    %75 = vsyncpa [#allocation3], 0
    %76 = vsyncpa [#allocation5], 0
    // Predicated region
    $region2: #{vqvae_forward.1} parent=1 // pred_check
      _
    $region3: #{vqvae_forward.1} parent=1 // pred_check_branch
      %78 = sbr.rel (0) target = $region5
    $region4: #{vqvae_forward.1} parent=1 // pred_region
      _
    $region5: #{vqvae_forward.1} parent=1 // pred_fallthru
      _
    // Predicated region
    $region6: #{vqvae_forward.1} parent=1 // pred_check
      _
    $region7: #{vqvae_forward.1} parent=1 // pred_check_branch
      %80 = sbr.rel (0) target = $region9
    $region8: #{vqvae_forward.1} parent=1 // pred_region
      _
    $region9: #{vqvae_forward.1} parent=1 // pred_fallthru
      _
    // Predicated region
    $region10: #{vqvae_forward.1} parent=1 // pred_check
      _
    $region11: #{vqvae_forward.1} parent=1 // pred_check_branch
      %82 = sbr.rel (0) target = $region13
    $region12: #{vqvae_forward.1} parent=1 // pred_region
      _
    $region13: #{vqvae_forward.1} parent=1 // pred_fallthru
      _
    // Predicated region
    $region14: #{vqvae_forward.1} parent=1 // pred_check
      _
    $region15: #{vqvae_forward.1} parent=1 // pred_check_branch
      %84 = sbr.rel (0) target = $region17
    $region16: #{vqvae_forward.1} parent=1 // pred_region
      _
    $region17: #{vqvae_forward.1} parent=1 // pred_fallthru
      _
    // Predicated region
    $region18: #{vqvae_forward.1} parent=1 // pred_check
      _
    $region19: #{vqvae_forward.1} parent=1 // pred_check_branch
      %86 = sbr.rel (0) target = $region21
    $region20: #{vqvae_forward.1} parent=1 // pred_region
      _
    $region21: #{vqvae_forward.1} parent=1 // pred_fallthru
      _
    // Predicated region
    $region22: #{vqvae_forward.1} parent=1 // pred_check
      _
    $region23: #{vqvae_forward.1} parent=1 // pred_check_branch
      %88 = sbr.rel (0) target = $region25
    $region24: #{vqvae_forward.1} parent=1 // pred_region
      _
    $region25: #{vqvae_forward.1} parent=1 // pred_fallthru
      _
    // Predicated region
    $region26: #{vqvae_forward.1} parent=1 // pred_check
      _
    $region27: #{vqvae_forward.1} parent=1 // pred_check_branch
      %90 = sbr.rel (0) target = $region29
    $region28: #{vqvae_forward.1} parent=1 // pred_region
      _
    $region29: #{vqvae_forward.1} parent=1 // pred_fallthru
      _
    // Predicated region
    $region30: #{vqvae_forward.1} parent=1 // pred_check
      _
    $region31: #{vqvae_forward.1} parent=1 // pred_check_branch
      %92 = sbr.rel (0) target = $region33
    $region32: #{vqvae_forward.1} parent=1 // pred_region
      _
    $region33: #{vqvae_forward.1} parent=1 // pred_fallthru
      _
    // Predicated region
    $region34: #{vqvae_forward.1} parent=1 // pred_check
      _
    $region35: #{vqvae_forward.1} parent=1 // pred_check_branch
      %94 = sbr.rel (0) target = $region37
    $region36: #{vqvae_forward.1} parent=1 // pred_region
      _
    $region37: #{vqvae_forward.1} parent=1 // pred_fallthru
      _
    // Predicated region
    $region38: #{vqvae_forward.1} parent=1 // pred_check
      _
    $region39: #{vqvae_forward.1} parent=1 // pred_check_branch
      %96 = sbr.rel (0) target = $region41
    $region40: #{vqvae_forward.1} parent=1 // pred_region
      _
    $region41: #{vqvae_forward.1} parent=1 // pred_fallthru
      _
    // Predicated region
    $region42: #{vqvae_forward.1} parent=1 // pred_check
      _
    $region43: #{vqvae_forward.1} parent=1 // pred_check_branch
      %98 = sbr.rel (0) target = $region45
    $region44: #{vqvae_forward.1} parent=1 // pred_region
      _
    $region45: #{vqvae_forward.1} parent=1 // pred_fallthru
      _
    // Predicated region
    $region46: #{vqvae_forward.1} parent=1 // pred_check
      _
    $region47: #{vqvae_forward.1} parent=1 // pred_check_branch
      %100 = sbr.rel (0) target = $region49
    $region48: #{vqvae_forward.1} parent=1 // pred_region
      _
    $region49: #{vqvae_forward.1} parent=1 // pred_fallthru
      _
    // Predicated region
    $region50: #{vqvae_forward.1} parent=1 // pred_check
      _
    $region51: #{vqvae_forward.1} parent=1 // pred_check_branch
      %102 = sbr.rel (0) target = $region53
    $region52: #{vqvae_forward.1} parent=1 // pred_region
      _
    $region53: #{vqvae_forward.1} parent=1 // pred_fallthru
      _
    // Predicated region
    $region54: #{vqvae_forward.1} parent=1 // pred_check
      _
    $region55: #{vqvae_forward.1} parent=1 // pred_check_branch
      %104 = sbr.rel (0) target = $region57
    $region56: #{vqvae_forward.1} parent=1 // pred_region
      _
    $region57: #{vqvae_forward.1} parent=1 // pred_fallthru
      _
    // Predicated region
    $region58: #{vqvae_forward.1} parent=1 // pred_check
      _
    $region59: #{vqvae_forward.1} parent=1 // pred_check_branch
      %106 = sbr.rel (0) target = $region61
    $region60: #{vqvae_forward.1} parent=1 // pred_region
      _
    $region61: #{vqvae_forward.1} parent=1 // pred_fallthru
      _
    // Predicated region
    $region62: #{vqvae_forward.1} parent=1 // pred_check
      _
    $region63: #{vqvae_forward.1} parent=1 // pred_check_branch
      %108 = sbr.rel (0) target = $region65
    $region64: #{vqvae_forward.1} parent=1 // pred_region
      _
    $region65: #{vqvae_forward.1} parent=1 // pred_fallthru
      _
    // Predicated region
    $region66: #{vqvae_forward.1} parent=1 // pred_check
      _
    $region67: #{vqvae_forward.1} parent=1 // pred_check_branch
      %110 = sbr.rel (0) target = $region69
    $region68: #{vqvae_forward.1} parent=1 // pred_region
      _
    $region69: #{vqvae_forward.1} parent=1 // pred_fallthru
      _
    // Predicated region
    $region70: #{vqvae_forward.1} parent=1 // pred_check
      _
    $region71: #{vqvae_forward.1} parent=1 // pred_check_branch
      %112 = sbr.rel (0) target = $region73
    $region72: #{vqvae_forward.1} parent=1 // pred_region
      _
    $region73: #{vqvae_forward.1} parent=1 // pred_fallthru
      _
    // Predicated region
    $region74: #{vqvae_forward.1} parent=1 // pred_check
      _
    $region75: #{vqvae_forward.1} parent=1 // pred_check_branch
      %114 = sbr.rel (0) target = $region77
    $region76: #{vqvae_forward.1} parent=1 // pred_region
      _
    $region77: #{vqvae_forward.1} parent=1 // pred_fallthru
      _
    // Predicated region
    $region78: #{vqvae_forward.1} parent=1 // pred_check
      _
    $region79: #{vqvae_forward.1} parent=1 // pred_check_branch
      %116 = sbr.rel (0) target = $region81
    $region80: #{vqvae_forward.1} parent=1 // pred_region
      _
    $region81: #{vqvae_forward.1} parent=1 // pred_fallthru
      _
    // Predicated region
    $region82: #{vqvae_forward.1} parent=1 // pred_check
      _
    $region83: #{vqvae_forward.1} parent=1 // pred_check_branch
      %118 = sbr.rel (0) target = $region85
    $region84: #{vqvae_forward.1} parent=1 // pred_region
      _
    $region85: #{vqvae_forward.1} parent=1 // pred_fallthru
      _
    // Predicated region
    $region86: #{vqvae_forward.1} parent=1 // pred_check
      _
    $region87: #{vqvae_forward.1} parent=1 // pred_check_branch
      %120 = sbr.rel (0) target = $region89
    $region88: #{vqvae_forward.1} parent=1 // pred_region
      _
    $region89: #{vqvae_forward.1} parent=1 // pred_fallthru
      _
    // Predicated region
    $region90: #{vqvae_forward.1} parent=1 // pred_check
      _
    $region91: #{vqvae_forward.1} parent=1 // pred_check_branch
      %122 = sbr.rel (0) target = $region93
    $region92: #{vqvae_forward.1} parent=1 // pred_region
      _
    $region93: #{vqvae_forward.1} parent=1 // pred_fallthru
      _
    // Predicated region
    $region94: #{vqvae_forward.1} parent=1 // pred_check
      _
    $region95: #{vqvae_forward.1} parent=1 // pred_check_branch
      %124 = sbr.rel (0) target = $region97
    $region96: #{vqvae_forward.1} parent=1 // pred_region
      _
    $region97: #{vqvae_forward.1} parent=1 // pred_fallthru
      _
    // Predicated region
    $region98: #{vqvae_forward.1} parent=1 // pred_check
      _
    $region99: #{vqvae_forward.1} parent=1 // pred_check_branch
      %126 = sbr.rel (0) target = $region101
    $region100: #{vqvae_forward.1} parent=1 // pred_region
      _
    $region101: #{vqvae_forward.1} parent=1 // pred_fallthru
      _
    // Predicated region
    $region102: #{vqvae_forward.1} parent=1 // pred_check
      _
    $region103: #{vqvae_forward.1} parent=1 // pred_check_branch
      %128 = sbr.rel (0) target = $region105
    $region104: #{vqvae_forward.1} parent=1 // pred_region
      _
    $region105: #{vqvae_forward.1} parent=1 // pred_fallthru
      _
    // Predicated region
    $region106: #{vqvae_forward.1} parent=1 // pred_check
      _
    $region107: #{vqvae_forward.1} parent=1 // pred_check_branch
      %130 = sbr.rel (0) target = $region109
    $region108: #{vqvae_forward.1} parent=1 // pred_region
      _
    $region109: #{vqvae_forward.1} parent=1 // pred_fallthru
      _
    // Predicated region
    $region110: #{vqvae_forward.1} parent=1 // pred_check
      _
    $region111: #{vqvae_forward.1} parent=1 // pred_check_branch
      %132 = sbr.rel (0) target = $region113
    $region112: #{vqvae_forward.1} parent=1 // pred_region
      _
    $region113: #{vqvae_forward.1} parent=1 // pred_fallthru
      _
    // Predicated region
    $region114: #{vqvae_forward.1} parent=1 // pred_check
      _
    $region115: #{vqvae_forward.1} parent=1 // pred_check_branch
      %134 = sbr.rel (0) target = $region117
    $region116: #{vqvae_forward.1} parent=1 // pred_region
      _
    $region117: #{vqvae_forward.1} parent=1 // pred_fallthru
      _
    // Predicated region
    $region118: #{vqvae_forward.1} parent=1 // pred_check
      _
    $region119: #{vqvae_forward.1} parent=1 // pred_check_branch
      %136 = sbr.rel (0) target = $region121
    $region120: #{vqvae_forward.1} parent=1 // pred_region
      _
    $region121: #{vqvae_forward.1} parent=1 // pred_fallthru
      _
    // Predicated region
    $region122: #{vqvae_forward.1} parent=1 // pred_check
      _
    $region123: #{vqvae_forward.1} parent=1 // pred_check_branch
      %138 = sbr.rel (0) target = $region125
    $region124: #{vqvae_forward.1} parent=1 // pred_region
      _
    $region125: #{vqvae_forward.1} parent=1 // pred_fallthru
      _
    // Predicated region
    $region126: #{vqvae_forward.1} parent=1 // pred_check
      _
    $region127: #{vqvae_forward.1} parent=1 // pred_check_branch
      %140 = sbr.rel (0) target = $region129
    $region128: #{vqvae_forward.1} parent=1 // pred_region
      _
    $region129: #{vqvae_forward.1} parent=1 // pred_fallthru
      _
    %v142 = vld [vmem:[%s3] sm:$0xf]
    %v143 = vld [vmem:[%s3 + $0x4] sm:$0xf]
    %v144 = vld [vmem:[%s3 + $0x8] sm:$0xf]
    %v145 = vld [vmem:[%s3 + $0xc] sm:$0xf]
    %150 = vrot.lane.b32.xlu0 %v142, 126
    %v151 = vpop.permute.xlu0 %150
    %152 = vrot.lane.b32.xlu0 %v143, 126
    %v153 = vpop.permute.xlu0 %152
    %154 = vrot.lane.b32.xlu0 %v144, 126
    %v155 = vpop.permute.xlu0 %154
    %156 = vrot.lane.b32.xlu0 %v145, 126
    %v157 = vpop.permute.xlu0 %156
    %v162 = vmul.bf16 %v142, %v151
    %v163 = vmul.bf16 %v143, %v153
    %v164 = vmul.bf16 %v144, %v155
    %v165 = vmul.bf16 %v145, %v157
    %166 = vrot.lane.b32.xlu0 %v142, 125
    %v167 = vpop.permute.xlu0 %166
    %168 = vrot.lane.b32.xlu0 %v143, 125
    %v169 = vpop.permute.xlu0 %168
    %170 = vrot.lane.b32.xlu0 %v144, 125
    %v171 = vpop.permute.xlu0 %170
    %172 = vrot.lane.b32.xlu0 %v145, 125
    %v173 = vpop.permute.xlu0 %172
    %v178 = vmul.bf16 %v142, %v167
    %v179 = vmul.bf16 %v143, %v169
    %v180 = vmul.bf16 %v144, %v171
    %v181 = vmul.bf16 %v145, %v173
    %182 = vrot.lane.b32.xlu0 %v142, 127
    %v183 = vpop.permute.xlu0 %182
    %184 = vrot.lane.b32.xlu0 %v143, 127
    %v185 = vpop.permute.xlu0 %184
    %186 = vrot.lane.b32.xlu0 %v144, 127
    %v187 = vpop.permute.xlu0 %186
    %188 = vrot.lane.b32.xlu0 %v145, 127
    %v189 = vpop.permute.xlu0 %188
    %v194 = vmul.bf16 %v142, %v183
    %v195 = vmul.bf16 %v143, %v185
    %v196 = vmul.bf16 %v144, %v187
    %v197 = vmul.bf16 %v145, %v189
    %v198 = vld [vmem:[%s1] sm:$0xf]
    %v199 = vld [vmem:[%s1 + $0x4] sm:$0xf]
    %v200 = vld [vmem:[%s1 + $0x8] sm:$0xf]
    %v201 = vld [vmem:[%s1 + $0xc] sm:$0xf]
    %v202 = vld [vmem:[%s1 + $0x10] sm:$0xf]
    %v203 = vld [vmem:[%s1 + $0x14] sm:$0xf]
    %v204 = vld [vmem:[%s1 + $0x18] sm:$0xf]
    %v205 = vld [vmem:[%s1 + $0x1c] sm:$0xf]
    %v206 = vld [vmem:[%s1 + $0x20] sm:$0xf]
    %v207 = vld [vmem:[%s1 + $0x24] sm:$0xf]
    %v208 = vld [vmem:[%s1 + $0x28] sm:$0xf]
    %v209 = vld [vmem:[%s1 + $0x2c] sm:$0xf]
    %v210 = vld [vmem:[%s1 + $0x30] sm:$0xf]
    %v211 = vld [vmem:[%s1 + $0x34] sm:$0xf]
    %v212 = vld [vmem:[%s1 + $0x38] sm:$0xf]
    %v213 = vld [vmem:[%s1 + $0x3c] sm:$0xf]
    %v214 = vld [vmem:[%s5] sm:$0xf]
    %v215 = vld [vmem:[%s5 + $0x4] sm:$0xf]
    %v216 = vld [vmem:[%s5 + $0x8] sm:$0xf]
    %v217 = vld [vmem:[%s5 + $0xc] sm:$0xf]
    %v218 = vld [vmem:[%s5 + $0x10] sm:$0xf]
    %v219 = vld [vmem:[%s5 + $0x14] sm:$0xf]
    %v220 = vld [vmem:[%s7] sm:$0x1]
    %v222 = vlaneseq
    %v223 = vshrl.u32 %v222, 7
    %v224 = vsub.s32 0, %v223
    %v225 = vrot.slane %v220, %v224
    %v243 = vunpack.c.l.b16 %v198
    %v244 = vunpack.c.l.b16 %v199
    %v245 = vunpack.c.l.b16 %v200
    %v246 = vunpack.c.l.b16 %v201
    %v247 = vunpack.c.l.b16 %v202
    %v248 = vunpack.c.l.b16 %v203
    %v249 = vunpack.c.l.b16 %v204
    %v250 = vunpack.c.l.b16 %v205
    %v251 = vunpack.c.l.b16 %v206
    %v252 = vunpack.c.l.b16 %v207
    %v253 = vunpack.c.l.b16 %v208
    %v254 = vunpack.c.l.b16 %v209
    %v255 = vunpack.c.l.b16 %v210
    %v256 = vunpack.c.l.b16 %v211
    %v257 = vunpack.c.l.b16 %v212
    %v258 = vunpack.c.l.b16 %v213
    %v259 = vpack.c.b16 %v244, %v243
    %v260 = vpack.c.b16 %v246, %v245
    %v261 = vpack.c.b16 %v248, %v247
    %v262 = vpack.c.b16 %v250, %v249
    %v263 = vpack.c.b16 %v252, %v251
    %v264 = vpack.c.b16 %v254, %v253
    %v265 = vpack.c.b16 %v256, %v255
    %v266 = vpack.c.b16 %v258, %v257
    %v273 = vunpack.c.l.b16 %v214
    %v274 = vunpack.c.l.b16 %v215
    %v275 = vunpack.c.l.b16 %v216
    %v276 = vunpack.c.l.b16 %v217
    %v277 = vunpack.c.l.b16 %v218
    %v278 = vunpack.c.l.b16 %v219
    %v279 = vpack.c.b16 %v274, %v273
    %v280 = vpack.c.b16 %v276, %v275
    %v281 = vpack.c.b16 %v278, %v277
    %vm285 = vcmask 392192
    %v287 = vsel %vm285, %v259, 0
    %v290 = vsel %vm285, %v260, 0
    %v293 = vsel %vm285, %v261, 0
    %v296 = vsel %vm285, %v262, 0
    %v299 = vsel %vm285, %v263, 0
    %v302 = vsel %vm285, %v264, 0
    %v305 = vsel %vm285, %v265, 0
    %v308 = vsel %vm285, %v266, 0
    %310 = vmatprep.subr.bf16.mxu0 0
    %311 = vmatpush1.bf16.msra.mxu0 %v279
    %312 = vmatprep.subr.bf16.mxu0 0
    %313 = vmatpush1.bf16.msra.mxu0 %v280
    %314 = vmatprep.subr.bf16.mxu0 0
    %315 = vmatpush1.bf16.msra.mxu0 %v281
    %316 = vmatprep.subr.bf16.mxu0 0
    %317 = vmatpush1.bf16.msra.mxu0 0
    %318 = vmatprep.subr.bf16.mxu0 0
    %319 = vmatpush1.bf16.msra.mxu0 0
    %320 = vmatprep.subr.bf16.mxu0 0
    %321 = vmatpush1.bf16.msra.mxu0 0
    %322 = vmatprep.subr.bf16.mxu0 0
    %323 = vmatpush1.bf16.msra.mxu0 0
    %324 = vmatprep.subr.bf16.mxu0 0
    %325 = vmatpush1.bf16.msra.mxu0 0
    %326 = vmatprep.subr.bf16.mxu0 0
    %327 = vmatpush1.bf16.msra.mxu0 0
    %328 = vmatprep.subr.bf16.mxu0 0
    %329 = vmatpush1.bf16.msra.mxu0 0
    %330 = vmatprep.subr.bf16.mxu0 0
    %331 = vmatpush1.bf16.msra.mxu0 0
    %332 = vmatprep.subr.bf16.mxu0 0
    %333 = vmatpush1.bf16.msra.mxu0 0
    %334 = vmatprep.subr.bf16.mxu0 0
    %335 = vmatpush1.bf16.msra.mxu0 0
    %336 = vmatprep.subr.bf16.mxu0 0
    %337 = vmatpush1.bf16.msra.mxu0 0
    %338 = vmatprep.subr.bf16.mxu0 0
    %339 = vmatpush1.bf16.msra.mxu0 0
    %340 = vmatprep.subr.bf16.mxu0 0
    %341 = vmatpush1.bf16.msra.mxu0 0
    %342 = vmatprep.mubr.bf16.mxu0 0
    %343 = vmatmul.mubr.bf16.gmra.mrb[0].mxu0 %v287
    %v344 = vpop.f32.mrb[0].mxu0
    %v345 = vadd.f32 %v225, %v344
    %v346 = vpop.f32.mrb[0].mxu0
    %v347 = vpop.f32.mrb[0].mxu0
    %v348 = vadd.f32 %v225, %v347
    %v349 = vpop.f32.mrb[0].mxu0
    %350 = vmatprep.mubr.bf16.mxu0 0
    %351 = vmatmul.mubr.bf16.gmra.mrb[0].mxu0 %v290
    %v352 = vpop.f32.mrb[0].mxu0
    %v353 = vadd.f32 %v225, %v352
    %v354 = vpop.f32.mrb[0].mxu0
    %v355 = vpop.f32.mrb[0].mxu0
    %v356 = vadd.f32 %v225, %v355
    %v357 = vpop.f32.mrb[0].mxu0
    %358 = vmatprep.mubr.bf16.mxu0 0
    %359 = vmatmul.mubr.bf16.gmra.mrb[0].mxu0 %v293
    %v360 = vpop.f32.mrb[0].mxu0
    %v361 = vadd.f32 %v225, %v360
    %v362 = vpop.f32.mrb[0].mxu0
    %v363 = vpop.f32.mrb[0].mxu0
    %v364 = vadd.f32 %v225, %v363
    %v365 = vpop.f32.mrb[0].mxu0
    %366 = vmatprep.mubr.bf16.mxu0 0
    %367 = vmatmul.mubr.bf16.gmra.mrb[0].mxu0 %v296
    %v368 = vpop.f32.mrb[0].mxu0
    %v369 = vadd.f32 %v225, %v368
    %v370 = vpop.f32.mrb[0].mxu0
    %v371 = vpop.f32.mrb[0].mxu0
    %v372 = vadd.f32 %v225, %v371
    %v373 = vpop.f32.mrb[0].mxu0
    %374 = vmatprep.mubr.bf16.mxu0 0
    %375 = vmatmul.mubr.bf16.gmra.mrb[0].mxu0 %v299
    %v376 = vpop.f32.mrb[0].mxu0
    %v377 = vadd.f32 %v225, %v376
    %v378 = vpop.f32.mrb[0].mxu0
    %v379 = vpop.f32.mrb[0].mxu0
    %v380 = vadd.f32 %v225, %v379
    %v381 = vpop.f32.mrb[0].mxu0
    %382 = vmatprep.mubr.bf16.mxu0 0
    %383 = vmatmul.mubr.bf16.gmra.mrb[0].mxu0 %v302
    %v384 = vpop.f32.mrb[0].mxu0
    %v385 = vadd.f32 %v225, %v384
    %v386 = vpop.f32.mrb[0].mxu0
    %v387 = vpop.f32.mrb[0].mxu0
    %v388 = vadd.f32 %v225, %v387
    %v389 = vpop.f32.mrb[0].mxu0
    %390 = vmatprep.mubr.bf16.mxu0 0
    %391 = vmatmul.mubr.bf16.gmra.mrb[0].mxu0 %v305
    %v392 = vpop.f32.mrb[0].mxu0
    %v393 = vadd.f32 %v225, %v392
    %v394 = vpop.f32.mrb[0].mxu0
    %v395 = vpop.f32.mrb[0].mxu0
    %v396 = vadd.f32 %v225, %v395
    %v397 = vpop.f32.mrb[0].mxu0
    %398 = vmatprep.mubr.bf16.mxu0 0
    %399 = vmatmul.mubr.bf16.gmra.mrb[0].mxu0 %v308
    %v400 = vpop.f32.mrb[0].mxu0
    %v401 = vadd.f32 %v225, %v400
    %v402 = vpop.f32.mrb[0].mxu0
    %v403 = vpop.f32.mrb[0].mxu0
    %v404 = vadd.f32 %v225, %v403
    %v405 = vpop.f32.mrb[0].mxu0
    %406 = vdwg.mxu0
    %v407 = vmax.f32 %v345, 0.0
    %v408 = vmax.f32 %v348, 0.0
    %v409 = vmax.f32 %v353, 0.0
    %v410 = vmax.f32 %v356, 0.0
    %v411 = vmax.f32 %v361, 0.0
    %v412 = vmax.f32 %v364, 0.0
    %v413 = vmax.f32 %v369, 0.0
    %v414 = vmax.f32 %v372, 0.0
    %v415 = vmax.f32 %v377, 0.0
    %v416 = vmax.f32 %v380, 0.0
    %v417 = vmax.f32 %v385, 0.0
    %v418 = vmax.f32 %v388, 0.0
    %v419 = vmax.f32 %v393, 0.0
    %v420 = vmax.f32 %v396, 0.0
    %v421 = vmax.f32 %v401, 0.0
    %v422 = vmax.f32 %v404, 0.0
    %v423 = vpack.c.bf16 %v408, %v407
    %v424 = vpack.c.bf16 %v410, %v409
    %v425 = vpack.c.bf16 %v412, %v411
    %v426 = vpack.c.bf16 %v414, %v413
    %v427 = vpack.c.bf16 %v416, %v415
    %v428 = vpack.c.bf16 %v418, %v417
    %v429 = vpack.c.bf16 %v420, %v419
    %v430 = vpack.c.bf16 %v422, %v421
    %vm431 = vsmask.f32 2304
    %v433 = vshrl.u32 %v423, 16
    %v435 = vrot.slane %v433, 5
    %v436 = vshll.u32 %v423, 16
    %v438 = vrot.slane %v436, 6
    %v439 = vor.u32 %v435, %v438
    %v441 = vshrl.u32 %v424, 16
    %v443 = vrot.slane %v441, 5
    %v444 = vshll.u32 %v424, 16
    %v446 = vrot.slane %v444, 6
    %v447 = vor.u32 %v443, %v446
    %v448 = vsel %vm431, %v439, %v447
    %vm452 = vcmask 1042432
    %vm453 = vmand %vm452, %vm431
    %v454 = vsel %vm453, 0, %v439
    %v455 = vsel %vm453, %v447, 0
    %v457 = vshrl.u32 %v425, 16
    %v459 = vrot.slane %v457, 5
    %v460 = vshll.u32 %v425, 16
    %v462 = vrot.slane %v460, 6
    %v463 = vor.u32 %v459, %v462
    %v465 = vshrl.u32 %v426, 16
    %v467 = vrot.slane %v465, 5
    %v468 = vshll.u32 %v426, 16
    %v470 = vrot.slane %v468, 6
    %v471 = vor.u32 %v467, %v470
    %v472 = vsel %vm431, %v463, %v471
    %v476 = vsel %vm453, 0, %v463
    %v477 = vsel %vm453, %v471, 0
    %v479 = vshrl.u32 %v427, 16
    %v481 = vrot.slane %v479, 5
    %v482 = vshll.u32 %v427, 16
    %v484 = vrot.slane %v482, 6
    %v485 = vor.u32 %v481, %v484
    %v487 = vshrl.u32 %v428, 16
    %v489 = vrot.slane %v487, 5
    %v490 = vshll.u32 %v428, 16
    %v492 = vrot.slane %v490, 6
    %v493 = vor.u32 %v489, %v492
    %v494 = vsel %vm431, %v485, %v493
    %v498 = vsel %vm453, 0, %v485
    %v499 = vsel %vm453, %v493, 0
    %v501 = vshrl.u32 %v429, 16
    %v503 = vrot.slane %v501, 5
    %v504 = vshll.u32 %v429, 16
    %v506 = vrot.slane %v504, 6
    %v507 = vor.u32 %v503, %v506
    %v509 = vshrl.u32 %v430, 16
    %v511 = vrot.slane %v509, 5
    %v512 = vshll.u32 %v430, 16
    %v514 = vrot.slane %v512, 6
    %v515 = vor.u32 %v511, %v514
    %v516 = vsel %vm431, %v507, %v515
    %v520 = vsel %vm453, 0, %v507
    %v521 = vsel %vm453, %v515, 0
    %523 = vset.pattern.permute.xlu0 0
    %524 = vperm.xlu0 %523, %v162
    %v525 = vpop.permute.xlu0 %524
    %v528 = vunpack.c.l.s4 839922192
    %v529 = vunpack.c.0.s8 %v528
    %v530 = vlaneseq
    %v531 = vshrl.u32 %v530, 7
    %v532 = vsub.s32 %v529, %v531
    %v533 = vrot.slane %v525, %v532
    %535 = vset.pattern.permute.xlu0 0
    %536 = vperm.xlu0 %535, %v163
    %v537 = vpop.permute.xlu0 %536
    %v540 = vunpack.c.l.s4 839922192
    %v541 = vunpack.c.0.s8 %v540
    %v542 = vlaneseq
    %v543 = vshrl.u32 %v542, 7
    %v544 = vsub.s32 %v541, %v543
    %v545 = vrot.slane %v537, %v544
    %547 = vset.pattern.permute.xlu0 0
    %548 = vperm.xlu0 %547, %v164
    %v549 = vpop.permute.xlu0 %548
    %v552 = vunpack.c.l.s4 839922192
    %v553 = vunpack.c.0.s8 %v552
    %v554 = vlaneseq
    %v555 = vshrl.u32 %v554, 7
    %v556 = vsub.s32 %v553, %v555
    %v557 = vrot.slane %v549, %v556
    %559 = vset.pattern.permute.xlu0 0
    %560 = vperm.xlu0 %559, %v165
    %v561 = vpop.permute.xlu0 %560
    %v564 = vunpack.c.l.s4 839922192
    %v565 = vunpack.c.0.s8 %v564
    %v566 = vlaneseq
    %v567 = vshrl.u32 %v566, 7
    %v568 = vsub.s32 %v565, %v567
    %v569 = vrot.slane %v561, %v568
    %v574 = vunpack.c.l.b16 %v533
    %v575 = vunpack.c.l.b16 %v545
    %v576 = vunpack.c.l.b16 %v557
    %v577 = vunpack.c.l.b16 %v569
    %v578 = vpack.c.b16 %v575, %v574
    %v579 = vpack.c.b16 %v577, %v576
    %v582 = vmul.bf16 %v520, %v578
    %v583 = vmul.bf16 %v516, %v579
    %585 = vset.pattern.permute.xlu0 0
    %586 = vperm.xlu0 %585, %v142
    %v587 = vpop.permute.xlu0 %586
    %v590 = vunpack.c.l.s4 839922192
    %v591 = vunpack.c.0.s8 %v590
    %v592 = vlaneseq
    %v593 = vshrl.u32 %v592, 7
    %v594 = vsub.s32 %v591, %v593
    %v595 = vrot.slane %v587, %v594
    %597 = vset.pattern.permute.xlu0 0
    %598 = vperm.xlu0 %597, %v143
    %v599 = vpop.permute.xlu0 %598
    %v602 = vunpack.c.l.s4 839922192
    %v603 = vunpack.c.0.s8 %v602
    %v604 = vlaneseq
    %v605 = vshrl.u32 %v604, 7
    %v606 = vsub.s32 %v603, %v605
    %v607 = vrot.slane %v599, %v606
    %609 = vset.pattern.permute.xlu0 0
    %610 = vperm.xlu0 %609, %v144
    %v611 = vpop.permute.xlu0 %610
    %v614 = vunpack.c.l.s4 839922192
    %v615 = vunpack.c.0.s8 %v614
    %v616 = vlaneseq
    %v617 = vshrl.u32 %v616, 7
    %v618 = vsub.s32 %v615, %v617
    %v619 = vrot.slane %v611, %v618
    %621 = vset.pattern.permute.xlu0 0
    %622 = vperm.xlu0 %621, %v145
    %v623 = vpop.permute.xlu0 %622
    %v626 = vunpack.c.l.s4 839922192
    %v627 = vunpack.c.0.s8 %v626
    %v628 = vlaneseq
    %v629 = vshrl.u32 %v628, 7
    %v630 = vsub.s32 %v627, %v629
    %v631 = vrot.slane %v623, %v630
    %v636 = vunpack.c.l.b16 %v595
    %v637 = vunpack.c.l.b16 %v607
    %v638 = vunpack.c.l.b16 %v619
    %v639 = vunpack.c.l.b16 %v631
    %v640 = vpack.c.b16 %v637, %v636
    %v641 = vpack.c.b16 %v639, %v638
    %vm642 = vsmask.f32 256
    %v644 = vshrl.u32 %v640, 16
    %v646 = vrot.slane %v644, 7
    %v647 = vshll.u32 %v640, 16
    %v649 = vor.u32 %v646, %v647
    %v651 = vshrl.u32 %v641, 16
    %v653 = vrot.slane %v651, 7
    %v654 = vshll.u32 %v641, 16
    %v656 = vor.u32 %v653, %v654
    %v657 = vsel %vm642, %v646, %v656
    %v661 = vmul.bf16 %v498, %v649
    %v662 = vmul.bf16 %v494, %v657
    %v663 = vmul.bf16 %v499, %v653
    %v664 = vmul.bf16 %v520, %v649
    %v665 = vmul.bf16 %v516, %v657
    %v666 = vmul.bf16 %v521, %v653
    %668 = vset.pattern.permute.xlu0 0
    %669 = vperm.xlu0 %668, %v178
    %v670 = vpop.permute.xlu0 %669
    %v673 = vunpack.c.l.s4 839922192
    %v674 = vunpack.c.0.s8 %v673
    %v675 = vlaneseq
    %v676 = vshrl.u32 %v675, 7
    %v677 = vsub.s32 %v674, %v676
    %v678 = vrot.slane %v670, %v677
    %680 = vset.pattern.permute.xlu0 0
    %681 = vperm.xlu0 %680, %v179
    %v682 = vpop.permute.xlu0 %681
    %v685 = vunpack.c.l.s4 839922192
    %v686 = vunpack.c.0.s8 %v685
    %v687 = vlaneseq
    %v688 = vshrl.u32 %v687, 7
    %v689 = vsub.s32 %v686, %v688
    %v690 = vrot.slane %v682, %v689
    %692 = vset.pattern.permute.xlu0 0
    %693 = vperm.xlu0 %692, %v180
    %v694 = vpop.permute.xlu0 %693
    %v697 = vunpack.c.l.s4 839922192
    %v698 = vunpack.c.0.s8 %v697
    %v699 = vlaneseq
    %v700 = vshrl.u32 %v699, 7
    %v701 = vsub.s32 %v698, %v700
    %v702 = vrot.slane %v694, %v701
    %704 = vset.pattern.permute.xlu0 0
    %705 = vperm.xlu0 %704, %v181
    %v706 = vpop.permute.xlu0 %705
    %v709 = vunpack.c.l.s4 839922192
    %v710 = vunpack.c.0.s8 %v709
    %v711 = vlaneseq
    %v712 = vshrl.u32 %v711, 7
    %v713 = vsub.s32 %v710, %v712
    %v714 = vrot.slane %v706, %v713
    %v719 = vunpack.c.l.b16 %v678
    %v720 = vunpack.c.l.b16 %v690
    %v721 = vunpack.c.l.b16 %v702
    %v722 = vunpack.c.l.b16 %v714
    %v723 = vpack.c.b16 %v720, %v719
    %v724 = vpack.c.b16 %v722, %v721
    %vm725 = vcmask 1040384
    %v726 = vrot.slane %v723, 7
    %v727 = vrot.slane %v724, 7
    %v728 = vsel %vm725, %v726, %v727
    %v732 = vmul.bf16 %v498, %v726
    %v733 = vmul.bf16 %v494, %v728
    %v734 = vmul.bf16 %v499, %v727
    %735 = vset.pattern.permute.xlu0 2
    %736 = vperm.xlu0 %735, %v142
    %v737 = vpop.permute.xlu0 %736
    %v740 = vunpack.c.l.s4 839922192
    %v741 = vunpack.c.0.s8 %v740
    %v742 = vlaneseq
    %v743 = vshrl.u32 %v742, 7
    %v744 = vsub.s32 %v741, %v743
    %v745 = vrot.slane %v737, %v744
    %746 = vset.pattern.permute.xlu0 2
    %747 = vperm.xlu0 %746, %v143
    %v748 = vpop.permute.xlu0 %747
    %v751 = vunpack.c.l.s4 839922192
    %v752 = vunpack.c.0.s8 %v751
    %v753 = vlaneseq
    %v754 = vshrl.u32 %v753, 7
    %v755 = vsub.s32 %v752, %v754
    %v756 = vrot.slane %v748, %v755
    %757 = vset.pattern.permute.xlu0 2
    %758 = vperm.xlu0 %757, %v144
    %v759 = vpop.permute.xlu0 %758
    %v762 = vunpack.c.l.s4 839922192
    %v763 = vunpack.c.0.s8 %v762
    %v764 = vlaneseq
    %v765 = vshrl.u32 %v764, 7
    %v766 = vsub.s32 %v763, %v765
    %v767 = vrot.slane %v759, %v766
    %768 = vset.pattern.permute.xlu0 2
    %769 = vperm.xlu0 %768, %v145
    %v770 = vpop.permute.xlu0 %769
    %v773 = vunpack.c.l.s4 839922192
    %v774 = vunpack.c.0.s8 %v773
    %v775 = vlaneseq
    %v776 = vshrl.u32 %v775, 7
    %v777 = vsub.s32 %v774, %v776
    %v778 = vrot.slane %v770, %v777
    %v783 = vunpack.c.l.b16 %v745
    %v784 = vunpack.c.l.b16 %v756
    %v785 = vunpack.c.l.b16 %v767
    %v786 = vunpack.c.l.b16 %v778
    %v787 = vpack.c.b16 %v784, %v783
    %v788 = vpack.c.b16 %v786, %v785
    %vm789 = vcmask 1041408
    %v790 = vrot.slane %v787, 6
    %v791 = vrot.slane %v788, 6
    %v792 = vsel %vm789, %v790, %v791
    %v796 = vmul.bf16 %v476, %v790
    %v797 = vmul.bf16 %v472, %v792
    %v798 = vmul.bf16 %v477, %v791
    %799 = vset.pattern.permute.xlu0 3
    %800 = vperm.xlu0 %799, %v142
    %v801 = vpop.permute.xlu0 %800
    %v804 = vunpack.c.l.s4 839922192
    %v805 = vunpack.c.0.s8 %v804
    %v806 = vlaneseq
    %v807 = vshrl.u32 %v806, 7
    %v808 = vsub.s32 %v805, %v807
    %v809 = vrot.slane %v801, %v808
    %810 = vset.pattern.permute.xlu0 3
    %811 = vperm.xlu0 %810, %v143
    %v812 = vpop.permute.xlu0 %811
    %v815 = vunpack.c.l.s4 839922192
    %v816 = vunpack.c.0.s8 %v815
    %v817 = vlaneseq
    %v818 = vshrl.u32 %v817, 7
    %v819 = vsub.s32 %v816, %v818
    %v820 = vrot.slane %v812, %v819
    %821 = vset.pattern.permute.xlu0 3
    %822 = vperm.xlu0 %821, %v144
    %v823 = vpop.permute.xlu0 %822
    %v826 = vunpack.c.l.s4 839922192
    %v827 = vunpack.c.0.s8 %v826
    %v828 = vlaneseq
    %v829 = vshrl.u32 %v828, 7
    %v830 = vsub.s32 %v827, %v829
    %v831 = vrot.slane %v823, %v830
    %832 = vset.pattern.permute.xlu0 3
    %833 = vperm.xlu0 %832, %v145
    %v834 = vpop.permute.xlu0 %833
    %v837 = vunpack.c.l.s4 839922192
    %v838 = vunpack.c.0.s8 %v837
    %v839 = vlaneseq
    %v840 = vshrl.u32 %v839, 7
    %v841 = vsub.s32 %v838, %v840
    %v842 = vrot.slane %v834, %v841
    %v847 = vunpack.c.l.b16 %v809
    %v848 = vunpack.c.l.b16 %v820
    %v849 = vunpack.c.l.b16 %v831
    %v850 = vunpack.c.l.b16 %v842
    %v851 = vpack.c.b16 %v848, %v847
    %v852 = vpack.c.b16 %v850, %v849
    %v853 = vrot.slane %v851, 5
    %v854 = vrot.slane %v852, 5
    %v855 = vsel %vm452, %v853, %v854
    %v859 = vmul.bf16 %v454, %v853
    %v860 = vmul.bf16 %v448, %v855
    %v861 = vmul.bf16 %v455, %v854
    %v862 = vmul.bf16 %v520, %v790
    %v863 = vmul.bf16 %v516, %v792
    %v864 = vmul.bf16 %v521, %v791
    %v865 = vmul.bf16 %v498, %v853
    %v866 = vmul.bf16 %v494, %v855
    %v867 = vmul.bf16 %v499, %v854
    %869 = vset.pattern.permute.xlu0 1
    %870 = vperm.xlu0 %869, %v194
    %v871 = vpop.permute.xlu0 %870
    %v874 = vunpack.c.l.s4 839922192
    %v875 = vunpack.c.0.s8 %v874
    %v876 = vlaneseq
    %v877 = vshrl.u32 %v876, 7
    %v878 = vsub.s32 %v875, %v877
    %v879 = vrot.slane %v871, %v878
    %881 = vset.pattern.permute.xlu0 1
    %882 = vperm.xlu0 %881, %v195
    %v883 = vpop.permute.xlu0 %882
    %v886 = vunpack.c.l.s4 839922192
    %v887 = vunpack.c.0.s8 %v886
    %v888 = vlaneseq
    %v889 = vshrl.u32 %v888, 7
    %v890 = vsub.s32 %v887, %v889
    %v891 = vrot.slane %v883, %v890
    %893 = vset.pattern.permute.xlu0 1
    %894 = vperm.xlu0 %893, %v196
    %v895 = vpop.permute.xlu0 %894
    %v898 = vunpack.c.l.s4 839922192
    %v899 = vunpack.c.0.s8 %v898
    %v900 = vlaneseq
    %v901 = vshrl.u32 %v900, 7
    %v902 = vsub.s32 %v899, %v901
    %v903 = vrot.slane %v895, %v902
    %905 = vset.pattern.permute.xlu0 1
    %906 = vperm.xlu0 %905, %v197
    %v907 = vpop.permute.xlu0 %906
    %v910 = vunpack.c.l.s4 839922192
    %v911 = vunpack.c.0.s8 %v910
    %v912 = vlaneseq
    %v913 = vshrl.u32 %v912, 7
    %v914 = vsub.s32 %v911, %v913
    %v915 = vrot.slane %v907, %v914
    %v920 = vunpack.c.l.b16 %v879
    %v921 = vunpack.c.l.b16 %v891
    %v922 = vunpack.c.l.b16 %v903
    %v923 = vunpack.c.l.b16 %v915
    %v924 = vpack.c.b16 %v920, %v920
    %v925 = vpack.c.b16 %v922, %v921
    %v926 = vpack.c.b16 %v923, %v923
    %v930 = vmul.bf16 %v476, %v924
    %v931 = vmul.bf16 %v472, %v925
    %v932 = vmul.bf16 %v477, %v926
    %933 = vset.pattern.permute.xlu0 1
    %934 = vperm.xlu0 %933, %v142
    %v935 = vpop.permute.xlu0 %934
    %v938 = vunpack.c.l.s4 839922192
    %v939 = vunpack.c.0.s8 %v938
    %v940 = vlaneseq
    %v941 = vshrl.u32 %v940, 7
    %v942 = vsub.s32 %v939, %v941
    %v943 = vrot.slane %v935, %v942
    %944 = vset.pattern.permute.xlu0 1
    %945 = vperm.xlu0 %944, %v143
    %v946 = vpop.permute.xlu0 %945
    %v949 = vunpack.c.l.s4 839922192
    %v950 = vunpack.c.0.s8 %v949
    %v951 = vlaneseq
    %v952 = vshrl.u32 %v951, 7
    %v953 = vsub.s32 %v950, %v952
    %v954 = vrot.slane %v946, %v953
    %955 = vset.pattern.permute.xlu0 1
    %956 = vperm.xlu0 %955, %v144
    %v957 = vpop.permute.xlu0 %956
    %v960 = vunpack.c.l.s4 839922192
    %v961 = vunpack.c.0.s8 %v960
    %v962 = vlaneseq
    %v963 = vshrl.u32 %v962, 7
    %v964 = vsub.s32 %v961, %v963
    %v965 = vrot.slane %v957, %v964
    %966 = vset.pattern.permute.xlu0 1
    %967 = vperm.xlu0 %966, %v145
    %v968 = vpop.permute.xlu0 %967
    %v971 = vunpack.c.l.s4 839922192
    %v972 = vunpack.c.0.s8 %v971
    %v973 = vlaneseq
    %v974 = vshrl.u32 %v973, 7
    %v975 = vsub.s32 %v972, %v974
    %v976 = vrot.slane %v968, %v975
    %v981 = vunpack.c.l.b16 %v943
    %v982 = vunpack.c.l.b16 %v954
    %v983 = vunpack.c.l.b16 %v965
    %v984 = vunpack.c.l.b16 %v976
    %v985 = vpack.c.b16 %v982, %v981
    %v986 = vpack.c.b16 %v984, %v983
    %vm987 = vsmask.f32 4352
    %v989 = vshrl.u32 %v985, 16
    %v991 = vrot.slane %v989, 3
    %v992 = vshll.u32 %v985, 16
    %v994 = vrot.slane %v992, 4
    %v995 = vor.u32 %v991, %v994
    %v997 = vshrl.u32 %v986, 16
    %v999 = vrot.slane %v997, 3
    %v1000 = vshll.u32 %v986, 16
    %v1002 = vrot.slane %v1000, 4
    %v1003 = vor.u32 %v999, %v1002
    %v1004 = vsel %vm987, %v995, %v1003
    %v1008 = vmul.bf16 %v454, %v995
    %v1009 = vmul.bf16 %v448, %v1004
    %v1010 = vmul.bf16 %v455, %v1003
    %v1011 = vmul.bf16 %v476, %v995
    %v1012 = vmul.bf16 %v472, %v1004
    %v1013 = vmul.bf16 %v477, %v1003
    %1014 = vset.pattern.permute.xlu0 1
    %1015 = vperm.xlu0 %1014, %v162
    %v1016 = vpop.permute.xlu0 %1015
    %v1019 = vunpack.c.l.s4 839922192
    %v1020 = vunpack.c.0.s8 %v1019
    %v1021 = vlaneseq
    %v1022 = vshrl.u32 %v1021, 7
    %v1023 = vsub.s32 %v1020, %v1022
    %v1024 = vrot.slane %v1016, %v1023
    %1025 = vset.pattern.permute.xlu0 1
    %1026 = vperm.xlu0 %1025, %v163
    %v1027 = vpop.permute.xlu0 %1026
    %v1030 = vunpack.c.l.s4 839922192
    %v1031 = vunpack.c.0.s8 %v1030
    %v1032 = vlaneseq
    %v1033 = vshrl.u32 %v1032, 7
    %v1034 = vsub.s32 %v1031, %v1033
    %v1035 = vrot.slane %v1027, %v1034
    %1036 = vset.pattern.permute.xlu0 1
    %1037 = vperm.xlu0 %1036, %v164
    %v1038 = vpop.permute.xlu0 %1037
    %v1041 = vunpack.c.l.s4 839922192
    %v1042 = vunpack.c.0.s8 %v1041
    %v1043 = vlaneseq
    %v1044 = vshrl.u32 %v1043, 7
    %v1045 = vsub.s32 %v1042, %v1044
    %v1046 = vrot.slane %v1038, %v1045
    %1047 = vset.pattern.permute.xlu0 1
    %1048 = vperm.xlu0 %1047, %v165
    %v1049 = vpop.permute.xlu0 %1048
    %v1052 = vunpack.c.l.s4 839922192
    %v1053 = vunpack.c.0.s8 %v1052
    %v1054 = vlaneseq
    %v1055 = vshrl.u32 %v1054, 7
    %v1056 = vsub.s32 %v1053, %v1055
    %v1057 = vrot.slane %v1049, %v1056
    %v1062 = vunpack.c.l.b16 %v1024
    %v1063 = vunpack.c.l.b16 %v1035
    %v1064 = vunpack.c.l.b16 %v1046
    %v1065 = vunpack.c.l.b16 %v1057
    %v1066 = vpack.c.b16 %v1063, %v1062
    %v1067 = vpack.c.b16 %v1065, %v1064
    %vm1068 = vcmask 1044480
    %v1069 = vrot.slane %v1066, 3
    %v1070 = vrot.slane %v1067, 3
    %v1071 = vsel %vm1068, %v1069, %v1070
    %v1075 = vmul.bf16 %v454, %v1069
    %v1076 = vmul.bf16 %v448, %v1071
    %v1077 = vmul.bf16 %v455, %v1070
    %vm1078 = vsmask.f32 7424
    %v1080 = vshrl.u32 %v661, 16
    %v1082 = vshll.u32 %v661, 16
    %v1084 = vrot.slane %v1082, 1
    %v1085 = vor.u32 %v1080, %v1084
    %v1087 = vshll.u32 %v662, 16
    %v1089 = vrot.slane %v1087, 1
    %v1090 = vsel %vm1078, %v1085, %v1089
    %v1091 = vshrl.u32 %v662, 16
    %v1093 = vor.u32 %v1091, %v1089
    %v1095 = vshll.u32 %v663, 16
    %v1097 = vrot.slane %v1095, 1
    %v1098 = vsel %vm1078, %v1093, %v1097
    %1099 = vrot.lane.b32.xlu0 %v1090, 32
    %v1100 = vpop.permute.xlu0 %1099
    %1101 = vrot.lane.b32.xlu0 %v1098, 32
    %v1102 = vpop.permute.xlu0 %1101
    %v1104 = vshrl.u32 %v664, 16
    %v1106 = vshll.u32 %v664, 16
    %v1108 = vrot.slane %v1106, 1
    %v1109 = vor.u32 %v1104, %v1108
    %v1111 = vshll.u32 %v665, 16
    %v1113 = vrot.slane %v1111, 1
    %v1114 = vsel %vm1078, %v1109, %v1113
    %v1115 = vshrl.u32 %v665, 16
    %v1117 = vor.u32 %v1115, %v1113
    %v1119 = vshll.u32 %v666, 16
    %v1121 = vrot.slane %v1119, 1
    %v1122 = vsel %vm1078, %v1117, %v1121
    %1123 = vrot.lane.b32.xlu0 %v1114, 64
    %v1124 = vpop.permute.xlu0 %1123
    %1125 = vrot.lane.b32.xlu0 %v1122, 64
    %v1126 = vpop.permute.xlu0 %1125
    %vm1130 = vcmask 1046528
    %v1131 = vrot.slane %v732, 1
    %v1132 = vrot.slane %v733, 1
    %v1133 = vsel %vm1130, %v1131, %v1132
    %v1134 = vrot.slane %v734, 1
    %v1135 = vsel %vm1130, %v1132, %v1134
    %1136 = vrot.lane.b32.xlu0 %v1133, 96
    %v1137 = vpop.permute.xlu0 %1136
    %1138 = vrot.lane.b32.xlu0 %v1135, 96
    %v1139 = vpop.permute.xlu0 %1138
    %vm1143 = vcmask 1045504
    %v1144 = vrot.slane %v796, 2
    %v1145 = vrot.slane %v797, 2
    %v1146 = vsel %vm1143, %v1144, %v1145
    %v1147 = vrot.slane %v798, 2
    %v1148 = vsel %vm1143, %v1145, %v1147
    %vm1149 = vsmask.f32 5376
    %v1151 = vshrl.u32 %v454, 16
    %v1153 = vrot.slane %v1151, 2
    %v1154 = vshll.u32 %v454, 16
    %v1156 = vrot.slane %v1154, 3
    %v1157 = vor.u32 %v1153, %v1156
    %v1159 = vshrl.u32 %v448, 16
    %v1161 = vrot.slane %v1159, 2
    %v1162 = vshll.u32 %v448, 16
    %v1164 = vrot.slane %v1162, 3
    %v1165 = vor.u32 %v1161, %v1164
    %v1166 = vsel %vm1149, %v1157, %v1165
    %v1168 = vshrl.u32 %v455, 16
    %v1170 = vrot.slane %v1168, 2
    %v1171 = vshll.u32 %v455, 16
    %v1173 = vrot.slane %v1171, 3
    %v1174 = vor.u32 %v1170, %v1173
    %v1175 = vsel %vm1149, %v1165, %v1174
    %1176 = vrot.lane.b32.xlu0 %v1166, 32
    %v1177 = vpop.permute.xlu0 %1176
    %1178 = vrot.lane.b32.xlu0 %v1175, 32
    %v1179 = vpop.permute.xlu0 %1178
    %v1181 = vshrl.u32 %v476, 16
    %v1183 = vrot.slane %v1181, 2
    %v1184 = vshll.u32 %v476, 16
    %v1186 = vrot.slane %v1184, 3
    %v1187 = vor.u32 %v1183, %v1186
    %v1189 = vshrl.u32 %v472, 16
    %v1191 = vrot.slane %v1189, 2
    %v1192 = vshll.u32 %v472, 16
    %v1194 = vrot.slane %v1192, 3
    %v1195 = vor.u32 %v1191, %v1194
    %v1196 = vsel %vm1149, %v1187, %v1195
    %v1198 = vshrl.u32 %v477, 16
    %v1200 = vrot.slane %v1198, 2
    %v1201 = vshll.u32 %v477, 16
    %v1203 = vrot.slane %v1201, 3
    %v1204 = vor.u32 %v1200, %v1203
    %v1205 = vsel %vm1149, %v1195, %v1204
    %1206 = vrot.lane.b32.xlu0 %v1196, 64
    %v1207 = vpop.permute.xlu0 %1206
    %1208 = vrot.lane.b32.xlu0 %v1205, 64
    %v1209 = vpop.permute.xlu0 %1208
    %v1213 = vrot.slane %v859, 3
    %v1214 = vrot.slane %v860, 3
    %v1215 = vsel %vm1068, %v1213, %v1214
    %v1216 = vrot.slane %v861, 3
    %v1217 = vsel %vm1068, %v1214, %v1216
    %1218 = vrot.lane.b32.xlu0 %v1215, 96
    %v1219 = vpop.permute.xlu0 %1218
    %1220 = vrot.lane.b32.xlu0 %v1217, 96
    %v1221 = vpop.permute.xlu0 %1220
    %v1225 = vrot.slane %v862, 2
    %v1226 = vrot.slane %v863, 2
    %v1227 = vsel %vm1143, %v1225, %v1226
    %v1228 = vrot.slane %v864, 2
    %v1229 = vsel %vm1143, %v1226, %v1228
    %v1231 = vshrl.u32 %v498, 16
    %v1233 = vrot.slane %v1231, 2
    %v1234 = vshll.u32 %v498, 16
    %v1236 = vrot.slane %v1234, 3
    %v1237 = vor.u32 %v1233, %v1236
    %v1239 = vshrl.u32 %v494, 16
    %v1241 = vrot.slane %v1239, 2
    %v1242 = vshll.u32 %v494, 16
    %v1244 = vrot.slane %v1242, 3
    %v1245 = vor.u32 %v1241, %v1244
    %v1246 = vsel %vm1149, %v1237, %v1245
    %v1248 = vshrl.u32 %v499, 16
    %v1250 = vrot.slane %v1248, 2
    %v1251 = vshll.u32 %v499, 16
    %v1253 = vrot.slane %v1251, 3
    %v1254 = vor.u32 %v1250, %v1253
    %v1255 = vsel %vm1149, %v1245, %v1254
    %1256 = vrot.lane.b32.xlu0 %v1246, 32
    %v1257 = vpop.permute.xlu0 %1256
    %1258 = vrot.lane.b32.xlu0 %v1255, 32
    %v1259 = vpop.permute.xlu0 %1258
    %v1261 = vshrl.u32 %v520, 16
    %v1263 = vrot.slane %v1261, 2
    %v1264 = vshll.u32 %v520, 16
    %v1266 = vrot.slane %v1264, 3
    %v1267 = vor.u32 %v1263, %v1266
    %v1269 = vshrl.u32 %v516, 16
    %v1271 = vrot.slane %v1269, 2
    %v1272 = vshll.u32 %v516, 16
    %v1274 = vrot.slane %v1272, 3
    %v1275 = vor.u32 %v1271, %v1274
    %v1276 = vsel %vm1149, %v1267, %v1275
    %v1278 = vshrl.u32 %v521, 16
    %v1280 = vrot.slane %v1278, 2
    %v1281 = vshll.u32 %v521, 16
    %v1283 = vrot.slane %v1281, 3
    %v1284 = vor.u32 %v1280, %v1283
    %v1285 = vsel %vm1149, %v1275, %v1284
    %1286 = vrot.lane.b32.xlu0 %v1276, 64
    %v1287 = vpop.permute.xlu0 %1286
    %1288 = vrot.lane.b32.xlu0 %v1285, 64
    %v1289 = vpop.permute.xlu0 %1288
    %v1293 = vrot.slane %v865, 3
    %v1294 = vrot.slane %v866, 3
    %v1295 = vsel %vm1068, %v1293, %v1294
    %v1296 = vrot.slane %v867, 3
    %v1297 = vsel %vm1068, %v1294, %v1296
    %1298 = vrot.lane.b32.xlu0 %v1295, 96
    %v1299 = vpop.permute.xlu0 %1298
    %1300 = vrot.lane.b32.xlu0 %v1297, 96
    %v1301 = vpop.permute.xlu0 %1300
    %vm1305 = vcmask 1043456
    %v1306 = vrot.slane %v930, 4
    %v1307 = vrot.slane %v931, 4
    %v1308 = vsel %vm1305, %v1306, %v1307
    %v1309 = vrot.slane %v932, 4
    %v1310 = vsel %vm1305, %v1307, %v1309
    %vm1311 = vsmask.f32 3328
    %v1313 = vshrl.u32 %v1008, 16
    %v1315 = vrot.slane %v1313, 4
    %v1316 = vshll.u32 %v1008, 16
    %v1318 = vrot.slane %v1316, 5
    %v1319 = vor.u32 %v1315, %v1318
    %v1321 = vshrl.u32 %v1009, 16
    %v1323 = vrot.slane %v1321, 4
    %v1324 = vshll.u32 %v1009, 16
    %v1326 = vrot.slane %v1324, 5
    %v1327 = vor.u32 %v1323, %v1326
    %v1328 = vsel %vm1311, %v1319, %v1327
    %v1330 = vshrl.u32 %v1010, 16
    %v1332 = vrot.slane %v1330, 4
    %v1333 = vshll.u32 %v1010, 16
    %v1335 = vrot.slane %v1333, 5
    %v1336 = vor.u32 %v1332, %v1335
    %v1337 = vsel %vm1311, %v1327, %v1336
    %1338 = vrot.lane.b32.xlu0 %v1328, 32
    %v1339 = vpop.permute.xlu0 %1338
    %1340 = vrot.lane.b32.xlu0 %v1337, 32
    %v1341 = vpop.permute.xlu0 %1340
    %v1343 = vshrl.u32 %v1011, 16
    %v1345 = vrot.slane %v1343, 4
    %v1346 = vshll.u32 %v1011, 16
    %v1348 = vrot.slane %v1346, 5
    %v1349 = vor.u32 %v1345, %v1348
    %v1351 = vshrl.u32 %v1012, 16
    %v1353 = vrot.slane %v1351, 4
    %v1354 = vshll.u32 %v1012, 16
    %v1356 = vrot.slane %v1354, 5
    %v1357 = vor.u32 %v1353, %v1356
    %v1358 = vsel %vm1311, %v1349, %v1357
    %v1360 = vshrl.u32 %v1013, 16
    %v1362 = vrot.slane %v1360, 4
    %v1363 = vshll.u32 %v1013, 16
    %v1365 = vrot.slane %v1363, 5
    %v1366 = vor.u32 %v1362, %v1365
    %v1367 = vsel %vm1311, %v1357, %v1366
    %1368 = vrot.lane.b32.xlu0 %v1358, 64
    %v1369 = vpop.permute.xlu0 %1368
    %1370 = vrot.lane.b32.xlu0 %v1367, 64
    %v1371 = vpop.permute.xlu0 %1370
    %v1375 = vrot.slane %v1075, 5
    %v1376 = vrot.slane %v1076, 5
    %v1377 = vsel %vm452, %v1375, %v1376
    %v1378 = vrot.slane %v1077, 5
    %v1379 = vsel %vm452, %v1376, %v1378
    %1380 = vrot.lane.b32.xlu0 %v1377, 96
    %v1381 = vpop.permute.xlu0 %1380
    %1382 = vrot.lane.b32.xlu0 %v1379, 96
    %v1383 = vpop.permute.xlu0 %1382
    %vm1384 = vcmask 261120
    %v1387 = vsel %vm1384, %v582, %v1100
    %v1390 = vsel %vm1384, %v583, %v1102
    %vm1391 = vcmask 523264
    %v1393 = vsel %vm1391, %v1387, %v1124
    %v1395 = vsel %vm1391, %v1390, %v1126
    %vm1396 = vcmask 785408
    %v1398 = vsel %vm1396, %v1393, %v1137
    %v1401 = vsel %vm1396, %v1395, %v1139
    %v1405 = vsel %vm1384, %v1146, %v1177
    %v1408 = vsel %vm1384, %v1148, %v1179
    %v1410 = vsel %vm1391, %v1405, %v1207
    %v1412 = vsel %vm1391, %v1408, %v1209
    %v1414 = vsel %vm1396, %v1410, %v1219
    %v1417 = vsel %vm1396, %v1412, %v1221
    %v1421 = vsel %vm1384, %v1227, %v1257
    %v1424 = vsel %vm1384, %v1229, %v1259
    %v1426 = vsel %vm1391, %v1421, %v1287
    %v1428 = vsel %vm1391, %v1424, %v1289
    %v1430 = vsel %vm1396, %v1426, %v1299
    %v1433 = vsel %vm1396, %v1428, %v1301
    %v1437 = vsel %vm1384, %v1308, %v1339
    %v1440 = vsel %vm1384, %v1310, %v1341
    %v1442 = vsel %vm1391, %v1437, %v1369
    %v1444 = vsel %vm1391, %v1440, %v1371
    %v1446 = vsel %vm1396, %v1442, %v1381
    %v1449 = vsel %vm1396, %v1444, %v1383
    %v1451 = vld [vmem:[%s9] sm:$0xf]
    %v1452 = vld [vmem:[%s9 + $0x4] sm:$0xf]
    %v1453 = vld [vmem:[%s9 + $0x8] sm:$0xf]
    %v1454 = vld [vmem:[%s9 + $0xc] sm:$0xf]
    %v1455 = vld [vmem:[%s9 + $0x10] sm:$0xf]
    %v1456 = vld [vmem:[%s9 + $0x14] sm:$0xf]
    %v1457 = vld [vmem:[%s9 + $0x18] sm:$0xf]
    %v1458 = vld [vmem:[%s9 + $0x1c] sm:$0xf]
    %v1459 = vld [vmem:[%s9 + $0x20] sm:$0xf]
    %v1460 = vld [vmem:[%s9 + $0x24] sm:$0xf]
    %v1461 = vld [vmem:[%s9 + $0x28] sm:$0xf]
    %v1462 = vld [vmem:[%s9 + $0x2c] sm:$0xf]
    %v1463 = vld [vmem:[%s9 + $0x30] sm:$0xf]
    %v1464 = vld [vmem:[%s9 + $0x34] sm:$0xf]
    %v1465 = vld [vmem:[%s9 + $0x38] sm:$0xf]
    %v1466 = vld [vmem:[%s9 + $0x3c] sm:$0xf]
    %v1467 = vld [vmem:[%s9 + $0x40] sm:$0xf]
    %v1468 = vld [vmem:[%s9 + $0x44] sm:$0xf]
    %v1469 = vld [vmem:[%s9 + $0x48] sm:$0xf]
    %v1470 = vld [vmem:[%s9 + $0x4c] sm:$0xf]
    %v1471 = vld [vmem:[%s9 + $0x50] sm:$0xf]
    %v1472 = vld [vmem:[%s9 + $0x54] sm:$0xf]
    %v1473 = vld [vmem:[%s9 + $0x58] sm:$0xf]
    %v1474 = vld [vmem:[%s9 + $0x5c] sm:$0xf]
    %v1475 = vld [vmem:[%s9 + $0x60] sm:$0xf]
    %v1476 = vld [vmem:[%s9 + $0x64] sm:$0xf]
    %v1477 = vld [vmem:[%s9 + $0x68] sm:$0xf]
    %v1478 = vld [vmem:[%s9 + $0x6c] sm:$0xf]
    %v1479 = vld [vmem:[%s9 + $0x70] sm:$0xf]
    %v1480 = vld [vmem:[%s9 + $0x74] sm:$0xf]
    %v1481 = vld [vmem:[%s9 + $0x78] sm:$0xf]
    %v1482 = vld [vmem:[%s9 + $0x7c] sm:$0xf]
    %v1483 = vld [vmem:[%s9 + $0x80] sm:$0xf]
    %v1484 = vld [vmem:[%s9 + $0x84] sm:$0xf]
    %v1485 = vld [vmem:[%s9 + $0x88] sm:$0xf]
    %v1486 = vld [vmem:[%s9 + $0x8c] sm:$0xf]
    %v1487 = vld [vmem:[%s9 + $0x90] sm:$0xf]
    %v1488 = vld [vmem:[%s9 + $0x94] sm:$0xf]
    %v1489 = vld [vmem:[%s9 + $0x98] sm:$0xf]
    %v1490 = vld [vmem:[%s9 + $0x9c] sm:$0xf]
    %v1491 = vld [vmem:[%s9 + $0xa0] sm:$0xf]
    %v1492 = vld [vmem:[%s9 + $0xa4] sm:$0xf]
    %v1493 = vld [vmem:[%s9 + $0xa8] sm:$0xf]
    %v1494 = vld [vmem:[%s9 + $0xac] sm:$0xf]
    %v1495 = vld [vmem:[%s9 + $0xb0] sm:$0xf]
    %v1496 = vld [vmem:[%s9 + $0xb4] sm:$0xf]
    %v1497 = vld [vmem:[%s9 + $0xb8] sm:$0xf]
    %v1498 = vld [vmem:[%s9 + $0xbc] sm:$0xf]
    %v1499 = vld [vmem:[%s9 + $0xc0] sm:$0xf]
    %v1500 = vld [vmem:[%s9 + $0xc4] sm:$0xf]
    %v1501 = vld [vmem:[%s9 + $0xc8] sm:$0xf]
    %v1502 = vld [vmem:[%s9 + $0xcc] sm:$0xf]
    %v1503 = vld [vmem:[%s9 + $0xd0] sm:$0xf]
    %v1504 = vld [vmem:[%s9 + $0xd4] sm:$0xf]
    %v1505 = vld [vmem:[%s9 + $0xd8] sm:$0xf]
    %v1506 = vld [vmem:[%s9 + $0xdc] sm:$0xf]
    %v1507 = vld [vmem:[%s9 + $0xe0] sm:$0xf]
    %v1508 = vld [vmem:[%s9 + $0xe4] sm:$0xf]
    %v1509 = vld [vmem:[%s9 + $0xe8] sm:$0xf]
    %v1510 = vld [vmem:[%s9 + $0xec] sm:$0xf]
    %v1511 = vld [vmem:[%s9 + $0xf0] sm:$0xf]
    %v1512 = vld [vmem:[%s9 + $0xf4] sm:$0xf]
    %v1513 = vld [vmem:[%s9 + $0xf8] sm:$0xf]
    %v1514 = vld [vmem:[%s9 + $0xfc] sm:$0xf]
    %v1515 = vld [vmem:[%s11] sm:$0x1]
    %v1517 = vlaneseq
    %v1518 = vshrl.u32 %v1517, 7
    %v1519 = vsub.s32 0, %v1518
    %v1520 = vrot.slane %v1515, %v1519
    %v1586 = vunpack.c.l.b16 %v1451
    %v1587 = vunpack.c.l.b16 %v1452
    %v1588 = vunpack.c.l.b16 %v1453
    %v1589 = vunpack.c.l.b16 %v1454
    %v1590 = vunpack.c.l.b16 %v1455
    %v1591 = vunpack.c.l.b16 %v1456
    %v1592 = vunpack.c.l.b16 %v1457
    %v1593 = vunpack.c.l.b16 %v1458
    %v1594 = vunpack.c.l.b16 %v1459
    %v1595 = vunpack.c.l.b16 %v1460
    %v1596 = vunpack.c.l.b16 %v1461
    %v1597 = vunpack.c.l.b16 %v1462
    %v1598 = vunpack.c.l.b16 %v1463
    %v1599 = vunpack.c.l.b16 %v1464
    %v1600 = vunpack.c.l.b16 %v1465
    %v1601 = vunpack.c.l.b16 %v1466
    %v1602 = vunpack.c.l.b16 %v1467
    %v1603 = vunpack.c.l.b16 %v1468
    %v1604 = vunpack.c.l.b16 %v1469
    %v1605 = vunpack.c.l.b16 %v1470
    %v1606 = vunpack.c.l.b16 %v1471
    %v1607 = vunpack.c.l.b16 %v1472
    %v1608 = vunpack.c.l.b16 %v1473
    %v1609 = vunpack.c.l.b16 %v1474
    %v1610 = vunpack.c.l.b16 %v1475
    %v1611 = vunpack.c.l.b16 %v1476
    %v1612 = vunpack.c.l.b16 %v1477
    %v1613 = vunpack.c.l.b16 %v1478
    %v1614 = vunpack.c.l.b16 %v1479
    %v1615 = vunpack.c.l.b16 %v1480
    %v1616 = vunpack.c.l.b16 %v1481
    %v1617 = vunpack.c.l.b16 %v1482
    %v1618 = vunpack.c.l.b16 %v1483
    %v1619 = vunpack.c.l.b16 %v1484
    %v1620 = vunpack.c.l.b16 %v1485
    %v1621 = vunpack.c.l.b16 %v1486
    %v1622 = vunpack.c.l.b16 %v1487
    %v1623 = vunpack.c.l.b16 %v1488
    %v1624 = vunpack.c.l.b16 %v1489
    %v1625 = vunpack.c.l.b16 %v1490
    %v1626 = vunpack.c.l.b16 %v1491
    %v1627 = vunpack.c.l.b16 %v1492
    %v1628 = vunpack.c.l.b16 %v1493
    %v1629 = vunpack.c.l.b16 %v1494
    %v1630 = vunpack.c.l.b16 %v1495
    %v1631 = vunpack.c.l.b16 %v1496
    %v1632 = vunpack.c.l.b16 %v1497
    %v1633 = vunpack.c.l.b16 %v1498
    %v1634 = vunpack.c.l.b16 %v1499
    %v1635 = vunpack.c.l.b16 %v1500
    %v1636 = vunpack.c.l.b16 %v1501
    %v1637 = vunpack.c.l.b16 %v1502
    %v1638 = vunpack.c.l.b16 %v1503
    %v1639 = vunpack.c.l.b16 %v1504
    %v1640 = vunpack.c.l.b16 %v1505
    %v1641 = vunpack.c.l.b16 %v1506
    %v1642 = vunpack.c.l.b16 %v1507
    %v1643 = vunpack.c.l.b16 %v1508
    %v1644 = vunpack.c.l.b16 %v1509
    %v1645 = vunpack.c.l.b16 %v1510
    %v1646 = vunpack.c.l.b16 %v1511
    %v1647 = vunpack.c.l.b16 %v1512
    %v1648 = vunpack.c.l.b16 %v1513
    %v1649 = vunpack.c.l.b16 %v1514
    %v1650 = vpack.c.b16 %v1587, %v1586
    %v1651 = vpack.c.b16 %v1589, %v1588
    %v1652 = vpack.c.b16 %v1591, %v1590
    %v1653 = vpack.c.b16 %v1593, %v1592
    %v1654 = vpack.c.b16 %v1595, %v1594
    %v1655 = vpack.c.b16 %v1597, %v1596
    %v1656 = vpack.c.b16 %v1599, %v1598
    %v1657 = vpack.c.b16 %v1601, %v1600
    %v1658 = vpack.c.b16 %v1603, %v1602
    %v1659 = vpack.c.b16 %v1605, %v1604
    %v1660 = vpack.c.b16 %v1607, %v1606
    %v1661 = vpack.c.b16 %v1609, %v1608
    %v1662 = vpack.c.b16 %v1611, %v1610
    %v1663 = vpack.c.b16 %v1613, %v1612
    %v1664 = vpack.c.b16 %v1615, %v1614
    %v1665 = vpack.c.b16 %v1617, %v1616
    %v1666 = vpack.c.b16 %v1619, %v1618
    %v1667 = vpack.c.b16 %v1621, %v1620
    %v1668 = vpack.c.b16 %v1623, %v1622
    %v1669 = vpack.c.b16 %v1625, %v1624
    %v1670 = vpack.c.b16 %v1627, %v1626
    %v1671 = vpack.c.b16 %v1629, %v1628
    %v1672 = vpack.c.b16 %v1631, %v1630
    %v1673 = vpack.c.b16 %v1633, %v1632
    %v1674 = vpack.c.b16 %v1635, %v1634
    %v1675 = vpack.c.b16 %v1637, %v1636
    %v1676 = vpack.c.b16 %v1639, %v1638
    %v1677 = vpack.c.b16 %v1641, %v1640
    %v1678 = vpack.c.b16 %v1643, %v1642
    %v1679 = vpack.c.b16 %v1645, %v1644
    %v1680 = vpack.c.b16 %v1647, %v1646
    %v1681 = vpack.c.b16 %v1649, %v1648
    %1714 = vmatprep.subr.bf16.mxu0 0
    %1715 = vmatpush1.bf16.msra.mxu0 %v1650
    %1716 = vmatprep.subr.bf16.mxu0 0
    %1717 = vmatpush1.bf16.msra.mxu0 %v1651
    %1718 = vmatprep.subr.bf16.mxu0 0
    %1719 = vmatpush1.bf16.msra.mxu0 %v1652
    %1720 = vmatprep.subr.bf16.mxu0 0
    %1721 = vmatpush1.bf16.msra.mxu0 %v1653
    %1722 = vmatprep.subr.bf16.mxu0 0
    %1723 = vmatpush1.bf16.msra.mxu0 %v1654
    %1724 = vmatprep.subr.bf16.mxu0 0
    %1725 = vmatpush1.bf16.msra.mxu0 %v1655
    %1726 = vmatprep.subr.bf16.mxu0 0
    %1727 = vmatpush1.bf16.msra.mxu0 %v1656
    %1728 = vmatprep.subr.bf16.mxu0 0
    %1729 = vmatpush1.bf16.msra.mxu0 %v1657
    %1730 = vmatprep.subr.bf16.mxu0 0
    %1731 = vmatpush1.bf16.msra.mxu0 %v1658
    %1732 = vmatprep.subr.bf16.mxu0 0
    %1733 = vmatpush1.bf16.msra.mxu0 %v1659
    %1734 = vmatprep.subr.bf16.mxu0 0
    %1735 = vmatpush1.bf16.msra.mxu0 %v1660
    %1736 = vmatprep.subr.bf16.mxu0 0
    %1737 = vmatpush1.bf16.msra.mxu0 %v1661
    %1738 = vmatprep.subr.bf16.mxu0 0
    %1739 = vmatpush1.bf16.msra.mxu0 %v1662
    %1740 = vmatprep.subr.bf16.mxu0 0
    %1741 = vmatpush1.bf16.msra.mxu0 %v1663
    %1742 = vmatprep.subr.bf16.mxu0 0
    %1743 = vmatpush1.bf16.msra.mxu0 %v1664
    %1744 = vmatprep.subr.bf16.mxu0 0
    %1745 = vmatpush1.bf16.msra.mxu0 %v1665
    %1746 = vmatprep.mubr.bf16.mxu0 %v1414
    %1747 = vmatmul.mubr.bf16.gmra.mrb[0].mxu0 %v1398
    %v1748 = vpop.f32.mrb[0].mxu0
    %v1749 = vadd.f32 %v1520, %v1748
    %v1750 = vpop.f32.mrb[0].mxu0
    %v1751 = vpop.f32.mrb[0].mxu0
    %v1752 = vadd.f32 %v1520, %v1751
    %v1753 = vpop.f32.mrb[0].mxu0
    %1754 = vmatprep.mubr.bf16.mxu0 %v1417
    %1755 = vmatmul.mubr.bf16.gmra.mrb[0].mxu0 %v1401
    %v1756 = vpop.f32.mrb[0].mxu0
    %v1757 = vadd.f32 %v1520, %v1756
    %v1758 = vpop.f32.mrb[0].mxu0
    %v1759 = vpop.f32.mrb[0].mxu0
    %v1760 = vadd.f32 %v1520, %v1759
    %v1761 = vpop.f32.mrb[0].mxu0
    %1762 = vdwg.mxu0
    %1763 = vmatprep.subr.bf16.mxu0 0
    %1764 = vmatpush1.bf16.msra.mxu0 %v1666
    %1765 = vmatprep.subr.bf16.mxu0 0
    %1766 = vmatpush1.bf16.msra.mxu0 %v1667
    %1767 = vmatprep.subr.bf16.mxu0 0
    %1768 = vmatpush1.bf16.msra.mxu0 %v1668
    %1769 = vmatprep.subr.bf16.mxu0 0
    %1770 = vmatpush1.bf16.msra.mxu0 %v1669
    %1771 = vmatprep.subr.bf16.mxu0 0
    %1772 = vmatpush1.bf16.msra.mxu0 %v1670
    %1773 = vmatprep.subr.bf16.mxu0 0
    %1774 = vmatpush1.bf16.msra.mxu0 %v1671
    %1775 = vmatprep.subr.bf16.mxu0 0
    %1776 = vmatpush1.bf16.msra.mxu0 %v1672
    %1777 = vmatprep.subr.bf16.mxu0 0
    %1778 = vmatpush1.bf16.msra.mxu0 %v1673
    %1779 = vmatprep.subr.bf16.mxu0 0
    %1780 = vmatpush1.bf16.msra.mxu0 %v1674
    %1781 = vmatprep.subr.bf16.mxu0 0
    %1782 = vmatpush1.bf16.msra.mxu0 %v1675
    %1783 = vmatprep.subr.bf16.mxu0 0
    %1784 = vmatpush1.bf16.msra.mxu0 %v1676
    %1785 = vmatprep.subr.bf16.mxu0 0
    %1786 = vmatpush1.bf16.msra.mxu0 %v1677
    %1787 = vmatprep.subr.bf16.mxu0 0
    %1788 = vmatpush1.bf16.msra.mxu0 %v1678
    %1789 = vmatprep.subr.bf16.mxu0 0
    %1790 = vmatpush1.bf16.msra.mxu0 %v1679
    %1791 = vmatprep.subr.bf16.mxu0 0
    %1792 = vmatpush1.bf16.msra.mxu0 %v1680
    %1793 = vmatprep.subr.bf16.mxu0 0
    %1794 = vmatpush1.bf16.msra.mxu0 %v1681
    %1795 = vmatprep.mubr.bf16.mxu0 %v1446
    %1796 = vmatmul.mubr.bf16.gmra.mrb[0].mxu0 %v1430
    %v1797 = vpop.f32.mrb[0].mxu0
    %v1798 = vadd.f32 %v1749, %v1797
    %v1799 = vpop.f32.mrb[0].mxu0
    %v1800 = vpop.f32.mrb[0].mxu0
    %v1801 = vadd.f32 %v1752, %v1800
    %v1802 = vpop.f32.mrb[0].mxu0
    %1803 = vmatprep.mubr.bf16.mxu0 %v1449
    %1804 = vmatmul.mubr.bf16.gmra.mrb[0].mxu0 %v1433
    %v1805 = vpop.f32.mrb[0].mxu0
    %v1806 = vadd.f32 %v1757, %v1805
    %v1807 = vpop.f32.mrb[0].mxu0
    %v1808 = vpop.f32.mrb[0].mxu0
    %v1809 = vadd.f32 %v1760, %v1808
    %v1810 = vpop.f32.mrb[0].mxu0
    %1811 = vdwg.mxu0
    %v1812 = vmax.f32 %v1798, 0.0
    %v1813 = vmax.f32 %v1801, 0.0
    %v1814 = vmax.f32 %v1806, 0.0
    %v1815 = vmax.f32 %v1809, 0.0
    %v1816 = vpack.c.bf16 %v1813, %v1812
    %v1817 = vpack.c.bf16 %v1815, %v1814
    %v1819 = vshrl.u32 %v1816, 16
    %v1821 = vrot.slane %v1819, 5
    %v1822 = vshll.u32 %v1816, 16
    %v1824 = vrot.slane %v1822, 6
    %v1825 = vor.u32 %v1821, %v1824
    %v1827 = vshrl.u32 %v1817, 16
    %v1829 = vrot.slane %v1827, 5
    %v1830 = vshll.u32 %v1817, 16
    %v1832 = vrot.slane %v1830, 6
    %v1833 = vor.u32 %v1829, %v1832
    %v1834 = vsel %vm431, %v1825, %v1833
    %v1838 = vsel %vm453, 0, %v1825
    %v1839 = vsel %vm453, %v1833, 0
    %v1840 = vmul.bf16 %v1838, %v578
    %v1841 = vmul.bf16 %v1834, %v579
    %v1842 = vmul.bf16 %v1838, %v649
    %v1843 = vmul.bf16 %v1834, %v657
    %v1844 = vmul.bf16 %v1839, %v653
    %v1845 = vmul.bf16 %v1838, %v726
    %v1846 = vmul.bf16 %v1834, %v728
    %v1847 = vmul.bf16 %v1839, %v727
    %v1848 = vmul.bf16 %v1838, %v790
    %v1849 = vmul.bf16 %v1834, %v792
    %v1850 = vmul.bf16 %v1839, %v791
    %v1851 = vmul.bf16 %v1838, %v853
    %v1852 = vmul.bf16 %v1834, %v855
    %v1853 = vmul.bf16 %v1839, %v854
    %v1854 = vmul.bf16 %v1838, %v924
    %v1855 = vmul.bf16 %v1834, %v925
    %v1856 = vmul.bf16 %v1839, %v926
    %v1857 = vmul.bf16 %v1838, %v995
    %v1858 = vmul.bf16 %v1834, %v1004
    %v1859 = vmul.bf16 %v1839, %v1003
    %v1860 = vmul.bf16 %v1838, %v1069
    %v1861 = vmul.bf16 %v1834, %v1071
    %v1862 = vmul.bf16 %v1839, %v1070
    %v1864 = vshrl.u32 %v1842, 16
    %v1866 = vshll.u32 %v1842, 16
    %v1868 = vrot.slane %v1866, 1
    %v1869 = vor.u32 %v1864, %v1868
    %v1871 = vshll.u32 %v1843, 16
    %v1873 = vrot.slane %v1871, 1
    %v1874 = vsel %vm1078, %v1869, %v1873
    %v1875 = vshrl.u32 %v1843, 16
    %v1877 = vor.u32 %v1875, %v1873
    %v1879 = vshll.u32 %v1844, 16
    %v1881 = vrot.slane %v1879, 1
    %v1882 = vsel %vm1078, %v1877, %v1881
    %1883 = vrot.lane.b32.xlu0 %v1874, 32
    %v1884 = vpop.permute.xlu0 %1883
    %1885 = vrot.lane.b32.xlu0 %v1882, 32
    %v1886 = vpop.permute.xlu0 %1885
    %v1890 = vrot.slane %v1845, 1
    %v1891 = vrot.slane %v1846, 1
    %v1892 = vsel %vm1130, %v1890, %v1891
    %v1893 = vrot.slane %v1847, 1
    %v1894 = vsel %vm1130, %v1891, %v1893
    %1895 = vrot.lane.b32.xlu0 %v1892, 64
    %v1896 = vpop.permute.xlu0 %1895
    %1897 = vrot.lane.b32.xlu0 %v1894, 64
    %v1898 = vpop.permute.xlu0 %1897
    %v1902 = vrot.slane %v1848, 2
    %v1903 = vrot.slane %v1849, 2
    %v1904 = vsel %vm1143, %v1902, %v1903
    %v1905 = vrot.slane %v1850, 2
    %v1906 = vsel %vm1143, %v1903, %v1905
    %1907 = vrot.lane.b32.xlu0 %v1904, 96
    %v1908 = vpop.permute.xlu0 %1907
    %1909 = vrot.lane.b32.xlu0 %v1906, 96
    %v1910 = vpop.permute.xlu0 %1909
    %v1912 = vshrl.u32 %v1838, 16
    %v1914 = vrot.slane %v1912, 2
    %v1915 = vshll.u32 %v1838, 16
    %v1917 = vrot.slane %v1915, 3
    %v1918 = vor.u32 %v1914, %v1917
    %v1920 = vshrl.u32 %v1834, 16
    %v1922 = vrot.slane %v1920, 2
    %v1923 = vshll.u32 %v1834, 16
    %v1925 = vrot.slane %v1923, 3
    %v1926 = vor.u32 %v1922, %v1925
    %v1927 = vsel %vm1149, %v1918, %v1926
    %v1929 = vshrl.u32 %v1839, 16
    %v1931 = vrot.slane %v1929, 2
    %v1932 = vshll.u32 %v1839, 16
    %v1934 = vrot.slane %v1932, 3
    %v1935 = vor.u32 %v1931, %v1934
    %v1936 = vsel %vm1149, %v1926, %v1935
    %v1940 = vrot.slane %v1851, 3
    %v1941 = vrot.slane %v1852, 3
    %v1942 = vsel %vm1068, %v1940, %v1941
    %v1943 = vrot.slane %v1853, 3
    %v1944 = vsel %vm1068, %v1941, %v1943
    %1945 = vrot.lane.b32.xlu0 %v1942, 32
    %v1946 = vpop.permute.xlu0 %1945
    %1947 = vrot.lane.b32.xlu0 %v1944, 32
    %v1948 = vpop.permute.xlu0 %1947
    %v1952 = vrot.slane %v1854, 4
    %v1953 = vrot.slane %v1855, 4
    %v1954 = vsel %vm1305, %v1952, %v1953
    %v1955 = vrot.slane %v1856, 4
    %v1956 = vsel %vm1305, %v1953, %v1955
    %1957 = vrot.lane.b32.xlu0 %v1954, 64
    %v1958 = vpop.permute.xlu0 %1957
    %1959 = vrot.lane.b32.xlu0 %v1956, 64
    %v1960 = vpop.permute.xlu0 %1959
    %v1962 = vshrl.u32 %v1857, 16
    %v1964 = vrot.slane %v1962, 4
    %v1965 = vshll.u32 %v1857, 16
    %v1967 = vrot.slane %v1965, 5
    %v1968 = vor.u32 %v1964, %v1967
    %v1970 = vshrl.u32 %v1858, 16
    %v1972 = vrot.slane %v1970, 4
    %v1973 = vshll.u32 %v1858, 16
    %v1975 = vrot.slane %v1973, 5
    %v1976 = vor.u32 %v1972, %v1975
    %v1977 = vsel %vm1311, %v1968, %v1976
    %v1979 = vshrl.u32 %v1859, 16
    %v1981 = vrot.slane %v1979, 4
    %v1982 = vshll.u32 %v1859, 16
    %v1984 = vrot.slane %v1982, 5
    %v1985 = vor.u32 %v1981, %v1984
    %v1986 = vsel %vm1311, %v1976, %v1985
    %1987 = vrot.lane.b32.xlu0 %v1977, 96
    %v1988 = vpop.permute.xlu0 %1987
    %1989 = vrot.lane.b32.xlu0 %v1986, 96
    %v1990 = vpop.permute.xlu0 %1989
    %v1994 = vrot.slane %v1860, 5
    %v1995 = vrot.slane %v1861, 5
    %v1996 = vsel %vm452, %v1994, %v1995
    %v1997 = vrot.slane %v1862, 5
    %v1998 = vsel %vm452, %v1995, %v1997
    %v2001 = vsel %vm1384, %v1840, %v1884
    %v2004 = vsel %vm1384, %v1841, %v1886
    %v2006 = vsel %vm1391, %v2001, %v1896
    %v2008 = vsel %vm1391, %v2004, %v1898
    %v2010 = vsel %vm1396, %v2006, %v1908
    %v2013 = vsel %vm1396, %v2008, %v1910
    %v2017 = vsel %vm1384, %v1927, %v1946
    %v2020 = vsel %vm1384, %v1936, %v1948
    %v2022 = vsel %vm1391, %v2017, %v1958
    %v2024 = vsel %vm1391, %v2020, %v1960
    %v2026 = vsel %vm1396, %v2022, %v1988
    %v2029 = vsel %vm1396, %v2024, %v1990
    %v2031 = vld [vmem:[%s13] sm:$0xf]
    %v2032 = vld [vmem:[%s13 + $0x4] sm:$0xf]
    %v2033 = vld [vmem:[%s13 + $0x8] sm:$0xf]
    %v2034 = vld [vmem:[%s13 + $0xc] sm:$0xf]
    %v2035 = vld [vmem:[%s13 + $0x10] sm:$0xf]
    %v2036 = vld [vmem:[%s13 + $0x14] sm:$0xf]
    %v2037 = vld [vmem:[%s13 + $0x18] sm:$0xf]
    %v2038 = vld [vmem:[%s13 + $0x1c] sm:$0xf]
    %v2039 = vld [vmem:[%s13 + $0x20] sm:$0xf]
    %v2040 = vld [vmem:[%s13 + $0x24] sm:$0xf]
    %v2041 = vld [vmem:[%s13 + $0x28] sm:$0xf]
    %v2042 = vld [vmem:[%s13 + $0x2c] sm:$0xf]
    %v2043 = vld [vmem:[%s13 + $0x30] sm:$0xf]
    %v2044 = vld [vmem:[%s13 + $0x34] sm:$0xf]
    %v2045 = vld [vmem:[%s13 + $0x38] sm:$0xf]
    %v2046 = vld [vmem:[%s13 + $0x3c] sm:$0xf]
    %v2047 = vld [vmem:[%s13 + $0x40] sm:$0xf]
    %v2048 = vld [vmem:[%s13 + $0x44] sm:$0xf]
    %v2049 = vld [vmem:[%s13 + $0x48] sm:$0xf]
    %v2050 = vld [vmem:[%s13 + $0x4c] sm:$0xf]
    %v2051 = vld [vmem:[%s13 + $0x50] sm:$0xf]
    %v2052 = vld [vmem:[%s13 + $0x54] sm:$0xf]
    %v2053 = vld [vmem:[%s13 + $0x58] sm:$0xf]
    %v2054 = vld [vmem:[%s13 + $0x5c] sm:$0xf]
    %v2055 = vld [vmem:[%s13 + $0x60] sm:$0xf]
    %v2056 = vld [vmem:[%s13 + $0x64] sm:$0xf]
    %v2057 = vld [vmem:[%s13 + $0x68] sm:$0xf]
    %v2058 = vld [vmem:[%s13 + $0x6c] sm:$0xf]
    %v2059 = vld [vmem:[%s13 + $0x70] sm:$0xf]
    %v2060 = vld [vmem:[%s13 + $0x74] sm:$0xf]
    %v2061 = vld [vmem:[%s13 + $0x78] sm:$0xf]
    %v2062 = vld [vmem:[%s13 + $0x7c] sm:$0xf]
    %v2063 = vld [vmem:[%s13 + $0x80] sm:$0xf]
    %v2064 = vld [vmem:[%s13 + $0x84] sm:$0xf]
    %v2065 = vld [vmem:[%s13 + $0x88] sm:$0xf]
    %v2066 = vld [vmem:[%s13 + $0x8c] sm:$0xf]
    %v2067 = vld [vmem:[%s15] sm:$0x1]
    %v2069 = vlaneseq
    %v2070 = vshrl.u32 %v2069, 7
    %v2071 = vsub.s32 0, %v2070
    %v2072 = vrot.slane %v2067, %v2071
    %v2110 = vunpack.c.l.b16 %v2031
    %v2111 = vunpack.c.l.b16 %v2032
    %v2112 = vunpack.c.l.b16 %v2033
    %v2113 = vunpack.c.l.b16 %v2034
    %v2114 = vunpack.c.l.b16 %v2035
    %v2115 = vunpack.c.l.b16 %v2036
    %v2116 = vunpack.c.l.b16 %v2037
    %v2117 = vunpack.c.l.b16 %v2038
    %v2118 = vunpack.c.l.b16 %v2039
    %v2119 = vunpack.c.l.b16 %v2040
    %v2120 = vunpack.c.l.b16 %v2041
    %v2121 = vunpack.c.l.b16 %v2042
    %v2122 = vunpack.c.l.b16 %v2043
    %v2123 = vunpack.c.l.b16 %v2044
    %v2124 = vunpack.c.l.b16 %v2045
    %v2125 = vunpack.c.l.b16 %v2046
    %v2126 = vunpack.c.l.b16 %v2047
    %v2127 = vunpack.c.l.b16 %v2048
    %v2128 = vunpack.c.l.b16 %v2049
    %v2129 = vunpack.c.l.b16 %v2050
    %v2130 = vunpack.c.l.b16 %v2051
    %v2131 = vunpack.c.l.b16 %v2052
    %v2132 = vunpack.c.l.b16 %v2053
    %v2133 = vunpack.c.l.b16 %v2054
    %v2134 = vunpack.c.l.b16 %v2055
    %v2135 = vunpack.c.l.b16 %v2056
    %v2136 = vunpack.c.l.b16 %v2057
    %v2137 = vunpack.c.l.b16 %v2058
    %v2138 = vunpack.c.l.b16 %v2059
    %v2139 = vunpack.c.l.b16 %v2060
    %v2140 = vunpack.c.l.b16 %v2061
    %v2141 = vunpack.c.l.b16 %v2062
    %v2142 = vunpack.c.l.b16 %v2063
    %v2143 = vunpack.c.l.b16 %v2064
    %v2144 = vunpack.c.l.b16 %v2065
    %v2145 = vunpack.c.l.b16 %v2066
    %v2146 = vpack.c.b16 %v2111, %v2110
    %v2147 = vpack.c.b16 %v2113, %v2112
    %v2148 = vpack.c.b16 %v2115, %v2114
    %v2149 = vpack.c.b16 %v2117, %v2116
    %v2150 = vpack.c.b16 %v2119, %v2118
    %v2151 = vpack.c.b16 %v2121, %v2120
    %v2152 = vpack.c.b16 %v2123, %v2122
    %v2153 = vpack.c.b16 %v2125, %v2124
    %v2154 = vpack.c.b16 %v2127, %v2126
    %v2155 = vpack.c.b16 %v2129, %v2128
    %v2156 = vpack.c.b16 %v2131, %v2130
    %v2157 = vpack.c.b16 %v2133, %v2132
    %v2158 = vpack.c.b16 %v2135, %v2134
    %v2159 = vpack.c.b16 %v2137, %v2136
    %v2160 = vpack.c.b16 %v2139, %v2138
    %v2161 = vpack.c.b16 %v2141, %v2140
    %v2162 = vpack.c.b16 %v2143, %v2142
    %v2163 = vpack.c.b16 %v2145, %v2144
    %v2183 = vsel %vm1384, %v1996, 0
    %v2186 = vsel %vm1384, %v1998, 0
    %2188 = vmatprep.subr.bf16.mxu0 0
    %2189 = vmatpush1.bf16.msra.mxu0 %v2146
    %2190 = vmatprep.subr.bf16.mxu0 0
    %2191 = vmatpush1.bf16.msra.mxu0 %v2147
    %2192 = vmatprep.subr.bf16.mxu0 0
    %2193 = vmatpush1.bf16.msra.mxu0 %v2148
    %2194 = vmatprep.subr.bf16.mxu0 0
    %2195 = vmatpush1.bf16.msra.mxu0 %v2149
    %2196 = vmatprep.subr.bf16.mxu0 0
    %2197 = vmatpush1.bf16.msra.mxu0 %v2150
    %2198 = vmatprep.subr.bf16.mxu0 0
    %2199 = vmatpush1.bf16.msra.mxu0 %v2151
    %2200 = vmatprep.subr.bf16.mxu0 0
    %2201 = vmatpush1.bf16.msra.mxu0 %v2152
    %2202 = vmatprep.subr.bf16.mxu0 0
    %2203 = vmatpush1.bf16.msra.mxu0 %v2153
    %2204 = vmatprep.subr.bf16.mxu0 0
    %2205 = vmatpush1.bf16.msra.mxu0 %v2154
    %2206 = vmatprep.subr.bf16.mxu0 0
    %2207 = vmatpush1.bf16.msra.mxu0 %v2155
    %2208 = vmatprep.subr.bf16.mxu0 0
    %2209 = vmatpush1.bf16.msra.mxu0 %v2156
    %2210 = vmatprep.subr.bf16.mxu0 0
    %2211 = vmatpush1.bf16.msra.mxu0 %v2157
    %2212 = vmatprep.subr.bf16.mxu0 0
    %2213 = vmatpush1.bf16.msra.mxu0 %v2158
    %2214 = vmatprep.subr.bf16.mxu0 0
    %2215 = vmatpush1.bf16.msra.mxu0 %v2159
    %2216 = vmatprep.subr.bf16.mxu0 0
    %2217 = vmatpush1.bf16.msra.mxu0 %v2160
    %2218 = vmatprep.subr.bf16.mxu0 0
    %2219 = vmatpush1.bf16.msra.mxu0 %v2161
    %2220 = vmatprep.mubr.bf16.mxu0 %v2026
    %2221 = vmatmul.mubr.bf16.gmra.mrb[0].mxu0 %v2010
    %v2222 = vpop.f32.mrb[0].mxu0
    %v2223 = vadd.f32 %v2072, %v2222
    %v2224 = vpop.f32.mrb[0].mxu0
    %v2225 = vpop.f32.mrb[0].mxu0
    %v2226 = vadd.f32 %v2072, %v2225
    %v2227 = vpop.f32.mrb[0].mxu0
    %2228 = vmatprep.mubr.bf16.mxu0 %v2029
    %2229 = vmatmul.mubr.bf16.gmra.mrb[0].mxu0 %v2013
    %v2230 = vpop.f32.mrb[0].mxu0
    %v2231 = vadd.f32 %v2072, %v2230
    %v2232 = vpop.f32.mrb[0].mxu0
    %v2233 = vpop.f32.mrb[0].mxu0
    %v2234 = vadd.f32 %v2072, %v2233
    %v2235 = vpop.f32.mrb[0].mxu0
    %2236 = vdwg.mxu0
    %2237 = vmatprep.subr.bf16.mxu0 0
    %2238 = vmatpush1.bf16.msra.mxu0 %v2162
    %2239 = vmatprep.subr.bf16.mxu0 0
    %2240 = vmatpush1.bf16.msra.mxu0 %v2163
    %2241 = vmatprep.subr.bf16.mxu0 0
    %2242 = vmatpush1.bf16.msra.mxu0 0
    %2243 = vmatprep.subr.bf16.mxu0 0
    %2244 = vmatpush1.bf16.msra.mxu0 0
    %2245 = vmatprep.subr.bf16.mxu0 0
    %2246 = vmatpush1.bf16.msra.mxu0 0
    %2247 = vmatprep.subr.bf16.mxu0 0
    %2248 = vmatpush1.bf16.msra.mxu0 0
    %2249 = vmatprep.subr.bf16.mxu0 0
    %2250 = vmatpush1.bf16.msra.mxu0 0
    %2251 = vmatprep.subr.bf16.mxu0 0
    %2252 = vmatpush1.bf16.msra.mxu0 0
    %2253 = vmatprep.subr.bf16.mxu0 0
    %2254 = vmatpush1.bf16.msra.mxu0 0
    %2255 = vmatprep.subr.bf16.mxu0 0
    %2256 = vmatpush1.bf16.msra.mxu0 0
    %2257 = vmatprep.subr.bf16.mxu0 0
    %2258 = vmatpush1.bf16.msra.mxu0 0
    %2259 = vmatprep.subr.bf16.mxu0 0
    %2260 = vmatpush1.bf16.msra.mxu0 0
    %2261 = vmatprep.subr.bf16.mxu0 0
    %2262 = vmatpush1.bf16.msra.mxu0 0
    %2263 = vmatprep.subr.bf16.mxu0 0
    %2264 = vmatpush1.bf16.msra.mxu0 0
    %2265 = vmatprep.subr.bf16.mxu0 0
    %2266 = vmatpush1.bf16.msra.mxu0 0
    %2267 = vmatprep.subr.bf16.mxu0 0
    %2268 = vmatpush1.bf16.msra.mxu0 0
    %2269 = vmatprep.mubr.bf16.mxu0 0
    %2270 = vmatmul.mubr.bf16.gmra.mrb[0].mxu0 %v2183
    %v2271 = vpop.f32.mrb[0].mxu0
    %v2272 = vadd.f32 %v2223, %v2271
    %v2273 = vpop.f32.mrb[0].mxu0
    %v2274 = vpop.f32.mrb[0].mxu0
    %v2275 = vadd.f32 %v2226, %v2274
    %v2276 = vpop.f32.mrb[0].mxu0
    %2277 = vmatprep.mubr.bf16.mxu0 0
    %2278 = vmatmul.mubr.bf16.gmra.mrb[0].mxu0 %v2186
    %v2279 = vpop.f32.mrb[0].mxu0
    %v2280 = vadd.f32 %v2231, %v2279
    %v2281 = vpop.f32.mrb[0].mxu0
    %v2282 = vpop.f32.mrb[0].mxu0
    %v2283 = vadd.f32 %v2234, %v2282
    %v2284 = vpop.f32.mrb[0].mxu0
    %2285 = vdwg.mxu0
    %v2286 = vpack.c.bf16 %v2275, %v2272
    %v2287 = vpack.c.bf16 %v2283, %v2280
    %v2288 = vmax.bf16 %v2286, 0
    %v2289 = vmax.bf16 %v2287, 0
    %v2291 = vshrl.u32 %v2288, 16
    %v2293 = vrot.slane %v2291, 5
    %v2294 = vshll.u32 %v2288, 16
    %v2296 = vrot.slane %v2294, 6
    %v2297 = vor.u32 %v2293, %v2296
    %v2299 = vshrl.u32 %v2289, 16
    %v2301 = vrot.slane %v2299, 5
    %v2302 = vshll.u32 %v2289, 16
    %v2304 = vrot.slane %v2302, 6
    %v2305 = vor.u32 %v2301, %v2304
    %v2306 = vsel %vm431, %v2297, %v2305
    %v2310 = vsel %vm453, 0, %v2297
    %v2311 = vsel %vm453, %v2305, 0
    %v2312 = vmul.bf16 %v2310, %v578
    %v2313 = vmul.bf16 %v2306, %v579
    %v2314 = vmul.bf16 %v2310, %v649
    %v2315 = vmul.bf16 %v2306, %v657
    %v2316 = vmul.bf16 %v2311, %v653
    %v2317 = vmul.bf16 %v2310, %v726
    %v2318 = vmul.bf16 %v2306, %v728
    %v2319 = vmul.bf16 %v2311, %v727
    %v2320 = vmul.bf16 %v2310, %v790
    %v2321 = vmul.bf16 %v2306, %v792
    %v2322 = vmul.bf16 %v2311, %v791
    %v2323 = vmul.bf16 %v2310, %v853
    %v2324 = vmul.bf16 %v2306, %v855
    %v2325 = vmul.bf16 %v2311, %v854
    %v2326 = vmul.bf16 %v2310, %v924
    %v2327 = vmul.bf16 %v2306, %v925
    %v2328 = vmul.bf16 %v2311, %v926
    %v2329 = vmul.bf16 %v2310, %v995
    %v2330 = vmul.bf16 %v2306, %v1004
    %v2331 = vmul.bf16 %v2311, %v1003
    %v2332 = vmul.bf16 %v2310, %v1069
    %v2333 = vmul.bf16 %v2306, %v1071
    %v2334 = vmul.bf16 %v2311, %v1070
    %v2336 = vshrl.u32 %v2314, 16
    %v2338 = vshll.u32 %v2314, 16
    %v2340 = vrot.slane %v2338, 1
    %v2341 = vor.u32 %v2336, %v2340
    %v2343 = vshll.u32 %v2315, 16
    %v2345 = vrot.slane %v2343, 1
    %v2346 = vsel %vm1078, %v2341, %v2345
    %v2347 = vshrl.u32 %v2315, 16
    %v2349 = vor.u32 %v2347, %v2345
    %v2351 = vshll.u32 %v2316, 16
    %v2353 = vrot.slane %v2351, 1
    %v2354 = vsel %vm1078, %v2349, %v2353
    %2355 = vrot.lane.b32.xlu0 %v2346, 32
    %v2356 = vpop.permute.xlu0 %2355
    %2357 = vrot.lane.b32.xlu0 %v2354, 32
    %v2358 = vpop.permute.xlu0 %2357
    %v2362 = vrot.slane %v2317, 1
    %v2363 = vrot.slane %v2318, 1
    %v2364 = vsel %vm1130, %v2362, %v2363
    %v2365 = vrot.slane %v2319, 1
    %v2366 = vsel %vm1130, %v2363, %v2365
    %2367 = vrot.lane.b32.xlu0 %v2364, 64
    %v2368 = vpop.permute.xlu0 %2367
    %2369 = vrot.lane.b32.xlu0 %v2366, 64
    %v2370 = vpop.permute.xlu0 %2369
    %v2374 = vrot.slane %v2320, 2
    %v2375 = vrot.slane %v2321, 2
    %v2376 = vsel %vm1143, %v2374, %v2375
    %v2377 = vrot.slane %v2322, 2
    %v2378 = vsel %vm1143, %v2375, %v2377
    %2379 = vrot.lane.b32.xlu0 %v2376, 96
    %v2380 = vpop.permute.xlu0 %2379
    %2381 = vrot.lane.b32.xlu0 %v2378, 96
    %v2382 = vpop.permute.xlu0 %2381
    %v2384 = vshrl.u32 %v2310, 16
    %v2386 = vrot.slane %v2384, 2
    %v2387 = vshll.u32 %v2310, 16
    %v2389 = vrot.slane %v2387, 3
    %v2390 = vor.u32 %v2386, %v2389
    %v2392 = vshrl.u32 %v2306, 16
    %v2394 = vrot.slane %v2392, 2
    %v2395 = vshll.u32 %v2306, 16
    %v2397 = vrot.slane %v2395, 3
    %v2398 = vor.u32 %v2394, %v2397
    %v2399 = vsel %vm1149, %v2390, %v2398
    %v2401 = vshrl.u32 %v2311, 16
    %v2403 = vrot.slane %v2401, 2
    %v2404 = vshll.u32 %v2311, 16
    %v2406 = vrot.slane %v2404, 3
    %v2407 = vor.u32 %v2403, %v2406
    %v2408 = vsel %vm1149, %v2398, %v2407
    %v2412 = vrot.slane %v2323, 3
    %v2413 = vrot.slane %v2324, 3
    %v2414 = vsel %vm1068, %v2412, %v2413
    %v2415 = vrot.slane %v2325, 3
    %v2416 = vsel %vm1068, %v2413, %v2415
    %2417 = vrot.lane.b32.xlu0 %v2414, 32
    %v2418 = vpop.permute.xlu0 %2417
    %2419 = vrot.lane.b32.xlu0 %v2416, 32
    %v2420 = vpop.permute.xlu0 %2419
    %v2424 = vrot.slane %v2326, 4
    %v2425 = vrot.slane %v2327, 4
    %v2426 = vsel %vm1305, %v2424, %v2425
    %v2427 = vrot.slane %v2328, 4
    %v2428 = vsel %vm1305, %v2425, %v2427
    %2429 = vrot.lane.b32.xlu0 %v2426, 64
    %v2430 = vpop.permute.xlu0 %2429
    %2431 = vrot.lane.b32.xlu0 %v2428, 64
    %v2432 = vpop.permute.xlu0 %2431
    %v2434 = vshrl.u32 %v2329, 16
    %v2436 = vrot.slane %v2434, 4
    %v2437 = vshll.u32 %v2329, 16
    %v2439 = vrot.slane %v2437, 5
    %v2440 = vor.u32 %v2436, %v2439
    %v2442 = vshrl.u32 %v2330, 16
    %v2444 = vrot.slane %v2442, 4
    %v2445 = vshll.u32 %v2330, 16
    %v2447 = vrot.slane %v2445, 5
    %v2448 = vor.u32 %v2444, %v2447
    %v2449 = vsel %vm1311, %v2440, %v2448
    %v2451 = vshrl.u32 %v2331, 16
    %v2453 = vrot.slane %v2451, 4
    %v2454 = vshll.u32 %v2331, 16
    %v2456 = vrot.slane %v2454, 5
    %v2457 = vor.u32 %v2453, %v2456
    %v2458 = vsel %vm1311, %v2448, %v2457
    %2459 = vrot.lane.b32.xlu0 %v2449, 96
    %v2460 = vpop.permute.xlu0 %2459
    %2461 = vrot.lane.b32.xlu0 %v2458, 96
    %v2462 = vpop.permute.xlu0 %2461
    %v2466 = vrot.slane %v2332, 5
    %v2467 = vrot.slane %v2333, 5
    %v2468 = vsel %vm452, %v2466, %v2467
    %v2469 = vrot.slane %v2334, 5
    %v2470 = vsel %vm452, %v2467, %v2469
    %v2473 = vsel %vm1384, %v2312, %v2356
    %v2476 = vsel %vm1384, %v2313, %v2358
    %v2478 = vsel %vm1391, %v2473, %v2368
    %v2480 = vsel %vm1391, %v2476, %v2370
    %v2482 = vsel %vm1396, %v2478, %v2380
    %v2485 = vsel %vm1396, %v2480, %v2382
    %v2489 = vsel %vm1384, %v2399, %v2418
    %v2492 = vsel %vm1384, %v2408, %v2420
    %v2494 = vsel %vm1391, %v2489, %v2430
    %v2496 = vsel %vm1391, %v2492, %v2432
    %v2498 = vsel %vm1396, %v2494, %v2460
    %v2501 = vsel %vm1396, %v2496, %v2462
    %v2503 = vld [vmem:[%s17] sm:$0xf]
    %v2504 = vld [vmem:[%s17 + $0x4] sm:$0xf]
    %v2505 = vld [vmem:[%s17 + $0x8] sm:$0xf]
    %v2506 = vld [vmem:[%s17 + $0xc] sm:$0xf]
    %v2507 = vld [vmem:[%s17 + $0x10] sm:$0xf]
    %v2508 = vld [vmem:[%s17 + $0x14] sm:$0xf]
    %v2509 = vld [vmem:[%s17 + $0x18] sm:$0xf]
    %v2510 = vld [vmem:[%s17 + $0x1c] sm:$0xf]
    %v2511 = vld [vmem:[%s17 + $0x20] sm:$0xf]
    %v2512 = vld [vmem:[%s17 + $0x24] sm:$0xf]
    %v2513 = vld [vmem:[%s17 + $0x28] sm:$0xf]
    %v2514 = vld [vmem:[%s17 + $0x2c] sm:$0xf]
    %v2515 = vld [vmem:[%s17 + $0x30] sm:$0xf]
    %v2516 = vld [vmem:[%s17 + $0x34] sm:$0xf]
    %v2517 = vld [vmem:[%s17 + $0x38] sm:$0xf]
    %v2518 = vld [vmem:[%s17 + $0x3c] sm:$0xf]
    %v2519 = vld [vmem:[%s17 + $0x40] sm:$0xf]
    %v2520 = vld [vmem:[%s17 + $0x44] sm:$0xf]
    %v2521 = vld [vmem:[%s17 + $0x48] sm:$0xf]
    %v2522 = vld [vmem:[%s17 + $0x4c] sm:$0xf]
    %v2523 = vld [vmem:[%s17 + $0x50] sm:$0xf]
    %v2524 = vld [vmem:[%s17 + $0x54] sm:$0xf]
    %v2525 = vld [vmem:[%s17 + $0x58] sm:$0xf]
    %v2526 = vld [vmem:[%s17 + $0x5c] sm:$0xf]
    %v2527 = vld [vmem:[%s17 + $0x60] sm:$0xf]
    %v2528 = vld [vmem:[%s17 + $0x64] sm:$0xf]
    %v2529 = vld [vmem:[%s17 + $0x68] sm:$0xf]
    %v2530 = vld [vmem:[%s17 + $0x6c] sm:$0xf]
    %v2531 = vld [vmem:[%s17 + $0x70] sm:$0xf]
    %v2532 = vld [vmem:[%s17 + $0x74] sm:$0xf]
    %v2533 = vld [vmem:[%s17 + $0x78] sm:$0xf]
    %v2534 = vld [vmem:[%s17 + $0x7c] sm:$0xf]
    %v2535 = vld [vmem:[%s17 + $0x80] sm:$0xf]
    %v2536 = vld [vmem:[%s17 + $0x84] sm:$0xf]
    %v2537 = vld [vmem:[%s17 + $0x88] sm:$0xf]
    %v2538 = vld [vmem:[%s17 + $0x8c] sm:$0xf]
    %v2539 = vld [vmem:[%s19] sm:$0x1]
    %v2541 = vlaneseq
    %v2542 = vshrl.u32 %v2541, 7
    %v2543 = vsub.s32 0, %v2542
    %v2544 = vrot.slane %v2539, %v2543
    %v2582 = vunpack.c.l.b16 %v2503
    %v2583 = vunpack.c.l.b16 %v2504
    %v2584 = vunpack.c.l.b16 %v2505
    %v2585 = vunpack.c.l.b16 %v2506
    %v2586 = vunpack.c.l.b16 %v2507
    %v2587 = vunpack.c.l.b16 %v2508
    %v2588 = vunpack.c.l.b16 %v2509
    %v2589 = vunpack.c.l.b16 %v2510
    %v2590 = vunpack.c.l.b16 %v2511
    %v2591 = vunpack.c.l.b16 %v2512
    %v2592 = vunpack.c.l.b16 %v2513
    %v2593 = vunpack.c.l.b16 %v2514
    %v2594 = vunpack.c.l.b16 %v2515
    %v2595 = vunpack.c.l.b16 %v2516
    %v2596 = vunpack.c.l.b16 %v2517
    %v2597 = vunpack.c.l.b16 %v2518
    %v2598 = vunpack.c.l.b16 %v2519
    %v2599 = vunpack.c.l.b16 %v2520
    %v2600 = vunpack.c.l.b16 %v2521
    %v2601 = vunpack.c.l.b16 %v2522
    %v2602 = vunpack.c.l.b16 %v2523
    %v2603 = vunpack.c.l.b16 %v2524
    %v2604 = vunpack.c.l.b16 %v2525
    %v2605 = vunpack.c.l.b16 %v2526
    %v2606 = vunpack.c.l.b16 %v2527
    %v2607 = vunpack.c.l.b16 %v2528
    %v2608 = vunpack.c.l.b16 %v2529
    %v2609 = vunpack.c.l.b16 %v2530
    %v2610 = vunpack.c.l.b16 %v2531
    %v2611 = vunpack.c.l.b16 %v2532
    %v2612 = vunpack.c.l.b16 %v2533
    %v2613 = vunpack.c.l.b16 %v2534
    %v2614 = vunpack.c.l.b16 %v2535
    %v2615 = vunpack.c.l.b16 %v2536
    %v2616 = vunpack.c.l.b16 %v2537
    %v2617 = vunpack.c.l.b16 %v2538
    %v2618 = vpack.c.b16 %v2583, %v2582
    %v2619 = vpack.c.b16 %v2585, %v2584
    %v2620 = vpack.c.b16 %v2587, %v2586
    %v2621 = vpack.c.b16 %v2589, %v2588
    %v2622 = vpack.c.b16 %v2591, %v2590
    %v2623 = vpack.c.b16 %v2593, %v2592
    %v2624 = vpack.c.b16 %v2595, %v2594
    %v2625 = vpack.c.b16 %v2597, %v2596
    %v2626 = vpack.c.b16 %v2599, %v2598
    %v2627 = vpack.c.b16 %v2601, %v2600
    %v2628 = vpack.c.b16 %v2603, %v2602
    %v2629 = vpack.c.b16 %v2605, %v2604
    %v2630 = vpack.c.b16 %v2607, %v2606
    %v2631 = vpack.c.b16 %v2609, %v2608
    %v2632 = vpack.c.b16 %v2611, %v2610
    %v2633 = vpack.c.b16 %v2613, %v2612
    %v2634 = vpack.c.b16 %v2615, %v2614
    %v2635 = vpack.c.b16 %v2617, %v2616
    %v2655 = vsel %vm1384, %v2468, 0
    %v2658 = vsel %vm1384, %v2470, 0
    %2660 = vmatprep.subr.bf16.mxu0 0
    %2661 = vmatpush1.bf16.msra.mxu0 %v2618
    %2662 = vmatprep.subr.bf16.mxu0 0
    %2663 = vmatpush1.bf16.msra.mxu0 %v2619
    %2664 = vmatprep.subr.bf16.mxu0 0
    %2665 = vmatpush1.bf16.msra.mxu0 %v2620
    %2666 = vmatprep.subr.bf16.mxu0 0
    %2667 = vmatpush1.bf16.msra.mxu0 %v2621
    %2668 = vmatprep.subr.bf16.mxu0 0
    %2669 = vmatpush1.bf16.msra.mxu0 %v2622
    %2670 = vmatprep.subr.bf16.mxu0 0
    %2671 = vmatpush1.bf16.msra.mxu0 %v2623
    %2672 = vmatprep.subr.bf16.mxu0 0
    %2673 = vmatpush1.bf16.msra.mxu0 %v2624
    %2674 = vmatprep.subr.bf16.mxu0 0
    %2675 = vmatpush1.bf16.msra.mxu0 %v2625
    %2676 = vmatprep.subr.bf16.mxu0 0
    %2677 = vmatpush1.bf16.msra.mxu0 %v2626
    %2678 = vmatprep.subr.bf16.mxu0 0
    %2679 = vmatpush1.bf16.msra.mxu0 %v2627
    %2680 = vmatprep.subr.bf16.mxu0 0
    %2681 = vmatpush1.bf16.msra.mxu0 %v2628
    %2682 = vmatprep.subr.bf16.mxu0 0
    %2683 = vmatpush1.bf16.msra.mxu0 %v2629
    %2684 = vmatprep.subr.bf16.mxu0 0
    %2685 = vmatpush1.bf16.msra.mxu0 %v2630
    %2686 = vmatprep.subr.bf16.mxu0 0
    %2687 = vmatpush1.bf16.msra.mxu0 %v2631
    %2688 = vmatprep.subr.bf16.mxu0 0
    %2689 = vmatpush1.bf16.msra.mxu0 %v2632
    %2690 = vmatprep.subr.bf16.mxu0 0
    %2691 = vmatpush1.bf16.msra.mxu0 %v2633
    %2692 = vmatprep.mubr.bf16.mxu0 %v2498
    %2693 = vmatmul.mubr.bf16.gmra.mrb[0].mxu0 %v2482
    %v2694 = vpop.f32.mrb[0].mxu0
    %v2695 = vadd.f32 %v2544, %v2694
    %v2696 = vpop.f32.mrb[0].mxu0
    %v2697 = vpop.f32.mrb[0].mxu0
    %v2698 = vadd.f32 %v2544, %v2697
    %v2699 = vpop.f32.mrb[0].mxu0
    %2700 = vmatprep.mubr.bf16.mxu0 %v2501
    %2701 = vmatmul.mubr.bf16.gmra.mrb[0].mxu0 %v2485
    %v2702 = vpop.f32.mrb[0].mxu0
    %v2703 = vadd.f32 %v2544, %v2702
    %v2704 = vpop.f32.mrb[0].mxu0
    %v2705 = vpop.f32.mrb[0].mxu0
    %v2706 = vadd.f32 %v2544, %v2705
    %v2707 = vpop.f32.mrb[0].mxu0
    %2708 = vdwg.mxu0
    %2709 = vmatprep.subr.bf16.mxu0 0
    %2710 = vmatpush1.bf16.msra.mxu0 %v2634
    %2711 = vmatprep.subr.bf16.mxu0 0
    %2712 = vmatpush1.bf16.msra.mxu0 %v2635
    %2713 = vmatprep.subr.bf16.mxu0 0
    %2714 = vmatpush1.bf16.msra.mxu0 0
    %2715 = vmatprep.subr.bf16.mxu0 0
    %2716 = vmatpush1.bf16.msra.mxu0 0
    %2717 = vmatprep.subr.bf16.mxu0 0
    %2718 = vmatpush1.bf16.msra.mxu0 0
    %2719 = vmatprep.subr.bf16.mxu0 0
    %2720 = vmatpush1.bf16.msra.mxu0 0
    %2721 = vmatprep.subr.bf16.mxu0 0
    %2722 = vmatpush1.bf16.msra.mxu0 0
    %2723 = vmatprep.subr.bf16.mxu0 0
    %2724 = vmatpush1.bf16.msra.mxu0 0
    %2725 = vmatprep.subr.bf16.mxu0 0
    %2726 = vmatpush1.bf16.msra.mxu0 0
    %2727 = vmatprep.subr.bf16.mxu0 0
    %2728 = vmatpush1.bf16.msra.mxu0 0
    %2729 = vmatprep.subr.bf16.mxu0 0
    %2730 = vmatpush1.bf16.msra.mxu0 0
    %2731 = vmatprep.subr.bf16.mxu0 0
    %2732 = vmatpush1.bf16.msra.mxu0 0
    %2733 = vmatprep.subr.bf16.mxu0 0
    %2734 = vmatpush1.bf16.msra.mxu0 0
    %2735 = vmatprep.subr.bf16.mxu0 0
    %2736 = vmatpush1.bf16.msra.mxu0 0
    %2737 = vmatprep.subr.bf16.mxu0 0
    %2738 = vmatpush1.bf16.msra.mxu0 0
    %2739 = vmatprep.subr.bf16.mxu0 0
    %2740 = vmatpush1.bf16.msra.mxu0 0
    %2741 = vmatprep.mubr.bf16.mxu0 0
    %2742 = vmatmul.mubr.bf16.gmra.mrb[0].mxu0 %v2655
    %v2743 = vpop.f32.mrb[0].mxu0
    %v2744 = vadd.f32 %v2695, %v2743
    %v2745 = vpop.f32.mrb[0].mxu0
    %v2746 = vpop.f32.mrb[0].mxu0
    %v2747 = vadd.f32 %v2698, %v2746
    %v2748 = vpop.f32.mrb[0].mxu0
    %2749 = vmatprep.mubr.bf16.mxu0 0
    %2750 = vmatmul.mubr.bf16.gmra.mrb[0].mxu0 %v2658
    %v2751 = vpop.f32.mrb[0].mxu0
    %v2752 = vadd.f32 %v2703, %v2751
    %v2753 = vpop.f32.mrb[0].mxu0
    %v2754 = vpop.f32.mrb[0].mxu0
    %v2755 = vadd.f32 %v2706, %v2754
    %v2756 = vpop.f32.mrb[0].mxu0
    %2757 = vdwg.mxu0
    %v2758 = vmax.f32 %v2744, 0.0
    %v2759 = vmax.f32 %v2747, 0.0
    %v2760 = vmax.f32 %v2752, 0.0
    %v2761 = vmax.f32 %v2755, 0.0
    %v2762 = vpack.c.bf16 %v2759, %v2758
    %v2763 = vpack.c.bf16 %v2761, %v2760
    %v2764 = vld [vmem:[%s21] sm:$0xf]
    %v2765 = vld [vmem:[%s21 + $0x4] sm:$0xf]
    %v2766 = vld [vmem:[%s21 + $0x8] sm:$0xf]
    %v2767 = vld [vmem:[%s21 + $0xc] sm:$0xf]
    %v2768 = vld [vmem:[%s23] sm:$0x1]
    %v2770 = vlaneseq
    %v2771 = vshrl.u32 %v2770, 7
    %v2772 = vsub.s32 0, %v2771
    %v2773 = vrot.slane %v2768, %v2772
    %v2779 = vunpack.c.l.b16 %v2764
    %v2780 = vunpack.c.l.b16 %v2765
    %v2781 = vunpack.c.l.b16 %v2766
    %v2782 = vunpack.c.l.b16 %v2767
    %v2783 = vpack.c.b16 %v2780, %v2779
    %v2784 = vpack.c.b16 %v2782, %v2781
    %v2788 = vsel %vm1384, %v2762, 0
    %v2791 = vsel %vm1384, %v2763, 0
    %2793 = vmatprep.subr.bf16.mxu0 0
    %2794 = vmatpush1.bf16.msra.mxu0 %v2783
    %2795 = vmatprep.subr.bf16.mxu0 0
    %2796 = vmatpush1.bf16.msra.mxu0 %v2784
    %2797 = vmatprep.subr.bf16.mxu0 0
    %2798 = vmatpush1.bf16.msra.mxu0 0
    %2799 = vmatprep.subr.bf16.mxu0 0
    %2800 = vmatpush1.bf16.msra.mxu0 0
    %2801 = vmatprep.subr.bf16.mxu0 0
    %2802 = vmatpush1.bf16.msra.mxu0 0
    %2803 = vmatprep.subr.bf16.mxu0 0
    %2804 = vmatpush1.bf16.msra.mxu0 0
    %2805 = vmatprep.subr.bf16.mxu0 0
    %2806 = vmatpush1.bf16.msra.mxu0 0
    %2807 = vmatprep.subr.bf16.mxu0 0
    %2808 = vmatpush1.bf16.msra.mxu0 0
    %2809 = vmatprep.subr.bf16.mxu0 0
    %2810 = vmatpush1.bf16.msra.mxu0 0
    %2811 = vmatprep.subr.bf16.mxu0 0
    %2812 = vmatpush1.bf16.msra.mxu0 0
    %2813 = vmatprep.subr.bf16.mxu0 0
    %2814 = vmatpush1.bf16.msra.mxu0 0
    %2815 = vmatprep.subr.bf16.mxu0 0
    %2816 = vmatpush1.bf16.msra.mxu0 0
    %2817 = vmatprep.subr.bf16.mxu0 0
    %2818 = vmatpush1.bf16.msra.mxu0 0
    %2819 = vmatprep.subr.bf16.mxu0 0
    %2820 = vmatpush1.bf16.msra.mxu0 0
    %2821 = vmatprep.subr.bf16.mxu0 0
    %2822 = vmatpush1.bf16.msra.mxu0 0
    %2823 = vmatprep.subr.bf16.mxu0 0
    %2824 = vmatpush1.bf16.msra.mxu0 0
    %2825 = vmatprep.mubr.bf16.mxu0 0
    %2826 = vmatmul.mubr.bf16.gmra.mrb[0].mxu0 %v2788
    %v2827 = vpop.f32.mrb[0].mxu0
    %v2828 = vadd.f32 %v2773, %v2827
    %v2829 = vpop.f32.mrb[0].mxu0
    %v2830 = vpop.f32.mrb[0].mxu0
    %v2831 = vadd.f32 %v2773, %v2830
    %v2832 = vpop.f32.mrb[0].mxu0
    %2833 = vmatprep.mubr.bf16.mxu0 0
    %2834 = vmatmul.mubr.bf16.gmra.mrb[0].mxu0 %v2791
    %v2835 = vpop.f32.mrb[0].mxu0
    %v2836 = vadd.f32 %v2773, %v2835
    %v2837 = vpop.f32.mrb[0].mxu0
    %v2838 = vpop.f32.mrb[0].mxu0
    %v2839 = vadd.f32 %v2773, %v2838
    %v2840 = vpop.f32.mrb[0].mxu0
    %2841 = vdwg.mxu0
    %v2842 = vadd.f32 %v2272, %v2828
    %v2843 = vadd.f32 %v2275, %v2831
    %v2844 = vadd.f32 %v2280, %v2836
    %v2845 = vadd.f32 %v2283, %v2839
    %v2846 = vpack.c.bf16 %v2843, %v2842
    %v2847 = vpack.c.bf16 %v2845, %v2844
    %v2848 = vmax.bf16 %v2846, 0
    %v2849 = vmax.bf16 %v2847, 0
    %v2851 = vshrl.u32 %v2848, 16
    %v2853 = vrot.slane %v2851, 5
    %v2854 = vshll.u32 %v2848, 16
    %v2856 = vrot.slane %v2854, 6
    %v2857 = vor.u32 %v2853, %v2856
    %v2859 = vshrl.u32 %v2849, 16
    %v2861 = vrot.slane %v2859, 5
    %v2862 = vshll.u32 %v2849, 16
    %v2864 = vrot.slane %v2862, 6
    %v2865 = vor.u32 %v2861, %v2864
    %v2866 = vsel %vm431, %v2857, %v2865
    %v2870 = vsel %vm453, 0, %v2857
    %v2871 = vsel %vm453, %v2865, 0
    %v2872 = vmul.bf16 %v2870, %v578
    %v2873 = vmul.bf16 %v2866, %v579
    %v2874 = vmul.bf16 %v2870, %v649
    %v2875 = vmul.bf16 %v2866, %v657
    %v2876 = vmul.bf16 %v2871, %v653
    %v2877 = vmul.bf16 %v2870, %v726
    %v2878 = vmul.bf16 %v2866, %v728
    %v2879 = vmul.bf16 %v2871, %v727
    %v2880 = vmul.bf16 %v2870, %v790
    %v2881 = vmul.bf16 %v2866, %v792
    %v2882 = vmul.bf16 %v2871, %v791
    %v2883 = vmul.bf16 %v2870, %v853
    %v2884 = vmul.bf16 %v2866, %v855
    %v2885 = vmul.bf16 %v2871, %v854
    %v2886 = vmul.bf16 %v2870, %v924
    %v2887 = vmul.bf16 %v2866, %v925
    %v2888 = vmul.bf16 %v2871, %v926
    %v2889 = vmul.bf16 %v2870, %v995
    %v2890 = vmul.bf16 %v2866, %v1004
    %v2891 = vmul.bf16 %v2871, %v1003
    %v2892 = vmul.bf16 %v2870, %v1069
    %v2893 = vmul.bf16 %v2866, %v1071
    %v2894 = vmul.bf16 %v2871, %v1070
    %v2896 = vshrl.u32 %v2874, 16
    %v2898 = vshll.u32 %v2874, 16
    %v2900 = vrot.slane %v2898, 1
    %v2901 = vor.u32 %v2896, %v2900
    %v2903 = vshll.u32 %v2875, 16
    %v2905 = vrot.slane %v2903, 1
    %v2906 = vsel %vm1078, %v2901, %v2905
    %v2907 = vshrl.u32 %v2875, 16
    %v2909 = vor.u32 %v2907, %v2905
    %v2911 = vshll.u32 %v2876, 16
    %v2913 = vrot.slane %v2911, 1
    %v2914 = vsel %vm1078, %v2909, %v2913
    %2915 = vrot.lane.b32.xlu0 %v2906, 32
    %v2916 = vpop.permute.xlu0 %2915
    %2917 = vrot.lane.b32.xlu0 %v2914, 32
    %v2918 = vpop.permute.xlu0 %2917
    %v2922 = vrot.slane %v2877, 1
    %v2923 = vrot.slane %v2878, 1
    %v2924 = vsel %vm1130, %v2922, %v2923
    %v2925 = vrot.slane %v2879, 1
    %v2926 = vsel %vm1130, %v2923, %v2925
    %2927 = vrot.lane.b32.xlu0 %v2924, 64
    %v2928 = vpop.permute.xlu0 %2927
    %2929 = vrot.lane.b32.xlu0 %v2926, 64
    %v2930 = vpop.permute.xlu0 %2929
    %v2934 = vrot.slane %v2880, 2
    %v2935 = vrot.slane %v2881, 2
    %v2936 = vsel %vm1143, %v2934, %v2935
    %v2937 = vrot.slane %v2882, 2
    %v2938 = vsel %vm1143, %v2935, %v2937
    %2939 = vrot.lane.b32.xlu0 %v2936, 96
    %v2940 = vpop.permute.xlu0 %2939
    %2941 = vrot.lane.b32.xlu0 %v2938, 96
    %v2942 = vpop.permute.xlu0 %2941
    %v2944 = vshrl.u32 %v2870, 16
    %v2946 = vrot.slane %v2944, 2
    %v2947 = vshll.u32 %v2870, 16
    %v2949 = vrot.slane %v2947, 3
    %v2950 = vor.u32 %v2946, %v2949
    %v2952 = vshrl.u32 %v2866, 16
    %v2954 = vrot.slane %v2952, 2
    %v2955 = vshll.u32 %v2866, 16
    %v2957 = vrot.slane %v2955, 3
    %v2958 = vor.u32 %v2954, %v2957
    %v2959 = vsel %vm1149, %v2950, %v2958
    %v2961 = vshrl.u32 %v2871, 16
    %v2963 = vrot.slane %v2961, 2
    %v2964 = vshll.u32 %v2871, 16
    %v2966 = vrot.slane %v2964, 3
    %v2967 = vor.u32 %v2963, %v2966
    %v2968 = vsel %vm1149, %v2958, %v2967
    %v2972 = vrot.slane %v2883, 3
    %v2973 = vrot.slane %v2884, 3
    %v2974 = vsel %vm1068, %v2972, %v2973
    %v2975 = vrot.slane %v2885, 3
    %v2976 = vsel %vm1068, %v2973, %v2975
    %2977 = vrot.lane.b32.xlu0 %v2974, 32
    %v2978 = vpop.permute.xlu0 %2977
    %2979 = vrot.lane.b32.xlu0 %v2976, 32
    %v2980 = vpop.permute.xlu0 %2979
    %v2984 = vrot.slane %v2886, 4
    %v2985 = vrot.slane %v2887, 4
    %v2986 = vsel %vm1305, %v2984, %v2985
    %v2987 = vrot.slane %v2888, 4
    %v2988 = vsel %vm1305, %v2985, %v2987
    %2989 = vrot.lane.b32.xlu0 %v2986, 64
    %v2990 = vpop.permute.xlu0 %2989
    %2991 = vrot.lane.b32.xlu0 %v2988, 64
    %v2992 = vpop.permute.xlu0 %2991
    %v2994 = vshrl.u32 %v2889, 16
    %v2996 = vrot.slane %v2994, 4
    %v2997 = vshll.u32 %v2889, 16
    %v2999 = vrot.slane %v2997, 5
    %v3000 = vor.u32 %v2996, %v2999
    %v3002 = vshrl.u32 %v2890, 16
    %v3004 = vrot.slane %v3002, 4
    %v3005 = vshll.u32 %v2890, 16
    %v3007 = vrot.slane %v3005, 5
    %v3008 = vor.u32 %v3004, %v3007
    %v3009 = vsel %vm1311, %v3000, %v3008
    %v3011 = vshrl.u32 %v2891, 16
    %v3013 = vrot.slane %v3011, 4
    %v3014 = vshll.u32 %v2891, 16
    %v3016 = vrot.slane %v3014, 5
    %v3017 = vor.u32 %v3013, %v3016
    %v3018 = vsel %vm1311, %v3008, %v3017
    %3019 = vrot.lane.b32.xlu0 %v3009, 96
    %v3020 = vpop.permute.xlu0 %3019
    %3021 = vrot.lane.b32.xlu0 %v3018, 96
    %v3022 = vpop.permute.xlu0 %3021
    %v3026 = vrot.slane %v2892, 5
    %v3027 = vrot.slane %v2893, 5
    %v3028 = vsel %vm452, %v3026, %v3027
    %v3029 = vrot.slane %v2894, 5
    %v3030 = vsel %vm452, %v3027, %v3029
    %v3033 = vsel %vm1384, %v2872, %v2916
    %v3036 = vsel %vm1384, %v2873, %v2918
    %v3038 = vsel %vm1391, %v3033, %v2928
    %v3040 = vsel %vm1391, %v3036, %v2930
    %v3042 = vsel %vm1396, %v3038, %v2940
    %v3045 = vsel %vm1396, %v3040, %v2942
    %v3049 = vsel %vm1384, %v2959, %v2978
    %v3052 = vsel %vm1384, %v2968, %v2980
    %v3054 = vsel %vm1391, %v3049, %v2990
    %v3056 = vsel %vm1391, %v3052, %v2992
    %v3058 = vsel %vm1396, %v3054, %v3020
    %v3061 = vsel %vm1396, %v3056, %v3022
    %v3063 = vld [vmem:[%s25] sm:$0xf]
    %v3064 = vld [vmem:[%s25 + $0x4] sm:$0xf]
    %v3065 = vld [vmem:[%s25 + $0x8] sm:$0xf]
    %v3066 = vld [vmem:[%s25 + $0xc] sm:$0xf]
    %v3067 = vld [vmem:[%s25 + $0x10] sm:$0xf]
    %v3068 = vld [vmem:[%s25 + $0x14] sm:$0xf]
    %v3069 = vld [vmem:[%s25 + $0x18] sm:$0xf]
    %v3070 = vld [vmem:[%s25 + $0x1c] sm:$0xf]
    %v3071 = vld [vmem:[%s25 + $0x20] sm:$0xf]
    %v3072 = vld [vmem:[%s25 + $0x24] sm:$0xf]
    %v3073 = vld [vmem:[%s25 + $0x28] sm:$0xf]
    %v3074 = vld [vmem:[%s25 + $0x2c] sm:$0xf]
    %v3075 = vld [vmem:[%s25 + $0x30] sm:$0xf]
    %v3076 = vld [vmem:[%s25 + $0x34] sm:$0xf]
    %v3077 = vld [vmem:[%s25 + $0x38] sm:$0xf]
    %v3078 = vld [vmem:[%s25 + $0x3c] sm:$0xf]
    %v3079 = vld [vmem:[%s25 + $0x40] sm:$0xf]
    %v3080 = vld [vmem:[%s25 + $0x44] sm:$0xf]
    %v3081 = vld [vmem:[%s25 + $0x48] sm:$0xf]
    %v3082 = vld [vmem:[%s25 + $0x4c] sm:$0xf]
    %v3083 = vld [vmem:[%s25 + $0x50] sm:$0xf]
    %v3084 = vld [vmem:[%s25 + $0x54] sm:$0xf]
    %v3085 = vld [vmem:[%s25 + $0x58] sm:$0xf]
    %v3086 = vld [vmem:[%s25 + $0x5c] sm:$0xf]
    %v3087 = vld [vmem:[%s25 + $0x60] sm:$0xf]
    %v3088 = vld [vmem:[%s25 + $0x64] sm:$0xf]
    %v3089 = vld [vmem:[%s25 + $0x68] sm:$0xf]
    %v3090 = vld [vmem:[%s25 + $0x6c] sm:$0xf]
    %v3091 = vld [vmem:[%s25 + $0x70] sm:$0xf]
    %v3092 = vld [vmem:[%s25 + $0x74] sm:$0xf]
    %v3093 = vld [vmem:[%s25 + $0x78] sm:$0xf]
    %v3094 = vld [vmem:[%s25 + $0x7c] sm:$0xf]
    %v3095 = vld [vmem:[%s25 + $0x80] sm:$0xf]
    %v3096 = vld [vmem:[%s25 + $0x84] sm:$0xf]
    %v3097 = vld [vmem:[%s25 + $0x88] sm:$0xf]
    %v3098 = vld [vmem:[%s25 + $0x8c] sm:$0xf]
    %v3099 = vld [vmem:[%s27] sm:$0x1]
    %v3101 = vlaneseq
    %v3102 = vshrl.u32 %v3101, 7
    %v3103 = vsub.s32 0, %v3102
    %v3104 = vrot.slane %v3099, %v3103
    %v3142 = vunpack.c.l.b16 %v3063
    %v3143 = vunpack.c.l.b16 %v3064
    %v3144 = vunpack.c.l.b16 %v3065
    %v3145 = vunpack.c.l.b16 %v3066
    %v3146 = vunpack.c.l.b16 %v3067
    %v3147 = vunpack.c.l.b16 %v3068
    %v3148 = vunpack.c.l.b16 %v3069
    %v3149 = vunpack.c.l.b16 %v3070
    %v3150 = vunpack.c.l.b16 %v3071
    %v3151 = vunpack.c.l.b16 %v3072
    %v3152 = vunpack.c.l.b16 %v3073
    %v3153 = vunpack.c.l.b16 %v3074
    %v3154 = vunpack.c.l.b16 %v3075
    %v3155 = vunpack.c.l.b16 %v3076
    %v3156 = vunpack.c.l.b16 %v3077
    %v3157 = vunpack.c.l.b16 %v3078
    %v3158 = vunpack.c.l.b16 %v3079
    %v3159 = vunpack.c.l.b16 %v3080
    %v3160 = vunpack.c.l.b16 %v3081
    %v3161 = vunpack.c.l.b16 %v3082
    %v3162 = vunpack.c.l.b16 %v3083
    %v3163 = vunpack.c.l.b16 %v3084
    %v3164 = vunpack.c.l.b16 %v3085
    %v3165 = vunpack.c.l.b16 %v3086
    %v3166 = vunpack.c.l.b16 %v3087
    %v3167 = vunpack.c.l.b16 %v3088
    %v3168 = vunpack.c.l.b16 %v3089
    %v3169 = vunpack.c.l.b16 %v3090
    %v3170 = vunpack.c.l.b16 %v3091
    %v3171 = vunpack.c.l.b16 %v3092
    %v3172 = vunpack.c.l.b16 %v3093
    %v3173 = vunpack.c.l.b16 %v3094
    %v3174 = vunpack.c.l.b16 %v3095
    %v3175 = vunpack.c.l.b16 %v3096
    %v3176 = vunpack.c.l.b16 %v3097
    %v3177 = vunpack.c.l.b16 %v3098
    %v3178 = vpack.c.b16 %v3143, %v3142
    %v3179 = vpack.c.b16 %v3145, %v3144
    %v3180 = vpack.c.b16 %v3147, %v3146
    %v3181 = vpack.c.b16 %v3149, %v3148
    %v3182 = vpack.c.b16 %v3151, %v3150
    %v3183 = vpack.c.b16 %v3153, %v3152
    %v3184 = vpack.c.b16 %v3155, %v3154
    %v3185 = vpack.c.b16 %v3157, %v3156
    %v3186 = vpack.c.b16 %v3159, %v3158
    %v3187 = vpack.c.b16 %v3161, %v3160
    %v3188 = vpack.c.b16 %v3163, %v3162
    %v3189 = vpack.c.b16 %v3165, %v3164
    %v3190 = vpack.c.b16 %v3167, %v3166
    %v3191 = vpack.c.b16 %v3169, %v3168
    %v3192 = vpack.c.b16 %v3171, %v3170
    %v3193 = vpack.c.b16 %v3173, %v3172
    %v3194 = vpack.c.b16 %v3175, %v3174
    %v3195 = vpack.c.b16 %v3177, %v3176
    %v3215 = vsel %vm1384, %v3028, 0
    %v3218 = vsel %vm1384, %v3030, 0
    %3220 = vmatprep.subr.bf16.mxu0 0
    %3221 = vmatpush1.bf16.msra.mxu0 %v3178
    %3222 = vmatprep.subr.bf16.mxu0 0
    %3223 = vmatpush1.bf16.msra.mxu0 %v3179
    %3224 = vmatprep.subr.bf16.mxu0 0
    %3225 = vmatpush1.bf16.msra.mxu0 %v3180
    %3226 = vmatprep.subr.bf16.mxu0 0
    %3227 = vmatpush1.bf16.msra.mxu0 %v3181
    %3228 = vmatprep.subr.bf16.mxu0 0
    %3229 = vmatpush1.bf16.msra.mxu0 %v3182
    %3230 = vmatprep.subr.bf16.mxu0 0
    %3231 = vmatpush1.bf16.msra.mxu0 %v3183
    %3232 = vmatprep.subr.bf16.mxu0 0
    %3233 = vmatpush1.bf16.msra.mxu0 %v3184
    %3234 = vmatprep.subr.bf16.mxu0 0
    %3235 = vmatpush1.bf16.msra.mxu0 %v3185
    %3236 = vmatprep.subr.bf16.mxu0 0
    %3237 = vmatpush1.bf16.msra.mxu0 %v3186
    %3238 = vmatprep.subr.bf16.mxu0 0
    %3239 = vmatpush1.bf16.msra.mxu0 %v3187
    %3240 = vmatprep.subr.bf16.mxu0 0
    %3241 = vmatpush1.bf16.msra.mxu0 %v3188
    %3242 = vmatprep.subr.bf16.mxu0 0
    %3243 = vmatpush1.bf16.msra.mxu0 %v3189
    %3244 = vmatprep.subr.bf16.mxu0 0
    %3245 = vmatpush1.bf16.msra.mxu0 %v3190
    %3246 = vmatprep.subr.bf16.mxu0 0
    %3247 = vmatpush1.bf16.msra.mxu0 %v3191
    %3248 = vmatprep.subr.bf16.mxu0 0
    %3249 = vmatpush1.bf16.msra.mxu0 %v3192
    %3250 = vmatprep.subr.bf16.mxu0 0
    %3251 = vmatpush1.bf16.msra.mxu0 %v3193
    %3252 = vmatprep.mubr.bf16.mxu0 %v3058
    %3253 = vmatmul.mubr.bf16.gmra.mrb[0].mxu0 %v3042
    %v3254 = vpop.f32.mrb[0].mxu0
    %v3255 = vadd.f32 %v3104, %v3254
    %v3256 = vpop.f32.mrb[0].mxu0
    %v3257 = vpop.f32.mrb[0].mxu0
    %v3258 = vadd.f32 %v3104, %v3257
    %v3259 = vpop.f32.mrb[0].mxu0
    %3260 = vmatprep.mubr.bf16.mxu0 %v3061
    %3261 = vmatmul.mubr.bf16.gmra.mrb[0].mxu0 %v3045
    %v3262 = vpop.f32.mrb[0].mxu0
    %v3263 = vadd.f32 %v3104, %v3262
    %v3264 = vpop.f32.mrb[0].mxu0
    %v3265 = vpop.f32.mrb[0].mxu0
    %v3266 = vadd.f32 %v3104, %v3265
    %v3267 = vpop.f32.mrb[0].mxu0
    %3268 = vdwg.mxu0
    %3269 = vmatprep.subr.bf16.mxu0 0
    %3270 = vmatpush1.bf16.msra.mxu0 %v3194
    %3271 = vmatprep.subr.bf16.mxu0 0
    %3272 = vmatpush1.bf16.msra.mxu0 %v3195
    %3273 = vmatprep.subr.bf16.mxu0 0
    %3274 = vmatpush1.bf16.msra.mxu0 0
    %3275 = vmatprep.subr.bf16.mxu0 0
    %3276 = vmatpush1.bf16.msra.mxu0 0
    %3277 = vmatprep.subr.bf16.mxu0 0
    %3278 = vmatpush1.bf16.msra.mxu0 0
    %3279 = vmatprep.subr.bf16.mxu0 0
    %3280 = vmatpush1.bf16.msra.mxu0 0
    %3281 = vmatprep.subr.bf16.mxu0 0
    %3282 = vmatpush1.bf16.msra.mxu0 0
    %3283 = vmatprep.subr.bf16.mxu0 0
    %3284 = vmatpush1.bf16.msra.mxu0 0
    %3285 = vmatprep.subr.bf16.mxu0 0
    %3286 = vmatpush1.bf16.msra.mxu0 0
    %3287 = vmatprep.subr.bf16.mxu0 0
    %3288 = vmatpush1.bf16.msra.mxu0 0
    %3289 = vmatprep.subr.bf16.mxu0 0
    %3290 = vmatpush1.bf16.msra.mxu0 0
    %3291 = vmatprep.subr.bf16.mxu0 0
    %3292 = vmatpush1.bf16.msra.mxu0 0
    %3293 = vmatprep.subr.bf16.mxu0 0
    %3294 = vmatpush1.bf16.msra.mxu0 0
    %3295 = vmatprep.subr.bf16.mxu0 0
    %3296 = vmatpush1.bf16.msra.mxu0 0
    %3297 = vmatprep.subr.bf16.mxu0 0
    %3298 = vmatpush1.bf16.msra.mxu0 0
    %3299 = vmatprep.subr.bf16.mxu0 0
    %3300 = vmatpush1.bf16.msra.mxu0 0
    %3301 = vmatprep.mubr.bf16.mxu0 0
    %3302 = vmatmul.mubr.bf16.gmra.mrb[0].mxu0 %v3215
    %v3303 = vpop.f32.mrb[0].mxu0
    %v3304 = vadd.f32 %v3255, %v3303
    %v3305 = vpop.f32.mrb[0].mxu0
    %v3306 = vpop.f32.mrb[0].mxu0
    %v3307 = vadd.f32 %v3258, %v3306
    %v3308 = vpop.f32.mrb[0].mxu0
    %3309 = vmatprep.mubr.bf16.mxu0 0
    %3310 = vmatmul.mubr.bf16.gmra.mrb[0].mxu0 %v3218
    %v3311 = vpop.f32.mrb[0].mxu0
    %v3312 = vadd.f32 %v3263, %v3311
    %v3313 = vpop.f32.mrb[0].mxu0
    %v3314 = vpop.f32.mrb[0].mxu0
    %v3315 = vadd.f32 %v3266, %v3314
    %v3316 = vpop.f32.mrb[0].mxu0
    %3317 = vdwg.mxu0
    %v3318 = vmax.f32 %v3304, 0.0
    %v3319 = vmax.f32 %v3307, 0.0
    %v3320 = vmax.f32 %v3312, 0.0
    %v3321 = vmax.f32 %v3315, 0.0
    %v3322 = vpack.c.bf16 %v3319, %v3318
    %v3323 = vpack.c.bf16 %v3321, %v3320
    %v3324 = vld [vmem:[%s29] sm:$0xf]
    %v3325 = vld [vmem:[%s29 + $0x4] sm:$0xf]
    %v3326 = vld [vmem:[%s29 + $0x8] sm:$0xf]
    %v3327 = vld [vmem:[%s29 + $0xc] sm:$0xf]
    %v3328 = vld [vmem:[%s31] sm:$0x1]
    %v3330 = vlaneseq
    %v3331 = vshrl.u32 %v3330, 7
    %v3332 = vsub.s32 0, %v3331
    %v3333 = vrot.slane %v3328, %v3332
    %v3339 = vunpack.c.l.b16 %v3324
    %v3340 = vunpack.c.l.b16 %v3325
    %v3341 = vunpack.c.l.b16 %v3326
    %v3342 = vunpack.c.l.b16 %v3327
    %v3343 = vpack.c.b16 %v3340, %v3339
    %v3344 = vpack.c.b16 %v3342, %v3341
    %v3348 = vsel %vm1384, %v3322, 0
    %v3351 = vsel %vm1384, %v3323, 0
    %3353 = vmatprep.subr.bf16.mxu0 0
    %3354 = vmatpush1.bf16.msra.mxu0 %v3343
    %3355 = vmatprep.subr.bf16.mxu0 0
    %3356 = vmatpush1.bf16.msra.mxu0 %v3344
    %3357 = vmatprep.subr.bf16.mxu0 0
    %3358 = vmatpush1.bf16.msra.mxu0 0
    %3359 = vmatprep.subr.bf16.mxu0 0
    %3360 = vmatpush1.bf16.msra.mxu0 0
    %3361 = vmatprep.subr.bf16.mxu0 0
    %3362 = vmatpush1.bf16.msra.mxu0 0
    %3363 = vmatprep.subr.bf16.mxu0 0
    %3364 = vmatpush1.bf16.msra.mxu0 0
    %3365 = vmatprep.subr.bf16.mxu0 0
    %3366 = vmatpush1.bf16.msra.mxu0 0
    %3367 = vmatprep.subr.bf16.mxu0 0
    %3368 = vmatpush1.bf16.msra.mxu0 0
    %3369 = vmatprep.subr.bf16.mxu0 0
    %3370 = vmatpush1.bf16.msra.mxu0 0
    %3371 = vmatprep.subr.bf16.mxu0 0
    %3372 = vmatpush1.bf16.msra.mxu0 0
    %3373 = vmatprep.subr.bf16.mxu0 0
    %3374 = vmatpush1.bf16.msra.mxu0 0
    %3375 = vmatprep.subr.bf16.mxu0 0
    %3376 = vmatpush1.bf16.msra.mxu0 0
    %3377 = vmatprep.subr.bf16.mxu0 0
    %3378 = vmatpush1.bf16.msra.mxu0 0
    %3379 = vmatprep.subr.bf16.mxu0 0
    %3380 = vmatpush1.bf16.msra.mxu0 0
    %3381 = vmatprep.subr.bf16.mxu0 0
    %3382 = vmatpush1.bf16.msra.mxu0 0
    %3383 = vmatprep.subr.bf16.mxu0 0
    %3384 = vmatpush1.bf16.msra.mxu0 0
    %3385 = vmatprep.mubr.bf16.mxu0 0
    %3386 = vmatmul.mubr.bf16.gmra.mrb[0].mxu0 %v3348
    %v3387 = vpop.f32.mrb[0].mxu0
    %v3388 = vadd.f32 %v3333, %v3387
    %v3389 = vpop.f32.mrb[0].mxu0
    %v3390 = vpop.f32.mrb[0].mxu0
    %v3391 = vadd.f32 %v3333, %v3390
    %v3392 = vpop.f32.mrb[0].mxu0
    %3393 = vmatprep.mubr.bf16.mxu0 0
    %3394 = vmatmul.mubr.bf16.gmra.mrb[0].mxu0 %v3351
    %v3395 = vpop.f32.mrb[0].mxu0
    %v3396 = vadd.f32 %v3333, %v3395
    %v3397 = vpop.f32.mrb[0].mxu0
    %v3398 = vpop.f32.mrb[0].mxu0
    %v3399 = vadd.f32 %v3333, %v3398
    %v3400 = vpop.f32.mrb[0].mxu0
    %3401 = vdwg.mxu0
    %v3402 = vadd.f32 %v2842, %v3388
    %v3403 = vadd.f32 %v2843, %v3391
    %v3404 = vadd.f32 %v2844, %v3396
    %v3405 = vadd.f32 %v2845, %v3399
    %v3406 = vld [vmem:[%s33] sm:$0xff]
    %v3407 = vld [vmem:[%s33 + $0x8] sm:$0xff]
    %v3408 = vld [vmem:[%s35] sm:$0x1]
    %v3409 = vpack.c.bf16 %v3403, %v3402
    %v3410 = vpack.c.bf16 %v3405, %v3404
    %v3411 = vpack.c.bf16 %v3407, %v3406
    %v3413 = vsel %vm1384, %v3409, 0
    %v3416 = vsel %vm1384, %v3410, 0
    %v3419 = vsel %vm1384, %v3411, 0
    %3421 = vmatprep.subr.bf16.mxu0 0
    %3422 = vmatpush1.bf16.xpose.msra.mxu0 %v3419
    %3423 = vmatprep.subr.bf16.mxu0 0
    %3424 = vmatpush1.bf16.xpose.msra.mxu0 0
    %3425 = vmatprep.subr.bf16.mxu0 0
    %3426 = vmatpush1.bf16.xpose.msra.mxu0 0
    %3427 = vmatprep.subr.bf16.mxu0 0
    %3428 = vmatpush1.bf16.xpose.msra.mxu0 0
    %3429 = vmatprep.subr.bf16.mxu0 0
    %3430 = vmatpush1.bf16.xpose.msra.mxu0 0
    %3431 = vmatprep.subr.bf16.mxu0 0
    %3432 = vmatpush1.bf16.xpose.msra.mxu0 0
    %3433 = vmatprep.subr.bf16.mxu0 0
    %3434 = vmatpush1.bf16.xpose.msra.mxu0 0
    %3435 = vmatprep.subr.bf16.mxu0 0
    %3436 = vmatpush1.bf16.xpose.msra.mxu0 0
    %3437 = vmatprep.subr.bf16.mxu0 0
    %3438 = vmatpush1.bf16.xpose.msra.mxu0 0
    %3439 = vmatprep.subr.bf16.mxu0 0
    %3440 = vmatpush1.bf16.xpose.msra.mxu0 0
    %3441 = vmatprep.subr.bf16.mxu0 0
    %3442 = vmatpush1.bf16.xpose.msra.mxu0 0
    %3443 = vmatprep.subr.bf16.mxu0 0
    %3444 = vmatpush1.bf16.xpose.msra.mxu0 0
    %3445 = vmatprep.subr.bf16.mxu0 0
    %3446 = vmatpush1.bf16.xpose.msra.mxu0 0
    %3447 = vmatprep.subr.bf16.mxu0 0
    %3448 = vmatpush1.bf16.xpose.msra.mxu0 0
    %3449 = vmatprep.subr.bf16.mxu0 0
    %3450 = vmatpush1.bf16.xpose.msra.mxu0 0
    %3451 = vmatprep.subr.bf16.mxu0 0
    %3452 = vmatpush1.bf16.xpose.msra.mxu0 0
    %3453 = vmatprep.mubr.bf16.mxu0 0
    %3454 = vmatmul.mubr.bf16.gmra.mrb[0].mxu0 %v3413
    %v3455 = vpop.f32.mrb[0].mxu0
    %v3456 = vadd.f32 0.0, %v3455
    %v3457 = vpop.f32.mrb[0].mxu0
    %v3458 = vpop.f32.mrb[0].mxu0
    %v3459 = vadd.f32 0.0, %v3458
    %v3460 = vpop.f32.mrb[0].mxu0
    %3461 = vmatprep.mubr.bf16.mxu0 0
    %3462 = vmatmul.mubr.bf16.gmra.mrb[0].mxu0 %v3416
    %v3463 = vpop.f32.mrb[0].mxu0
    %v3464 = vadd.f32 0.0, %v3463
    %v3465 = vpop.f32.mrb[0].mxu0
    %v3466 = vpop.f32.mrb[0].mxu0
    %v3467 = vadd.f32 0.0, %v3466
    %v3468 = vpop.f32.mrb[0].mxu0
    %3469 = vdwg.mxu0
    %v3470 = vmul.f32 %v3456, 2.0
    %v3471 = vmul.f32 %v3459, 2.0
    %v3472 = vmul.f32 %v3464, 2.0
    %v3473 = vmul.f32 %v3467, 2.0
    %v3475 = vlaneseq
    %v3476 = vshrl.u32 %v3475, 7
    %v3477 = vsub.s32 0, %v3476
    %v3478 = vrot.slane %v3408, %v3477
    %v3480 = vsub.f32 %v3478, %v3470
    %v3481 = vsub.f32 %v3478, %v3471
    %v3482 = vsub.f32 %v3478, %v3472
    %v3483 = vsub.f32 %v3478, %v3473
    %v3484 = vlaneseq
    %v3485 = vand.u32 %v3484, 127
    %vm3486 = vcmask 130048
    %v3487 = vsel %vm3486, %v3480, inf
    %3488 = vmin.xlane.f32.xlu0 %v3487
    %v3489 = vpop.xlane.xlu0 %3488
    %v3490 = vsel %vm3486, %v3481, inf
    %3491 = vmin.xlane.f32.xlu0 %v3490
    %v3492 = vpop.xlane.xlu0 %3491
    %v3493 = vsel %vm3486, %v3482, inf
    %3494 = vmin.xlane.f32.xlu0 %v3493
    %v3495 = vpop.xlane.xlu0 %3494
    %v3496 = vsel %vm3486, %v3483, inf
    %3497 = vmin.xlane.f32.xlu0 %v3496
    %v3498 = vpop.xlane.xlu0 %3497
    %vm3499 = vcmp.eq.f32.partialorder %v3480, %v3489
    %vm3500 = vcmp.eq.f32.partialorder %v3481, %v3492
    %vm3501 = vcmp.eq.f32.partialorder %v3482, %v3495
    %vm3502 = vcmp.eq.f32.partialorder %v3483, %v3498
    %v3503 = vsel %vm3499, %v3485, 16
    %v3504 = vsel %vm3500, %v3485, 16
    %v3505 = vsel %vm3501, %v3485, 16
    %v3506 = vsel %vm3502, %v3485, 16
    %v3507 = vsel %vm3486, %v3503, 2147483647
    %v3508 = vand.u32 %v3507, 65535
    %v3509 = vshra.s32 %v3507, 16
    %v3510 = vcvt.s32.f32 %v3508
    %v3511 = vcvt.s32.f32 %v3509
    %3512 = vmin.xlane.f32.xlu0 %v3511
    %v3513 = vpop.xlane.xlu0 %3512
    %vm3514 = vcmp.eq.f32.partialorder %v3511, %v3513
    %v3515 = vsel %vm3514, %v3510, inf
    %3516 = vmin.xlane.f32.xlu0 %v3515
    %v3517 = vpop.xlane.xlu0 %3516
    %v3518 = vcvt.f32.s32 %v3517
    %v3519 = vcvt.f32.s32 %v3513
    %v3520 = vshll.u32 %v3519, 16
    %v3521 = vadd.s32 %v3520, %v3518
    %v3522 = vsel %vm3486, %v3504, 2147483647
    %v3523 = vand.u32 %v3522, 65535
    %v3524 = vshra.s32 %v3522, 16
    %v3525 = vcvt.s32.f32 %v3523
    %v3526 = vcvt.s32.f32 %v3524
    %3527 = vmin.xlane.f32.xlu0 %v3526
    %v3528 = vpop.xlane.xlu0 %3527
    %vm3529 = vcmp.eq.f32.partialorder %v3526, %v3528
    %v3530 = vsel %vm3529, %v3525, inf
    %3531 = vmin.xlane.f32.xlu0 %v3530
    %v3532 = vpop.xlane.xlu0 %3531
    %v3533 = vcvt.f32.s32 %v3532
    %v3534 = vcvt.f32.s32 %v3528
    %v3535 = vshll.u32 %v3534, 16
    %v3536 = vadd.s32 %v3535, %v3533
    %v3537 = vsel %vm3486, %v3505, 2147483647
    %v3538 = vand.u32 %v3537, 65535
    %v3539 = vshra.s32 %v3537, 16
    %v3540 = vcvt.s32.f32 %v3538
    %v3541 = vcvt.s32.f32 %v3539
    %3542 = vmin.xlane.f32.xlu0 %v3541
    %v3543 = vpop.xlane.xlu0 %3542
    %vm3544 = vcmp.eq.f32.partialorder %v3541, %v3543
    %v3545 = vsel %vm3544, %v3540, inf
    %3546 = vmin.xlane.f32.xlu0 %v3545
    %v3547 = vpop.xlane.xlu0 %3546
    %v3548 = vcvt.f32.s32 %v3547
    %v3549 = vcvt.f32.s32 %v3543
    %v3550 = vshll.u32 %v3549, 16
    %v3551 = vadd.s32 %v3550, %v3548
    %v3552 = vsel %vm3486, %v3506, 2147483647
    %v3553 = vand.u32 %v3552, 65535
    %v3554 = vshra.s32 %v3552, 16
    %v3555 = vcvt.s32.f32 %v3553
    %v3556 = vcvt.s32.f32 %v3554
    %3557 = vmin.xlane.f32.xlu0 %v3556
    %v3558 = vpop.xlane.xlu0 %3557
    %vm3559 = vcmp.eq.f32.partialorder %v3556, %v3558
    %v3560 = vsel %vm3559, %v3555, inf
    %3561 = vmin.xlane.f32.xlu0 %v3560
    %v3562 = vpop.xlane.xlu0 %3561
    %v3563 = vcvt.f32.s32 %v3562
    %v3564 = vcvt.f32.s32 %v3558
    %v3565 = vshll.u32 %v3564, 16
    %v3566 = vadd.s32 %v3565, %v3563
    %vm3567 = vcmp.eq.s32.totalorder %v3485, %v3521
    %vm3568 = vcmp.eq.s32.totalorder %v3485, %v3536
    %vm3569 = vcmp.eq.s32.totalorder %v3485, %v3551
    %vm3570 = vcmp.eq.s32.totalorder %v3485, %v3566
    %v3571 = vsel %vm3567, 1, 0
    %v3572 = vsel %vm3568, 1, 0
    %v3573 = vsel %vm3569, 1, 0
    %v3574 = vsel %vm3570, 1, 0
    %v3575 = vcvt.s32.f32 %v3571
    %v3576 = vcvt.s32.f32 %v3572
    %v3577 = vcvt.s32.f32 %v3573
    %v3578 = vcvt.s32.f32 %v3574
    %v3580 = vsel %vm3486, %v3575, 0
    %v3583 = vsel %vm3486, %v3576, 0
    %v3586 = vsel %vm3486, %v3577, 0
    %v3589 = vsel %vm3486, %v3578, 0
    %3591 = vmatprep.subr.mxu0 0.0
    %3592 = vmatpush1.msra.mxu0 %v3406
    %3593 = vmatprep.subr.mxu0 0.0
    %3594 = vmatpush1.msra.mxu0 %v3407
    %3595 = vmatprep.subr.mxu0 0.0
    %3596 = vmatpush1.msra.mxu0 0.0
    %3597 = vmatprep.subr.mxu0 0.0
    %3598 = vmatpush1.msra.mxu0 0.0
    %3599 = vmatprep.subr.mxu0 0.0
    %3600 = vmatpush1.msra.mxu0 0.0
    %3601 = vmatprep.subr.mxu0 0.0
    %3602 = vmatpush1.msra.mxu0 0.0
    %3603 = vmatprep.subr.mxu0 0.0
    %3604 = vmatpush1.msra.mxu0 0.0
    %3605 = vmatprep.subr.mxu0 0.0
    %3606 = vmatpush1.msra.mxu0 0.0
    %3607 = vmatprep.subr.mxu0 0.0
    %3608 = vmatpush1.msra.mxu0 0.0
    %3609 = vmatprep.subr.mxu0 0.0
    %3610 = vmatpush1.msra.mxu0 0.0
    %3611 = vmatprep.subr.mxu0 0.0
    %3612 = vmatpush1.msra.mxu0 0.0
    %3613 = vmatprep.subr.mxu0 0.0
    %3614 = vmatpush1.msra.mxu0 0.0
    %3615 = vmatprep.subr.mxu0 0.0
    %3616 = vmatpush1.msra.mxu0 0.0
    %3617 = vmatprep.subr.mxu0 0.0
    %3618 = vmatpush1.msra.mxu0 0.0
    %3619 = vmatprep.subr.mxu0 0.0
    %3620 = vmatpush1.msra.mxu0 0.0
    %3621 = vmatprep.subr.mxu0 0.0
    %3622 = vmatpush1.msra.mxu0 0.0
    %3623 = vmatprep.subr.mxu0 0.0
    %3624 = vmatpush1.msra.mxu0 0.0
    %3625 = vmatprep.subr.mxu0 0.0
    %3626 = vmatpush1.msra.mxu0 0.0
    %3627 = vmatprep.subr.mxu0 0.0
    %3628 = vmatpush1.msra.mxu0 0.0
    %3629 = vmatprep.subr.mxu0 0.0
    %3630 = vmatpush1.msra.mxu0 0.0
    %3631 = vmatprep.subr.mxu0 0.0
    %3632 = vmatpush1.msra.mxu0 0.0
    %3633 = vmatprep.subr.mxu0 0.0
    %3634 = vmatpush1.msra.mxu0 0.0
    %3635 = vmatprep.subr.mxu0 0.0
    %3636 = vmatpush1.msra.mxu0 0.0
    %3637 = vmatprep.subr.mxu0 0.0
    %3638 = vmatpush1.msra.mxu0 0.0
    %3639 = vmatprep.subr.mxu0 0.0
    %3640 = vmatpush1.msra.mxu0 0.0
    %3641 = vmatprep.subr.mxu0 0.0
    %3642 = vmatpush1.msra.mxu0 0.0
    %3643 = vmatprep.subr.mxu0 0.0
    %3644 = vmatpush1.msra.mxu0 0.0
    %3645 = vmatprep.subr.mxu0 0.0
    %3646 = vmatpush1.msra.mxu0 0.0
    %3647 = vmatprep.subr.mxu0 0.0
    %3648 = vmatpush1.msra.mxu0 0.0
    %3649 = vmatprep.subr.mxu0 0.0
    %3650 = vmatpush1.msra.mxu0 0.0
    %3651 = vmatprep.subr.mxu0 0.0
    %3652 = vmatpush1.msra.mxu0 0.0
    %3653 = vmatprep.subr.mxu0 0.0
    %3654 = vmatpush1.msra.mxu0 0.0
    %3655 = vmatprep.mubr.f32.mxu0 0.0
    %3656 = vmatmul.mubr.f32.gmra.mrb[0].mxu0 %v3580
    %v3657 = vpop.f32.mrb[0].mxu0
    %v3658 = vadd.f32 0.0, %v3657
    %v3659 = vpop.f32.mrb[0].mxu0
    %3660 = vmatprep.mubr.f32.mxu0 0.0
    %3661 = vmatmul.mubr.f32.gmra.mrb[0].mxu0 %v3583
    %v3662 = vpop.f32.mrb[0].mxu0
    %v3663 = vadd.f32 0.0, %v3662
    %v3664 = vpop.f32.mrb[0].mxu0
    %3665 = vmatprep.mubr.f32.mxu0 0.0
    %3666 = vmatmul.mubr.f32.gmra.mrb[0].mxu0 %v3586
    %v3667 = vpop.f32.mrb[0].mxu0
    %v3668 = vadd.f32 0.0, %v3667
    %v3669 = vpop.f32.mrb[0].mxu0
    %3670 = vmatprep.mubr.f32.mxu0 0.0
    %3671 = vmatmul.mubr.f32.gmra.mrb[0].mxu0 %v3589
    %v3672 = vpop.f32.mrb[0].mxu0
    %v3673 = vadd.f32 0.0, %v3672
    %v3674 = vpop.f32.mrb[0].mxu0
    %3675 = vdwg.mxu0
    %3676 = vst.msk [vmem:[#allocation2] sm:$0xff] %vm1384, %v3402
    %3677 = vst.msk [vmem:[#allocation2 + $0x8] sm:$0xff] %vm1384, %v3403
    %3678 = vst.msk [vmem:[#allocation2 + $0x10] sm:$0xff] %vm1384, %v3404
    %3679 = vst.msk [vmem:[#allocation2 + $0x18] sm:$0xff] %vm1384, %v3405
    %3680 = vst.msk [vmem:[#allocation4] sm:$0xff] %vm1384, %v3658
    %3681 = vst.msk [vmem:[#allocation4 + $0x8] sm:$0xff] %vm1384, %v3663
    %3682 = vst.msk [vmem:[#allocation4 + $0x10] sm:$0xff] %vm1384, %v3668
    %3683 = vst.msk [vmem:[#allocation4 + $0x18] sm:$0xff] %vm1384, %v3673
    %v3684 = vpack.c.bf16 %v3663, %v3658
    %v3685 = vpack.c.bf16 %v3673, %v3668
    %v3687 = vshrl.u32 %v3684, 16
    %v3689 = vrot.slane %v3687, 5
    %v3690 = vshll.u32 %v3684, 16
    %v3692 = vrot.slane %v3690, 6
    %v3693 = vor.u32 %v3689, %v3692
    %v3695 = vshrl.u32 %v3685, 16
    %v3697 = vrot.slane %v3695, 5
    %v3698 = vshll.u32 %v3685, 16
    %v3700 = vrot.slane %v3698, 6
    %v3701 = vor.u32 %v3697, %v3700
    %v3702 = vsel %vm431, %v3693, %v3701
    %v3706 = vsel %vm453, 0, %v3693
    %v3707 = vsel %vm453, %v3701, 0
    %v3708 = vmul.bf16 %v3706, %v578
    %v3709 = vmul.bf16 %v3702, %v579
    %v3710 = vmul.bf16 %v3706, %v649
    %v3711 = vmul.bf16 %v3702, %v657
    %v3712 = vmul.bf16 %v3707, %v653
    %v3713 = vmul.bf16 %v3706, %v726
    %v3714 = vmul.bf16 %v3702, %v728
    %v3715 = vmul.bf16 %v3707, %v727
    %v3716 = vmul.bf16 %v3706, %v790
    %v3717 = vmul.bf16 %v3702, %v792
    %v3718 = vmul.bf16 %v3707, %v791
    %v3719 = vmul.bf16 %v3706, %v853
    %v3720 = vmul.bf16 %v3702, %v855
    %v3721 = vmul.bf16 %v3707, %v854
    %v3722 = vmul.bf16 %v3706, %v924
    %v3723 = vmul.bf16 %v3702, %v925
    %v3724 = vmul.bf16 %v3707, %v926
    %v3725 = vmul.bf16 %v3706, %v995
    %v3726 = vmul.bf16 %v3702, %v1004
    %v3727 = vmul.bf16 %v3707, %v1003
    %v3728 = vmul.bf16 %v3706, %v1069
    %v3729 = vmul.bf16 %v3702, %v1071
    %v3730 = vmul.bf16 %v3707, %v1070
    %v3732 = vshrl.u32 %v3710, 16
    %v3734 = vshll.u32 %v3710, 16
    %v3736 = vrot.slane %v3734, 1
    %v3737 = vor.u32 %v3732, %v3736
    %v3739 = vshll.u32 %v3711, 16
    %v3741 = vrot.slane %v3739, 1
    %v3742 = vsel %vm1078, %v3737, %v3741
    %v3743 = vshrl.u32 %v3711, 16
    %v3745 = vor.u32 %v3743, %v3741
    %v3747 = vshll.u32 %v3712, 16
    %v3749 = vrot.slane %v3747, 1
    %v3750 = vsel %vm1078, %v3745, %v3749
    %3751 = vrot.lane.b32.xlu0 %v3742, 32
    %v3752 = vpop.permute.xlu0 %3751
    %3753 = vrot.lane.b32.xlu0 %v3750, 32
    %v3754 = vpop.permute.xlu0 %3753
    %v3758 = vrot.slane %v3713, 1
    %v3759 = vrot.slane %v3714, 1
    %v3760 = vsel %vm1130, %v3758, %v3759
    %v3761 = vrot.slane %v3715, 1
    %v3762 = vsel %vm1130, %v3759, %v3761
    %3763 = vrot.lane.b32.xlu0 %v3760, 64
    %v3764 = vpop.permute.xlu0 %3763
    %3765 = vrot.lane.b32.xlu0 %v3762, 64
    %v3766 = vpop.permute.xlu0 %3765
    %v3770 = vrot.slane %v3716, 2
    %v3771 = vrot.slane %v3717, 2
    %v3772 = vsel %vm1143, %v3770, %v3771
    %v3773 = vrot.slane %v3718, 2
    %v3774 = vsel %vm1143, %v3771, %v3773
    %3775 = vrot.lane.b32.xlu0 %v3772, 96
    %v3776 = vpop.permute.xlu0 %3775
    %3777 = vrot.lane.b32.xlu0 %v3774, 96
    %v3778 = vpop.permute.xlu0 %3777
    %v3780 = vshrl.u32 %v3706, 16
    %v3782 = vrot.slane %v3780, 2
    %v3783 = vshll.u32 %v3706, 16
    %v3785 = vrot.slane %v3783, 3
    %v3786 = vor.u32 %v3782, %v3785
    %v3788 = vshrl.u32 %v3702, 16
    %v3790 = vrot.slane %v3788, 2
    %v3791 = vshll.u32 %v3702, 16
    %v3793 = vrot.slane %v3791, 3
    %v3794 = vor.u32 %v3790, %v3793
    %v3795 = vsel %vm1149, %v3786, %v3794
    %v3797 = vshrl.u32 %v3707, 16
    %v3799 = vrot.slane %v3797, 2
    %v3800 = vshll.u32 %v3707, 16
    %v3802 = vrot.slane %v3800, 3
    %v3803 = vor.u32 %v3799, %v3802
    %v3804 = vsel %vm1149, %v3794, %v3803
    %v3808 = vrot.slane %v3719, 3
    %v3809 = vrot.slane %v3720, 3
    %v3810 = vsel %vm1068, %v3808, %v3809
    %v3811 = vrot.slane %v3721, 3
    %v3812 = vsel %vm1068, %v3809, %v3811
    %3813 = vrot.lane.b32.xlu0 %v3810, 32
    %v3814 = vpop.permute.xlu0 %3813
    %3815 = vrot.lane.b32.xlu0 %v3812, 32
    %v3816 = vpop.permute.xlu0 %3815
    %v3820 = vrot.slane %v3722, 4
    %v3821 = vrot.slane %v3723, 4
    %v3822 = vsel %vm1305, %v3820, %v3821
    %v3823 = vrot.slane %v3724, 4
    %v3824 = vsel %vm1305, %v3821, %v3823
    %3825 = vrot.lane.b32.xlu0 %v3822, 64
    %v3826 = vpop.permute.xlu0 %3825
    %3827 = vrot.lane.b32.xlu0 %v3824, 64
    %v3828 = vpop.permute.xlu0 %3827
    %v3830 = vshrl.u32 %v3725, 16
    %v3832 = vrot.slane %v3830, 4
    %v3833 = vshll.u32 %v3725, 16
    %v3835 = vrot.slane %v3833, 5
    %v3836 = vor.u32 %v3832, %v3835
    %v3838 = vshrl.u32 %v3726, 16
    %v3840 = vrot.slane %v3838, 4
    %v3841 = vshll.u32 %v3726, 16
    %v3843 = vrot.slane %v3841, 5
    %v3844 = vor.u32 %v3840, %v3843
    %v3845 = vsel %vm1311, %v3836, %v3844
    %v3847 = vshrl.u32 %v3727, 16
    %v3849 = vrot.slane %v3847, 4
    %v3850 = vshll.u32 %v3727, 16
    %v3852 = vrot.slane %v3850, 5
    %v3853 = vor.u32 %v3849, %v3852
    %v3854 = vsel %vm1311, %v3844, %v3853
    %3855 = vrot.lane.b32.xlu0 %v3845, 96
    %v3856 = vpop.permute.xlu0 %3855
    %3857 = vrot.lane.b32.xlu0 %v3854, 96
    %v3858 = vpop.permute.xlu0 %3857
    %v3862 = vrot.slane %v3728, 5
    %v3863 = vrot.slane %v3729, 5
    %v3864 = vsel %vm452, %v3862, %v3863
    %v3865 = vrot.slane %v3730, 5
    %v3866 = vsel %vm452, %v3863, %v3865
    %v3869 = vsel %vm1384, %v3708, %v3752
    %v3872 = vsel %vm1384, %v3709, %v3754
    %v3874 = vsel %vm1391, %v3869, %v3764
    %v3876 = vsel %vm1391, %v3872, %v3766
    %v3878 = vsel %vm1396, %v3874, %v3776
    %v3881 = vsel %vm1396, %v3876, %v3778
    %v3885 = vsel %vm1384, %v3795, %v3814
    %v3888 = vsel %vm1384, %v3804, %v3816
    %v3890 = vsel %vm1391, %v3885, %v3826
    %v3892 = vsel %vm1391, %v3888, %v3828
    %v3894 = vsel %vm1396, %v3890, %v3856
    %v3897 = vsel %vm1396, %v3892, %v3858
    %v3899 = vld [vmem:[%s37] sm:$0xf]
    %v3900 = vld [vmem:[%s37 + $0x4] sm:$0xf]
    %v3901 = vld [vmem:[%s37 + $0x8] sm:$0xf]
    %v3902 = vld [vmem:[%s37 + $0xc] sm:$0xf]
    %v3903 = vld [vmem:[%s37 + $0x10] sm:$0xf]
    %v3904 = vld [vmem:[%s37 + $0x14] sm:$0xf]
    %v3905 = vld [vmem:[%s37 + $0x18] sm:$0xf]
    %v3906 = vld [vmem:[%s37 + $0x1c] sm:$0xf]
    %v3907 = vld [vmem:[%s37 + $0x20] sm:$0xf]
    %v3908 = vld [vmem:[%s37 + $0x24] sm:$0xf]
    %v3909 = vld [vmem:[%s37 + $0x28] sm:$0xf]
    %v3910 = vld [vmem:[%s37 + $0x2c] sm:$0xf]
    %v3911 = vld [vmem:[%s37 + $0x30] sm:$0xf]
    %v3912 = vld [vmem:[%s37 + $0x34] sm:$0xf]
    %v3913 = vld [vmem:[%s37 + $0x38] sm:$0xf]
    %v3914 = vld [vmem:[%s37 + $0x3c] sm:$0xf]
    %v3915 = vld [vmem:[%s37 + $0x40] sm:$0xf]
    %v3916 = vld [vmem:[%s37 + $0x44] sm:$0xf]
    %v3917 = vld [vmem:[%s37 + $0x48] sm:$0xf]
    %v3918 = vld [vmem:[%s37 + $0x4c] sm:$0xf]
    %v3919 = vld [vmem:[%s37 + $0x50] sm:$0xf]
    %v3920 = vld [vmem:[%s37 + $0x54] sm:$0xf]
    %v3921 = vld [vmem:[%s37 + $0x58] sm:$0xf]
    %v3922 = vld [vmem:[%s37 + $0x5c] sm:$0xf]
    %v3923 = vld [vmem:[%s37 + $0x60] sm:$0xf]
    %v3924 = vld [vmem:[%s37 + $0x64] sm:$0xf]
    %v3925 = vld [vmem:[%s37 + $0x68] sm:$0xf]
    %v3926 = vld [vmem:[%s37 + $0x6c] sm:$0xf]
    %v3927 = vld [vmem:[%s37 + $0x70] sm:$0xf]
    %v3928 = vld [vmem:[%s37 + $0x74] sm:$0xf]
    %v3929 = vld [vmem:[%s37 + $0x78] sm:$0xf]
    %v3930 = vld [vmem:[%s37 + $0x7c] sm:$0xf]
    %v3931 = vld [vmem:[%s37 + $0x80] sm:$0xf]
    %v3932 = vld [vmem:[%s37 + $0x84] sm:$0xf]
    %v3933 = vld [vmem:[%s37 + $0x88] sm:$0xf]
    %v3934 = vld [vmem:[%s37 + $0x8c] sm:$0xf]
    %v3935 = vld [vmem:[%s39] sm:$0x1]
    %v3937 = vlaneseq
    %v3938 = vshrl.u32 %v3937, 7
    %v3939 = vsub.s32 0, %v3938
    %v3940 = vrot.slane %v3935, %v3939
    %v3978 = vunpack.c.l.b16 %v3899
    %v3979 = vunpack.c.l.b16 %v3900
    %v3980 = vunpack.c.l.b16 %v3901
    %v3981 = vunpack.c.l.b16 %v3902
    %v3982 = vunpack.c.l.b16 %v3903
    %v3983 = vunpack.c.l.b16 %v3904
    %v3984 = vunpack.c.l.b16 %v3905
    %v3985 = vunpack.c.l.b16 %v3906
    %v3986 = vunpack.c.l.b16 %v3907
    %v3987 = vunpack.c.l.b16 %v3908
    %v3988 = vunpack.c.l.b16 %v3909
    %v3989 = vunpack.c.l.b16 %v3910
    %v3990 = vunpack.c.l.b16 %v3911
    %v3991 = vunpack.c.l.b16 %v3912
    %v3992 = vunpack.c.l.b16 %v3913
    %v3993 = vunpack.c.l.b16 %v3914
    %v3994 = vunpack.c.l.b16 %v3915
    %v3995 = vunpack.c.l.b16 %v3916
    %v3996 = vunpack.c.l.b16 %v3917
    %v3997 = vunpack.c.l.b16 %v3918
    %v3998 = vunpack.c.l.b16 %v3919
    %v3999 = vunpack.c.l.b16 %v3920
    %v4000 = vunpack.c.l.b16 %v3921
    %v4001 = vunpack.c.l.b16 %v3922
    %v4002 = vunpack.c.l.b16 %v3923
    %v4003 = vunpack.c.l.b16 %v3924
    %v4004 = vunpack.c.l.b16 %v3925
    %v4005 = vunpack.c.l.b16 %v3926
    %v4006 = vunpack.c.l.b16 %v3927
    %v4007 = vunpack.c.l.b16 %v3928
    %v4008 = vunpack.c.l.b16 %v3929
    %v4009 = vunpack.c.l.b16 %v3930
    %v4010 = vunpack.c.l.b16 %v3931
    %v4011 = vunpack.c.l.b16 %v3932
    %v4012 = vunpack.c.l.b16 %v3933
    %v4013 = vunpack.c.l.b16 %v3934
    %v4014 = vpack.c.b16 %v3979, %v3978
    %v4015 = vpack.c.b16 %v3981, %v3980
    %v4016 = vpack.c.b16 %v3983, %v3982
    %v4017 = vpack.c.b16 %v3985, %v3984
    %v4018 = vpack.c.b16 %v3987, %v3986
    %v4019 = vpack.c.b16 %v3989, %v3988
    %v4020 = vpack.c.b16 %v3991, %v3990
    %v4021 = vpack.c.b16 %v3993, %v3992
    %v4022 = vpack.c.b16 %v3995, %v3994
    %v4023 = vpack.c.b16 %v3997, %v3996
    %v4024 = vpack.c.b16 %v3999, %v3998
    %v4025 = vpack.c.b16 %v4001, %v4000
    %v4026 = vpack.c.b16 %v4003, %v4002
    %v4027 = vpack.c.b16 %v4005, %v4004
    %v4028 = vpack.c.b16 %v4007, %v4006
    %v4029 = vpack.c.b16 %v4009, %v4008
    %v4030 = vpack.c.b16 %v4011, %v4010
    %v4031 = vpack.c.b16 %v4013, %v4012
    %v4051 = vsel %vm1384, %v3864, 0
    %v4054 = vsel %vm1384, %v3866, 0
    %4056 = vmatprep.subr.bf16.mxu0 0
    %4057 = vmatpush1.bf16.msra.mxu0 %v4014
    %4058 = vmatprep.subr.bf16.mxu0 0
    %4059 = vmatpush1.bf16.msra.mxu0 %v4015
    %4060 = vmatprep.subr.bf16.mxu0 0
    %4061 = vmatpush1.bf16.msra.mxu0 %v4016
    %4062 = vmatprep.subr.bf16.mxu0 0
    %4063 = vmatpush1.bf16.msra.mxu0 %v4017
    %4064 = vmatprep.subr.bf16.mxu0 0
    %4065 = vmatpush1.bf16.msra.mxu0 %v4018
    %4066 = vmatprep.subr.bf16.mxu0 0
    %4067 = vmatpush1.bf16.msra.mxu0 %v4019
    %4068 = vmatprep.subr.bf16.mxu0 0
    %4069 = vmatpush1.bf16.msra.mxu0 %v4020
    %4070 = vmatprep.subr.bf16.mxu0 0
    %4071 = vmatpush1.bf16.msra.mxu0 %v4021
    %4072 = vmatprep.subr.bf16.mxu0 0
    %4073 = vmatpush1.bf16.msra.mxu0 %v4022
    %4074 = vmatprep.subr.bf16.mxu0 0
    %4075 = vmatpush1.bf16.msra.mxu0 %v4023
    %4076 = vmatprep.subr.bf16.mxu0 0
    %4077 = vmatpush1.bf16.msra.mxu0 %v4024
    %4078 = vmatprep.subr.bf16.mxu0 0
    %4079 = vmatpush1.bf16.msra.mxu0 %v4025
    %4080 = vmatprep.subr.bf16.mxu0 0
    %4081 = vmatpush1.bf16.msra.mxu0 %v4026
    %4082 = vmatprep.subr.bf16.mxu0 0
    %4083 = vmatpush1.bf16.msra.mxu0 %v4027
    %4084 = vmatprep.subr.bf16.mxu0 0
    %4085 = vmatpush1.bf16.msra.mxu0 %v4028
    %4086 = vmatprep.subr.bf16.mxu0 0
    %4087 = vmatpush1.bf16.msra.mxu0 %v4029
    %4088 = vmatprep.mubr.bf16.mxu0 %v3894
    %4089 = vmatmul.mubr.bf16.gmra.mrb[0].mxu0 %v3878
    %v4090 = vpop.f32.mrb[0].mxu0
    %v4091 = vadd.f32 %v3940, %v4090
    %v4092 = vpop.f32.mrb[0].mxu0
    %v4093 = vpop.f32.mrb[0].mxu0
    %v4094 = vadd.f32 %v3940, %v4093
    %v4095 = vpop.f32.mrb[0].mxu0
    %4096 = vmatprep.mubr.bf16.mxu0 %v3897
    %4097 = vmatmul.mubr.bf16.gmra.mrb[0].mxu0 %v3881
    %v4098 = vpop.f32.mrb[0].mxu0
    %v4099 = vadd.f32 %v3940, %v4098
    %v4100 = vpop.f32.mrb[0].mxu0
    %v4101 = vpop.f32.mrb[0].mxu0
    %v4102 = vadd.f32 %v3940, %v4101
    %v4103 = vpop.f32.mrb[0].mxu0
    %4104 = vdwg.mxu0
    %4105 = vmatprep.subr.bf16.mxu0 0
    %4106 = vmatpush1.bf16.msra.mxu0 %v4030
    %4107 = vmatprep.subr.bf16.mxu0 0
    %4108 = vmatpush1.bf16.msra.mxu0 %v4031
    %4109 = vmatprep.subr.bf16.mxu0 0
    %4110 = vmatpush1.bf16.msra.mxu0 0
    %4111 = vmatprep.subr.bf16.mxu0 0
    %4112 = vmatpush1.bf16.msra.mxu0 0
    %4113 = vmatprep.subr.bf16.mxu0 0
    %4114 = vmatpush1.bf16.msra.mxu0 0
    %4115 = vmatprep.subr.bf16.mxu0 0
    %4116 = vmatpush1.bf16.msra.mxu0 0
    %4117 = vmatprep.subr.bf16.mxu0 0
    %4118 = vmatpush1.bf16.msra.mxu0 0
    %4119 = vmatprep.subr.bf16.mxu0 0
    %4120 = vmatpush1.bf16.msra.mxu0 0
    %4121 = vmatprep.subr.bf16.mxu0 0
    %4122 = vmatpush1.bf16.msra.mxu0 0
    %4123 = vmatprep.subr.bf16.mxu0 0
    %4124 = vmatpush1.bf16.msra.mxu0 0
    %4125 = vmatprep.subr.bf16.mxu0 0
    %4126 = vmatpush1.bf16.msra.mxu0 0
    %4127 = vmatprep.subr.bf16.mxu0 0
    %4128 = vmatpush1.bf16.msra.mxu0 0
    %4129 = vmatprep.subr.bf16.mxu0 0
    %4130 = vmatpush1.bf16.msra.mxu0 0
    %4131 = vmatprep.subr.bf16.mxu0 0
    %4132 = vmatpush1.bf16.msra.mxu0 0
    %4133 = vmatprep.subr.bf16.mxu0 0
    %4134 = vmatpush1.bf16.msra.mxu0 0
    %4135 = vmatprep.subr.bf16.mxu0 0
    %4136 = vmatpush1.bf16.msra.mxu0 0
    %4137 = vmatprep.mubr.bf16.mxu0 0
    %4138 = vmatmul.mubr.bf16.gmra.mrb[0].mxu0 %v4051
    %v4139 = vpop.f32.mrb[0].mxu0
    %v4140 = vadd.f32 %v4091, %v4139
    %v4141 = vpop.f32.mrb[0].mxu0
    %v4142 = vpop.f32.mrb[0].mxu0
    %v4143 = vadd.f32 %v4094, %v4142
    %v4144 = vpop.f32.mrb[0].mxu0
    %4145 = vmatprep.mubr.bf16.mxu0 0
    %4146 = vmatmul.mubr.bf16.gmra.mrb[0].mxu0 %v4054
    %v4147 = vpop.f32.mrb[0].mxu0
    %v4148 = vadd.f32 %v4099, %v4147
    %v4149 = vpop.f32.mrb[0].mxu0
    %v4150 = vpop.f32.mrb[0].mxu0
    %v4151 = vadd.f32 %v4102, %v4150
    %v4152 = vpop.f32.mrb[0].mxu0
    %4153 = vdwg.mxu0
    %v4154 = vpack.c.bf16 %v4143, %v4140
    %v4155 = vpack.c.bf16 %v4151, %v4148
    %v4156 = vmax.bf16 %v4154, 0
    %v4157 = vmax.bf16 %v4155, 0
    %v4159 = vshrl.u32 %v4156, 16
    %v4161 = vrot.slane %v4159, 5
    %v4162 = vshll.u32 %v4156, 16
    %v4164 = vrot.slane %v4162, 6
    %v4165 = vor.u32 %v4161, %v4164
    %v4167 = vshrl.u32 %v4157, 16
    %v4169 = vrot.slane %v4167, 5
    %v4170 = vshll.u32 %v4157, 16
    %v4172 = vrot.slane %v4170, 6
    %v4173 = vor.u32 %v4169, %v4172
    %v4174 = vsel %vm431, %v4165, %v4173
    %v4178 = vsel %vm453, 0, %v4165
    %v4179 = vsel %vm453, %v4173, 0
    %v4180 = vmul.bf16 %v4178, %v578
    %v4181 = vmul.bf16 %v4174, %v579
    %v4182 = vmul.bf16 %v4178, %v649
    %v4183 = vmul.bf16 %v4174, %v657
    %v4184 = vmul.bf16 %v4179, %v653
    %v4185 = vmul.bf16 %v4178, %v726
    %v4186 = vmul.bf16 %v4174, %v728
    %v4187 = vmul.bf16 %v4179, %v727
    %v4188 = vmul.bf16 %v4178, %v790
    %v4189 = vmul.bf16 %v4174, %v792
    %v4190 = vmul.bf16 %v4179, %v791
    %v4191 = vmul.bf16 %v4178, %v853
    %v4192 = vmul.bf16 %v4174, %v855
    %v4193 = vmul.bf16 %v4179, %v854
    %v4194 = vmul.bf16 %v4178, %v924
    %v4195 = vmul.bf16 %v4174, %v925
    %v4196 = vmul.bf16 %v4179, %v926
    %v4197 = vmul.bf16 %v4178, %v995
    %v4198 = vmul.bf16 %v4174, %v1004
    %v4199 = vmul.bf16 %v4179, %v1003
    %v4200 = vmul.bf16 %v4178, %v1069
    %v4201 = vmul.bf16 %v4174, %v1071
    %v4202 = vmul.bf16 %v4179, %v1070
    %v4204 = vshrl.u32 %v4182, 16
    %v4206 = vshll.u32 %v4182, 16
    %v4208 = vrot.slane %v4206, 1
    %v4209 = vor.u32 %v4204, %v4208
    %v4211 = vshll.u32 %v4183, 16
    %v4213 = vrot.slane %v4211, 1
    %v4214 = vsel %vm1078, %v4209, %v4213
    %v4215 = vshrl.u32 %v4183, 16
    %v4217 = vor.u32 %v4215, %v4213
    %v4219 = vshll.u32 %v4184, 16
    %v4221 = vrot.slane %v4219, 1
    %v4222 = vsel %vm1078, %v4217, %v4221
    %4223 = vrot.lane.b32.xlu0 %v4214, 32
    %v4224 = vpop.permute.xlu0 %4223
    %4225 = vrot.lane.b32.xlu0 %v4222, 32
    %v4226 = vpop.permute.xlu0 %4225
    %v4230 = vrot.slane %v4185, 1
    %v4231 = vrot.slane %v4186, 1
    %v4232 = vsel %vm1130, %v4230, %v4231
    %v4233 = vrot.slane %v4187, 1
    %v4234 = vsel %vm1130, %v4231, %v4233
    %4235 = vrot.lane.b32.xlu0 %v4232, 64
    %v4236 = vpop.permute.xlu0 %4235
    %4237 = vrot.lane.b32.xlu0 %v4234, 64
    %v4238 = vpop.permute.xlu0 %4237
    %v4242 = vrot.slane %v4188, 2
    %v4243 = vrot.slane %v4189, 2
    %v4244 = vsel %vm1143, %v4242, %v4243
    %v4245 = vrot.slane %v4190, 2
    %v4246 = vsel %vm1143, %v4243, %v4245
    %4247 = vrot.lane.b32.xlu0 %v4244, 96
    %v4248 = vpop.permute.xlu0 %4247
    %4249 = vrot.lane.b32.xlu0 %v4246, 96
    %v4250 = vpop.permute.xlu0 %4249
    %v4252 = vshrl.u32 %v4178, 16
    %v4254 = vrot.slane %v4252, 2
    %v4255 = vshll.u32 %v4178, 16
    %v4257 = vrot.slane %v4255, 3
    %v4258 = vor.u32 %v4254, %v4257
    %v4260 = vshrl.u32 %v4174, 16
    %v4262 = vrot.slane %v4260, 2
    %v4263 = vshll.u32 %v4174, 16
    %v4265 = vrot.slane %v4263, 3
    %v4266 = vor.u32 %v4262, %v4265
    %v4267 = vsel %vm1149, %v4258, %v4266
    %v4269 = vshrl.u32 %v4179, 16
    %v4271 = vrot.slane %v4269, 2
    %v4272 = vshll.u32 %v4179, 16
    %v4274 = vrot.slane %v4272, 3
    %v4275 = vor.u32 %v4271, %v4274
    %v4276 = vsel %vm1149, %v4266, %v4275
    %v4280 = vrot.slane %v4191, 3
    %v4281 = vrot.slane %v4192, 3
    %v4282 = vsel %vm1068, %v4280, %v4281
    %v4283 = vrot.slane %v4193, 3
    %v4284 = vsel %vm1068, %v4281, %v4283
    %4285 = vrot.lane.b32.xlu0 %v4282, 32
    %v4286 = vpop.permute.xlu0 %4285
    %4287 = vrot.lane.b32.xlu0 %v4284, 32
    %v4288 = vpop.permute.xlu0 %4287
    %v4292 = vrot.slane %v4194, 4
    %v4293 = vrot.slane %v4195, 4
    %v4294 = vsel %vm1305, %v4292, %v4293
    %v4295 = vrot.slane %v4196, 4
    %v4296 = vsel %vm1305, %v4293, %v4295
    %4297 = vrot.lane.b32.xlu0 %v4294, 64
    %v4298 = vpop.permute.xlu0 %4297
    %4299 = vrot.lane.b32.xlu0 %v4296, 64
    %v4300 = vpop.permute.xlu0 %4299
    %v4302 = vshrl.u32 %v4197, 16
    %v4304 = vrot.slane %v4302, 4
    %v4305 = vshll.u32 %v4197, 16
    %v4307 = vrot.slane %v4305, 5
    %v4308 = vor.u32 %v4304, %v4307
    %v4310 = vshrl.u32 %v4198, 16
    %v4312 = vrot.slane %v4310, 4
    %v4313 = vshll.u32 %v4198, 16
    %v4315 = vrot.slane %v4313, 5
    %v4316 = vor.u32 %v4312, %v4315
    %v4317 = vsel %vm1311, %v4308, %v4316
    %v4319 = vshrl.u32 %v4199, 16
    %v4321 = vrot.slane %v4319, 4
    %v4322 = vshll.u32 %v4199, 16
    %v4324 = vrot.slane %v4322, 5
    %v4325 = vor.u32 %v4321, %v4324
    %v4326 = vsel %vm1311, %v4316, %v4325
    %4327 = vrot.lane.b32.xlu0 %v4317, 96
    %v4328 = vpop.permute.xlu0 %4327
    %4329 = vrot.lane.b32.xlu0 %v4326, 96
    %v4330 = vpop.permute.xlu0 %4329
    %v4334 = vrot.slane %v4200, 5
    %v4335 = vrot.slane %v4201, 5
    %v4336 = vsel %vm452, %v4334, %v4335
    %v4337 = vrot.slane %v4202, 5
    %v4338 = vsel %vm452, %v4335, %v4337
    %v4341 = vsel %vm1384, %v4180, %v4224
    %v4344 = vsel %vm1384, %v4181, %v4226
    %v4346 = vsel %vm1391, %v4341, %v4236
    %v4348 = vsel %vm1391, %v4344, %v4238
    %v4350 = vsel %vm1396, %v4346, %v4248
    %v4353 = vsel %vm1396, %v4348, %v4250
    %v4357 = vsel %vm1384, %v4267, %v4286
    %v4360 = vsel %vm1384, %v4276, %v4288
    %v4362 = vsel %vm1391, %v4357, %v4298
    %v4364 = vsel %vm1391, %v4360, %v4300
    %v4366 = vsel %vm1396, %v4362, %v4328
    %v4369 = vsel %vm1396, %v4364, %v4330
    %v4371 = vld [vmem:[%s41] sm:$0xf]
    %v4372 = vld [vmem:[%s41 + $0x4] sm:$0xf]
    %v4373 = vld [vmem:[%s41 + $0x8] sm:$0xf]
    %v4374 = vld [vmem:[%s41 + $0xc] sm:$0xf]
    %v4375 = vld [vmem:[%s41 + $0x10] sm:$0xf]
    %v4376 = vld [vmem:[%s41 + $0x14] sm:$0xf]
    %v4377 = vld [vmem:[%s41 + $0x18] sm:$0xf]
    %v4378 = vld [vmem:[%s41 + $0x1c] sm:$0xf]
    %v4379 = vld [vmem:[%s41 + $0x20] sm:$0xf]
    %v4380 = vld [vmem:[%s41 + $0x24] sm:$0xf]
    %v4381 = vld [vmem:[%s41 + $0x28] sm:$0xf]
    %v4382 = vld [vmem:[%s41 + $0x2c] sm:$0xf]
    %v4383 = vld [vmem:[%s41 + $0x30] sm:$0xf]
    %v4384 = vld [vmem:[%s41 + $0x34] sm:$0xf]
    %v4385 = vld [vmem:[%s41 + $0x38] sm:$0xf]
    %v4386 = vld [vmem:[%s41 + $0x3c] sm:$0xf]
    %v4387 = vld [vmem:[%s41 + $0x40] sm:$0xf]
    %v4388 = vld [vmem:[%s41 + $0x44] sm:$0xf]
    %v4389 = vld [vmem:[%s41 + $0x48] sm:$0xf]
    %v4390 = vld [vmem:[%s41 + $0x4c] sm:$0xf]
    %v4391 = vld [vmem:[%s41 + $0x50] sm:$0xf]
    %v4392 = vld [vmem:[%s41 + $0x54] sm:$0xf]
    %v4393 = vld [vmem:[%s41 + $0x58] sm:$0xf]
    %v4394 = vld [vmem:[%s41 + $0x5c] sm:$0xf]
    %v4395 = vld [vmem:[%s41 + $0x60] sm:$0xf]
    %v4396 = vld [vmem:[%s41 + $0x64] sm:$0xf]
    %v4397 = vld [vmem:[%s41 + $0x68] sm:$0xf]
    %v4398 = vld [vmem:[%s41 + $0x6c] sm:$0xf]
    %v4399 = vld [vmem:[%s41 + $0x70] sm:$0xf]
    %v4400 = vld [vmem:[%s41 + $0x74] sm:$0xf]
    %v4401 = vld [vmem:[%s41 + $0x78] sm:$0xf]
    %v4402 = vld [vmem:[%s41 + $0x7c] sm:$0xf]
    %v4403 = vld [vmem:[%s41 + $0x80] sm:$0xf]
    %v4404 = vld [vmem:[%s41 + $0x84] sm:$0xf]
    %v4405 = vld [vmem:[%s41 + $0x88] sm:$0xf]
    %v4406 = vld [vmem:[%s41 + $0x8c] sm:$0xf]
    %v4407 = vld [vmem:[%s43] sm:$0x1]
    %v4409 = vlaneseq
    %v4410 = vshrl.u32 %v4409, 7
    %v4411 = vsub.s32 0, %v4410
    %v4412 = vrot.slane %v4407, %v4411
    %v4450 = vunpack.c.l.b16 %v4371
    %v4451 = vunpack.c.l.b16 %v4372
    %v4452 = vunpack.c.l.b16 %v4373
    %v4453 = vunpack.c.l.b16 %v4374
    %v4454 = vunpack.c.l.b16 %v4375
    %v4455 = vunpack.c.l.b16 %v4376
    %v4456 = vunpack.c.l.b16 %v4377
    %v4457 = vunpack.c.l.b16 %v4378
    %v4458 = vunpack.c.l.b16 %v4379
    %v4459 = vunpack.c.l.b16 %v4380
    %v4460 = vunpack.c.l.b16 %v4381
    %v4461 = vunpack.c.l.b16 %v4382
    %v4462 = vunpack.c.l.b16 %v4383
    %v4463 = vunpack.c.l.b16 %v4384
    %v4464 = vunpack.c.l.b16 %v4385
    %v4465 = vunpack.c.l.b16 %v4386
    %v4466 = vunpack.c.l.b16 %v4387
    %v4467 = vunpack.c.l.b16 %v4388
    %v4468 = vunpack.c.l.b16 %v4389
    %v4469 = vunpack.c.l.b16 %v4390
    %v4470 = vunpack.c.l.b16 %v4391
    %v4471 = vunpack.c.l.b16 %v4392
    %v4472 = vunpack.c.l.b16 %v4393
    %v4473 = vunpack.c.l.b16 %v4394
    %v4474 = vunpack.c.l.b16 %v4395
    %v4475 = vunpack.c.l.b16 %v4396
    %v4476 = vunpack.c.l.b16 %v4397
    %v4477 = vunpack.c.l.b16 %v4398
    %v4478 = vunpack.c.l.b16 %v4399
    %v4479 = vunpack.c.l.b16 %v4400
    %v4480 = vunpack.c.l.b16 %v4401
    %v4481 = vunpack.c.l.b16 %v4402
    %v4482 = vunpack.c.l.b16 %v4403
    %v4483 = vunpack.c.l.b16 %v4404
    %v4484 = vunpack.c.l.b16 %v4405
    %v4485 = vunpack.c.l.b16 %v4406
    %v4486 = vpack.c.b16 %v4451, %v4450
    %v4487 = vpack.c.b16 %v4453, %v4452
    %v4488 = vpack.c.b16 %v4455, %v4454
    %v4489 = vpack.c.b16 %v4457, %v4456
    %v4490 = vpack.c.b16 %v4459, %v4458
    %v4491 = vpack.c.b16 %v4461, %v4460
    %v4492 = vpack.c.b16 %v4463, %v4462
    %v4493 = vpack.c.b16 %v4465, %v4464
    %v4494 = vpack.c.b16 %v4467, %v4466
    %v4495 = vpack.c.b16 %v4469, %v4468
    %v4496 = vpack.c.b16 %v4471, %v4470
    %v4497 = vpack.c.b16 %v4473, %v4472
    %v4498 = vpack.c.b16 %v4475, %v4474
    %v4499 = vpack.c.b16 %v4477, %v4476
    %v4500 = vpack.c.b16 %v4479, %v4478
    %v4501 = vpack.c.b16 %v4481, %v4480
    %v4502 = vpack.c.b16 %v4483, %v4482
    %v4503 = vpack.c.b16 %v4485, %v4484
    %v4523 = vsel %vm1384, %v4336, 0
    %v4526 = vsel %vm1384, %v4338, 0
    %4528 = vmatprep.subr.bf16.mxu0 0
    %4529 = vmatpush1.bf16.msra.mxu0 %v4486
    %4530 = vmatprep.subr.bf16.mxu0 0
    %4531 = vmatpush1.bf16.msra.mxu0 %v4487
    %4532 = vmatprep.subr.bf16.mxu0 0
    %4533 = vmatpush1.bf16.msra.mxu0 %v4488
    %4534 = vmatprep.subr.bf16.mxu0 0
    %4535 = vmatpush1.bf16.msra.mxu0 %v4489
    %4536 = vmatprep.subr.bf16.mxu0 0
    %4537 = vmatpush1.bf16.msra.mxu0 %v4490
    %4538 = vmatprep.subr.bf16.mxu0 0
    %4539 = vmatpush1.bf16.msra.mxu0 %v4491
    %4540 = vmatprep.subr.bf16.mxu0 0
    %4541 = vmatpush1.bf16.msra.mxu0 %v4492
    %4542 = vmatprep.subr.bf16.mxu0 0
    %4543 = vmatpush1.bf16.msra.mxu0 %v4493
    %4544 = vmatprep.subr.bf16.mxu0 0
    %4545 = vmatpush1.bf16.msra.mxu0 %v4494
    %4546 = vmatprep.subr.bf16.mxu0 0
    %4547 = vmatpush1.bf16.msra.mxu0 %v4495
    %4548 = vmatprep.subr.bf16.mxu0 0
    %4549 = vmatpush1.bf16.msra.mxu0 %v4496
    %4550 = vmatprep.subr.bf16.mxu0 0
    %4551 = vmatpush1.bf16.msra.mxu0 %v4497
    %4552 = vmatprep.subr.bf16.mxu0 0
    %4553 = vmatpush1.bf16.msra.mxu0 %v4498
    %4554 = vmatprep.subr.bf16.mxu0 0
    %4555 = vmatpush1.bf16.msra.mxu0 %v4499
    %4556 = vmatprep.subr.bf16.mxu0 0
    %4557 = vmatpush1.bf16.msra.mxu0 %v4500
    %4558 = vmatprep.subr.bf16.mxu0 0
    %4559 = vmatpush1.bf16.msra.mxu0 %v4501
    %4560 = vmatprep.mubr.bf16.mxu0 %v4366
    %4561 = vmatmul.mubr.bf16.gmra.mrb[0].mxu0 %v4350
    %v4562 = vpop.f32.mrb[0].mxu0
    %v4563 = vadd.f32 %v4412, %v4562
    %v4564 = vpop.f32.mrb[0].mxu0
    %v4565 = vpop.f32.mrb[0].mxu0
    %v4566 = vadd.f32 %v4412, %v4565
    %v4567 = vpop.f32.mrb[0].mxu0
    %4568 = vmatprep.mubr.bf16.mxu0 %v4369
    %4569 = vmatmul.mubr.bf16.gmra.mrb[0].mxu0 %v4353
    %v4570 = vpop.f32.mrb[0].mxu0
    %v4571 = vadd.f32 %v4412, %v4570
    %v4572 = vpop.f32.mrb[0].mxu0
    %v4573 = vpop.f32.mrb[0].mxu0
    %v4574 = vadd.f32 %v4412, %v4573
    %v4575 = vpop.f32.mrb[0].mxu0
    %4576 = vdwg.mxu0
    %4577 = vmatprep.subr.bf16.mxu0 0
    %4578 = vmatpush1.bf16.msra.mxu0 %v4502
    %4579 = vmatprep.subr.bf16.mxu0 0
    %4580 = vmatpush1.bf16.msra.mxu0 %v4503
    %4581 = vmatprep.subr.bf16.mxu0 0
    %4582 = vmatpush1.bf16.msra.mxu0 0
    %4583 = vmatprep.subr.bf16.mxu0 0
    %4584 = vmatpush1.bf16.msra.mxu0 0
    %4585 = vmatprep.subr.bf16.mxu0 0
    %4586 = vmatpush1.bf16.msra.mxu0 0
    %4587 = vmatprep.subr.bf16.mxu0 0
    %4588 = vmatpush1.bf16.msra.mxu0 0
    %4589 = vmatprep.subr.bf16.mxu0 0
    %4590 = vmatpush1.bf16.msra.mxu0 0
    %4591 = vmatprep.subr.bf16.mxu0 0
    %4592 = vmatpush1.bf16.msra.mxu0 0
    %4593 = vmatprep.subr.bf16.mxu0 0
    %4594 = vmatpush1.bf16.msra.mxu0 0
    %4595 = vmatprep.subr.bf16.mxu0 0
    %4596 = vmatpush1.bf16.msra.mxu0 0
    %4597 = vmatprep.subr.bf16.mxu0 0
    %4598 = vmatpush1.bf16.msra.mxu0 0
    %4599 = vmatprep.subr.bf16.mxu0 0
    %4600 = vmatpush1.bf16.msra.mxu0 0
    %4601 = vmatprep.subr.bf16.mxu0 0
    %4602 = vmatpush1.bf16.msra.mxu0 0
    %4603 = vmatprep.subr.bf16.mxu0 0
    %4604 = vmatpush1.bf16.msra.mxu0 0
    %4605 = vmatprep.subr.bf16.mxu0 0
    %4606 = vmatpush1.bf16.msra.mxu0 0
    %4607 = vmatprep.subr.bf16.mxu0 0
    %4608 = vmatpush1.bf16.msra.mxu0 0
    %4609 = vmatprep.mubr.bf16.mxu0 0
    %4610 = vmatmul.mubr.bf16.gmra.mrb[0].mxu0 %v4523
    %v4611 = vpop.f32.mrb[0].mxu0
    %v4612 = vadd.f32 %v4563, %v4611
    %v4613 = vpop.f32.mrb[0].mxu0
    %v4614 = vpop.f32.mrb[0].mxu0
    %v4615 = vadd.f32 %v4566, %v4614
    %v4616 = vpop.f32.mrb[0].mxu0
    %4617 = vmatprep.mubr.bf16.mxu0 0
    %4618 = vmatmul.mubr.bf16.gmra.mrb[0].mxu0 %v4526
    %v4619 = vpop.f32.mrb[0].mxu0
    %v4620 = vadd.f32 %v4571, %v4619
    %v4621 = vpop.f32.mrb[0].mxu0
    %v4622 = vpop.f32.mrb[0].mxu0
    %v4623 = vadd.f32 %v4574, %v4622
    %v4624 = vpop.f32.mrb[0].mxu0
    %4625 = vdwg.mxu0
    %v4626 = vmax.f32 %v4612, 0.0
    %v4627 = vmax.f32 %v4615, 0.0
    %v4628 = vmax.f32 %v4620, 0.0
    %v4629 = vmax.f32 %v4623, 0.0
    %v4630 = vpack.c.bf16 %v4627, %v4626
    %v4631 = vpack.c.bf16 %v4629, %v4628
    %v4632 = vld [vmem:[%s45] sm:$0xf]
    %v4633 = vld [vmem:[%s45 + $0x4] sm:$0xf]
    %v4634 = vld [vmem:[%s45 + $0x8] sm:$0xf]
    %v4635 = vld [vmem:[%s45 + $0xc] sm:$0xf]
    %v4636 = vld [vmem:[%s47] sm:$0x1]
    %v4638 = vlaneseq
    %v4639 = vshrl.u32 %v4638, 7
    %v4640 = vsub.s32 0, %v4639
    %v4641 = vrot.slane %v4636, %v4640
    %v4647 = vunpack.c.l.b16 %v4632
    %v4648 = vunpack.c.l.b16 %v4633
    %v4649 = vunpack.c.l.b16 %v4634
    %v4650 = vunpack.c.l.b16 %v4635
    %v4651 = vpack.c.b16 %v4648, %v4647
    %v4652 = vpack.c.b16 %v4650, %v4649
    %v4656 = vsel %vm1384, %v4630, 0
    %v4659 = vsel %vm1384, %v4631, 0
    %4661 = vmatprep.subr.bf16.mxu0 0
    %4662 = vmatpush1.bf16.msra.mxu0 %v4651
    %4663 = vmatprep.subr.bf16.mxu0 0
    %4664 = vmatpush1.bf16.msra.mxu0 %v4652
    %4665 = vmatprep.subr.bf16.mxu0 0
    %4666 = vmatpush1.bf16.msra.mxu0 0
    %4667 = vmatprep.subr.bf16.mxu0 0
    %4668 = vmatpush1.bf16.msra.mxu0 0
    %4669 = vmatprep.subr.bf16.mxu0 0
    %4670 = vmatpush1.bf16.msra.mxu0 0
    %4671 = vmatprep.subr.bf16.mxu0 0
    %4672 = vmatpush1.bf16.msra.mxu0 0
    %4673 = vmatprep.subr.bf16.mxu0 0
    %4674 = vmatpush1.bf16.msra.mxu0 0
    %4675 = vmatprep.subr.bf16.mxu0 0
    %4676 = vmatpush1.bf16.msra.mxu0 0
    %4677 = vmatprep.subr.bf16.mxu0 0
    %4678 = vmatpush1.bf16.msra.mxu0 0
    %4679 = vmatprep.subr.bf16.mxu0 0
    %4680 = vmatpush1.bf16.msra.mxu0 0
    %4681 = vmatprep.subr.bf16.mxu0 0
    %4682 = vmatpush1.bf16.msra.mxu0 0
    %4683 = vmatprep.subr.bf16.mxu0 0
    %4684 = vmatpush1.bf16.msra.mxu0 0
    %4685 = vmatprep.subr.bf16.mxu0 0
    %4686 = vmatpush1.bf16.msra.mxu0 0
    %4687 = vmatprep.subr.bf16.mxu0 0
    %4688 = vmatpush1.bf16.msra.mxu0 0
    %4689 = vmatprep.subr.bf16.mxu0 0
    %4690 = vmatpush1.bf16.msra.mxu0 0
    %4691 = vmatprep.subr.bf16.mxu0 0
    %4692 = vmatpush1.bf16.msra.mxu0 0
    %4693 = vmatprep.mubr.bf16.mxu0 0
    %4694 = vmatmul.mubr.bf16.gmra.mrb[0].mxu0 %v4656
    %v4695 = vpop.f32.mrb[0].mxu0
    %v4696 = vadd.f32 %v4641, %v4695
    %v4697 = vpop.f32.mrb[0].mxu0
    %v4698 = vpop.f32.mrb[0].mxu0
    %v4699 = vadd.f32 %v4641, %v4698
    %v4700 = vpop.f32.mrb[0].mxu0
    %4701 = vmatprep.mubr.bf16.mxu0 0
    %4702 = vmatmul.mubr.bf16.gmra.mrb[0].mxu0 %v4659
    %v4703 = vpop.f32.mrb[0].mxu0
    %v4704 = vadd.f32 %v4641, %v4703
    %v4705 = vpop.f32.mrb[0].mxu0
    %v4706 = vpop.f32.mrb[0].mxu0
    %v4707 = vadd.f32 %v4641, %v4706
    %v4708 = vpop.f32.mrb[0].mxu0
    %4709 = vdwg.mxu0
    %v4710 = vadd.f32 %v4140, %v4696
    %v4711 = vadd.f32 %v4143, %v4699
    %v4712 = vadd.f32 %v4148, %v4704
    %v4713 = vadd.f32 %v4151, %v4707
    %v4714 = vpack.c.bf16 %v4711, %v4710
    %v4715 = vpack.c.bf16 %v4713, %v4712
    %v4716 = vmax.bf16 %v4714, 0
    %v4717 = vmax.bf16 %v4715, 0
    %v4719 = vshrl.u32 %v4716, 16
    %v4721 = vrot.slane %v4719, 5
    %v4722 = vshll.u32 %v4716, 16
    %v4724 = vrot.slane %v4722, 6
    %v4725 = vor.u32 %v4721, %v4724
    %v4727 = vshrl.u32 %v4717, 16
    %v4729 = vrot.slane %v4727, 5
    %v4730 = vshll.u32 %v4717, 16
    %v4732 = vrot.slane %v4730, 6
    %v4733 = vor.u32 %v4729, %v4732
    %v4734 = vsel %vm431, %v4725, %v4733
    %v4738 = vsel %vm453, 0, %v4725
    %v4739 = vsel %vm453, %v4733, 0
    %v4740 = vmul.bf16 %v4738, %v578
    %v4741 = vmul.bf16 %v4734, %v579
    %v4742 = vmul.bf16 %v4738, %v649
    %v4743 = vmul.bf16 %v4734, %v657
    %v4744 = vmul.bf16 %v4739, %v653
    %v4745 = vmul.bf16 %v4738, %v726
    %v4746 = vmul.bf16 %v4734, %v728
    %v4747 = vmul.bf16 %v4739, %v727
    %v4748 = vmul.bf16 %v4738, %v790
    %v4749 = vmul.bf16 %v4734, %v792
    %v4750 = vmul.bf16 %v4739, %v791
    %v4751 = vmul.bf16 %v4738, %v853
    %v4752 = vmul.bf16 %v4734, %v855
    %v4753 = vmul.bf16 %v4739, %v854
    %v4754 = vmul.bf16 %v4738, %v924
    %v4755 = vmul.bf16 %v4734, %v925
    %v4756 = vmul.bf16 %v4739, %v926
    %v4757 = vmul.bf16 %v4738, %v995
    %v4758 = vmul.bf16 %v4734, %v1004
    %v4759 = vmul.bf16 %v4739, %v1003
    %v4760 = vmul.bf16 %v4738, %v1069
    %v4761 = vmul.bf16 %v4734, %v1071
    %v4762 = vmul.bf16 %v4739, %v1070
    %v4764 = vshrl.u32 %v4742, 16
    %v4766 = vshll.u32 %v4742, 16
    %v4768 = vrot.slane %v4766, 1
    %v4769 = vor.u32 %v4764, %v4768
    %v4771 = vshll.u32 %v4743, 16
    %v4773 = vrot.slane %v4771, 1
    %v4774 = vsel %vm1078, %v4769, %v4773
    %v4775 = vshrl.u32 %v4743, 16
    %v4777 = vor.u32 %v4775, %v4773
    %v4779 = vshll.u32 %v4744, 16
    %v4781 = vrot.slane %v4779, 1
    %v4782 = vsel %vm1078, %v4777, %v4781
    %4783 = vrot.lane.b32.xlu0 %v4774, 32
    %v4784 = vpop.permute.xlu0 %4783
    %4785 = vrot.lane.b32.xlu0 %v4782, 32
    %v4786 = vpop.permute.xlu0 %4785
    %v4790 = vrot.slane %v4745, 1
    %v4791 = vrot.slane %v4746, 1
    %v4792 = vsel %vm1130, %v4790, %v4791
    %v4793 = vrot.slane %v4747, 1
    %v4794 = vsel %vm1130, %v4791, %v4793
    %4795 = vrot.lane.b32.xlu0 %v4792, 64
    %v4796 = vpop.permute.xlu0 %4795
    %4797 = vrot.lane.b32.xlu0 %v4794, 64
    %v4798 = vpop.permute.xlu0 %4797
    %v4802 = vrot.slane %v4748, 2
    %v4803 = vrot.slane %v4749, 2
    %v4804 = vsel %vm1143, %v4802, %v4803
    %v4805 = vrot.slane %v4750, 2
    %v4806 = vsel %vm1143, %v4803, %v4805
    %4807 = vrot.lane.b32.xlu0 %v4804, 96
    %v4808 = vpop.permute.xlu0 %4807
    %4809 = vrot.lane.b32.xlu0 %v4806, 96
    %v4810 = vpop.permute.xlu0 %4809
    %v4812 = vshrl.u32 %v4738, 16
    %v4814 = vrot.slane %v4812, 2
    %v4815 = vshll.u32 %v4738, 16
    %v4817 = vrot.slane %v4815, 3
    %v4818 = vor.u32 %v4814, %v4817
    %v4820 = vshrl.u32 %v4734, 16
    %v4822 = vrot.slane %v4820, 2
    %v4823 = vshll.u32 %v4734, 16
    %v4825 = vrot.slane %v4823, 3
    %v4826 = vor.u32 %v4822, %v4825
    %v4827 = vsel %vm1149, %v4818, %v4826
    %v4829 = vshrl.u32 %v4739, 16
    %v4831 = vrot.slane %v4829, 2
    %v4832 = vshll.u32 %v4739, 16
    %v4834 = vrot.slane %v4832, 3
    %v4835 = vor.u32 %v4831, %v4834
    %v4836 = vsel %vm1149, %v4826, %v4835
    %v4840 = vrot.slane %v4751, 3
    %v4841 = vrot.slane %v4752, 3
    %v4842 = vsel %vm1068, %v4840, %v4841
    %v4843 = vrot.slane %v4753, 3
    %v4844 = vsel %vm1068, %v4841, %v4843
    %4845 = vrot.lane.b32.xlu0 %v4842, 32
    %v4846 = vpop.permute.xlu0 %4845
    %4847 = vrot.lane.b32.xlu0 %v4844, 32
    %v4848 = vpop.permute.xlu0 %4847
    %v4852 = vrot.slane %v4754, 4
    %v4853 = vrot.slane %v4755, 4
    %v4854 = vsel %vm1305, %v4852, %v4853
    %v4855 = vrot.slane %v4756, 4
    %v4856 = vsel %vm1305, %v4853, %v4855
    %4857 = vrot.lane.b32.xlu0 %v4854, 64
    %v4858 = vpop.permute.xlu0 %4857
    %4859 = vrot.lane.b32.xlu0 %v4856, 64
    %v4860 = vpop.permute.xlu0 %4859
    %v4862 = vshrl.u32 %v4757, 16
    %v4864 = vrot.slane %v4862, 4
    %v4865 = vshll.u32 %v4757, 16
    %v4867 = vrot.slane %v4865, 5
    %v4868 = vor.u32 %v4864, %v4867
    %v4870 = vshrl.u32 %v4758, 16
    %v4872 = vrot.slane %v4870, 4
    %v4873 = vshll.u32 %v4758, 16
    %v4875 = vrot.slane %v4873, 5
    %v4876 = vor.u32 %v4872, %v4875
    %v4877 = vsel %vm1311, %v4868, %v4876
    %v4879 = vshrl.u32 %v4759, 16
    %v4881 = vrot.slane %v4879, 4
    %v4882 = vshll.u32 %v4759, 16
    %v4884 = vrot.slane %v4882, 5
    %v4885 = vor.u32 %v4881, %v4884
    %v4886 = vsel %vm1311, %v4876, %v4885
    %4887 = vrot.lane.b32.xlu0 %v4877, 96
    %v4888 = vpop.permute.xlu0 %4887
    %4889 = vrot.lane.b32.xlu0 %v4886, 96
    %v4890 = vpop.permute.xlu0 %4889
    %v4894 = vrot.slane %v4760, 5
    %v4895 = vrot.slane %v4761, 5
    %v4896 = vsel %vm452, %v4894, %v4895
    %v4897 = vrot.slane %v4762, 5
    %v4898 = vsel %vm452, %v4895, %v4897
    %v4901 = vsel %vm1384, %v4740, %v4784
    %v4904 = vsel %vm1384, %v4741, %v4786
    %v4906 = vsel %vm1391, %v4901, %v4796
    %v4908 = vsel %vm1391, %v4904, %v4798
    %v4910 = vsel %vm1396, %v4906, %v4808
    %v4913 = vsel %vm1396, %v4908, %v4810
    %v4917 = vsel %vm1384, %v4827, %v4846
    %v4920 = vsel %vm1384, %v4836, %v4848
    %v4922 = vsel %vm1391, %v4917, %v4858
    %v4924 = vsel %vm1391, %v4920, %v4860
    %v4926 = vsel %vm1396, %v4922, %v4888
    %v4929 = vsel %vm1396, %v4924, %v4890
    %v4931 = vld [vmem:[%s49] sm:$0xf]
    %v4932 = vld [vmem:[%s49 + $0x4] sm:$0xf]
    %v4933 = vld [vmem:[%s49 + $0x8] sm:$0xf]
    %v4934 = vld [vmem:[%s49 + $0xc] sm:$0xf]
    %v4935 = vld [vmem:[%s49 + $0x10] sm:$0xf]
    %v4936 = vld [vmem:[%s49 + $0x14] sm:$0xf]
    %v4937 = vld [vmem:[%s49 + $0x18] sm:$0xf]
    %v4938 = vld [vmem:[%s49 + $0x1c] sm:$0xf]
    %v4939 = vld [vmem:[%s49 + $0x20] sm:$0xf]
    %v4940 = vld [vmem:[%s49 + $0x24] sm:$0xf]
    %v4941 = vld [vmem:[%s49 + $0x28] sm:$0xf]
    %v4942 = vld [vmem:[%s49 + $0x2c] sm:$0xf]
    %v4943 = vld [vmem:[%s49 + $0x30] sm:$0xf]
    %v4944 = vld [vmem:[%s49 + $0x34] sm:$0xf]
    %v4945 = vld [vmem:[%s49 + $0x38] sm:$0xf]
    %v4946 = vld [vmem:[%s49 + $0x3c] sm:$0xf]
    %v4947 = vld [vmem:[%s49 + $0x40] sm:$0xf]
    %v4948 = vld [vmem:[%s49 + $0x44] sm:$0xf]
    %v4949 = vld [vmem:[%s49 + $0x48] sm:$0xf]
    %v4950 = vld [vmem:[%s49 + $0x4c] sm:$0xf]
    %v4951 = vld [vmem:[%s49 + $0x50] sm:$0xf]
    %v4952 = vld [vmem:[%s49 + $0x54] sm:$0xf]
    %v4953 = vld [vmem:[%s49 + $0x58] sm:$0xf]
    %v4954 = vld [vmem:[%s49 + $0x5c] sm:$0xf]
    %v4955 = vld [vmem:[%s49 + $0x60] sm:$0xf]
    %v4956 = vld [vmem:[%s49 + $0x64] sm:$0xf]
    %v4957 = vld [vmem:[%s49 + $0x68] sm:$0xf]
    %v4958 = vld [vmem:[%s49 + $0x6c] sm:$0xf]
    %v4959 = vld [vmem:[%s49 + $0x70] sm:$0xf]
    %v4960 = vld [vmem:[%s49 + $0x74] sm:$0xf]
    %v4961 = vld [vmem:[%s49 + $0x78] sm:$0xf]
    %v4962 = vld [vmem:[%s49 + $0x7c] sm:$0xf]
    %v4963 = vld [vmem:[%s49 + $0x80] sm:$0xf]
    %v4964 = vld [vmem:[%s49 + $0x84] sm:$0xf]
    %v4965 = vld [vmem:[%s49 + $0x88] sm:$0xf]
    %v4966 = vld [vmem:[%s49 + $0x8c] sm:$0xf]
    %v4967 = vld [vmem:[%s51] sm:$0x1]
    %v4969 = vlaneseq
    %v4970 = vshrl.u32 %v4969, 7
    %v4971 = vsub.s32 0, %v4970
    %v4972 = vrot.slane %v4967, %v4971
    %v5010 = vunpack.c.l.b16 %v4931
    %v5011 = vunpack.c.l.b16 %v4932
    %v5012 = vunpack.c.l.b16 %v4933
    %v5013 = vunpack.c.l.b16 %v4934
    %v5014 = vunpack.c.l.b16 %v4935
    %v5015 = vunpack.c.l.b16 %v4936
    %v5016 = vunpack.c.l.b16 %v4937
    %v5017 = vunpack.c.l.b16 %v4938
    %v5018 = vunpack.c.l.b16 %v4939
    %v5019 = vunpack.c.l.b16 %v4940
    %v5020 = vunpack.c.l.b16 %v4941
    %v5021 = vunpack.c.l.b16 %v4942
    %v5022 = vunpack.c.l.b16 %v4943
    %v5023 = vunpack.c.l.b16 %v4944
    %v5024 = vunpack.c.l.b16 %v4945
    %v5025 = vunpack.c.l.b16 %v4946
    %v5026 = vunpack.c.l.b16 %v4947
    %v5027 = vunpack.c.l.b16 %v4948
    %v5028 = vunpack.c.l.b16 %v4949
    %v5029 = vunpack.c.l.b16 %v4950
    %v5030 = vunpack.c.l.b16 %v4951
    %v5031 = vunpack.c.l.b16 %v4952
    %v5032 = vunpack.c.l.b16 %v4953
    %v5033 = vunpack.c.l.b16 %v4954
    %v5034 = vunpack.c.l.b16 %v4955
    %v5035 = vunpack.c.l.b16 %v4956
    %v5036 = vunpack.c.l.b16 %v4957
    %v5037 = vunpack.c.l.b16 %v4958
    %v5038 = vunpack.c.l.b16 %v4959
    %v5039 = vunpack.c.l.b16 %v4960
    %v5040 = vunpack.c.l.b16 %v4961
    %v5041 = vunpack.c.l.b16 %v4962
    %v5042 = vunpack.c.l.b16 %v4963
    %v5043 = vunpack.c.l.b16 %v4964
    %v5044 = vunpack.c.l.b16 %v4965
    %v5045 = vunpack.c.l.b16 %v4966
    %v5046 = vpack.c.b16 %v5011, %v5010
    %v5047 = vpack.c.b16 %v5013, %v5012
    %v5048 = vpack.c.b16 %v5015, %v5014
    %v5049 = vpack.c.b16 %v5017, %v5016
    %v5050 = vpack.c.b16 %v5019, %v5018
    %v5051 = vpack.c.b16 %v5021, %v5020
    %v5052 = vpack.c.b16 %v5023, %v5022
    %v5053 = vpack.c.b16 %v5025, %v5024
    %v5054 = vpack.c.b16 %v5027, %v5026
    %v5055 = vpack.c.b16 %v5029, %v5028
    %v5056 = vpack.c.b16 %v5031, %v5030
    %v5057 = vpack.c.b16 %v5033, %v5032
    %v5058 = vpack.c.b16 %v5035, %v5034
    %v5059 = vpack.c.b16 %v5037, %v5036
    %v5060 = vpack.c.b16 %v5039, %v5038
    %v5061 = vpack.c.b16 %v5041, %v5040
    %v5062 = vpack.c.b16 %v5043, %v5042
    %v5063 = vpack.c.b16 %v5045, %v5044
    %v5083 = vsel %vm1384, %v4896, 0
    %v5086 = vsel %vm1384, %v4898, 0
    %5088 = vmatprep.subr.bf16.mxu0 0
    %5089 = vmatpush1.bf16.msra.mxu0 %v5046
    %5090 = vmatprep.subr.bf16.mxu0 0
    %5091 = vmatpush1.bf16.msra.mxu0 %v5047
    %5092 = vmatprep.subr.bf16.mxu0 0
    %5093 = vmatpush1.bf16.msra.mxu0 %v5048
    %5094 = vmatprep.subr.bf16.mxu0 0
    %5095 = vmatpush1.bf16.msra.mxu0 %v5049
    %5096 = vmatprep.subr.bf16.mxu0 0
    %5097 = vmatpush1.bf16.msra.mxu0 %v5050
    %5098 = vmatprep.subr.bf16.mxu0 0
    %5099 = vmatpush1.bf16.msra.mxu0 %v5051
    %5100 = vmatprep.subr.bf16.mxu0 0
    %5101 = vmatpush1.bf16.msra.mxu0 %v5052
    %5102 = vmatprep.subr.bf16.mxu0 0
    %5103 = vmatpush1.bf16.msra.mxu0 %v5053
    %5104 = vmatprep.subr.bf16.mxu0 0
    %5105 = vmatpush1.bf16.msra.mxu0 %v5054
    %5106 = vmatprep.subr.bf16.mxu0 0
    %5107 = vmatpush1.bf16.msra.mxu0 %v5055
    %5108 = vmatprep.subr.bf16.mxu0 0
    %5109 = vmatpush1.bf16.msra.mxu0 %v5056
    %5110 = vmatprep.subr.bf16.mxu0 0
    %5111 = vmatpush1.bf16.msra.mxu0 %v5057
    %5112 = vmatprep.subr.bf16.mxu0 0
    %5113 = vmatpush1.bf16.msra.mxu0 %v5058
    %5114 = vmatprep.subr.bf16.mxu0 0
    %5115 = vmatpush1.bf16.msra.mxu0 %v5059
    %5116 = vmatprep.subr.bf16.mxu0 0
    %5117 = vmatpush1.bf16.msra.mxu0 %v5060
    %5118 = vmatprep.subr.bf16.mxu0 0
    %5119 = vmatpush1.bf16.msra.mxu0 %v5061
    %5120 = vmatprep.mubr.bf16.mxu0 %v4926
    %5121 = vmatmul.mubr.bf16.gmra.mrb[0].mxu0 %v4910
    %v5122 = vpop.f32.mrb[0].mxu0
    %v5123 = vadd.f32 %v4972, %v5122
    %v5124 = vpop.f32.mrb[0].mxu0
    %v5125 = vpop.f32.mrb[0].mxu0
    %v5126 = vadd.f32 %v4972, %v5125
    %v5127 = vpop.f32.mrb[0].mxu0
    %5128 = vmatprep.mubr.bf16.mxu0 %v4929
    %5129 = vmatmul.mubr.bf16.gmra.mrb[0].mxu0 %v4913
    %v5130 = vpop.f32.mrb[0].mxu0
    %v5131 = vadd.f32 %v4972, %v5130
    %v5132 = vpop.f32.mrb[0].mxu0
    %v5133 = vpop.f32.mrb[0].mxu0
    %v5134 = vadd.f32 %v4972, %v5133
    %v5135 = vpop.f32.mrb[0].mxu0
    %5136 = vdwg.mxu0
    %5137 = vmatprep.subr.bf16.mxu0 0
    %5138 = vmatpush1.bf16.msra.mxu0 %v5062
    %5139 = vmatprep.subr.bf16.mxu0 0
    %5140 = vmatpush1.bf16.msra.mxu0 %v5063
    %5141 = vmatprep.subr.bf16.mxu0 0
    %5142 = vmatpush1.bf16.msra.mxu0 0
    %5143 = vmatprep.subr.bf16.mxu0 0
    %5144 = vmatpush1.bf16.msra.mxu0 0
    %5145 = vmatprep.subr.bf16.mxu0 0
    %5146 = vmatpush1.bf16.msra.mxu0 0
    %5147 = vmatprep.subr.bf16.mxu0 0
    %5148 = vmatpush1.bf16.msra.mxu0 0
    %5149 = vmatprep.subr.bf16.mxu0 0
    %5150 = vmatpush1.bf16.msra.mxu0 0
    %5151 = vmatprep.subr.bf16.mxu0 0
    %5152 = vmatpush1.bf16.msra.mxu0 0
    %5153 = vmatprep.subr.bf16.mxu0 0
    %5154 = vmatpush1.bf16.msra.mxu0 0
    %5155 = vmatprep.subr.bf16.mxu0 0
    %5156 = vmatpush1.bf16.msra.mxu0 0
    %5157 = vmatprep.subr.bf16.mxu0 0
    %5158 = vmatpush1.bf16.msra.mxu0 0
    %5159 = vmatprep.subr.bf16.mxu0 0
    %5160 = vmatpush1.bf16.msra.mxu0 0
    %5161 = vmatprep.subr.bf16.mxu0 0
    %5162 = vmatpush1.bf16.msra.mxu0 0
    %5163 = vmatprep.subr.bf16.mxu0 0
    %5164 = vmatpush1.bf16.msra.mxu0 0
    %5165 = vmatprep.subr.bf16.mxu0 0
    %5166 = vmatpush1.bf16.msra.mxu0 0
    %5167 = vmatprep.subr.bf16.mxu0 0
    %5168 = vmatpush1.bf16.msra.mxu0 0
    %5169 = vmatprep.mubr.bf16.mxu0 0
    %5170 = vmatmul.mubr.bf16.gmra.mrb[0].mxu0 %v5083
    %v5171 = vpop.f32.mrb[0].mxu0
    %v5172 = vadd.f32 %v5123, %v5171
    %v5173 = vpop.f32.mrb[0].mxu0
    %v5174 = vpop.f32.mrb[0].mxu0
    %v5175 = vadd.f32 %v5126, %v5174
    %v5176 = vpop.f32.mrb[0].mxu0
    %5177 = vmatprep.mubr.bf16.mxu0 0
    %5178 = vmatmul.mubr.bf16.gmra.mrb[0].mxu0 %v5086
    %v5179 = vpop.f32.mrb[0].mxu0
    %v5180 = vadd.f32 %v5131, %v5179
    %v5181 = vpop.f32.mrb[0].mxu0
    %v5182 = vpop.f32.mrb[0].mxu0
    %v5183 = vadd.f32 %v5134, %v5182
    %v5184 = vpop.f32.mrb[0].mxu0
    %5185 = vdwg.mxu0
    %v5186 = vmax.f32 %v5172, 0.0
    %v5187 = vmax.f32 %v5175, 0.0
    %v5188 = vmax.f32 %v5180, 0.0
    %v5189 = vmax.f32 %v5183, 0.0
    %v5190 = vpack.c.bf16 %v5187, %v5186
    %v5191 = vpack.c.bf16 %v5189, %v5188
    %v5192 = vld [vmem:[%s53] sm:$0xf]
    %v5193 = vld [vmem:[%s53 + $0x4] sm:$0xf]
    %v5194 = vld [vmem:[%s53 + $0x8] sm:$0xf]
    %v5195 = vld [vmem:[%s53 + $0xc] sm:$0xf]
    %v5196 = vld [vmem:[%s55] sm:$0x1]
    %v5198 = vlaneseq
    %v5199 = vshrl.u32 %v5198, 7
    %v5200 = vsub.s32 0, %v5199
    %v5201 = vrot.slane %v5196, %v5200
    %v5207 = vunpack.c.l.b16 %v5192
    %v5208 = vunpack.c.l.b16 %v5193
    %v5209 = vunpack.c.l.b16 %v5194
    %v5210 = vunpack.c.l.b16 %v5195
    %v5211 = vpack.c.b16 %v5208, %v5207
    %v5212 = vpack.c.b16 %v5210, %v5209
    %v5216 = vsel %vm1384, %v5190, 0
    %v5219 = vsel %vm1384, %v5191, 0
    %5221 = vmatprep.subr.bf16.mxu0 0
    %5222 = vmatpush1.bf16.msra.mxu0 %v5211
    %5223 = vmatprep.subr.bf16.mxu0 0
    %5224 = vmatpush1.bf16.msra.mxu0 %v5212
    %5225 = vmatprep.subr.bf16.mxu0 0
    %5226 = vmatpush1.bf16.msra.mxu0 0
    %5227 = vmatprep.subr.bf16.mxu0 0
    %5228 = vmatpush1.bf16.msra.mxu0 0
    %5229 = vmatprep.subr.bf16.mxu0 0
    %5230 = vmatpush1.bf16.msra.mxu0 0
    %5231 = vmatprep.subr.bf16.mxu0 0
    %5232 = vmatpush1.bf16.msra.mxu0 0
    %5233 = vmatprep.subr.bf16.mxu0 0
    %5234 = vmatpush1.bf16.msra.mxu0 0
    %5235 = vmatprep.subr.bf16.mxu0 0
    %5236 = vmatpush1.bf16.msra.mxu0 0
    %5237 = vmatprep.subr.bf16.mxu0 0
    %5238 = vmatpush1.bf16.msra.mxu0 0
    %5239 = vmatprep.subr.bf16.mxu0 0
    %5240 = vmatpush1.bf16.msra.mxu0 0
    %5241 = vmatprep.subr.bf16.mxu0 0
    %5242 = vmatpush1.bf16.msra.mxu0 0
    %5243 = vmatprep.subr.bf16.mxu0 0
    %5244 = vmatpush1.bf16.msra.mxu0 0
    %5245 = vmatprep.subr.bf16.mxu0 0
    %5246 = vmatpush1.bf16.msra.mxu0 0
    %5247 = vmatprep.subr.bf16.mxu0 0
    %5248 = vmatpush1.bf16.msra.mxu0 0
    %5249 = vmatprep.subr.bf16.mxu0 0
    %5250 = vmatpush1.bf16.msra.mxu0 0
    %5251 = vmatprep.subr.bf16.mxu0 0
    %5252 = vmatpush1.bf16.msra.mxu0 0
    %5253 = vmatprep.mubr.bf16.mxu0 0
    %5254 = vmatmul.mubr.bf16.gmra.mrb[0].mxu0 %v5216
    %v5255 = vpop.f32.mrb[0].mxu0
    %v5256 = vadd.f32 %v5201, %v5255
    %v5257 = vpop.f32.mrb[0].mxu0
    %v5258 = vpop.f32.mrb[0].mxu0
    %v5259 = vadd.f32 %v5201, %v5258
    %v5260 = vpop.f32.mrb[0].mxu0
    %5261 = vmatprep.mubr.bf16.mxu0 0
    %5262 = vmatmul.mubr.bf16.gmra.mrb[0].mxu0 %v5219
    %v5263 = vpop.f32.mrb[0].mxu0
    %v5264 = vadd.f32 %v5201, %v5263
    %v5265 = vpop.f32.mrb[0].mxu0
    %v5266 = vpop.f32.mrb[0].mxu0
    %v5267 = vadd.f32 %v5201, %v5266
    %v5268 = vpop.f32.mrb[0].mxu0
    %5269 = vdwg.mxu0
    %v5270 = vadd.f32 %v4710, %v5256
    %v5271 = vadd.f32 %v4711, %v5259
    %v5272 = vadd.f32 %v4712, %v5264
    %v5273 = vadd.f32 %v4713, %v5267
    %v5274 = vpack.c.bf16 %v5271, %v5270
    %v5275 = vpack.c.bf16 %v5273, %v5272
    %v5277 = vshrl.u32 %v5274, 16
    %v5279 = vrot.slane %v5277, 5
    %v5280 = vshll.u32 %v5274, 16
    %v5282 = vrot.slane %v5280, 6
    %v5283 = vor.u32 %v5279, %v5282
    %v5285 = vshrl.u32 %v5275, 16
    %v5287 = vrot.slane %v5285, 5
    %v5288 = vshll.u32 %v5275, 16
    %v5290 = vrot.slane %v5288, 6
    %v5291 = vor.u32 %v5287, %v5290
    %v5292 = vsel %vm431, %v5283, %v5291
    %v5296 = vsel %vm453, 0, %v5283
    %v5297 = vsel %vm453, %v5291, 0
    %v5298 = vmul.bf16 %v5296, %v578
    %v5299 = vmul.bf16 %v5292, %v579
    %v5300 = vmul.bf16 %v5296, %v649
    %v5301 = vmul.bf16 %v5292, %v657
    %v5302 = vmul.bf16 %v5297, %v653
    %v5303 = vmul.bf16 %v5296, %v726
    %v5304 = vmul.bf16 %v5292, %v728
    %v5305 = vmul.bf16 %v5297, %v727
    %v5306 = vmul.bf16 %v5296, %v790
    %v5307 = vmul.bf16 %v5292, %v792
    %v5308 = vmul.bf16 %v5297, %v791
    %v5309 = vmul.bf16 %v5296, %v853
    %v5310 = vmul.bf16 %v5292, %v855
    %v5311 = vmul.bf16 %v5297, %v854
    %v5312 = vmul.bf16 %v5296, %v924
    %v5313 = vmul.bf16 %v5292, %v925
    %v5314 = vmul.bf16 %v5297, %v926
    %v5315 = vmul.bf16 %v5296, %v995
    %v5316 = vmul.bf16 %v5292, %v1004
    %v5317 = vmul.bf16 %v5297, %v1003
    %v5318 = vmul.bf16 %v5296, %v1069
    %v5319 = vmul.bf16 %v5292, %v1071
    %v5320 = vmul.bf16 %v5297, %v1070
    %v5322 = vshrl.u32 %v5300, 16
    %v5324 = vshll.u32 %v5300, 16
    %v5326 = vrot.slane %v5324, 1
    %v5327 = vor.u32 %v5322, %v5326
    %v5329 = vshll.u32 %v5301, 16
    %v5331 = vrot.slane %v5329, 1
    %v5332 = vsel %vm1078, %v5327, %v5331
    %v5333 = vshrl.u32 %v5301, 16
    %v5335 = vor.u32 %v5333, %v5331
    %v5337 = vshll.u32 %v5302, 16
    %v5339 = vrot.slane %v5337, 1
    %v5340 = vsel %vm1078, %v5335, %v5339
    %5341 = vrot.lane.b32.xlu0 %v5332, 32
    %v5342 = vpop.permute.xlu0 %5341
    %5343 = vrot.lane.b32.xlu0 %v5340, 32
    %v5344 = vpop.permute.xlu0 %5343
    %v5348 = vrot.slane %v5303, 1
    %v5349 = vrot.slane %v5304, 1
    %v5350 = vsel %vm1130, %v5348, %v5349
    %v5351 = vrot.slane %v5305, 1
    %v5352 = vsel %vm1130, %v5349, %v5351
    %5353 = vrot.lane.b32.xlu0 %v5350, 64
    %v5354 = vpop.permute.xlu0 %5353
    %5355 = vrot.lane.b32.xlu0 %v5352, 64
    %v5356 = vpop.permute.xlu0 %5355
    %v5360 = vrot.slane %v5306, 2
    %v5361 = vrot.slane %v5307, 2
    %v5362 = vsel %vm1143, %v5360, %v5361
    %v5363 = vrot.slane %v5308, 2
    %v5364 = vsel %vm1143, %v5361, %v5363
    %5365 = vrot.lane.b32.xlu0 %v5362, 96
    %v5366 = vpop.permute.xlu0 %5365
    %5367 = vrot.lane.b32.xlu0 %v5364, 96
    %v5368 = vpop.permute.xlu0 %5367
    %v5370 = vshrl.u32 %v5296, 16
    %v5372 = vrot.slane %v5370, 2
    %v5373 = vshll.u32 %v5296, 16
    %v5375 = vrot.slane %v5373, 3
    %v5376 = vor.u32 %v5372, %v5375
    %v5378 = vshrl.u32 %v5292, 16
    %v5380 = vrot.slane %v5378, 2
    %v5381 = vshll.u32 %v5292, 16
    %v5383 = vrot.slane %v5381, 3
    %v5384 = vor.u32 %v5380, %v5383
    %v5385 = vsel %vm1149, %v5376, %v5384
    %v5387 = vshrl.u32 %v5297, 16
    %v5389 = vrot.slane %v5387, 2
    %v5390 = vshll.u32 %v5297, 16
    %v5392 = vrot.slane %v5390, 3
    %v5393 = vor.u32 %v5389, %v5392
    %v5394 = vsel %vm1149, %v5384, %v5393
    %v5398 = vrot.slane %v5309, 3
    %v5399 = vrot.slane %v5310, 3
    %v5400 = vsel %vm1068, %v5398, %v5399
    %v5401 = vrot.slane %v5311, 3
    %v5402 = vsel %vm1068, %v5399, %v5401
    %5403 = vrot.lane.b32.xlu0 %v5400, 32
    %v5404 = vpop.permute.xlu0 %5403
    %5405 = vrot.lane.b32.xlu0 %v5402, 32
    %v5406 = vpop.permute.xlu0 %5405
    %v5410 = vrot.slane %v5312, 4
    %v5411 = vrot.slane %v5313, 4
    %v5412 = vsel %vm1305, %v5410, %v5411
    %v5413 = vrot.slane %v5314, 4
    %v5414 = vsel %vm1305, %v5411, %v5413
    %5415 = vrot.lane.b32.xlu0 %v5412, 64
    %v5416 = vpop.permute.xlu0 %5415
    %5417 = vrot.lane.b32.xlu0 %v5414, 64
    %v5418 = vpop.permute.xlu0 %5417
    %v5420 = vshrl.u32 %v5315, 16
    %v5422 = vrot.slane %v5420, 4
    %v5423 = vshll.u32 %v5315, 16
    %v5425 = vrot.slane %v5423, 5
    %v5426 = vor.u32 %v5422, %v5425
    %v5428 = vshrl.u32 %v5316, 16
    %v5430 = vrot.slane %v5428, 4
    %v5431 = vshll.u32 %v5316, 16
    %v5433 = vrot.slane %v5431, 5
    %v5434 = vor.u32 %v5430, %v5433
    %v5435 = vsel %vm1311, %v5426, %v5434
    %v5437 = vshrl.u32 %v5317, 16
    %v5439 = vrot.slane %v5437, 4
    %v5440 = vshll.u32 %v5317, 16
    %v5442 = vrot.slane %v5440, 5
    %v5443 = vor.u32 %v5439, %v5442
    %v5444 = vsel %vm1311, %v5434, %v5443
    %5445 = vrot.lane.b32.xlu0 %v5435, 96
    %v5446 = vpop.permute.xlu0 %5445
    %5447 = vrot.lane.b32.xlu0 %v5444, 96
    %v5448 = vpop.permute.xlu0 %5447
    %v5452 = vrot.slane %v5318, 5
    %v5453 = vrot.slane %v5319, 5
    %v5454 = vsel %vm452, %v5452, %v5453
    %v5455 = vrot.slane %v5320, 5
    %v5456 = vsel %vm452, %v5453, %v5455
    %v5459 = vsel %vm1384, %v5298, %v5342
    %v5462 = vsel %vm1384, %v5299, %v5344
    %v5464 = vsel %vm1391, %v5459, %v5354
    %v5466 = vsel %vm1391, %v5462, %v5356
    %v5468 = vsel %vm1396, %v5464, %v5366
    %v5471 = vsel %vm1396, %v5466, %v5368
    %v5475 = vsel %vm1384, %v5385, %v5404
    %v5478 = vsel %vm1384, %v5394, %v5406
    %v5480 = vsel %vm1391, %v5475, %v5416
    %v5482 = vsel %vm1391, %v5478, %v5418
    %v5484 = vsel %vm1396, %v5480, %v5446
    %v5487 = vsel %vm1396, %v5482, %v5448
    %v5489 = vld [vmem:[%s57] sm:$0xf]
    %v5490 = vld [vmem:[%s57 + $0x4] sm:$0xf]
    %v5491 = vld [vmem:[%s57 + $0x8] sm:$0xf]
    %v5492 = vld [vmem:[%s57 + $0xc] sm:$0xf]
    %v5493 = vld [vmem:[%s57 + $0x10] sm:$0xf]
    %v5494 = vld [vmem:[%s57 + $0x14] sm:$0xf]
    %v5495 = vld [vmem:[%s57 + $0x18] sm:$0xf]
    %v5496 = vld [vmem:[%s57 + $0x1c] sm:$0xf]
    %v5497 = vld [vmem:[%s57 + $0x20] sm:$0xf]
    %v5498 = vld [vmem:[%s57 + $0x24] sm:$0xf]
    %v5499 = vld [vmem:[%s57 + $0x28] sm:$0xf]
    %v5500 = vld [vmem:[%s57 + $0x2c] sm:$0xf]
    %v5501 = vld [vmem:[%s57 + $0x30] sm:$0xf]
    %v5502 = vld [vmem:[%s57 + $0x34] sm:$0xf]
    %v5503 = vld [vmem:[%s57 + $0x38] sm:$0xf]
    %v5504 = vld [vmem:[%s57 + $0x3c] sm:$0xf]
    %v5505 = vld [vmem:[%s57 + $0x40] sm:$0xf]
    %v5506 = vld [vmem:[%s57 + $0x44] sm:$0xf]
    %v5507 = vld [vmem:[%s57 + $0x48] sm:$0xf]
    %v5508 = vld [vmem:[%s57 + $0x4c] sm:$0xf]
    %v5509 = vld [vmem:[%s57 + $0x50] sm:$0xf]
    %v5510 = vld [vmem:[%s57 + $0x54] sm:$0xf]
    %v5511 = vld [vmem:[%s57 + $0x58] sm:$0xf]
    %v5512 = vld [vmem:[%s57 + $0x5c] sm:$0xf]
    %v5513 = vld [vmem:[%s57 + $0x60] sm:$0xf]
    %v5514 = vld [vmem:[%s57 + $0x64] sm:$0xf]
    %v5515 = vld [vmem:[%s57 + $0x68] sm:$0xf]
    %v5516 = vld [vmem:[%s57 + $0x6c] sm:$0xf]
    %v5517 = vld [vmem:[%s57 + $0x70] sm:$0xf]
    %v5518 = vld [vmem:[%s57 + $0x74] sm:$0xf]
    %v5519 = vld [vmem:[%s57 + $0x78] sm:$0xf]
    %v5520 = vld [vmem:[%s57 + $0x7c] sm:$0xf]
    %v5521 = vld [vmem:[%s57 + $0x80] sm:$0xf]
    %v5522 = vld [vmem:[%s57 + $0x84] sm:$0xf]
    %v5523 = vld [vmem:[%s57 + $0x88] sm:$0xf]
    %v5524 = vld [vmem:[%s57 + $0x8c] sm:$0xf]
    %v5525 = vld [vmem:[%s59] sm:$0x1]
    %v5527 = vlaneseq
    %v5528 = vshrl.u32 %v5527, 7
    %v5529 = vsub.s32 0, %v5528
    %v5530 = vrot.slane %v5525, %v5529
    %v5568 = vunpack.c.l.b16 %v5489
    %v5569 = vunpack.c.l.b16 %v5490
    %v5570 = vunpack.c.l.b16 %v5491
    %v5571 = vunpack.c.l.b16 %v5492
    %v5572 = vunpack.c.l.b16 %v5493
    %v5573 = vunpack.c.l.b16 %v5494
    %v5574 = vunpack.c.l.b16 %v5495
    %v5575 = vunpack.c.l.b16 %v5496
    %v5576 = vunpack.c.l.b16 %v5497
    %v5577 = vunpack.c.l.b16 %v5498
    %v5578 = vunpack.c.l.b16 %v5499
    %v5579 = vunpack.c.l.b16 %v5500
    %v5580 = vunpack.c.l.b16 %v5501
    %v5581 = vunpack.c.l.b16 %v5502
    %v5582 = vunpack.c.l.b16 %v5503
    %v5583 = vunpack.c.l.b16 %v5504
    %v5584 = vunpack.c.l.b16 %v5505
    %v5585 = vunpack.c.l.b16 %v5506
    %v5586 = vunpack.c.l.b16 %v5507
    %v5587 = vunpack.c.l.b16 %v5508
    %v5588 = vunpack.c.l.b16 %v5509
    %v5589 = vunpack.c.l.b16 %v5510
    %v5590 = vunpack.c.l.b16 %v5511
    %v5591 = vunpack.c.l.b16 %v5512
    %v5592 = vunpack.c.l.b16 %v5513
    %v5593 = vunpack.c.l.b16 %v5514
    %v5594 = vunpack.c.l.b16 %v5515
    %v5595 = vunpack.c.l.b16 %v5516
    %v5596 = vunpack.c.l.b16 %v5517
    %v5597 = vunpack.c.l.b16 %v5518
    %v5598 = vunpack.c.l.b16 %v5519
    %v5599 = vunpack.c.l.b16 %v5520
    %v5600 = vunpack.c.l.b16 %v5521
    %v5601 = vunpack.c.l.b16 %v5522
    %v5602 = vunpack.c.l.b16 %v5523
    %v5603 = vunpack.c.l.b16 %v5524
    %v5604 = vpack.c.b16 %v5569, %v5568
    %v5605 = vpack.c.b16 %v5571, %v5570
    %v5606 = vpack.c.b16 %v5573, %v5572
    %v5607 = vpack.c.b16 %v5575, %v5574
    %v5608 = vpack.c.b16 %v5577, %v5576
    %v5609 = vpack.c.b16 %v5579, %v5578
    %v5610 = vpack.c.b16 %v5581, %v5580
    %v5611 = vpack.c.b16 %v5583, %v5582
    %v5612 = vpack.c.b16 %v5585, %v5584
    %v5613 = vpack.c.b16 %v5587, %v5586
    %v5614 = vpack.c.b16 %v5589, %v5588
    %v5615 = vpack.c.b16 %v5591, %v5590
    %v5616 = vpack.c.b16 %v5593, %v5592
    %v5617 = vpack.c.b16 %v5595, %v5594
    %v5618 = vpack.c.b16 %v5597, %v5596
    %v5619 = vpack.c.b16 %v5599, %v5598
    %v5620 = vpack.c.b16 %v5601, %v5600
    %v5621 = vpack.c.b16 %v5603, %v5602
    %v5641 = vsel %vm1384, %v5454, 0
    %v5644 = vsel %vm1384, %v5456, 0
    %5646 = vmatprep.subr.bf16.mxu0 0
    %5647 = vmatpush1.bf16.msra.mxu0 %v5604
    %5648 = vmatprep.subr.bf16.mxu0 0
    %5649 = vmatpush1.bf16.msra.mxu0 %v5605
    %5650 = vmatprep.subr.bf16.mxu0 0
    %5651 = vmatpush1.bf16.msra.mxu0 %v5606
    %5652 = vmatprep.subr.bf16.mxu0 0
    %5653 = vmatpush1.bf16.msra.mxu0 %v5607
    %5654 = vmatprep.subr.bf16.mxu0 0
    %5655 = vmatpush1.bf16.msra.mxu0 %v5608
    %5656 = vmatprep.subr.bf16.mxu0 0
    %5657 = vmatpush1.bf16.msra.mxu0 %v5609
    %5658 = vmatprep.subr.bf16.mxu0 0
    %5659 = vmatpush1.bf16.msra.mxu0 %v5610
    %5660 = vmatprep.subr.bf16.mxu0 0
    %5661 = vmatpush1.bf16.msra.mxu0 %v5611
    %5662 = vmatprep.subr.bf16.mxu0 0
    %5663 = vmatpush1.bf16.msra.mxu0 %v5612
    %5664 = vmatprep.subr.bf16.mxu0 0
    %5665 = vmatpush1.bf16.msra.mxu0 %v5613
    %5666 = vmatprep.subr.bf16.mxu0 0
    %5667 = vmatpush1.bf16.msra.mxu0 %v5614
    %5668 = vmatprep.subr.bf16.mxu0 0
    %5669 = vmatpush1.bf16.msra.mxu0 %v5615
    %5670 = vmatprep.subr.bf16.mxu0 0
    %5671 = vmatpush1.bf16.msra.mxu0 %v5616
    %5672 = vmatprep.subr.bf16.mxu0 0
    %5673 = vmatpush1.bf16.msra.mxu0 %v5617
    %5674 = vmatprep.subr.bf16.mxu0 0
    %5675 = vmatpush1.bf16.msra.mxu0 %v5618
    %5676 = vmatprep.subr.bf16.mxu0 0
    %5677 = vmatpush1.bf16.msra.mxu0 %v5619
    %5678 = vmatprep.mubr.bf16.mxu0 %v5484
    %5679 = vmatmul.mubr.bf16.gmra.mrb[0].mxu0 %v5468
    %v5680 = vpop.f32.mrb[0].mxu0
    %v5681 = vadd.f32 %v5530, %v5680
    %v5682 = vpop.f32.mrb[0].mxu0
    %v5683 = vpop.f32.mrb[0].mxu0
    %v5684 = vadd.f32 %v5530, %v5683
    %v5685 = vpop.f32.mrb[0].mxu0
    %5686 = vmatprep.mubr.bf16.mxu0 %v5487
    %5687 = vmatmul.mubr.bf16.gmra.mrb[0].mxu0 %v5471
    %v5688 = vpop.f32.mrb[0].mxu0
    %v5689 = vadd.f32 %v5530, %v5688
    %v5690 = vpop.f32.mrb[0].mxu0
    %v5691 = vpop.f32.mrb[0].mxu0
    %v5692 = vadd.f32 %v5530, %v5691
    %v5693 = vpop.f32.mrb[0].mxu0
    %5694 = vdwg.mxu0
    %5695 = vmatprep.subr.bf16.mxu0 0
    %5696 = vmatpush1.bf16.msra.mxu0 %v5620
    %5697 = vmatprep.subr.bf16.mxu0 0
    %5698 = vmatpush1.bf16.msra.mxu0 %v5621
    %5699 = vmatprep.subr.bf16.mxu0 0
    %5700 = vmatpush1.bf16.msra.mxu0 0
    %5701 = vmatprep.subr.bf16.mxu0 0
    %5702 = vmatpush1.bf16.msra.mxu0 0
    %5703 = vmatprep.subr.bf16.mxu0 0
    %5704 = vmatpush1.bf16.msra.mxu0 0
    %5705 = vmatprep.subr.bf16.mxu0 0
    %5706 = vmatpush1.bf16.msra.mxu0 0
    %5707 = vmatprep.subr.bf16.mxu0 0
    %5708 = vmatpush1.bf16.msra.mxu0 0
    %5709 = vmatprep.subr.bf16.mxu0 0
    %5710 = vmatpush1.bf16.msra.mxu0 0
    %5711 = vmatprep.subr.bf16.mxu0 0
    %5712 = vmatpush1.bf16.msra.mxu0 0
    %5713 = vmatprep.subr.bf16.mxu0 0
    %5714 = vmatpush1.bf16.msra.mxu0 0
    %5715 = vmatprep.subr.bf16.mxu0 0
    %5716 = vmatpush1.bf16.msra.mxu0 0
    %5717 = vmatprep.subr.bf16.mxu0 0
    %5718 = vmatpush1.bf16.msra.mxu0 0
    %5719 = vmatprep.subr.bf16.mxu0 0
    %5720 = vmatpush1.bf16.msra.mxu0 0
    %5721 = vmatprep.subr.bf16.mxu0 0
    %5722 = vmatpush1.bf16.msra.mxu0 0
    %5723 = vmatprep.subr.bf16.mxu0 0
    %5724 = vmatpush1.bf16.msra.mxu0 0
    %5725 = vmatprep.subr.bf16.mxu0 0
    %5726 = vmatpush1.bf16.msra.mxu0 0
    %5727 = vmatprep.mubr.bf16.mxu0 0
    %5728 = vmatmul.mubr.bf16.gmra.mrb[0].mxu0 %v5641
    %v5729 = vpop.f32.mrb[0].mxu0
    %v5730 = vadd.f32 %v5681, %v5729
    %v5731 = vpop.f32.mrb[0].mxu0
    %v5732 = vpop.f32.mrb[0].mxu0
    %v5733 = vadd.f32 %v5684, %v5732
    %v5734 = vpop.f32.mrb[0].mxu0
    %5735 = vmatprep.mubr.bf16.mxu0 0
    %5736 = vmatmul.mubr.bf16.gmra.mrb[0].mxu0 %v5644
    %v5737 = vpop.f32.mrb[0].mxu0
    %v5738 = vadd.f32 %v5689, %v5737
    %v5739 = vpop.f32.mrb[0].mxu0
    %v5740 = vpop.f32.mrb[0].mxu0
    %v5741 = vadd.f32 %v5692, %v5740
    %v5742 = vpop.f32.mrb[0].mxu0
    %5743 = vdwg.mxu0
    %v5744 = vmax.f32 %v5730, 0.0
    %v5745 = vmax.f32 %v5733, 0.0
    %v5746 = vmax.f32 %v5738, 0.0
    %v5747 = vmax.f32 %v5741, 0.0
    %v5748 = vpack.c.bf16 %v5745, %v5744
    %v5749 = vpack.c.bf16 %v5747, %v5746
    %v5751 = vshrl.u32 %v5748, 16
    %v5753 = vrot.slane %v5751, 5
    %v5754 = vshll.u32 %v5748, 16
    %v5756 = vrot.slane %v5754, 6
    %v5757 = vor.u32 %v5753, %v5756
    %v5759 = vshrl.u32 %v5749, 16
    %v5761 = vrot.slane %v5759, 5
    %v5762 = vshll.u32 %v5749, 16
    %v5764 = vrot.slane %v5762, 6
    %v5765 = vor.u32 %v5761, %v5764
    %v5766 = vsel %vm431, %v5757, %v5765
    %v5770 = vsel %vm453, 0, %v5757
    %v5771 = vsel %vm453, %v5765, 0
    %v5772 = vmul.bf16 %v5770, %v578
    %v5773 = vmul.bf16 %v5766, %v579
    %v5774 = vmul.bf16 %v5770, %v649
    %v5775 = vmul.bf16 %v5766, %v657
    %v5776 = vmul.bf16 %v5771, %v653
    %v5777 = vmul.bf16 %v5770, %v790
    %v5778 = vmul.bf16 %v5766, %v792
    %v5779 = vmul.bf16 %v5771, %v791
    %5782 = vrot.lane.b32.xlu0 %v5772, 32
    %v5783 = vpop.permute.xlu0 %5782
    %5784 = vrot.lane.b32.xlu0 %v5773, 32
    %v5785 = vpop.permute.xlu0 %5784
    %v5787 = vshrl.u32 %v5774, 16
    %v5789 = vshll.u32 %v5774, 16
    %v5791 = vrot.slane %v5789, 1
    %v5792 = vor.u32 %v5787, %v5791
    %v5794 = vshll.u32 %v5775, 16
    %v5796 = vrot.slane %v5794, 1
    %v5797 = vsel %vm1078, %v5792, %v5796
    %v5798 = vshrl.u32 %v5775, 16
    %v5800 = vor.u32 %v5798, %v5796
    %v5802 = vshll.u32 %v5776, 16
    %v5804 = vrot.slane %v5802, 1
    %v5805 = vsel %vm1078, %v5800, %v5804
    %5806 = vrot.lane.b32.xlu0 %v5797, 96
    %v5807 = vpop.permute.xlu0 %5806
    %5808 = vrot.lane.b32.xlu0 %v5805, 96
    %v5809 = vpop.permute.xlu0 %5808
    %v5813 = vrot.slane %v5777, 2
    %v5814 = vrot.slane %v5778, 2
    %v5815 = vsel %vm1143, %v5813, %v5814
    %v5816 = vrot.slane %v5779, 2
    %v5817 = vsel %vm1143, %v5814, %v5816
    %5818 = vrot.lane.b32.xlu0 %v5815, 64
    %v5819 = vpop.permute.xlu0 %5818
    %5820 = vrot.lane.b32.xlu0 %v5817, 64
    %v5821 = vpop.permute.xlu0 %5820
    %v5823 = vshrl.u32 %v5770, 16
    %v5825 = vrot.slane %v5823, 2
    %v5826 = vshll.u32 %v5770, 16
    %v5828 = vrot.slane %v5826, 3
    %v5829 = vor.u32 %v5825, %v5828
    %v5831 = vshrl.u32 %v5766, 16
    %v5833 = vrot.slane %v5831, 2
    %v5834 = vshll.u32 %v5766, 16
    %v5836 = vrot.slane %v5834, 3
    %v5837 = vor.u32 %v5833, %v5836
    %v5838 = vsel %vm1149, %v5829, %v5837
    %v5840 = vshrl.u32 %v5771, 16
    %v5842 = vrot.slane %v5840, 2
    %v5843 = vshll.u32 %v5771, 16
    %v5845 = vrot.slane %v5843, 3
    %v5846 = vor.u32 %v5842, %v5845
    %v5847 = vsel %vm1149, %v5837, %v5846
    %5848 = vrot.lane.b32.xlu0 %v5815, 96
    %v5849 = vpop.permute.xlu0 %5848
    %5850 = vrot.lane.b32.xlu0 %v5817, 96
    %v5851 = vpop.permute.xlu0 %5850
    %5852 = vrot.lane.b32.xlu0 %v5838, 32
    %v5853 = vpop.permute.xlu0 %5852
    %5854 = vrot.lane.b32.xlu0 %v5847, 32
    %v5855 = vpop.permute.xlu0 %5854
    %v5858 = vsel %vm1384, %v5783, %v5807
    %v5861 = vsel %vm1384, %v5785, %v5809
    %v5862 = vsel %vm1391, %v5858, %v5807
    %v5863 = vsel %vm1391, %v5861, %v5809
    %v5865 = vsel %vm1396, %v5862, %v5819
    %v5868 = vsel %vm1396, %v5863, %v5821
    %v5873 = vsel %vm1391, %v5838, %v5849
    %v5875 = vsel %vm1391, %v5847, %v5851
    %v5877 = vsel %vm1396, %v5873, %v5853
    %v5880 = vsel %vm1396, %v5875, %v5855
    %v5882 = vld [vmem:[%s61] sm:$0xf]
    %v5883 = vld [vmem:[%s61 + $0x4] sm:$0xf]
    %v5884 = vld [vmem:[%s61 + $0x8] sm:$0xf]
    %v5885 = vld [vmem:[%s61 + $0xc] sm:$0xf]
    %v5886 = vld [vmem:[%s61 + $0x10] sm:$0xf]
    %v5887 = vld [vmem:[%s61 + $0x14] sm:$0xf]
    %v5888 = vld [vmem:[%s61 + $0x18] sm:$0xf]
    %v5889 = vld [vmem:[%s61 + $0x1c] sm:$0xf]
    %v5890 = vld [vmem:[%s61 + $0x20] sm:$0xf]
    %v5891 = vld [vmem:[%s61 + $0x24] sm:$0xf]
    %v5892 = vld [vmem:[%s61 + $0x28] sm:$0xf]
    %v5893 = vld [vmem:[%s61 + $0x2c] sm:$0xf]
    %v5894 = vld [vmem:[%s61 + $0x30] sm:$0xf]
    %v5895 = vld [vmem:[%s61 + $0x34] sm:$0xf]
    %v5896 = vld [vmem:[%s61 + $0x38] sm:$0xf]
    %v5897 = vld [vmem:[%s61 + $0x3c] sm:$0xf]
    %v5898 = vld [vmem:[%s61 + $0x40] sm:$0xf]
    %v5899 = vld [vmem:[%s61 + $0x44] sm:$0xf]
    %v5900 = vld [vmem:[%s61 + $0x48] sm:$0xf]
    %v5901 = vld [vmem:[%s61 + $0x4c] sm:$0xf]
    %v5902 = vld [vmem:[%s61 + $0x50] sm:$0xf]
    %v5903 = vld [vmem:[%s61 + $0x54] sm:$0xf]
    %v5904 = vld [vmem:[%s61 + $0x58] sm:$0xf]
    %v5905 = vld [vmem:[%s61 + $0x5c] sm:$0xf]
    %v5906 = vld [vmem:[%s61 + $0x60] sm:$0xf]
    %v5907 = vld [vmem:[%s61 + $0x64] sm:$0xf]
    %v5908 = vld [vmem:[%s61 + $0x68] sm:$0xf]
    %v5909 = vld [vmem:[%s61 + $0x6c] sm:$0xf]
    %v5910 = vld [vmem:[%s61 + $0x70] sm:$0xf]
    %v5911 = vld [vmem:[%s61 + $0x74] sm:$0xf]
    %v5912 = vld [vmem:[%s61 + $0x78] sm:$0xf]
    %v5913 = vld [vmem:[%s61 + $0x7c] sm:$0xf]
    %v5914 = vld [vmem:[%s61 + $0x80] sm:$0xf]
    %v5915 = vld [vmem:[%s61 + $0x84] sm:$0xf]
    %v5916 = vld [vmem:[%s61 + $0x88] sm:$0xf]
    %v5917 = vld [vmem:[%s61 + $0x8c] sm:$0xf]
    %v5918 = vld [vmem:[%s63] sm:$0x1]
    %v5920 = vlaneseq
    %v5921 = vshrl.u32 %v5920, 7
    %v5922 = vsub.s32 0, %v5921
    %v5923 = vrot.slane %v5918, %v5922
    %v5961 = vunpack.c.l.b16 %v5882
    %v5962 = vunpack.c.l.b16 %v5883
    %v5963 = vunpack.c.l.b16 %v5884
    %v5964 = vunpack.c.l.b16 %v5885
    %v5965 = vunpack.c.l.b16 %v5886
    %v5966 = vunpack.c.l.b16 %v5887
    %v5967 = vunpack.c.l.b16 %v5888
    %v5968 = vunpack.c.l.b16 %v5889
    %v5969 = vunpack.c.l.b16 %v5890
    %v5970 = vunpack.c.l.b16 %v5891
    %v5971 = vunpack.c.l.b16 %v5892
    %v5972 = vunpack.c.l.b16 %v5893
    %v5973 = vunpack.c.l.b16 %v5894
    %v5974 = vunpack.c.l.b16 %v5895
    %v5975 = vunpack.c.l.b16 %v5896
    %v5976 = vunpack.c.l.b16 %v5897
    %v5977 = vunpack.c.l.b16 %v5898
    %v5978 = vunpack.c.l.b16 %v5899
    %v5979 = vunpack.c.l.b16 %v5900
    %v5980 = vunpack.c.l.b16 %v5901
    %v5981 = vunpack.c.l.b16 %v5902
    %v5982 = vunpack.c.l.b16 %v5903
    %v5983 = vunpack.c.l.b16 %v5904
    %v5984 = vunpack.c.l.b16 %v5905
    %v5985 = vunpack.c.l.b16 %v5906
    %v5986 = vunpack.c.l.b16 %v5907
    %v5987 = vunpack.c.l.b16 %v5908
    %v5988 = vunpack.c.l.b16 %v5909
    %v5989 = vunpack.c.l.b16 %v5910
    %v5990 = vunpack.c.l.b16 %v5911
    %v5991 = vunpack.c.l.b16 %v5912
    %v5992 = vunpack.c.l.b16 %v5913
    %v5993 = vunpack.c.l.b16 %v5914
    %v5994 = vunpack.c.l.b16 %v5915
    %v5995 = vunpack.c.l.b16 %v5916
    %v5996 = vunpack.c.l.b16 %v5917
    %v5997 = vpack.c.b16 %v5962, %v5961
    %v5998 = vpack.c.b16 %v5964, %v5963
    %v5999 = vpack.c.b16 %v5966, %v5965
    %v6000 = vpack.c.b16 %v5968, %v5967
    %v6001 = vpack.c.b16 %v5970, %v5969
    %v6002 = vpack.c.b16 %v5972, %v5971
    %v6003 = vpack.c.b16 %v5974, %v5973
    %v6004 = vpack.c.b16 %v5976, %v5975
    %v6005 = vpack.c.b16 %v5978, %v5977
    %v6006 = vpack.c.b16 %v5980, %v5979
    %v6007 = vpack.c.b16 %v5982, %v5981
    %v6008 = vpack.c.b16 %v5984, %v5983
    %v6009 = vpack.c.b16 %v5986, %v5985
    %v6010 = vpack.c.b16 %v5988, %v5987
    %v6011 = vpack.c.b16 %v5990, %v5989
    %v6012 = vpack.c.b16 %v5992, %v5991
    %v6013 = vpack.c.b16 %v5994, %v5993
    %v6014 = vpack.c.b16 %v5996, %v5995
    %v6033 = vsel %vm1384, %v5853, 0
    %v6035 = vsel %vm1384, %v5855, 0
    %6037 = vmatprep.subr.bf16.mxu0 0
    %6038 = vmatpush1.bf16.msra.mxu0 %v5997
    %6039 = vmatprep.subr.bf16.mxu0 0
    %6040 = vmatpush1.bf16.msra.mxu0 %v5998
    %6041 = vmatprep.subr.bf16.mxu0 0
    %6042 = vmatpush1.bf16.msra.mxu0 %v5999
    %6043 = vmatprep.subr.bf16.mxu0 0
    %6044 = vmatpush1.bf16.msra.mxu0 %v6000
    %6045 = vmatprep.subr.bf16.mxu0 0
    %6046 = vmatpush1.bf16.msra.mxu0 %v6001
    %6047 = vmatprep.subr.bf16.mxu0 0
    %6048 = vmatpush1.bf16.msra.mxu0 %v6002
    %6049 = vmatprep.subr.bf16.mxu0 0
    %6050 = vmatpush1.bf16.msra.mxu0 %v6003
    %6051 = vmatprep.subr.bf16.mxu0 0
    %6052 = vmatpush1.bf16.msra.mxu0 %v6004
    %6053 = vmatprep.subr.bf16.mxu0 0
    %6054 = vmatpush1.bf16.msra.mxu0 %v6005
    %6055 = vmatprep.subr.bf16.mxu0 0
    %6056 = vmatpush1.bf16.msra.mxu0 %v6006
    %6057 = vmatprep.subr.bf16.mxu0 0
    %6058 = vmatpush1.bf16.msra.mxu0 %v6007
    %6059 = vmatprep.subr.bf16.mxu0 0
    %6060 = vmatpush1.bf16.msra.mxu0 %v6008
    %6061 = vmatprep.subr.bf16.mxu0 0
    %6062 = vmatpush1.bf16.msra.mxu0 %v6009
    %6063 = vmatprep.subr.bf16.mxu0 0
    %6064 = vmatpush1.bf16.msra.mxu0 %v6010
    %6065 = vmatprep.subr.bf16.mxu0 0
    %6066 = vmatpush1.bf16.msra.mxu0 %v6011
    %6067 = vmatprep.subr.bf16.mxu0 0
    %6068 = vmatpush1.bf16.msra.mxu0 %v6012
    %6069 = vmatprep.mubr.bf16.mxu0 %v5877
    %6070 = vmatmul.mubr.bf16.gmra.mrb[0].mxu0 %v5865
    %v6071 = vpop.f32.mrb[0].mxu0
    %v6072 = vadd.f32 %v5923, %v6071
    %v6073 = vpop.f32.mrb[0].mxu0
    %v6074 = vpop.f32.mrb[0].mxu0
    %v6075 = vadd.f32 %v5923, %v6074
    %v6076 = vpop.f32.mrb[0].mxu0
    %6077 = vmatprep.mubr.bf16.mxu0 %v5880
    %6078 = vmatmul.mubr.bf16.gmra.mrb[0].mxu0 %v5868
    %v6079 = vpop.f32.mrb[0].mxu0
    %v6080 = vadd.f32 %v5923, %v6079
    %v6081 = vpop.f32.mrb[0].mxu0
    %v6082 = vpop.f32.mrb[0].mxu0
    %v6083 = vadd.f32 %v5923, %v6082
    %v6084 = vpop.f32.mrb[0].mxu0
    %6085 = vdwg.mxu0
    %6086 = vmatprep.subr.bf16.mxu0 0
    %6087 = vmatpush1.bf16.msra.mxu0 %v6013
    %6088 = vmatprep.subr.bf16.mxu0 0
    %6089 = vmatpush1.bf16.msra.mxu0 %v6014
    %6090 = vmatprep.subr.bf16.mxu0 0
    %6091 = vmatpush1.bf16.msra.mxu0 0
    %6092 = vmatprep.subr.bf16.mxu0 0
    %6093 = vmatpush1.bf16.msra.mxu0 0
    %6094 = vmatprep.subr.bf16.mxu0 0
    %6095 = vmatpush1.bf16.msra.mxu0 0
    %6096 = vmatprep.subr.bf16.mxu0 0
    %6097 = vmatpush1.bf16.msra.mxu0 0
    %6098 = vmatprep.subr.bf16.mxu0 0
    %6099 = vmatpush1.bf16.msra.mxu0 0
    %6100 = vmatprep.subr.bf16.mxu0 0
    %6101 = vmatpush1.bf16.msra.mxu0 0
    %6102 = vmatprep.subr.bf16.mxu0 0
    %6103 = vmatpush1.bf16.msra.mxu0 0
    %6104 = vmatprep.subr.bf16.mxu0 0
    %6105 = vmatpush1.bf16.msra.mxu0 0
    %6106 = vmatprep.subr.bf16.mxu0 0
    %6107 = vmatpush1.bf16.msra.mxu0 0
    %6108 = vmatprep.subr.bf16.mxu0 0
    %6109 = vmatpush1.bf16.msra.mxu0 0
    %6110 = vmatprep.subr.bf16.mxu0 0
    %6111 = vmatpush1.bf16.msra.mxu0 0
    %6112 = vmatprep.subr.bf16.mxu0 0
    %6113 = vmatpush1.bf16.msra.mxu0 0
    %6114 = vmatprep.subr.bf16.mxu0 0
    %6115 = vmatpush1.bf16.msra.mxu0 0
    %6116 = vmatprep.subr.bf16.mxu0 0
    %6117 = vmatpush1.bf16.msra.mxu0 0
    %6118 = vmatprep.mubr.bf16.mxu0 0
    %6119 = vmatmul.mubr.bf16.gmra.mrb[0].mxu0 %v6033
    %v6120 = vpop.f32.mrb[0].mxu0
    %v6121 = vadd.f32 %v6072, %v6120
    %v6122 = vpop.f32.mrb[0].mxu0
    %v6123 = vpop.f32.mrb[0].mxu0
    %v6124 = vadd.f32 %v6075, %v6123
    %v6125 = vpop.f32.mrb[0].mxu0
    %6126 = vmatprep.mubr.bf16.mxu0 0
    %6127 = vmatmul.mubr.bf16.gmra.mrb[0].mxu0 %v6035
    %v6128 = vpop.f32.mrb[0].mxu0
    %v6129 = vadd.f32 %v6080, %v6128
    %v6130 = vpop.f32.mrb[0].mxu0
    %v6131 = vpop.f32.mrb[0].mxu0
    %v6132 = vadd.f32 %v6083, %v6131
    %v6133 = vpop.f32.mrb[0].mxu0
    %6134 = vdwg.mxu0
    %v6135 = vmul.bf16 %v5770, %v726
    %v6136 = vmul.bf16 %v5766, %v728
    %v6137 = vmul.bf16 %v5771, %v727
    %v6138 = vmul.bf16 %v5770, %v853
    %v6139 = vmul.bf16 %v5766, %v855
    %v6140 = vmul.bf16 %v5771, %v854
    %6144 = vrot.lane.b32.xlu0 %v5774, 64
    %v6145 = vpop.permute.xlu0 %6144
    %6146 = vrot.lane.b32.xlu0 %v5775, 64
    %v6147 = vpop.permute.xlu0 %6146
    %6148 = vrot.lane.b32.xlu0 %v5776, 64
    %v6149 = vpop.permute.xlu0 %6148
    %v6151 = vshrl.u32 %v6135, 16
    %v6153 = vshll.u32 %v6135, 16
    %v6155 = vrot.slane %v6153, 1
    %v6156 = vor.u32 %v6151, %v6155
    %v6158 = vshll.u32 %v6136, 16
    %v6160 = vrot.slane %v6158, 1
    %v6161 = vsel %vm1078, %v6156, %v6160
    %v6162 = vshrl.u32 %v6136, 16
    %v6164 = vor.u32 %v6162, %v6160
    %v6166 = vshll.u32 %v6137, 16
    %v6168 = vrot.slane %v6166, 1
    %v6169 = vsel %vm1078, %v6164, %v6168
    %v6170 = vshrl.u32 %v6137, 16
    %v6174 = vrot.slane %v5770, 2
    %v6175 = vrot.slane %v5766, 2
    %v6176 = vsel %vm1143, %v6174, %v6175
    %v6177 = vrot.slane %v5771, 2
    %v6178 = vsel %vm1143, %v6175, %v6177
    %6179 = vrot.lane.b32.xlu0 %v6176, 96
    %v6180 = vpop.permute.xlu0 %6179
    %6181 = vrot.lane.b32.xlu0 %v6178, 96
    %v6182 = vpop.permute.xlu0 %6181
    %6183 = vrot.lane.b32.xlu0 %v6177, 96
    %v6184 = vpop.permute.xlu0 %6183
    %v6186 = vshrl.u32 %v6138, 16
    %v6188 = vrot.slane %v6186, 2
    %v6189 = vshll.u32 %v6138, 16
    %v6191 = vrot.slane %v6189, 3
    %v6192 = vor.u32 %v6188, %v6191
    %v6194 = vshrl.u32 %v6139, 16
    %v6196 = vrot.slane %v6194, 2
    %v6197 = vshll.u32 %v6139, 16
    %v6199 = vrot.slane %v6197, 3
    %v6200 = vor.u32 %v6196, %v6199
    %v6201 = vsel %vm1149, %v6192, %v6200
    %v6203 = vshrl.u32 %v6140, 16
    %v6205 = vrot.slane %v6203, 2
    %v6206 = vshll.u32 %v6140, 16
    %v6208 = vrot.slane %v6206, 3
    %v6209 = vor.u32 %v6205, %v6208
    %v6210 = vsel %vm1149, %v6200, %v6209
    %6211 = vrot.lane.b32.xlu0 %v6201, 32
    %v6212 = vpop.permute.xlu0 %6211
    %6213 = vrot.lane.b32.xlu0 %v6210, 32
    %v6214 = vpop.permute.xlu0 %6213
    %6215 = vrot.lane.b32.xlu0 %v6205, 32
    %v6216 = vpop.permute.xlu0 %6215
    %6217 = vrot.lane.b32.xlu0 %v6201, 64
    %v6218 = vpop.permute.xlu0 %6217
    %6219 = vrot.lane.b32.xlu0 %v6210, 64
    %v6220 = vpop.permute.xlu0 %6219
    %6221 = vrot.lane.b32.xlu0 %v6205, 64
    %v6222 = vpop.permute.xlu0 %6221
    %v6227 = vsel %vm1391, %v6145, %v6161
    %v6229 = vsel %vm1391, %v6147, %v6169
    %v6231 = vsel %vm1391, %v6149, %v6170
    %v6233 = vsel %vm1396, %v6227, %v6180
    %v6235 = vsel %vm1396, %v6229, %v6182
    %v6237 = vsel %vm1396, %v6231, %v6184
    %v6239 = vsel %vm1384, %v6180, %v6212
    %v6241 = vsel %vm1384, %v6182, %v6214
    %v6243 = vsel %vm1384, %v6184, %v6216
    %v6245 = vsel %vm1391, %v6239, %v6176
    %v6247 = vsel %vm1391, %v6241, %v6178
    %v6249 = vsel %vm1391, %v6243, %v6177
    %v6250 = vsel %vm1396, %v6245, %v6176
    %v6251 = vsel %vm1396, %v6247, %v6178
    %v6252 = vsel %vm1396, %v6249, %v6177
    %v6253 = vshrl.u32 %v6233, 16
    %v6255 = vshll.u32 %v6233, 16
    %v6257 = vrot.slane %v6255, 1
    %v6258 = vor.u32 %v6253, %v6257
    %v6259 = vshll.u32 %v6235, 16
    %v6261 = vrot.slane %v6259, 1
    %v6262 = vsel %vm1078, %v6258, %v6261
    %v6263 = vshrl.u32 %v6250, 16
    %v6265 = vshll.u32 %v6250, 16
    %v6267 = vrot.slane %v6265, 1
    %v6268 = vor.u32 %v6263, %v6267
    %v6269 = vshll.u32 %v6251, 16
    %v6271 = vrot.slane %v6269, 1
    %v6272 = vsel %vm1078, %v6268, %v6271
    %v6274 = vshrl.u32 %v6218, 16
    %v6276 = vshll.u32 %v6218, 16
    %v6278 = vrot.slane %v6276, 1
    %v6279 = vor.u32 %v6274, %v6278
    %v6281 = vshll.u32 %v6220, 16
    %v6283 = vrot.slane %v6281, 1
    %v6284 = vsel %vm1078, %v6279, %v6283
    %v6285 = vshrl.u32 %v6235, 16
    %v6287 = vor.u32 %v6285, %v6261
    %v6288 = vshll.u32 %v6237, 16
    %v6290 = vrot.slane %v6288, 1
    %v6291 = vsel %vm1078, %v6287, %v6290
    %v6292 = vshrl.u32 %v6251, 16
    %v6294 = vor.u32 %v6292, %v6271
    %v6295 = vshll.u32 %v6252, 16
    %v6297 = vrot.slane %v6295, 1
    %v6298 = vsel %vm1078, %v6294, %v6297
    %v6299 = vshrl.u32 %v6220, 16
    %v6301 = vor.u32 %v6299, %v6283
    %v6303 = vshll.u32 %v6222, 16
    %v6305 = vrot.slane %v6303, 1
    %v6306 = vsel %vm1078, %v6301, %v6305
    %v6312 = vsel %vm1384, %v6284, 0
    %v6315 = vsel %vm1384, %v6306, 0
    %6317 = vmatprep.subr.bf16.mxu0 0
    %6318 = vmatpush1.bf16.msra.mxu0 %v5997
    %6319 = vmatprep.subr.bf16.mxu0 0
    %6320 = vmatpush1.bf16.msra.mxu0 %v5998
    %6321 = vmatprep.subr.bf16.mxu0 0
    %6322 = vmatpush1.bf16.msra.mxu0 %v5999
    %6323 = vmatprep.subr.bf16.mxu0 0
    %6324 = vmatpush1.bf16.msra.mxu0 %v6000
    %6325 = vmatprep.subr.bf16.mxu0 0
    %6326 = vmatpush1.bf16.msra.mxu0 %v6001
    %6327 = vmatprep.subr.bf16.mxu0 0
    %6328 = vmatpush1.bf16.msra.mxu0 %v6002
    %6329 = vmatprep.subr.bf16.mxu0 0
    %6330 = vmatpush1.bf16.msra.mxu0 %v6003
    %6331 = vmatprep.subr.bf16.mxu0 0
    %6332 = vmatpush1.bf16.msra.mxu0 %v6004
    %6333 = vmatprep.subr.bf16.mxu0 0
    %6334 = vmatpush1.bf16.msra.mxu0 %v6005
    %6335 = vmatprep.subr.bf16.mxu0 0
    %6336 = vmatpush1.bf16.msra.mxu0 %v6006
    %6337 = vmatprep.subr.bf16.mxu0 0
    %6338 = vmatpush1.bf16.msra.mxu0 %v6007
    %6339 = vmatprep.subr.bf16.mxu0 0
    %6340 = vmatpush1.bf16.msra.mxu0 %v6008
    %6341 = vmatprep.subr.bf16.mxu0 0
    %6342 = vmatpush1.bf16.msra.mxu0 %v6009
    %6343 = vmatprep.subr.bf16.mxu0 0
    %6344 = vmatpush1.bf16.msra.mxu0 %v6010
    %6345 = vmatprep.subr.bf16.mxu0 0
    %6346 = vmatpush1.bf16.msra.mxu0 %v6011
    %6347 = vmatprep.subr.bf16.mxu0 0
    %6348 = vmatpush1.bf16.msra.mxu0 %v6012
    %6349 = vmatprep.mubr.bf16.mxu0 %v6272
    %6350 = vmatmul.mubr.bf16.gmra.mrb[0].mxu0 %v6262
    %v6351 = vpop.f32.mrb[0].mxu0
    %v6352 = vadd.f32 %v5923, %v6351
    %v6353 = vpop.f32.mrb[0].mxu0
    %v6354 = vpop.f32.mrb[0].mxu0
    %v6355 = vadd.f32 %v5923, %v6354
    %v6356 = vpop.f32.mrb[0].mxu0
    %6357 = vmatprep.mubr.bf16.mxu0 %v6298
    %6358 = vmatmul.mubr.bf16.gmra.mrb[0].mxu0 %v6291
    %v6359 = vpop.f32.mrb[0].mxu0
    %v6360 = vadd.f32 %v5923, %v6359
    %v6361 = vpop.f32.mrb[0].mxu0
    %v6362 = vpop.f32.mrb[0].mxu0
    %v6363 = vadd.f32 %v5923, %v6362
    %v6364 = vpop.f32.mrb[0].mxu0
    %6365 = vdwg.mxu0
    %6366 = vmatprep.subr.bf16.mxu0 0
    %6367 = vmatpush1.bf16.msra.mxu0 %v6013
    %6368 = vmatprep.subr.bf16.mxu0 0
    %6369 = vmatpush1.bf16.msra.mxu0 %v6014
    %6370 = vmatprep.subr.bf16.mxu0 0
    %6371 = vmatpush1.bf16.msra.mxu0 0
    %6372 = vmatprep.subr.bf16.mxu0 0
    %6373 = vmatpush1.bf16.msra.mxu0 0
    %6374 = vmatprep.subr.bf16.mxu0 0
    %6375 = vmatpush1.bf16.msra.mxu0 0
    %6376 = vmatprep.subr.bf16.mxu0 0
    %6377 = vmatpush1.bf16.msra.mxu0 0
    %6378 = vmatprep.subr.bf16.mxu0 0
    %6379 = vmatpush1.bf16.msra.mxu0 0
    %6380 = vmatprep.subr.bf16.mxu0 0
    %6381 = vmatpush1.bf16.msra.mxu0 0
    %6382 = vmatprep.subr.bf16.mxu0 0
    %6383 = vmatpush1.bf16.msra.mxu0 0
    %6384 = vmatprep.subr.bf16.mxu0 0
    %6385 = vmatpush1.bf16.msra.mxu0 0
    %6386 = vmatprep.subr.bf16.mxu0 0
    %6387 = vmatpush1.bf16.msra.mxu0 0
    %6388 = vmatprep.subr.bf16.mxu0 0
    %6389 = vmatpush1.bf16.msra.mxu0 0
    %6390 = vmatprep.subr.bf16.mxu0 0
    %6391 = vmatpush1.bf16.msra.mxu0 0
    %6392 = vmatprep.subr.bf16.mxu0 0
    %6393 = vmatpush1.bf16.msra.mxu0 0
    %6394 = vmatprep.subr.bf16.mxu0 0
    %6395 = vmatpush1.bf16.msra.mxu0 0
    %6396 = vmatprep.subr.bf16.mxu0 0
    %6397 = vmatpush1.bf16.msra.mxu0 0
    %6398 = vmatprep.mubr.bf16.mxu0 0
    %6399 = vmatmul.mubr.bf16.gmra.mrb[0].mxu0 %v6312
    %v6400 = vpop.f32.mrb[0].mxu0
    %v6401 = vadd.f32 %v6352, %v6400
    %v6402 = vpop.f32.mrb[0].mxu0
    %v6403 = vpop.f32.mrb[0].mxu0
    %v6404 = vadd.f32 %v6355, %v6403
    %v6405 = vpop.f32.mrb[0].mxu0
    %6406 = vmatprep.mubr.bf16.mxu0 0
    %6407 = vmatmul.mubr.bf16.gmra.mrb[0].mxu0 %v6315
    %v6408 = vpop.f32.mrb[0].mxu0
    %v6409 = vadd.f32 %v6360, %v6408
    %v6410 = vpop.f32.mrb[0].mxu0
    %v6411 = vpop.f32.mrb[0].mxu0
    %v6412 = vadd.f32 %v6363, %v6411
    %v6413 = vpop.f32.mrb[0].mxu0
    %6414 = vdwg.mxu0
    %v6415 = vmul.bf16 %v5770, %v924
    %v6416 = vmul.bf16 %v5766, %v925
    %v6417 = vmul.bf16 %v5771, %v926
    %v6418 = vmul.bf16 %v5770, %v995
    %v6419 = vmul.bf16 %v5766, %v1004
    %v6420 = vmul.bf16 %v5771, %v1003
    %6421 = vrot.lane.b32.xlu0 %v5777, 96
    %v6422 = vpop.permute.xlu0 %6421
    %6423 = vrot.lane.b32.xlu0 %v5778, 96
    %v6424 = vpop.permute.xlu0 %6423
    %6425 = vrot.lane.b32.xlu0 %v5779, 96
    %v6426 = vpop.permute.xlu0 %6425
    %v6427 = vrot.slane %v5826, 1
    %v6428 = vor.u32 %v5823, %v6427
    %v6429 = vrot.slane %v5834, 1
    %v6430 = vsel %vm1078, %v6428, %v6429
    %v6431 = vor.u32 %v5831, %v6429
    %v6432 = vrot.slane %v5843, 1
    %v6433 = vsel %vm1078, %v6431, %v6432
    %v6434 = vor.u32 %v5840, %v6432
    %6435 = vrot.lane.b32.xlu0 %v6430, 32
    %v6436 = vpop.permute.xlu0 %6435
    %6437 = vrot.lane.b32.xlu0 %v6433, 32
    %v6438 = vpop.permute.xlu0 %6437
    %6439 = vrot.lane.b32.xlu0 %v6434, 32
    %v6440 = vpop.permute.xlu0 %6439
    %6441 = vrot.lane.b32.xlu0 %v6430, 64
    %v6442 = vpop.permute.xlu0 %6441
    %6443 = vrot.lane.b32.xlu0 %v6433, 64
    %v6444 = vpop.permute.xlu0 %6443
    %6445 = vrot.lane.b32.xlu0 %v6434, 64
    %v6446 = vpop.permute.xlu0 %6445
    %v6450 = vrot.slane %v6415, 2
    %v6451 = vrot.slane %v6416, 2
    %v6452 = vsel %vm1143, %v6450, %v6451
    %v6453 = vrot.slane %v6417, 2
    %v6454 = vsel %vm1143, %v6451, %v6453
    %6455 = vrot.lane.b32.xlu0 %v6452, 32
    %v6456 = vpop.permute.xlu0 %6455
    %6457 = vrot.lane.b32.xlu0 %v6454, 32
    %v6458 = vpop.permute.xlu0 %6457
    %6459 = vrot.lane.b32.xlu0 %v6453, 32
    %v6460 = vpop.permute.xlu0 %6459
    %v6462 = vshrl.u32 %v6418, 16
    %v6464 = vrot.slane %v6462, 2
    %v6465 = vshll.u32 %v6418, 16
    %v6467 = vrot.slane %v6465, 3
    %v6468 = vor.u32 %v6464, %v6467
    %v6470 = vshrl.u32 %v6419, 16
    %v6472 = vrot.slane %v6470, 2
    %v6473 = vshll.u32 %v6419, 16
    %v6475 = vrot.slane %v6473, 3
    %v6476 = vor.u32 %v6472, %v6475
    %v6477 = vsel %vm1149, %v6468, %v6476
    %v6479 = vshrl.u32 %v6420, 16
    %v6481 = vrot.slane %v6479, 2
    %v6482 = vshll.u32 %v6420, 16
    %v6484 = vrot.slane %v6482, 3
    %v6485 = vor.u32 %v6481, %v6484
    %v6486 = vsel %vm1149, %v6476, %v6485
    %6487 = vrot.lane.b32.xlu0 %v6477, 96
    %v6488 = vpop.permute.xlu0 %6487
    %6489 = vrot.lane.b32.xlu0 %v6486, 96
    %v6490 = vpop.permute.xlu0 %6489
    %6491 = vrot.lane.b32.xlu0 %v6485, 96
    %v6492 = vpop.permute.xlu0 %6491
    %v6495 = vsel %vm1384, %v6422, %v6436
    %v6498 = vsel %vm1384, %v6424, %v6438
    %v6501 = vsel %vm1384, %v6426, %v6440
    %v6502 = vsel %vm1391, %v6495, %v6436
    %v6503 = vsel %vm1391, %v6498, %v6438
    %v6504 = vsel %vm1391, %v6501, %v6440
    %v6506 = vsel %vm1396, %v6502, %v5777
    %v6508 = vsel %vm1396, %v6503, %v5778
    %v6510 = vsel %vm1396, %v6504, %v5779
    %v6515 = vsel %vm1391, %v6442, %v6456
    %v6517 = vsel %vm1391, %v6444, %v6458
    %v6519 = vsel %vm1391, %v6446, %v6460
    %v6521 = vsel %vm1396, %v6515, %v6488
    %v6523 = vsel %vm1396, %v6517, %v6490
    %v6525 = vsel %vm1396, %v6519, %v6492
    %v6532 = vrot.slane %v6506, 2
    %v6533 = vrot.slane %v6508, 2
    %v6534 = vsel %vm1143, %v6532, %v6533
    %v6535 = vrot.slane %v6521, 2
    %v6536 = vrot.slane %v6523, 2
    %v6537 = vsel %vm1143, %v6535, %v6536
    %v6538 = vrot.slane %v6488, 2
    %v6539 = vrot.slane %v6490, 2
    %v6540 = vsel %vm1143, %v6538, %v6539
    %v6541 = vrot.slane %v6510, 2
    %v6542 = vsel %vm1143, %v6533, %v6541
    %v6543 = vrot.slane %v6525, 2
    %v6544 = vsel %vm1143, %v6536, %v6543
    %v6545 = vrot.slane %v6492, 2
    %v6546 = vsel %vm1143, %v6539, %v6545
    %v6552 = vsel %vm1384, %v6540, 0
    %v6555 = vsel %vm1384, %v6546, 0
    %6557 = vmatprep.subr.bf16.mxu0 0
    %6558 = vmatpush1.bf16.msra.mxu0 %v5997
    %6559 = vmatprep.subr.bf16.mxu0 0
    %6560 = vmatpush1.bf16.msra.mxu0 %v5998
    %6561 = vmatprep.subr.bf16.mxu0 0
    %6562 = vmatpush1.bf16.msra.mxu0 %v5999
    %6563 = vmatprep.subr.bf16.mxu0 0
    %6564 = vmatpush1.bf16.msra.mxu0 %v6000
    %6565 = vmatprep.subr.bf16.mxu0 0
    %6566 = vmatpush1.bf16.msra.mxu0 %v6001
    %6567 = vmatprep.subr.bf16.mxu0 0
    %6568 = vmatpush1.bf16.msra.mxu0 %v6002
    %6569 = vmatprep.subr.bf16.mxu0 0
    %6570 = vmatpush1.bf16.msra.mxu0 %v6003
    %6571 = vmatprep.subr.bf16.mxu0 0
    %6572 = vmatpush1.bf16.msra.mxu0 %v6004
    %6573 = vmatprep.subr.bf16.mxu0 0
    %6574 = vmatpush1.bf16.msra.mxu0 %v6005
    %6575 = vmatprep.subr.bf16.mxu0 0
    %6576 = vmatpush1.bf16.msra.mxu0 %v6006
    %6577 = vmatprep.subr.bf16.mxu0 0
    %6578 = vmatpush1.bf16.msra.mxu0 %v6007
    %6579 = vmatprep.subr.bf16.mxu0 0
    %6580 = vmatpush1.bf16.msra.mxu0 %v6008
    %6581 = vmatprep.subr.bf16.mxu0 0
    %6582 = vmatpush1.bf16.msra.mxu0 %v6009
    %6583 = vmatprep.subr.bf16.mxu0 0
    %6584 = vmatpush1.bf16.msra.mxu0 %v6010
    %6585 = vmatprep.subr.bf16.mxu0 0
    %6586 = vmatpush1.bf16.msra.mxu0 %v6011
    %6587 = vmatprep.subr.bf16.mxu0 0
    %6588 = vmatpush1.bf16.msra.mxu0 %v6012
    %6589 = vmatprep.mubr.bf16.mxu0 %v6537
    %6590 = vmatmul.mubr.bf16.gmra.mrb[0].mxu0 %v6534
    %v6591 = vpop.f32.mrb[0].mxu0
    %v6592 = vadd.f32 %v5923, %v6591
    %v6593 = vpop.f32.mrb[0].mxu0
    %v6594 = vpop.f32.mrb[0].mxu0
    %v6595 = vadd.f32 %v5923, %v6594
    %v6596 = vpop.f32.mrb[0].mxu0
    %6597 = vmatprep.mubr.bf16.mxu0 %v6544
    %6598 = vmatmul.mubr.bf16.gmra.mrb[0].mxu0 %v6542
    %v6599 = vpop.f32.mrb[0].mxu0
    %v6600 = vadd.f32 %v5923, %v6599
    %v6601 = vpop.f32.mrb[0].mxu0
    %v6602 = vpop.f32.mrb[0].mxu0
    %v6603 = vadd.f32 %v5923, %v6602
    %v6604 = vpop.f32.mrb[0].mxu0
    %6605 = vdwg.mxu0
    %6606 = vmatprep.subr.bf16.mxu0 0
    %6607 = vmatpush1.bf16.msra.mxu0 %v6013
    %6608 = vmatprep.subr.bf16.mxu0 0
    %6609 = vmatpush1.bf16.msra.mxu0 %v6014
    %6610 = vmatprep.subr.bf16.mxu0 0
    %6611 = vmatpush1.bf16.msra.mxu0 0
    %6612 = vmatprep.subr.bf16.mxu0 0
    %6613 = vmatpush1.bf16.msra.mxu0 0
    %6614 = vmatprep.subr.bf16.mxu0 0
    %6615 = vmatpush1.bf16.msra.mxu0 0
    %6616 = vmatprep.subr.bf16.mxu0 0
    %6617 = vmatpush1.bf16.msra.mxu0 0
    %6618 = vmatprep.subr.bf16.mxu0 0
    %6619 = vmatpush1.bf16.msra.mxu0 0
    %6620 = vmatprep.subr.bf16.mxu0 0
    %6621 = vmatpush1.bf16.msra.mxu0 0
    %6622 = vmatprep.subr.bf16.mxu0 0
    %6623 = vmatpush1.bf16.msra.mxu0 0
    %6624 = vmatprep.subr.bf16.mxu0 0
    %6625 = vmatpush1.bf16.msra.mxu0 0
    %6626 = vmatprep.subr.bf16.mxu0 0
    %6627 = vmatpush1.bf16.msra.mxu0 0
    %6628 = vmatprep.subr.bf16.mxu0 0
    %6629 = vmatpush1.bf16.msra.mxu0 0
    %6630 = vmatprep.subr.bf16.mxu0 0
    %6631 = vmatpush1.bf16.msra.mxu0 0
    %6632 = vmatprep.subr.bf16.mxu0 0
    %6633 = vmatpush1.bf16.msra.mxu0 0
    %6634 = vmatprep.subr.bf16.mxu0 0
    %6635 = vmatpush1.bf16.msra.mxu0 0
    %6636 = vmatprep.subr.bf16.mxu0 0
    %6637 = vmatpush1.bf16.msra.mxu0 0
    %6638 = vmatprep.mubr.bf16.mxu0 0
    %6639 = vmatmul.mubr.bf16.gmra.mrb[0].mxu0 %v6552
    %v6640 = vpop.f32.mrb[0].mxu0
    %v6641 = vadd.f32 %v6592, %v6640
    %v6642 = vpop.f32.mrb[0].mxu0
    %v6643 = vpop.f32.mrb[0].mxu0
    %v6644 = vadd.f32 %v6595, %v6643
    %v6645 = vpop.f32.mrb[0].mxu0
    %6646 = vmatprep.mubr.bf16.mxu0 0
    %6647 = vmatmul.mubr.bf16.gmra.mrb[0].mxu0 %v6555
    %v6648 = vpop.f32.mrb[0].mxu0
    %v6649 = vadd.f32 %v6600, %v6648
    %v6650 = vpop.f32.mrb[0].mxu0
    %v6651 = vpop.f32.mrb[0].mxu0
    %v6652 = vadd.f32 %v6603, %v6651
    %v6653 = vpop.f32.mrb[0].mxu0
    %6654 = vdwg.mxu0
    %v6655 = vmul.bf16 %v5770, %v1069
    %v6656 = vmul.bf16 %v5766, %v1071
    %v6657 = vmul.bf16 %v5771, %v1070
    %v6658 = vrot.slane %v6189, 1
    %v6659 = vor.u32 %v6186, %v6658
    %v6660 = vrot.slane %v6197, 1
    %v6661 = vsel %vm1078, %v6659, %v6660
    %v6662 = vor.u32 %v6194, %v6660
    %v6663 = vrot.slane %v6206, 1
    %v6664 = vsel %vm1078, %v6662, %v6663
    %v6665 = vor.u32 %v6203, %v6663
    %6666 = vrot.lane.b32.xlu0 %v6661, 64
    %v6667 = vpop.permute.xlu0 %6666
    %6668 = vrot.lane.b32.xlu0 %v6664, 64
    %v6669 = vpop.permute.xlu0 %6668
    %6670 = vrot.lane.b32.xlu0 %v6665, 64
    %v6671 = vpop.permute.xlu0 %6670
    %6672 = vrot.lane.b32.xlu0 %v5770, 32
    %v6673 = vpop.permute.xlu0 %6672
    %6674 = vrot.lane.b32.xlu0 %v5766, 32
    %v6675 = vpop.permute.xlu0 %6674
    %6676 = vrot.lane.b32.xlu0 %v5771, 32
    %v6677 = vpop.permute.xlu0 %6676
    %6678 = vrot.lane.b32.xlu0 %v6661, 96
    %v6679 = vpop.permute.xlu0 %6678
    %6680 = vrot.lane.b32.xlu0 %v6664, 96
    %v6681 = vpop.permute.xlu0 %6680
    %6682 = vrot.lane.b32.xlu0 %v6665, 96
    %v6683 = vpop.permute.xlu0 %6682
    %v6687 = vrot.slane %v6418, 2
    %v6688 = vrot.slane %v6419, 2
    %v6689 = vsel %vm1143, %v6687, %v6688
    %v6690 = vrot.slane %v6420, 2
    %v6691 = vsel %vm1143, %v6688, %v6690
    %6692 = vrot.lane.b32.xlu0 %v6689, 64
    %v6693 = vpop.permute.xlu0 %6692
    %6694 = vrot.lane.b32.xlu0 %v6691, 64
    %v6695 = vpop.permute.xlu0 %6694
    %6696 = vrot.lane.b32.xlu0 %v6690, 64
    %v6697 = vpop.permute.xlu0 %6696
    %v6699 = vshrl.u32 %v6655, 16
    %v6701 = vrot.slane %v6699, 2
    %v6702 = vshll.u32 %v6655, 16
    %v6704 = vrot.slane %v6702, 3
    %v6705 = vor.u32 %v6701, %v6704
    %v6707 = vshrl.u32 %v6656, 16
    %v6709 = vrot.slane %v6707, 2
    %v6710 = vshll.u32 %v6656, 16
    %v6712 = vrot.slane %v6710, 3
    %v6713 = vor.u32 %v6709, %v6712
    %v6714 = vsel %vm1149, %v6705, %v6713
    %v6716 = vshrl.u32 %v6657, 16
    %v6718 = vrot.slane %v6716, 2
    %v6719 = vshll.u32 %v6657, 16
    %v6721 = vrot.slane %v6719, 3
    %v6722 = vor.u32 %v6718, %v6721
    %v6723 = vsel %vm1149, %v6713, %v6722
    %v6725 = vsel %vm1391, %v5770, %v6667
    %v6727 = vsel %vm1391, %v5766, %v6669
    %v6729 = vsel %vm1391, %v5771, %v6671
    %v6731 = vsel %vm1396, %v6725, %v6673
    %v6733 = vsel %vm1396, %v6727, %v6675
    %v6735 = vsel %vm1396, %v6729, %v6677
    %v6737 = vsel %vm1384, %v6673, %v6679
    %v6739 = vsel %vm1384, %v6675, %v6681
    %v6741 = vsel %vm1384, %v6677, %v6683
    %v6743 = vsel %vm1391, %v6737, %v6693
    %v6745 = vsel %vm1391, %v6739, %v6695
    %v6747 = vsel %vm1391, %v6741, %v6697
    %v6748 = vsel %vm1396, %v6743, %v6693
    %v6749 = vsel %vm1396, %v6745, %v6695
    %v6750 = vsel %vm1396, %v6747, %v6697
    %v6751 = vshrl.u32 %v6731, 16
    %v6753 = vrot.slane %v6751, 2
    %v6754 = vshll.u32 %v6731, 16
    %v6756 = vrot.slane %v6754, 3
    %v6757 = vor.u32 %v6753, %v6756
    %v6758 = vshrl.u32 %v6733, 16
    %v6760 = vrot.slane %v6758, 2
    %v6761 = vshll.u32 %v6733, 16
    %v6763 = vrot.slane %v6761, 3
    %v6764 = vor.u32 %v6760, %v6763
    %v6765 = vsel %vm1149, %v6757, %v6764
    %v6766 = vshrl.u32 %v6748, 16
    %v6768 = vrot.slane %v6766, 2
    %v6769 = vshll.u32 %v6748, 16
    %v6771 = vrot.slane %v6769, 3
    %v6772 = vor.u32 %v6768, %v6771
    %v6773 = vshrl.u32 %v6749, 16
    %v6775 = vrot.slane %v6773, 2
    %v6776 = vshll.u32 %v6749, 16
    %v6778 = vrot.slane %v6776, 3
    %v6779 = vor.u32 %v6775, %v6778
    %v6780 = vsel %vm1149, %v6772, %v6779
    %v6782 = vshrl.u32 %v6714, 16
    %v6784 = vrot.slane %v6782, 2
    %v6785 = vshll.u32 %v6714, 16
    %v6787 = vrot.slane %v6785, 3
    %v6788 = vor.u32 %v6784, %v6787
    %v6790 = vshrl.u32 %v6723, 16
    %v6792 = vrot.slane %v6790, 2
    %v6793 = vshll.u32 %v6723, 16
    %v6795 = vrot.slane %v6793, 3
    %v6796 = vor.u32 %v6792, %v6795
    %v6797 = vsel %vm1149, %v6788, %v6796
    %v6798 = vshrl.u32 %v6735, 16
    %v6800 = vrot.slane %v6798, 2
    %v6801 = vshll.u32 %v6735, 16
    %v6803 = vrot.slane %v6801, 3
    %v6804 = vor.u32 %v6800, %v6803
    %v6805 = vsel %vm1149, %v6764, %v6804
    %v6806 = vshrl.u32 %v6750, 16
    %v6808 = vrot.slane %v6806, 2
    %v6809 = vshll.u32 %v6750, 16
    %v6811 = vrot.slane %v6809, 3
    %v6812 = vor.u32 %v6808, %v6811
    %v6813 = vsel %vm1149, %v6779, %v6812
    %v6815 = vshrl.u32 %v6722, 16
    %v6817 = vrot.slane %v6815, 2
    %v6818 = vshll.u32 %v6722, 16
    %v6820 = vrot.slane %v6818, 3
    %v6821 = vor.u32 %v6817, %v6820
    %v6822 = vsel %vm1149, %v6796, %v6821
    %v6828 = vsel %vm1384, %v6797, 0
    %v6831 = vsel %vm1384, %v6822, 0
    %6833 = vmatprep.subr.bf16.mxu0 0
    %6834 = vmatpush1.bf16.msra.mxu0 %v5997
    %6835 = vmatprep.subr.bf16.mxu0 0
    %6836 = vmatpush1.bf16.msra.mxu0 %v5998
    %6837 = vmatprep.subr.bf16.mxu0 0
    %6838 = vmatpush1.bf16.msra.mxu0 %v5999
    %6839 = vmatprep.subr.bf16.mxu0 0
    %6840 = vmatpush1.bf16.msra.mxu0 %v6000
    %6841 = vmatprep.subr.bf16.mxu0 0
    %6842 = vmatpush1.bf16.msra.mxu0 %v6001
    %6843 = vmatprep.subr.bf16.mxu0 0
    %6844 = vmatpush1.bf16.msra.mxu0 %v6002
    %6845 = vmatprep.subr.bf16.mxu0 0
    %6846 = vmatpush1.bf16.msra.mxu0 %v6003
    %6847 = vmatprep.subr.bf16.mxu0 0
    %6848 = vmatpush1.bf16.msra.mxu0 %v6004
    %6849 = vmatprep.subr.bf16.mxu0 0
    %6850 = vmatpush1.bf16.msra.mxu0 %v6005
    %6851 = vmatprep.subr.bf16.mxu0 0
    %6852 = vmatpush1.bf16.msra.mxu0 %v6006
    %6853 = vmatprep.subr.bf16.mxu0 0
    %6854 = vmatpush1.bf16.msra.mxu0 %v6007
    %6855 = vmatprep.subr.bf16.mxu0 0
    %6856 = vmatpush1.bf16.msra.mxu0 %v6008
    %6857 = vmatprep.subr.bf16.mxu0 0
    %6858 = vmatpush1.bf16.msra.mxu0 %v6009
    %6859 = vmatprep.subr.bf16.mxu0 0
    %6860 = vmatpush1.bf16.msra.mxu0 %v6010
    %6861 = vmatprep.subr.bf16.mxu0 0
    %6862 = vmatpush1.bf16.msra.mxu0 %v6011
    %6863 = vmatprep.subr.bf16.mxu0 0
    %6864 = vmatpush1.bf16.msra.mxu0 %v6012
    %6865 = vmatprep.mubr.bf16.mxu0 %v6780
    %6866 = vmatmul.mubr.bf16.gmra.mrb[0].mxu0 %v6765
    %v6867 = vpop.f32.mrb[0].mxu0
    %v6868 = vadd.f32 %v5923, %v6867
    %v6869 = vpop.f32.mrb[0].mxu0
    %v6870 = vpop.f32.mrb[0].mxu0
    %v6871 = vadd.f32 %v5923, %v6870
    %v6872 = vpop.f32.mrb[0].mxu0
    %6873 = vmatprep.mubr.bf16.mxu0 %v6813
    %6874 = vmatmul.mubr.bf16.gmra.mrb[0].mxu0 %v6805
    %v6875 = vpop.f32.mrb[0].mxu0
    %v6876 = vadd.f32 %v5923, %v6875
    %v6877 = vpop.f32.mrb[0].mxu0
    %v6878 = vpop.f32.mrb[0].mxu0
    %v6879 = vadd.f32 %v5923, %v6878
    %v6880 = vpop.f32.mrb[0].mxu0
    %6881 = vdwg.mxu0
    %6882 = vmatprep.subr.bf16.mxu0 0
    %6883 = vmatpush1.bf16.msra.mxu0 %v6013
    %6884 = vmatprep.subr.bf16.mxu0 0
    %6885 = vmatpush1.bf16.msra.mxu0 %v6014
    %6886 = vmatprep.subr.bf16.mxu0 0
    %6887 = vmatpush1.bf16.msra.mxu0 0
    %6888 = vmatprep.subr.bf16.mxu0 0
    %6889 = vmatpush1.bf16.msra.mxu0 0
    %6890 = vmatprep.subr.bf16.mxu0 0
    %6891 = vmatpush1.bf16.msra.mxu0 0
    %6892 = vmatprep.subr.bf16.mxu0 0
    %6893 = vmatpush1.bf16.msra.mxu0 0
    %6894 = vmatprep.subr.bf16.mxu0 0
    %6895 = vmatpush1.bf16.msra.mxu0 0
    %6896 = vmatprep.subr.bf16.mxu0 0
    %6897 = vmatpush1.bf16.msra.mxu0 0
    %6898 = vmatprep.subr.bf16.mxu0 0
    %6899 = vmatpush1.bf16.msra.mxu0 0
    %6900 = vmatprep.subr.bf16.mxu0 0
    %6901 = vmatpush1.bf16.msra.mxu0 0
    %6902 = vmatprep.subr.bf16.mxu0 0
    %6903 = vmatpush1.bf16.msra.mxu0 0
    %6904 = vmatprep.subr.bf16.mxu0 0
    %6905 = vmatpush1.bf16.msra.mxu0 0
    %6906 = vmatprep.subr.bf16.mxu0 0
    %6907 = vmatpush1.bf16.msra.mxu0 0
    %6908 = vmatprep.subr.bf16.mxu0 0
    %6909 = vmatpush1.bf16.msra.mxu0 0
    %6910 = vmatprep.subr.bf16.mxu0 0
    %6911 = vmatpush1.bf16.msra.mxu0 0
    %6912 = vmatprep.subr.bf16.mxu0 0
    %6913 = vmatpush1.bf16.msra.mxu0 0
    %6914 = vmatprep.mubr.bf16.mxu0 0
    %6915 = vmatmul.mubr.bf16.gmra.mrb[0].mxu0 %v6828
    %v6916 = vpop.f32.mrb[0].mxu0
    %v6917 = vadd.f32 %v6868, %v6916
    %v6918 = vpop.f32.mrb[0].mxu0
    %v6919 = vpop.f32.mrb[0].mxu0
    %v6920 = vadd.f32 %v6871, %v6919
    %v6921 = vpop.f32.mrb[0].mxu0
    %6922 = vmatprep.mubr.bf16.mxu0 0
    %6923 = vmatmul.mubr.bf16.gmra.mrb[0].mxu0 %v6831
    %v6924 = vpop.f32.mrb[0].mxu0
    %v6925 = vadd.f32 %v6876, %v6924
    %v6926 = vpop.f32.mrb[0].mxu0
    %v6927 = vpop.f32.mrb[0].mxu0
    %v6928 = vadd.f32 %v6879, %v6927
    %v6929 = vpop.f32.mrb[0].mxu0
    %6930 = vdwg.mxu0
    %6935 = vrot.lane.b32.xlu0 %v6401, 12
    %v6936 = vpop.permute.xlu0 %6935
    %6937 = vrot.lane.b32.xlu0 %v6404, 12
    %v6938 = vpop.permute.xlu0 %6937
    %6939 = vrot.lane.b32.xlu0 %v6409, 12
    %v6940 = vpop.permute.xlu0 %6939
    %6941 = vrot.lane.b32.xlu0 %v6412, 12
    %v6942 = vpop.permute.xlu0 %6941
    %6951 = vrot.lane.b32.xlu0 %v6641, 24
    %v6952 = vpop.permute.xlu0 %6951
    %6953 = vrot.lane.b32.xlu0 %v6644, 24
    %v6954 = vpop.permute.xlu0 %6953
    %6955 = vrot.lane.b32.xlu0 %v6649, 24
    %v6956 = vpop.permute.xlu0 %6955
    %6957 = vrot.lane.b32.xlu0 %v6652, 24
    %v6958 = vpop.permute.xlu0 %6957
    %6967 = vrot.lane.b32.xlu0 %v6917, 36
    %v6968 = vpop.permute.xlu0 %6967
    %6969 = vrot.lane.b32.xlu0 %v6920, 36
    %v6970 = vpop.permute.xlu0 %6969
    %6971 = vrot.lane.b32.xlu0 %v6925, 36
    %v6972 = vpop.permute.xlu0 %6971
    %6973 = vrot.lane.b32.xlu0 %v6928, 36
    %v6974 = vpop.permute.xlu0 %6973
    %vm6979 = vcmask 97280
    %v6980 = vsel %vm6979, %v6121, %v6936
    %v6981 = vsel %vm6979, %v6124, %v6938
    %v6982 = vsel %vm6979, %v6129, %v6940
    %v6983 = vsel %vm6979, %v6132, %v6942
    %vm6984 = vcmask 195584
    %v6985 = vsel %vm6984, %v6980, %v6952
    %v6986 = vsel %vm6984, %v6981, %v6954
    %v6987 = vsel %vm6984, %v6982, %v6956
    %v6988 = vsel %vm6984, %v6983, %v6958
    %vm6989 = vcmask 293888
    %v6990 = vsel %vm6989, %v6985, %v6968
    %v6991 = vsel %vm6989, %v6986, %v6970
    %v6992 = vsel %vm6989, %v6987, %v6972
    %v6993 = vsel %vm6989, %v6988, %v6974
    %6994 = vst.msk [vmem:[%s69] sm:$0xff] %vm285, %v6990
    %6995 = vst.msk [vmem:[%s69 + $0x8] sm:$0xff] %vm285, %v6991
    %6996 = vst.msk [vmem:[%s69 + $0x10] sm:$0xff] %vm285, %v6992
    %6997 = vst.msk [vmem:[%s69 + $0x18] sm:$0xff] %vm285, %v6993
    // Predicated region
    $region130: #{vqvae_forward.1} parent=1 // pred_check
      _
    $region131: #{vqvae_forward.1} parent=1 // pred_check_branch
      %6999 = sbr.rel (0) target = $region133
    $region132: #{vqvae_forward.1} parent=1 // pred_region
      %s7001 = ssub.s32 512, 512
      %7002 = vsyncadd [#allocation3], %s7001
      %s7003 = sshll.u32 [#allocation2], 4
      %s7004 = int_to_ptr.vmem [resolvable:$true] %s7003
      %7009 = dma.vmem_to_hbm [thread:$0]  %s7004, 512, %s65, [#allocation3], 128, 128, 8
    $region133: #{vqvae_forward.1} parent=1 // pred_fallthru
      _
    // Predicated region
    $region134: #{vqvae_forward.1} parent=1 // pred_check
      _
    $region135: #{vqvae_forward.1} parent=1 // pred_check_branch
      %7011 = sbr.rel (0) target = $region137
    $region136: #{vqvae_forward.1} parent=1 // pred_region
      %s7013 = ssub.s32 512, 512
      %7014 = vsyncadd [#allocation5], %s7013
      %s7015 = sshll.u32 [#allocation4], 4
      %s7016 = int_to_ptr.vmem [resolvable:$true] %s7015
      %7021 = dma.vmem_to_hbm [thread:$0]  %s7016, 512, %s67, [#allocation5], 128, 128, 8
    $region137: #{vqvae_forward.1} parent=1 // pred_fallthru
      _
    // Predicated region
    $region138: #{vqvae_forward.1} parent=1 // pred_check
      _
    $region139: #{vqvae_forward.1} parent=1 // pred_check_branch
      %7023 = sbr.rel (0) target = $region141
    $region140: #{vqvae_forward.1} parent=1 // pred_region
      _
    $region141: #{vqvae_forward.1} parent=1 // pred_fallthru
      _
    // Predicated region
    $region142: #{vqvae_forward.1} parent=1 // pred_check
      _
    $region143: #{vqvae_forward.1} parent=1 // pred_check_branch
      %7025 = sbr.rel (0) target = $region145
    $region144: #{vqvae_forward.1} parent=1 // pred_region
      %7026 = dma.done [#allocation3], 512
    $region145: #{vqvae_forward.1} parent=1 // pred_fallthru
      _
    // Predicated region
    $region146: #{vqvae_forward.1} parent=1 // pred_check
      _
    $region147: #{vqvae_forward.1} parent=1 // pred_check_branch
      %7028 = sbr.rel (0) target = $region149
    $region148: #{vqvae_forward.1} parent=1 // pred_region
      %7029 = dma.done [#allocation5], 512
    $region149: #{vqvae_forward.1} parent=1 // pred_fallthru
      _
    // Predicated region
    $region150: #{vqvae_forward.1} parent=1 // pred_check
      _
    $region151: #{vqvae_forward.1} parent=1 // pred_check_branch
      %7031 = sbr.rel (0) target = $region153
    $region152: #{vqvae_forward.1} parent=1 // pred_region
      _
    $region153: #{vqvae_forward.1} parent=1 // pred_fallthru
      _
    %7032 = vsyncpa [#allocation3], 1
    %7033 = vsyncpa [#allocation5], 1

</llo_original>
